<compile_context>
chip_gen: v7x
topology: tpu7x:2x2x1
jax: 0.10.0
libtpu: 0.0.40
codegen_flags: <defaults>
</compile_context>

<pallas_src>
import functools
import math

import jax
import jax.numpy as jnp
from jax.experimental import pallas as pl
from jax.experimental.pallas import tpu as pltpu

N_HEAD = 4      # nn.TransformerEncoderLayer(nhead=4)
D_MODEL = 256
D_FF = 512
K_MAX = 15      # largest conv kernel (global_conv); smaller taps are centered.


def _row_tiles(M, row_tile=512):
    tm = min(M, row_tile)
    # Give v7x's second TensorCore work when the whole problem fits one tile;
    # the extra grid step costs ~0.35us on single-core chips (v5e/v6e).
    if tm == M and M >= 16 and (M // 2) % 8 == 0:
        tm = M // 2
    return tm, (pl.cdiv(M, tm),)


# ----------------------------------------------------------------------------
# Fused conv (4 branches, folded BN) + ReLU + Max/Avg pool(2,2) kernel
# ----------------------------------------------------------------------------

def _conv_pool_kernel(pe_ref, po_ref, w_ref, b_ref, o_ref, *, n_maxpool):
    """pe/po: (tl, K*Cin) bf16 patches for even/odd positions; w: (K*Cin, 512)."""
    w = w_ref[...]
    bias = b_ref[...]
    a0 = jnp.maximum(
        jnp.dot(pe_ref[...], w, preferred_element_type=jnp.float32) + bias, 0.0)
    a1 = jnp.maximum(
        jnp.dot(po_ref[...], w, preferred_element_type=jnp.float32) + bias, 0.0)
    # Channel order [fine1|fine2|mid|global]: first n_maxpool (=128, lane
    # aligned) columns -> MaxPool(2); remaining columns -> AvgPool(2).
    o_ref[:, :n_maxpool] = jnp.maximum(a0[:, :n_maxpool], a1[:, :n_maxpool])
    o_ref[:, n_maxpool:] = 0.5 * (a0[:, n_maxpool:] + a1[:, n_maxpool:])


def conv_pool(pe, po, w, b, *, n_maxpool, row_tile=512):
    B, L2, KC = pe.shape
    Ctot = w.shape[1]
    tl = min(L2, row_tile)        # bounds per-step VMEM (v7x: 64 MiB physical)
    grid = (B, pl.cdiv(L2, tl))
    return pl.pallas_call(
        functools.partial(_conv_pool_kernel, n_maxpool=n_maxpool),
        out_shape=jax.ShapeDtypeStruct((B, L2, Ctot), jnp.float32),
        grid=grid,
        in_specs=[
            pl.BlockSpec((None, tl, KC), lambda bb, lt: (bb, lt, 0)),
            pl.BlockSpec((None, tl, KC), lambda bb, lt: (bb, lt, 0)),
            pl.BlockSpec((KC, Ctot), lambda bb, lt: (0, 0)),
            pl.BlockSpec((1, Ctot), lambda bb, lt: (0, 0)),
        ],
        out_specs=pl.BlockSpec((None, tl, Ctot), lambda bb, lt: (bb, lt, 0)),
        compiler_params=pltpu.CompilerParams(
            dimension_semantics=("parallel", "parallel")),
    )(pe, po, w, b.reshape(1, Ctot))


# ----------------------------------------------------------------------------
# Fused fusion1 + residual + fusion2 + residual (1x1 convs, BN folded)
# ----------------------------------------------------------------------------

def _fusion_kernel(p_ref, w1_ref, b1_ref, w2f_ref, w2g_ref, b2_ref, o_ref):
    n_in1 = w1_ref.shape[0]          # 256 = fine1(64)+fine2(64)+mid(128)
    c1 = w1_ref.shape[1]             # 128
    cg = w2g_ref.shape[0]            # 256 (global channels)
    p = p_ref[...]                   # (tm, 512) pooled conv output
    fin = p[:, :n_in1]               # [fine1 | fine2 | mid]
    m_skip = p[:, n_in1 - c1:n_in1]  # mid
    g = p[:, n_in1:n_in1 + cg]       # global
    h1 = jnp.dot(fin.astype(jnp.bfloat16), w1_ref[...],
                 preferred_element_type=jnp.float32) + b1_ref[...]
    h1 = jnp.maximum(h1, 0.0) + m_skip
    h2 = (jnp.dot(h1.astype(jnp.bfloat16), w2f_ref[...],
                  preferred_element_type=jnp.float32)
          + jnp.dot(g.astype(jnp.bfloat16), w2g_ref[...],
                    preferred_element_type=jnp.float32)
          + b2_ref[...])
    o_ref[...] = jnp.maximum(h2, 0.0) + g


def fusion(pooled, w1, b1, w2f, w2g, b2, row_tile=512):
    M, Cp = pooled.shape
    c1 = w1.shape[1]
    c2 = w2g.shape[1]
    tm, grid = _row_tiles(M, row_tile)
    return pl.pallas_call(
        _fusion_kernel,
        out_shape=jax.ShapeDtypeStruct((M, c2), jnp.float32),
        grid=grid,
        in_specs=[
            pl.BlockSpec((tm, Cp), lambda i: (i, 0)),
            pl.BlockSpec(w1.shape, lambda i: (0, 0)),
            pl.BlockSpec((1, c1), lambda i: (0, 0)),
            pl.BlockSpec(w2f.shape, lambda i: (0, 0)),
            pl.BlockSpec(w2g.shape, lambda i: (0, 0)),
            pl.BlockSpec((1, c2), lambda i: (0, 0)),
        ],
        out_specs=pl.BlockSpec((tm, c2), lambda i: (i, 0)),
        compiler_params=pltpu.CompilerParams(dimension_semantics=("parallel",)),
    )(pooled, w1, b1.reshape(1, c1), w2f, w2g, b2.reshape(1, c2))


# ----------------------------------------------------------------------------
# Row-tiled linear (bf16 MXU operands, f32 accumulate) -- used for the head
# ----------------------------------------------------------------------------

def _linear_kernel(x_ref, w_ref, b_ref, o_ref):
    o_ref[...] = jnp.dot(x_ref[...].astype(jnp.bfloat16), w_ref[...],
                         preferred_element_type=jnp.float32) + b_ref[...]


def linear(x, w, b, row_tile=512):
    M, K = x.shape
    N = w.shape[1]
    tm, grid = _row_tiles(M, row_tile)
    return pl.pallas_call(
        _linear_kernel,
        out_shape=jax.ShapeDtypeStruct((M, N), jnp.float32),
        grid=grid,
        in_specs=[
            pl.BlockSpec((tm, K), lambda i: (i, 0)),
            pl.BlockSpec((K, N), lambda i: (0, 0)),
            pl.BlockSpec((1, N), lambda i: (0, 0)),
        ],
        out_specs=pl.BlockSpec((tm, N), lambda i: (i, 0)),
        compiler_params=pltpu.CompilerParams(dimension_semantics=("parallel",)),
    )(x, w, b.reshape(1, N))


# ----------------------------------------------------------------------------
# Fully fused transformer encoder layer (per batch): qkv -> MHA -> out-proj
#   + residual + LN1 -> FFN(ReLU) + residual + LN2
# ----------------------------------------------------------------------------

def _encoder_layer_kernel(x_ref, wqkv_ref, bqkv_ref, wout_ref, bout_ref,
                          g1_ref, be1_ref, wff1_ref, bff1_ref,
                          wff2_ref, bff2_ref, g2_ref, be2_ref, o_ref,
                          *, n_head, eps):
    x = x_ref[...]                                    # (S, D) f32
    D = x.shape[-1]
    dh = D // n_head
    scale = 1.0 / math.sqrt(dh)

    qkv = jnp.dot(x.astype(jnp.bfloat16), wqkv_ref[...],
                  preferred_element_type=jnp.float32) + bqkv_ref[...]

    heads = []
    for h in range(n_head):                           # static unroll over heads
        q = qkv[:, h * dh:(h + 1) * dh].astype(jnp.bfloat16)
        k = qkv[:, D + h * dh:D + (h + 1) * dh].astype(jnp.bfloat16)
        v = qkv[:, 2 * D + h * dh:2 * D + (h + 1) * dh].astype(jnp.bfloat16)
        s = jax.lax.dot_general(q, k, (((1,), (1,)), ((), ())),
                                preferred_element_type=jnp.float32) * scale
        m = jnp.max(s, axis=-1, keepdims=True)
        p = jnp.exp(s - m)
        denom = jnp.sum(p, axis=-1, keepdims=True)
        o = jnp.dot(p.astype(jnp.bfloat16), v, preferred_element_type=jnp.float32)
        heads.append(o * pl.reciprocal(denom, approx=True))
    # TODO(synk): for S >= ~1024 this should switch to a K/V-tiled online softmax.
    attn = jnp.concatenate(heads, axis=-1)            # (S, D), lane-dense

    proj = jnp.dot(attn.astype(jnp.bfloat16), wout_ref[...],
                   preferred_element_type=jnp.float32) + bout_ref[...]
    z1 = x + proj
    mu1 = jnp.mean(z1, axis=-1, keepdims=True)
    zc1 = z1 - mu1
    var1 = jnp.mean(zc1 * zc1, axis=-1, keepdims=True)
    x1 = zc1 * jax.lax.rsqrt(var1 + eps) * g1_ref[...] + be1_ref[...]

    hdn = jnp.maximum(
        jnp.dot(x1.astype(jnp.bfloat16), wff1_ref[...],
                preferred_element_type=jnp.float32) + bff1_ref[...], 0.0)
    y = jnp.dot(hdn.astype(jnp.bfloat16), wff2_ref[...],
                preferred_element_type=jnp.float32) + bff2_ref[...]
    z2 = x1 + y
    mu2 = jnp.mean(z2, axis=-1, keepdims=True)
    zc2 = z2 - mu2
    var2 = jnp.mean(zc2 * zc2, axis=-1, keepdims=True)
    o_ref[...] = zc2 * jax.lax.rsqrt(var2 + eps) * g2_ref[...] + be2_ref[...]


def encoder_layer(x2d, lp, *, B, S, eps=1e-5):
    M, D = x2d.shape
    FF = lp["w_ff1"].shape[1]

    def rep(shape):
        return pl.BlockSpec(shape, lambda b: (0, 0))

    return pl.pallas_call(
        functools.partial(_encoder_layer_kernel, n_head=N_HEAD, eps=eps),
        out_shape=jax.ShapeDtypeStruct((M, D), jnp.float32),
        grid=(B,),
        in_specs=[
            pl.BlockSpec((S, D), lambda b: (b, 0)),
            rep((D, 3 * D)), rep((1, 3 * D)),
            rep((D, D)), rep((1, D)),
            rep((1, D)), rep((1, D)),
            rep((D, FF)), rep((1, FF)),
            rep((FF, D)), rep((1, D)),
            rep((1, D)), rep((1, D)),
        ],
        out_specs=pl.BlockSpec((S, D), lambda b: (b, 0)),
        compiler_params=pltpu.CompilerParams(dimension_semantics=("parallel",)),
    )(x2d,
      lp["w_qkv"], lp["b_qkv"].reshape(1, -1),
      lp["w_out"], lp["b_out"].reshape(1, -1),
      lp["ln1_g"].reshape(1, -1), lp["ln1_b"].reshape(1, -1),
      lp["w_ff1"], lp["b_ff1"].reshape(1, -1),
      lp["w_ff2"], lp["b_ff2"].reshape(1, -1),
      lp["ln2_g"].reshape(1, -1), lp["ln2_b"].reshape(1, -1))


# ----------------------------------------------------------------------------
# Parameters (deterministic synthetic init; shapes match the PyTorch module)
# ----------------------------------------------------------------------------

def init_params(key, input_size, output_channels):
    keys = iter(jax.random.split(key, 128))
    nk = lambda: next(keys)  # noqa: E731

    def w_init(shape, fan_in):
        return jax.random.normal(nk(), shape, jnp.float32) / jnp.sqrt(float(fan_in))

    def b_init(n):
        return 0.01 * jax.random.normal(nk(), (n,), jnp.float32)

    def bn_init(n):
        gamma = 1.0 + 0.1 * jax.random.normal(nk(), (n,), jnp.float32)
        beta = 0.1 * jax.random.normal(nk(), (n,), jnp.float32)
        rm = 0.1 * jax.random.normal(nk(), (n,), jnp.float32)
        rv = 1.0 + 0.1 * jax.random.uniform(nk(), (n,), jnp.float32)
        return gamma, beta, rm, rv

    p = {}
    eps = 1e-5

    # Conv branches, output-column order [fine1(K5), fine2(K3), mid(K7), global(K15)].
    branch_defs = [(64, 5), (64, 3), (128, 7), (256, 15)]
    ctot = sum(c for c, _ in branch_defs)
    W = jnp.zeros((K_MAX * input_size, ctot), jnp.float32)
    biases = []
    col = 0
    for cout, Kb in branch_defs:
        w_ock = w_init((cout, input_size, Kb), input_size * Kb)
        b = b_init(cout)
        gamma, beta, rm, rv = bn_init(cout)
        scale = gamma / jnp.sqrt(rv + eps)                       # fold eval BN
        w_mat = (jnp.transpose(w_ock, (2, 1, 0))
                 .reshape(Kb * input_size, cout) * scale[None, :])
        off = (K_MAX // 2 - Kb // 2) * input_size                # center smaller taps
        W = W.at[off:off + Kb * input_size, col:col + cout].set(w_mat)
        biases.append((b - rm) * scale + beta)
        col += cout
    p["conv_w"] = W.astype(jnp.bfloat16)
    p["conv_b"] = jnp.concatenate(biases)

    def fold_1x1(cout, cin):
        w = w_init((cout, cin, 1), cin)
        b = b_init(cout)
        gamma, beta, rm, rv = bn_init(cout)
        scale = gamma / jnp.sqrt(rv + eps)
        return w[:, :, 0].T * scale[None, :], (b - rm) * scale + beta

    w1, b1 = fold_1x1(128, 256)
    w2, b2 = fold_1x1(256, 384)
    p["fusion_w1"] = w1.astype(jnp.bfloat16)
    p["fusion_b1"] = b1
    p["fusion_w2f"] = w2[:128].astype(jnp.bfloat16)   # rows for [fine_combined]
    p["fusion_w2g"] = w2[128:].astype(jnp.bfloat16)   # rows for [global]
    p["fusion_b2"] = b2

    # Transformer encoder: 2 layers, d_model=256, nhead=4, dim_ff=512.
    D, FF = D_MODEL, D_FF
    layers = []
    for _ in range(2):
        lp = {
            "w_qkv": w_init((D, 3 * D), D).astype(jnp.bfloat16), "b_qkv": b_init(3 * D),
            "w_out": w_init((D, D), D).astype(jnp.bfloat16), "b_out": b_init(D),
            "ln1_g": 1.0 + 0.05 * jax.random.normal(nk(), (D,), jnp.float32),
            "ln1_b": 0.05 * jax.random.normal(nk(), (D,), jnp.float32),
            "w_ff1": w_init((D, FF), D).astype(jnp.bfloat16), "b_ff1": b_init(FF),
            "w_ff2": w_init((FF, D), FF).astype(jnp.bfloat16), "b_ff2": b_init(D),
            "ln2_g": 1.0 + 0.05 * jax.random.normal(nk(), (D,), jnp.float32),
            "ln2_b": 0.05 * jax.random.normal(nk(), (D,), jnp.float32),
        }
        layers.append(lp)
    p["encoder_layers"] = layers

    # Head: fold fc (*1.11) and last_layer into one matmul (eval mode only).
    w_fc, b_fc = w_init((D, 64), D), b_init(64)
    w_last, b_last = w_init((64, output_channels), 64), b_init(output_channels)
    p["head_w"] = ((1.11 * w_fc) @ w_last).astype(jnp.bfloat16)
    p["head_b"] = (1.11 * b_fc) @ w_last + b_last
    return p


# ----------------------------------------------------------------------------
# Forward pass (eval mode)
# ----------------------------------------------------------------------------

def tf_nn_forward(params, x_ncl, anchors):
    """x_ncl: (B, input_size, SEQ_LEN), same NCW layout as the PyTorch module."""
    B, Cin, L = x_ncl.shape
    K = K_MAX
    x = jnp.transpose(x_ncl, (0, 2, 1)).astype(jnp.float32)           # (B, L, Cin)
    xp = jnp.pad(x, ((0, 0), (K // 2, K // 2), (0, 0)))               # (B, L+14, Cin)

    # Lane-dense bf16 im2col slab (k-major / Cin-minor), pre-split into the
    # even/odd rows of each pool(2,2) pair.  The conv kernel then needs only
    # two (L/2, K*Cin) x (K*Cin, 512) matmuls per tile.
    # TODO(synk): for very long sequences assemble the patches inside the
    # kernel from an (L+K-1, Cin) VMEM tile instead of this K-fold HBM slab.
    patches = jnp.concatenate([xp[:, k:k + L, :] for k in range(K)], axis=-1)
    pe = patches[:, 0::2, :].astype(jnp.bfloat16)                     # (B, L/2, K*Cin)
    po = patches[:, 1::2, :].astype(jnp.bfloat16)

    pooled = conv_pool(pe, po, params["conv_w"], params["conv_b"],
                       n_maxpool=128)                                 # (B, L/2, 512)

    L2 = L // 2
    M2 = B * L2
    h = fusion(pooled.reshape(M2, -1), params["fusion_w1"], params["fusion_b1"],
               params["fusion_w2f"], params["fusion_w2g"], params["fusion_b2"])

    for lp in params["encoder_layers"]:
        h = encoder_layer(h, lp, B=B, S=L2)                           # (M2, 256)

    D = h.shape[-1]
    # Slice to the last `anchors` rows BEFORE the head; fc*1.11 and last_layer folded.
    h_last = h.reshape(B, L2, D)[:, -anchors:, :].reshape(B * anchors, D)
    z = linear(h_last, params["head_w"], params["head_b"])            # (B*anchors, out)

    # TODO(synk): training branch (RecentAndFinalLoss) not implemented; eval path only.
    return z.reshape(B, anchors, -1)


# ----------------------------------------------------------------------------

if __name__ == "__main__":
    B = 2
    input_size = 4
    SEQ_LEN = 16
    output_channels = 6
    anchors = 4

    key = jax.random.PRNGKey(0)
    kx, kp = jax.random.split(key)
    x = jax.random.normal(kx, (B, input_size, SEQ_LEN), jnp.float32)
    params = init_params(kp, input_size, output_channels)

    fwd = jax.jit(tf_nn_forward, static_argnums=(2,))
    out = fwd(params, x, anchors)
    out = jax.block_until_ready(out)
    assert out.shape == (B, anchors, output_channels), out.shape
    assert out.dtype == jnp.float32
    assert bool(jnp.all(jnp.isfinite(out)))
    print("KERNEL_OK")
</pallas_src>

<mosaic_0001>
module attributes {stable_mosaic.version = 11 : i64} {
  func.func @_conv_pool_kernel(%arg0: i32, %arg1: i32, %arg2: memref<1x8x60xbf16, #tpu.memory_space<vmem>>, %arg3: memref<1x8x60xbf16, #tpu.memory_space<vmem>>, %arg4: memref<60x512xbf16, #tpu.memory_space<vmem>>, %arg5: memref<1x512xf32, #tpu.memory_space<vmem>>, %arg6: memref<1x8x512xf32, #tpu.memory_space<vmem>>) attributes {dimension_semantics = [#tpu.dimension_semantics<parallel>, #tpu.dimension_semantics<parallel>], iteration_bounds = array<i64: 2, 1>, scalar_prefetch = 0 : i64, scratch_operands = 0 : i64, tpu.core_type = #tpu.core_type<tc>, window_params = [{transform_indices = @transform_0, window_bounds = array<i64: 1, 8, 60>}, {transform_indices = @transform_1, window_bounds = array<i64: 1, 8, 60>}, {pipeline_mode = #tpu.pipeline_mode<synchronous>, transform_indices = @transform_2, window_bounds = array<i64: 60, 512>}, {pipeline_mode = #tpu.pipeline_mode<synchronous>, transform_indices = @transform_3, window_bounds = array<i64: 1, 512>}, {transform_indices = @transform_4, window_bounds = array<i64: 1, 8, 512>}]} {
    %c0 = arith.constant 0 : index
    %c0_0 = arith.constant 0 : index
    %0 = vector.load %arg4[%c0, %c0_0] : memref<60x512xbf16, #tpu.memory_space<vmem>>, vector<60x512xbf16>
    %c0_1 = arith.constant 0 : index
    %c0_2 = arith.constant 0 : index
    %1 = vector.load %arg5[%c0_1, %c0_2] : memref<1x512xf32, #tpu.memory_space<vmem>>, vector<1x512xf32>
    %c0_3 = arith.constant 0 : index
    %c0_4 = arith.constant 0 : index
    %c0_5 = arith.constant 0 : index
    %2 = vector.load %arg2[%c0_3, %c0_4, %c0_5] : memref<1x8x60xbf16, #tpu.memory_space<vmem>>, vector<1x8x60xbf16>
    %3 = vector.shape_cast %2 : vector<1x8x60xbf16> to vector<8x60xbf16>
    %cst = arith.constant dense<0.000000e+00> : vector<8x512xf32>
    %4 = tpu.matmul %3, %0, %cst {dimension_numbers = #tpu.dot_dimension_numbers<[1], [0], [0], [1], [0, 0, 1, 1], [], []>} : vector<8x60xbf16>, vector<60x512xbf16>, vector<8x512xf32> -> vector<8x512xf32>
    %5 = vector.broadcast %1 : vector<1x512xf32> to vector<8x512xf32>
    %6 = arith.addf %4, %5 : vector<8x512xf32>
    %cst_6 = arith.constant 0.000000e+00 : f32
    %7 = vector.broadcast %cst_6 : f32 to vector<8x512xf32>
    %8 = arith.maximumf %6, %7 : vector<8x512xf32>
    %c0_7 = arith.constant 0 : index
    %c0_8 = arith.constant 0 : index
    %c0_9 = arith.constant 0 : index
    %9 = vector.load %arg3[%c0_7, %c0_8, %c0_9] : memref<1x8x60xbf16, #tpu.memory_space<vmem>>, vector<1x8x60xbf16>
    %10 = vector.shape_cast %9 : vector<1x8x60xbf16> to vector<8x60xbf16>
    %cst_10 = arith.constant dense<0.000000e+00> : vector<8x512xf32>
    %11 = tpu.matmul %10, %0, %cst_10 {dimension_numbers = #tpu.dot_dimension_numbers<[1], [0], [0], [1], [0, 0, 1, 1], [], []>} : vector<8x60xbf16>, vector<60x512xbf16>, vector<8x512xf32> -> vector<8x512xf32>
    %12 = vector.broadcast %1 : vector<1x512xf32> to vector<8x512xf32>
    %13 = arith.addf %11, %12 : vector<8x512xf32>
    %cst_11 = arith.constant 0.000000e+00 : f32
    %14 = vector.broadcast %cst_11 : f32 to vector<8x512xf32>
    %15 = arith.maximumf %13, %14 : vector<8x512xf32>
    %16 = vector.extract_strided_slice %8 {offsets = [0, 0], sizes = [8, 128], strides = [1, 1]} : vector<8x512xf32> to vector<8x128xf32>
    %17 = vector.extract_strided_slice %15 {offsets = [0, 0], sizes = [8, 128], strides = [1, 1]} : vector<8x512xf32> to vector<8x128xf32>
    %18 = arith.maximumf %16, %17 : vector<8x128xf32>
    %c0_12 = arith.constant 0 : index
    %c0_13 = arith.constant 0 : index
    %c0_14 = arith.constant 0 : index
    %19 = vector.load %arg6[%c0_12, %c0_13, %c0_14] : memref<1x8x512xf32, #tpu.memory_space<vmem>>, vector<1x8x128xf32>
    %20 = vector.shape_cast %19 : vector<1x8x128xf32> to vector<8x128xf32>
    %21 = vector.shape_cast %18 : vector<8x128xf32> to vector<1x8x128xf32>
    tpu.vector_store %arg6[%c0_12, %c0_13, %c0_14], %21 {strides = array<i32>} : memref<1x8x512xf32, #tpu.memory_space<vmem>>, vector<1x8x128xf32>,
    %22 = vector.extract_strided_slice %8 {offsets = [0, 128], sizes = [8, 384], strides = [1, 1]} : vector<8x512xf32> to vector<8x384xf32>
    %23 = vector.extract_strided_slice %15 {offsets = [0, 128], sizes = [8, 384], strides = [1, 1]} : vector<8x512xf32> to vector<8x384xf32>
    %24 = arith.addf %22, %23 : vector<8x384xf32>
    %cst_15 = arith.constant 5.000000e-01 : f32
    %25 = vector.broadcast %cst_15 : f32 to vector<8x384xf32>
    %26 = arith.mulf %25, %24 : vector<8x384xf32>
    %c0_16 = arith.constant 0 : index
    %c0_17 = arith.constant 0 : index
    %c128 = arith.constant 128 : index
    %27 = vector.load %arg6[%c0_16, %c0_17, %c128] : memref<1x8x512xf32, #tpu.memory_space<vmem>>, vector<1x8x384xf32>
    %28 = vector.shape_cast %27 : vector<1x8x384xf32> to vector<8x384xf32>
    %29 = vector.shape_cast %26 : vector<8x384xf32> to vector<1x8x384xf32>
    tpu.vector_store %arg6[%c0_16, %c0_17, %c128], %29 {strides = array<i32>} : memref<1x8x512xf32, #tpu.memory_space<vmem>>, vector<1x8x384xf32>,
    return
  }
  func.func @transform_0(%arg0: i32, %arg1: i32) -> (i32, i32, i32) {
    %c0_i32 = arith.constant 0 : i32
    %c0_i32_0 = arith.constant 0 : i32
    return %arg0, %arg1, %c0_i32 : i32, i32, i32
  }
  func.func @transform_1(%arg0: i32, %arg1: i32) -> (i32, i32, i32) {
    %c0_i32 = arith.constant 0 : i32
    %c0_i32_0 = arith.constant 0 : i32
    return %arg0, %arg1, %c0_i32 : i32, i32, i32
  }
  func.func @transform_2(%arg0: i32, %arg1: i32) -> (i32, i32) {
    %c0_i32 = arith.constant 0 : i32
    %c0_i32_0 = arith.constant 0 : i32
    %c0_i32_1 = arith.constant 0 : i32
    return %c0_i32, %c0_i32_0 : i32, i32
  }
  func.func @transform_3(%arg0: i32, %arg1: i32) -> (i32, i32) {
    %c0_i32 = arith.constant 0 : i32
    %c0_i32_0 = arith.constant 0 : i32
    %c0_i32_1 = arith.constant 0 : i32
    return %c0_i32, %c0_i32_0 : i32, i32
  }
  func.func @transform_4(%arg0: i32, %arg1: i32) -> (i32, i32, i32) {
    %c0_i32 = arith.constant 0 : i32
    %c0_i32_0 = arith.constant 0 : i32
    return %arg0, %arg1, %c0_i32 : i32, i32, i32
  }
}

module attributes {stable_mosaic.version = 11 : i64} {
  func.func @_encoder_layer_kernel(%arg0: i32, %arg1: memref<8x256xf32, #tpu.memory_space<vmem>>, %arg2: memref<256x768xbf16, #tpu.memory_space<vmem>>, %arg3: memref<1x768xf32, #tpu.memory_space<vmem>>, %arg4: memref<256x256xbf16, #tpu.memory_space<vmem>>, %arg5: memref<1x256xf32, #tpu.memory_space<vmem>>, %arg6: memref<1x256xf32, #tpu.memory_space<vmem>>, %arg7: memref<1x256xf32, #tpu.memory_space<vmem>>, %arg8: memref<256x512xbf16, #tpu.memory_space<vmem>>, %arg9: memref<1x512xf32, #tpu.memory_space<vmem>>, %arg10: memref<512x256xbf16, #tpu.memory_space<vmem>>, %arg11: memref<1x256xf32, #tpu.memory_space<vmem>>, %arg12: memref<1x256xf32, #tpu.memory_space<vmem>>, %arg13: memref<1x256xf32, #tpu.memory_space<vmem>>, %arg14: memref<8x256xf32, #tpu.memory_space<vmem>>) attributes {dimension_semantics = [#tpu.dimension_semantics<parallel>], iteration_bounds = array<i64: 2>, scalar_prefetch = 0 : i64, scratch_operands = 0 : i64, tpu.core_type = #tpu.core_type<tc>, window_params = [{transform_indices = @transform_0, window_bounds = array<i64: 8, 256>}, {pipeline_mode = #tpu.pipeline_mode<synchronous>, transform_indices = @transform_1, window_bounds = array<i64: 256, 768>}, {pipeline_mode = #tpu.pipeline_mode<synchronous>, transform_indices = @transform_2, window_bounds = array<i64: 1, 768>}, {pipeline_mode = #tpu.pipeline_mode<synchronous>, transform_indices = @transform_3, window_bounds = array<i64: 256, 256>}, {pipeline_mode = #tpu.pipeline_mode<synchronous>, transform_indices = @transform_4, window_bounds = array<i64: 1, 256>}, {pipeline_mode = #tpu.pipeline_mode<synchronous>, transform_indices = @transform_5, window_bounds = array<i64: 1, 256>}, {pipeline_mode = #tpu.pipeline_mode<synchronous>, transform_indices = @transform_6, window_bounds = array<i64: 1, 256>}, {pipeline_mode = #tpu.pipeline_mode<synchronous>, transform_indices = @transform_7, window_bounds = array<i64: 256, 512>}, {pipeline_mode = #tpu.pipeline_mode<synchronous>, transform_indices = @transform_8, window_bounds = array<i64: 1, 512>}, {pipeline_mode = #tpu.pipeline_mode<synchronous>, transform_indices = @transform_9, window_bounds = array<i64: 512, 256>}, {pipeline_mode = #tpu.pipeline_mode<synchronous>, transform_indices = @transform_10, window_bounds = array<i64: 1, 256>}, {pipeline_mode = #tpu.pipeline_mode<synchronous>, transform_indices = @transform_11, window_bounds = array<i64: 1, 256>}, {pipeline_mode = #tpu.pipeline_mode<synchronous>, transform_indices = @transform_12, window_bounds = array<i64: 1, 256>}, {transform_indices = @transform_13, window_bounds = array<i64: 8, 256>}]} {
    %c0 = arith.constant 0 : index
    %c0_0 = arith.constant 0 : index
    %0 = vector.load %arg1[%c0, %c0_0] : memref<8x256xf32, #tpu.memory_space<vmem>>, vector<8x256xf32>
    %1 = arith.truncf %0 : vector<8x256xf32> to vector<8x256xbf16>
    %c0_1 = arith.constant 0 : index
    %c0_2 = arith.constant 0 : index
    %2 = vector.load %arg2[%c0_1, %c0_2] : memref<256x768xbf16, #tpu.memory_space<vmem>>, vector<256x768xbf16>
    %cst = arith.constant dense<0.000000e+00> : vector<8x768xf32>
    %3 = tpu.matmul %1, %2, %cst {dimension_numbers = #tpu.dot_dimension_numbers<[1], [0], [0], [1], [0, 0, 1, 1], [], []>} : vector<8x256xbf16>, vector<256x768xbf16>, vector<8x768xf32> -> vector<8x768xf32>
    %c0_3 = arith.constant 0 : index
    %c0_4 = arith.constant 0 : index
    %4 = vector.load %arg3[%c0_3, %c0_4] : memref<1x768xf32, #tpu.memory_space<vmem>>, vector<1x768xf32>
    %5 = vector.broadcast %4 : vector<1x768xf32> to vector<8x768xf32>
    %6 = arith.addf %3, %5 : vector<8x768xf32>
    %7 = vector.extract_strided_slice %6 {offsets = [0, 0], sizes = [8, 64], strides = [1, 1]} : vector<8x768xf32> to vector<8x64xf32>
    %8 = arith.truncf %7 : vector<8x64xf32> to vector<8x64xbf16>
    %9 = vector.extract_strided_slice %6 {offsets = [0, 256], sizes = [8, 64], strides = [1, 1]} : vector<8x768xf32> to vector<8x64xf32>
    %10 = arith.truncf %9 : vector<8x64xf32> to vector<8x64xbf16>
    %11 = vector.extract_strided_slice %6 {offsets = [0, 512], sizes = [8, 64], strides = [1, 1]} : vector<8x768xf32> to vector<8x64xf32>
    %12 = arith.truncf %11 : vector<8x64xf32> to vector<8x64xbf16>
    %cst_5 = arith.constant dense<0.000000e+00> : vector<8x8xf32>
    %13 = tpu.matmul %8, %10, %cst_5 {dimension_numbers = #tpu.dot_dimension_numbers<[1], [1], [0], [0], [0, 0, 1, 0], [], []>} : vector<8x64xbf16>, vector<8x64xbf16>, vector<8x8xf32> -> vector<8x8xf32>
    %cst_6 = arith.constant 1.250000e-01 : f32
    %14 = vector.broadcast %cst_6 : f32 to vector<8x8xf32>
    %15 = arith.mulf %13, %14 : vector<8x8xf32>
    %cst_7 = arith.constant dense<0xFF800000> : vector<8xf32>
    %16 = vector.multi_reduction <maximumf>, %15, %cst_7 [1] : vector<8x8xf32> to vector<8xf32>
    %17 = vector.shape_cast %16 : vector<8xf32> to vector<8x1xf32>
    %18 = vector.broadcast %17 : vector<8x1xf32> to vector<8x8xf32>
    %19 = arith.subf %15, %18 : vector<8x8xf32>
    %20 = math.exp %19 : vector<8x8xf32>
    %cst_8 = arith.constant dense<0.000000e+00> : vector<8xf32>
    %21 = vector.multi_reduction <add>, %20, %cst_8 [1] : vector<8x8xf32> to vector<8xf32>
    %22 = vector.shape_cast %21 : vector<8xf32> to vector<8x1xf32>
    %23 = arith.truncf %20 : vector<8x8xf32> to vector<8x8xbf16>
    %cst_9 = arith.constant dense<0.000000e+00> : vector<8x64xf32>
    %24 = tpu.matmul %23, %12, %cst_9 {dimension_numbers = #tpu.dot_dimension_numbers<[1], [0], [0], [1], [0, 0, 1, 1], [], []>} : vector<8x8xbf16>, vector<8x64xbf16>, vector<8x64xf32> -> vector<8x64xf32>
    %25 = tpu.reciprocal %22 {approx = true} : vector<8x1xf32> -> vector<8x1xf32>
    %26 = vector.broadcast %25 : vector<8x1xf32> to vector<8x64xf32>
    %27 = arith.mulf %24, %26 : vector<8x64xf32>
    %28 = vector.extract_strided_slice %6 {offsets = [0, 64], sizes = [8, 64], strides = [1, 1]} : vector<8x768xf32> to vector<8x64xf32>
    %29 = arith.truncf %28 : vector<8x64xf32> to vector<8x64xbf16>
    %30 = vector.extract_strided_slice %6 {offsets = [0, 320], sizes = [8, 64], strides = [1, 1]} : vector<8x768xf32> to vector<8x64xf32>
    %31 = arith.truncf %30 : vector<8x64xf32> to vector<8x64xbf16>
    %32 = vector.extract_strided_slice %6 {offsets = [0, 576], sizes = [8, 64], strides = [1, 1]} : vector<8x768xf32> to vector<8x64xf32>
    %33 = arith.truncf %32 : vector<8x64xf32> to vector<8x64xbf16>
    %cst_10 = arith.constant dense<0.000000e+00> : vector<8x8xf32>
    %34 = tpu.matmul %29, %31, %cst_10 {dimension_numbers = #tpu.dot_dimension_numbers<[1], [1], [0], [0], [0, 0, 1, 0], [], []>} : vector<8x64xbf16>, vector<8x64xbf16>, vector<8x8xf32> -> vector<8x8xf32>
    %cst_11 = arith.constant 1.250000e-01 : f32
    %35 = vector.broadcast %cst_11 : f32 to vector<8x8xf32>
    %36 = arith.mulf %34, %35 : vector<8x8xf32>
    %cst_12 = arith.constant dense<0xFF800000> : vector<8xf32>
    %37 = vector.multi_reduction <maximumf>, %36, %cst_12 [1] : vector<8x8xf32> to vector<8xf32>
    %38 = vector.shape_cast %37 : vector<8xf32> to vector<8x1xf32>
    %39 = vector.broadcast %38 : vector<8x1xf32> to vector<8x8xf32>
    %40 = arith.subf %36, %39 : vector<8x8xf32>
    %41 = math.exp %40 : vector<8x8xf32>
    %cst_13 = arith.constant dense<0.000000e+00> : vector<8xf32>
    %42 = vector.multi_reduction <add>, %41, %cst_13 [1] : vector<8x8xf32> to vector<8xf32>
    %43 = vector.shape_cast %42 : vector<8xf32> to vector<8x1xf32>
    %44 = arith.truncf %41 : vector<8x8xf32> to vector<8x8xbf16>
    %cst_14 = arith.constant dense<0.000000e+00> : vector<8x64xf32>
    %45 = tpu.matmul %44, %33, %cst_14 {dimension_numbers = #tpu.dot_dimension_numbers<[1], [0], [0], [1], [0, 0, 1, 1], [], []>} : vector<8x8xbf16>, vector<8x64xbf16>, vector<8x64xf32> -> vector<8x64xf32>
    %46 = tpu.reciprocal %43 {approx = true} : vector<8x1xf32> -> vector<8x1xf32>
    %47 = vector.broadcast %46 : vector<8x1xf32> to vector<8x64xf32>
    %48 = arith.mulf %45, %47 : vector<8x64xf32>
    %49 = vector.extract_strided_slice %6 {offsets = [0, 128], sizes = [8, 64], strides = [1, 1]} : vector<8x768xf32> to vector<8x64xf32>
    %50 = arith.truncf %49 : vector<8x64xf32> to vector<8x64xbf16>
    %51 = vector.extract_strided_slice %6 {offsets = [0, 384], sizes = [8, 64], strides = [1, 1]} : vector<8x768xf32> to vector<8x64xf32>
    %52 = arith.truncf %51 : vector<8x64xf32> to vector<8x64xbf16>
    %53 = vector.extract_strided_slice %6 {offsets = [0, 640], sizes = [8, 64], strides = [1, 1]} : vector<8x768xf32> to vector<8x64xf32>
    %54 = arith.truncf %53 : vector<8x64xf32> to vector<8x64xbf16>
    %cst_15 = arith.constant dense<0.000000e+00> : vector<8x8xf32>
    %55 = tpu.matmul %50, %52, %cst_15 {dimension_numbers = #tpu.dot_dimension_numbers<[1], [1], [0], [0], [0, 0, 1, 0], [], []>} : vector<8x64xbf16>, vector<8x64xbf16>, vector<8x8xf32> -> vector<8x8xf32>
    %cst_16 = arith.constant 1.250000e-01 : f32
    %56 = vector.broadcast %cst_16 : f32 to vector<8x8xf32>
    %57 = arith.mulf %55, %56 : vector<8x8xf32>
    %cst_17 = arith.constant dense<0xFF800000> : vector<8xf32>
    %58 = vector.multi_reduction <maximumf>, %57, %cst_17 [1] : vector<8x8xf32> to vector<8xf32>
    %59 = vector.shape_cast %58 : vector<8xf32> to vector<8x1xf32>
    %60 = vector.broadcast %59 : vector<8x1xf32> to vector<8x8xf32>
    %61 = arith.subf %57, %60 : vector<8x8xf32>
    %62 = math.exp %61 : vector<8x8xf32>
    %cst_18 = arith.constant dense<0.000000e+00> : vector<8xf32>
    %63 = vector.multi_reduction <add>, %62, %cst_18 [1] : vector<8x8xf32> to vector<8xf32>
    %64 = vector.shape_cast %63 : vector<8xf32> to vector<8x1xf32>
    %65 = arith.truncf %62 : vector<8x8xf32> to vector<8x8xbf16>
    %cst_19 = arith.constant dense<0.000000e+00> : vector<8x64xf32>
    %66 = tpu.matmul %65, %54, %cst_19 {dimension_numbers = #tpu.dot_dimension_numbers<[1], [0], [0], [1], [0, 0, 1, 1], [], []>} : vector<8x8xbf16>, vector<8x64xbf16>, vector<8x64xf32> -> vector<8x64xf32>
    %67 = tpu.reciprocal %64 {approx = true} : vector<8x1xf32> -> vector<8x1xf32>
    %68 = vector.broadcast %67 : vector<8x1xf32> to vector<8x64xf32>
    %69 = arith.mulf %66, %68 : vector<8x64xf32>
    %70 = vector.extract_strided_slice %6 {offsets = [0, 192], sizes = [8, 64], strides = [1, 1]} : vector<8x768xf32> to vector<8x64xf32>
    %71 = arith.truncf %70 : vector<8x64xf32> to vector<8x64xbf16>
    %72 = vector.extract_strided_slice %6 {offsets = [0, 448], sizes = [8, 64], strides = [1, 1]} : vector<8x768xf32> to vector<8x64xf32>
    %73 = arith.truncf %72 : vector<8x64xf32> to vector<8x64xbf16>
    %74 = vector.extract_strided_slice %6 {offsets = [0, 704], sizes = [8, 64], strides = [1, 1]} : vector<8x768xf32> to vector<8x64xf32>
    %75 = arith.truncf %74 : vector<8x64xf32> to vector<8x64xbf16>
    %cst_20 = arith.constant dense<0.000000e+00> : vector<8x8xf32>
    %76 = tpu.matmul %71, %73, %cst_20 {dimension_numbers = #tpu.dot_dimension_numbers<[1], [1], [0], [0], [0, 0, 1, 0], [], []>} : vector<8x64xbf16>, vector<8x64xbf16>, vector<8x8xf32> -> vector<8x8xf32>
    %cst_21 = arith.constant 1.250000e-01 : f32
    %77 = vector.broadcast %cst_21 : f32 to vector<8x8xf32>
    %78 = arith.mulf %76, %77 : vector<8x8xf32>
    %cst_22 = arith.constant dense<0xFF800000> : vector<8xf32>
    %79 = vector.multi_reduction <maximumf>, %78, %cst_22 [1] : vector<8x8xf32> to vector<8xf32>
    %80 = vector.shape_cast %79 : vector<8xf32> to vector<8x1xf32>
    %81 = vector.broadcast %80 : vector<8x1xf32> to vector<8x8xf32>
    %82 = arith.subf %78, %81 : vector<8x8xf32>
    %83 = math.exp %82 : vector<8x8xf32>
    %cst_23 = arith.constant dense<0.000000e+00> : vector<8xf32>
    %84 = vector.multi_reduction <add>, %83, %cst_23 [1] : vector<8x8xf32> to vector<8xf32>
    %85 = vector.shape_cast %84 : vector<8xf32> to vector<8x1xf32>
    %86 = arith.truncf %83 : vector<8x8xf32> to vector<8x8xbf16>
    %cst_24 = arith.constant dense<0.000000e+00> : vector<8x64xf32>
    %87 = tpu.matmul %86, %75, %cst_24 {dimension_numbers = #tpu.dot_dimension_numbers<[1], [0], [0], [1], [0, 0, 1, 1], [], []>} : vector<8x8xbf16>, vector<8x64xbf16>, vector<8x64xf32> -> vector<8x64xf32>
    %88 = tpu.reciprocal %85 {approx = true} : vector<8x1xf32> -> vector<8x1xf32>
    %89 = vector.broadcast %88 : vector<8x1xf32> to vector<8x64xf32>
    %90 = arith.mulf %87, %89 : vector<8x64xf32>
    %91 = tpu.concatenate %27, %48, %69, %90 in 1 : vector<8x64xf32>, vector<8x64xf32>, vector<8x64xf32>, vector<8x64xf32> -> vector<8x256xf32>
    %92 = arith.truncf %91 : vector<8x256xf32> to vector<8x256xbf16>
    %c0_25 = arith.constant 0 : index
    %c0_26 = arith.constant 0 : index
    %93 = vector.load %arg4[%c0_25, %c0_26] : memref<256x256xbf16, #tpu.memory_space<vmem>>, vector<256x256xbf16>
    %cst_27 = arith.constant dense<0.000000e+00> : vector<8x256xf32>
    %94 = tpu.matmul %92, %93, %cst_27 {dimension_numbers = #tpu.dot_dimension_numbers<[1], [0], [0], [1], [0, 0, 1, 1], [], []>} : vector<8x256xbf16>, vector<256x256xbf16>, vector<8x256xf32> -> vector<8x256xf32>
    %c0_28 = arith.constant 0 : index
    %c0_29 = arith.constant 0 : index
    %95 = vector.load %arg5[%c0_28, %c0_29] : memref<1x256xf32, #tpu.memory_space<vmem>>, vector<1x256xf32>
    %96 = vector.broadcast %95 : vector<1x256xf32> to vector<8x256xf32>
    %97 = arith.addf %94, %96 : vector<8x256xf32>
    %98 = arith.addf %0, %97 : vector<8x256xf32>
    %cst_30 = arith.constant dense<0.000000e+00> : vector<8xf32>
    %99 = vector.multi_reduction <add>, %98, %cst_30 [1] : vector<8x256xf32> to vector<8xf32>
    %100 = vector.shape_cast %99 : vector<8xf32> to vector<8x1xf32>
    %cst_31 = arith.constant 2.560000e+02 : f32
    %101 = vector.broadcast %cst_31 : f32 to vector<8x1xf32>
    %102 = arith.divf %100, %101 : vector<8x1xf32>
    %103 = vector.broadcast %102 : vector<8x1xf32> to vector<8x256xf32>
    %104 = arith.subf %98, %103 : vector<8x256xf32>
    %105 = arith.mulf %104, %104 : vector<8x256xf32>
    %cst_32 = arith.constant dense<0.000000e+00> : vector<8xf32>
    %106 = vector.multi_reduction <add>, %105, %cst_32 [1] : vector<8x256xf32> to vector<8xf32>
    %107 = vector.shape_cast %106 : vector<8xf32> to vector<8x1xf32>
    %cst_33 = arith.constant 2.560000e+02 : f32
    %108 = vector.broadcast %cst_33 : f32 to vector<8x1xf32>
    %109 = arith.divf %107, %108 : vector<8x1xf32>
    %cst_34 = arith.constant 9.99999974E-6 : f32
    %110 = vector.broadcast %cst_34 : f32 to vector<8x1xf32>
    %111 = arith.addf %109, %110 : vector<8x1xf32>
    %112 = math.rsqrt %111 : vector<8x1xf32>
    %113 = vector.broadcast %112 : vector<8x1xf32> to vector<8x256xf32>
    %114 = arith.mulf %104, %113 : vector<8x256xf32>
    %c0_35 = arith.constant 0 : index
    %c0_36 = arith.constant 0 : index
    %115 = vector.load %arg6[%c0_35, %c0_36] : memref<1x256xf32, #tpu.memory_space<vmem>>, vector<1x256xf32>
    %116 = vector.broadcast %115 : vector<1x256xf32> to vector<8x256xf32>
    %117 = arith.mulf %114, %116 : vector<8x256xf32>
    %c0_37 = arith.constant 0 : index
    %c0_38 = arith.constant 0 : index
    %118 = vector.load %arg7[%c0_37, %c0_38] : memref<1x256xf32, #tpu.memory_space<vmem>>, vector<1x256xf32>
    %119 = vector.broadcast %118 : vector<1x256xf32> to vector<8x256xf32>
    %120 = arith.addf %117, %119 : vector<8x256xf32>
    %121 = arith.truncf %120 : vector<8x256xf32> to vector<8x256xbf16>
    %c0_39 = arith.constant 0 : index
    %c0_40 = arith.constant 0 : index
    %122 = vector.load %arg8[%c0_39, %c0_40] : memref<256x512xbf16, #tpu.memory_space<vmem>>, vector<256x512xbf16>
    %cst_41 = arith.constant dense<0.000000e+00> : vector<8x512xf32>
    %123 = tpu.matmul %121, %122, %cst_41 {dimension_numbers = #tpu.dot_dimension_numbers<[1], [0], [0], [1], [0, 0, 1, 1], [], []>} : vector<8x256xbf16>, vector<256x512xbf16>, vector<8x512xf32> -> vector<8x512xf32>
    %c0_42 = arith.constant 0 : index
    %c0_43 = arith.constant 0 : index
    %124 = vector.load %arg9[%c0_42, %c0_43] : memref<1x512xf32, #tpu.memory_space<vmem>>, vector<1x512xf32>
    %125 = vector.broadcast %124 : vector<1x512xf32> to vector<8x512xf32>
    %126 = arith.addf %123, %125 : vector<8x512xf32>
    %cst_44 = arith.constant 0.000000e+00 : f32
    %127 = vector.broadcast %cst_44 : f32 to vector<8x512xf32>
    %128 = arith.maximumf %126, %127 : vector<8x512xf32>
    %129 = arith.truncf %128 : vector<8x512xf32> to vector<8x512xbf16>
    %c0_45 = arith.constant 0 : index
    %c0_46 = arith.constant 0 : index
    %130 = vector.load %arg10[%c0_45, %c0_46] : memref<512x256xbf16, #tpu.memory_space<vmem>>, vector<512x256xbf16>
    %cst_47 = arith.constant dense<0.000000e+00> : vector<8x256xf32>
    %131 = tpu.matmul %129, %130, %cst_47 {dimension_numbers = #tpu.dot_dimension_numbers<[1], [0], [0], [1], [0, 0, 1, 1], [], []>} : vector<8x512xbf16>, vector<512x256xbf16>, vector<8x256xf32> -> vector<8x256xf32>
    %c0_48 = arith.constant 0 : index
    %c0_49 = arith.constant 0 : index
    %132 = vector.load %arg11[%c0_48, %c0_49] : memref<1x256xf32, #tpu.memory_space<vmem>>, vector<1x256xf32>
    %133 = vector.broadcast %132 : vector<1x256xf32> to vector<8x256xf32>
    %134 = arith.addf %131, %133 : vector<8x256xf32>
    %135 = arith.addf %120, %134 : vector<8x256xf32>
    %cst_50 = arith.constant dense<0.000000e+00> : vector<8xf32>
    %136 = vector.multi_reduction <add>, %135, %cst_50 [1] : vector<8x256xf32> to vector<8xf32>
    %137 = vector.shape_cast %136 : vector<8xf32> to vector<8x1xf32>
    %cst_51 = arith.constant 2.560000e+02 : f32
    %138 = vector.broadcast %cst_51 : f32 to vector<8x1xf32>
    %139 = arith.divf %137, %138 : vector<8x1xf32>
    %140 = vector.broadcast %139 : vector<8x1xf32> to vector<8x256xf32>
    %141 = arith.subf %135, %140 : vector<8x256xf32>
    %142 = arith.mulf %141, %141 : vector<8x256xf32>
    %cst_52 = arith.constant dense<0.000000e+00> : vector<8xf32>
    %143 = vector.multi_reduction <add>, %142, %cst_52 [1] : vector<8x256xf32> to vector<8xf32>
    %144 = vector.shape_cast %143 : vector<8xf32> to vector<8x1xf32>
    %cst_53 = arith.constant 2.560000e+02 : f32
    %145 = vector.broadcast %cst_53 : f32 to vector<8x1xf32>
    %146 = arith.divf %144, %145 : vector<8x1xf32>
    %cst_54 = arith.constant 9.99999974E-6 : f32
    %147 = vector.broadcast %cst_54 : f32 to vector<8x1xf32>
    %148 = arith.addf %146, %147 : vector<8x1xf32>
    %149 = math.rsqrt %148 : vector<8x1xf32>
    %150 = vector.broadcast %149 : vector<8x1xf32> to vector<8x256xf32>
    %151 = arith.mulf %141, %150 : vector<8x256xf32>
    %c0_55 = arith.constant 0 : index
    %c0_56 = arith.constant 0 : index
    %152 = vector.load %arg12[%c0_55, %c0_56] : memref<1x256xf32, #tpu.memory_space<vmem>>, vector<1x256xf32>
    %153 = vector.broadcast %152 : vector<1x256xf32> to vector<8x256xf32>
    %154 = arith.mulf %151, %153 : vector<8x256xf32>
    %c0_57 = arith.constant 0 : index
    %c0_58 = arith.constant 0 : index
    %155 = vector.load %arg13[%c0_57, %c0_58] : memref<1x256xf32, #tpu.memory_space<vmem>>, vector<1x256xf32>
    %156 = vector.broadcast %155 : vector<1x256xf32> to vector<8x256xf32>
    %157 = arith.addf %154, %156 : vector<8x256xf32>
    %c0_59 = arith.constant 0 : index
    %c0_60 = arith.constant 0 : index
    %158 = vector.load %arg14[%c0_59, %c0_60] : memref<8x256xf32, #tpu.memory_space<vmem>>, vector<8x256xf32>
    tpu.vector_store %arg14[%c0_59, %c0_60], %157 {strides = array<i32>} : memref<8x256xf32, #tpu.memory_space<vmem>>, vector<8x256xf32>,
    return
  }
  func.func @transform_0(%arg0: i32) -> (i32, i32) {
    %c0_i32 = arith.constant 0 : i32
    %c0_i32_0 = arith.constant 0 : i32
    return %arg0, %c0_i32 : i32, i32
  }
  func.func @transform_1(%arg0: i32) -> (i32, i32) {
    %c0_i32 = arith.constant 0 : i32
    %c0_i32_0 = arith.constant 0 : i32
    %c0_i32_1 = arith.constant 0 : i32
    return %c0_i32, %c0_i32_0 : i32, i32
  }
  func.func @transform_2(%arg0: i32) -> (i32, i32) {
    %c0_i32 = arith.constant 0 : i32
    %c0_i32_0 = arith.constant 0 : i32
    %c0_i32_1 = arith.constant 0 : i32
    return %c0_i32, %c0_i32_0 : i32, i32
  }
  func.func @transform_3(%arg0: i32) -> (i32, i32) {
    %c0_i32 = arith.constant 0 : i32
    %c0_i32_0 = arith.constant 0 : i32
    %c0_i32_1 = arith.constant 0 : i32
    return %c0_i32, %c0_i32_0 : i32, i32
  }
  func.func @transform_4(%arg0: i32) -> (i32, i32) {
    %c0_i32 = arith.constant 0 : i32
    %c0_i32_0 = arith.constant 0 : i32
    %c0_i32_1 = arith.constant 0 : i32
    return %c0_i32, %c0_i32_0 : i32, i32
  }
  func.func @transform_5(%arg0: i32) -> (i32, i32) {
    %c0_i32 = arith.constant 0 : i32
    %c0_i32_0 = arith.constant 0 : i32
    %c0_i32_1 = arith.constant 0 : i32
    return %c0_i32, %c0_i32_0 : i32, i32
  }
  func.func @transform_6(%arg0: i32) -> (i32, i32) {
    %c0_i32 = arith.constant 0 : i32
    %c0_i32_0 = arith.constant 0 : i32
    %c0_i32_1 = arith.constant 0 : i32
    return %c0_i32, %c0_i32_0 : i32, i32
  }
  func.func @transform_7(%arg0: i32) -> (i32, i32) {
    %c0_i32 = arith.constant 0 : i32
    %c0_i32_0 = arith.constant 0 : i32
    %c0_i32_1 = arith.constant 0 : i32
    return %c0_i32, %c0_i32_0 : i32, i32
  }
  func.func @transform_8(%arg0: i32) -> (i32, i32) {
    %c0_i32 = arith.constant 0 : i32
    %c0_i32_0 = arith.constant 0 : i32
    %c0_i32_1 = arith.constant 0 : i32
    return %c0_i32, %c0_i32_0 : i32, i32
  }
  func.func @transform_9(%arg0: i32) -> (i32, i32) {
    %c0_i32 = arith.constant 0 : i32
    %c0_i32_0 = arith.constant 0 : i32
    %c0_i32_1 = arith.constant 0 : i32
    return %c0_i32, %c0_i32_0 : i32, i32
  }
  func.func @transform_10(%arg0: i32) -> (i32, i32) {
    %c0_i32 = arith.constant 0 : i32
    %c0_i32_0 = arith.constant 0 : i32
    %c0_i32_1 = arith.constant 0 : i32
    return %c0_i32, %c0_i32_0 : i32, i32
  }
  func.func @transform_11(%arg0: i32) -> (i32, i32) {
    %c0_i32 = arith.constant 0 : i32
    %c0_i32_0 = arith.constant 0 : i32
    %c0_i32_1 = arith.constant 0 : i32
    return %c0_i32, %c0_i32_0 : i32, i32
  }
  func.func @transform_12(%arg0: i32) -> (i32, i32) {
    %c0_i32 = arith.constant 0 : i32
    %c0_i32_0 = arith.constant 0 : i32
    %c0_i32_1 = arith.constant 0 : i32
    return %c0_i32, %c0_i32_0 : i32, i32
  }
  func.func @transform_13(%arg0: i32) -> (i32, i32) {
    %c0_i32 = arith.constant 0 : i32
    %c0_i32_0 = arith.constant 0 : i32
    return %arg0, %c0_i32 : i32, i32
  }
}

module attributes {stable_mosaic.version = 11 : i64} {
  func.func @_fusion_kernel(%arg0: i32, %arg1: memref<8x512xf32, #tpu.memory_space<vmem>>, %arg2: memref<256x128xbf16, #tpu.memory_space<vmem>>, %arg3: memref<1x128xf32, #tpu.memory_space<vmem>>, %arg4: memref<128x256xbf16, #tpu.memory_space<vmem>>, %arg5: memref<256x256xbf16, #tpu.memory_space<vmem>>, %arg6: memref<1x256xf32, #tpu.memory_space<vmem>>, %arg7: memref<8x256xf32, #tpu.memory_space<vmem>>) attributes {dimension_semantics = [#tpu.dimension_semantics<parallel>], iteration_bounds = array<i64: 2>, scalar_prefetch = 0 : i64, scratch_operands = 0 : i64, tpu.core_type = #tpu.core_type<tc>, window_params = [{transform_indices = @transform_0, window_bounds = array<i64: 8, 512>}, {pipeline_mode = #tpu.pipeline_mode<synchronous>, transform_indices = @transform_1, window_bounds = array<i64: 256, 128>}, {pipeline_mode = #tpu.pipeline_mode<synchronous>, transform_indices = @transform_2, window_bounds = array<i64: 1, 128>}, {pipeline_mode = #tpu.pipeline_mode<synchronous>, transform_indices = @transform_3, window_bounds = array<i64: 128, 256>}, {pipeline_mode = #tpu.pipeline_mode<synchronous>, transform_indices = @transform_4, window_bounds = array<i64: 256, 256>}, {pipeline_mode = #tpu.pipeline_mode<synchronous>, transform_indices = @transform_5, window_bounds = array<i64: 1, 256>}, {transform_indices = @transform_6, window_bounds = array<i64: 8, 256>}]} {
    %c0 = arith.constant 0 : index
    %c0_0 = arith.constant 0 : index
    %0 = vector.load %arg1[%c0, %c0_0] : memref<8x512xf32, #tpu.memory_space<vmem>>, vector<8x512xf32>
    %1 = vector.extract_strided_slice %0 {offsets = [0, 0], sizes = [8, 256], strides = [1, 1]} : vector<8x512xf32> to vector<8x256xf32>
    %2 = vector.extract_strided_slice %0 {offsets = [0, 128], sizes = [8, 128], strides = [1, 1]} : vector<8x512xf32> to vector<8x128xf32>
    %3 = vector.extract_strided_slice %0 {offsets = [0, 256], sizes = [8, 256], strides = [1, 1]} : vector<8x512xf32> to vector<8x256xf32>
    %4 = arith.truncf %1 : vector<8x256xf32> to vector<8x256xbf16>
    %c0_1 = arith.constant 0 : index
    %c0_2 = arith.constant 0 : index
    %5 = vector.load %arg2[%c0_1, %c0_2] : memref<256x128xbf16, #tpu.memory_space<vmem>>, vector<256x128xbf16>
    %cst = arith.constant dense<0.000000e+00> : vector<8x128xf32>
    %6 = tpu.matmul %4, %5, %cst {dimension_numbers = #tpu.dot_dimension_numbers<[1], [0], [0], [1], [0, 0, 1, 1], [], []>} : vector<8x256xbf16>, vector<256x128xbf16>, vector<8x128xf32> -> vector<8x128xf32>
    %c0_3 = arith.constant 0 : index
    %c0_4 = arith.constant 0 : index
    %7 = vector.load %arg3[%c0_3, %c0_4] : memref<1x128xf32, #tpu.memory_space<vmem>>, vector<1x128xf32>
    %8 = vector.broadcast %7 : vector<1x128xf32> to vector<8x128xf32>
    %9 = arith.addf %6, %8 : vector<8x128xf32>
    %cst_5 = arith.constant 0.000000e+00 : f32
    %10 = vector.broadcast %cst_5 : f32 to vector<8x128xf32>
    %11 = arith.maximumf %9, %10 : vector<8x128xf32>
    %12 = arith.addf %11, %2 : vector<8x128xf32>
    %13 = arith.truncf %12 : vector<8x128xf32> to vector<8x128xbf16>
    %c0_6 = arith.constant 0 : index
    %c0_7 = arith.constant 0 : index
    %14 = vector.load %arg4[%c0_6, %c0_7] : memref<128x256xbf16, #tpu.memory_space<vmem>>, vector<128x256xbf16>
    %cst_8 = arith.constant dense<0.000000e+00> : vector<8x256xf32>
    %15 = tpu.matmul %13, %14, %cst_8 {dimension_numbers = #tpu.dot_dimension_numbers<[1], [0], [0], [1], [0, 0, 1, 1], [], []>} : vector<8x128xbf16>, vector<128x256xbf16>, vector<8x256xf32> -> vector<8x256xf32>
    %16 = arith.truncf %3 : vector<8x256xf32> to vector<8x256xbf16>
    %c0_9 = arith.constant 0 : index
    %c0_10 = arith.constant 0 : index
    %17 = vector.load %arg5[%c0_9, %c0_10] : memref<256x256xbf16, #tpu.memory_space<vmem>>, vector<256x256xbf16>
    %cst_11 = arith.constant dense<0.000000e+00> : vector<8x256xf32>
    %18 = tpu.matmul %16, %17, %cst_11 {dimension_numbers = #tpu.dot_dimension_numbers<[1], [0], [0], [1], [0, 0, 1, 1], [], []>} : vector<8x256xbf16>, vector<256x256xbf16>, vector<8x256xf32> -> vector<8x256xf32>
    %19 = arith.addf %15, %18 : vector<8x256xf32>
    %c0_12 = arith.constant 0 : index
    %c0_13 = arith.constant 0 : index
    %20 = vector.load %arg6[%c0_12, %c0_13] : memref<1x256xf32, #tpu.memory_space<vmem>>, vector<1x256xf32>
    %21 = vector.broadcast %20 : vector<1x256xf32> to vector<8x256xf32>
    %22 = arith.addf %19, %21 : vector<8x256xf32>
    %cst_14 = arith.constant 0.000000e+00 : f32
    %23 = vector.broadcast %cst_14 : f32 to vector<8x256xf32>
    %24 = arith.maximumf %22, %23 : vector<8x256xf32>
    %25 = arith.addf %24, %3 : vector<8x256xf32>
    %c0_15 = arith.constant 0 : index
    %c0_16 = arith.constant 0 : index
    %26 = vector.load %arg7[%c0_15, %c0_16] : memref<8x256xf32, #tpu.memory_space<vmem>>, vector<8x256xf32>
    tpu.vector_store %arg7[%c0_15, %c0_16], %25 {strides = array<i32>} : memref<8x256xf32, #tpu.memory_space<vmem>>, vector<8x256xf32>,
    return
  }
  func.func @transform_0(%arg0: i32) -> (i32, i32) {
    %c0_i32 = arith.constant 0 : i32
    %c0_i32_0 = arith.constant 0 : i32
    return %arg0, %c0_i32 : i32, i32
  }
  func.func @transform_1(%arg0: i32) -> (i32, i32) {
    %c0_i32 = arith.constant 0 : i32
    %c0_i32_0 = arith.constant 0 : i32
    %c0_i32_1 = arith.constant 0 : i32
    return %c0_i32, %c0_i32_0 : i32, i32
  }
  func.func @transform_2(%arg0: i32) -> (i32, i32) {
    %c0_i32 = arith.constant 0 : i32
    %c0_i32_0 = arith.constant 0 : i32
    %c0_i32_1 = arith.constant 0 : i32
    return %c0_i32, %c0_i32_0 : i32, i32
  }
  func.func @transform_3(%arg0: i32) -> (i32, i32) {
    %c0_i32 = arith.constant 0 : i32
    %c0_i32_0 = arith.constant 0 : i32
    %c0_i32_1 = arith.constant 0 : i32
    return %c0_i32, %c0_i32_0 : i32, i32
  }
  func.func @transform_4(%arg0: i32) -> (i32, i32) {
    %c0_i32 = arith.constant 0 : i32
    %c0_i32_0 = arith.constant 0 : i32
    %c0_i32_1 = arith.constant 0 : i32
    return %c0_i32, %c0_i32_0 : i32, i32
  }
  func.func @transform_5(%arg0: i32) -> (i32, i32) {
    %c0_i32 = arith.constant 0 : i32
    %c0_i32_0 = arith.constant 0 : i32
    %c0_i32_1 = arith.constant 0 : i32
    return %c0_i32, %c0_i32_0 : i32, i32
  }
  func.func @transform_6(%arg0: i32) -> (i32, i32) {
    %c0_i32 = arith.constant 0 : i32
    %c0_i32_0 = arith.constant 0 : i32
    return %arg0, %c0_i32 : i32, i32
  }
}

module attributes {stable_mosaic.version = 11 : i64} {
  func.func @_encoder_layer_kernel(%arg0: i32, %arg1: memref<8x256xf32, #tpu.memory_space<vmem>>, %arg2: memref<256x768xbf16, #tpu.memory_space<vmem>>, %arg3: memref<1x768xf32, #tpu.memory_space<vmem>>, %arg4: memref<256x256xbf16, #tpu.memory_space<vmem>>, %arg5: memref<1x256xf32, #tpu.memory_space<vmem>>, %arg6: memref<1x256xf32, #tpu.memory_space<vmem>>, %arg7: memref<1x256xf32, #tpu.memory_space<vmem>>, %arg8: memref<256x512xbf16, #tpu.memory_space<vmem>>, %arg9: memref<1x512xf32, #tpu.memory_space<vmem>>, %arg10: memref<512x256xbf16, #tpu.memory_space<vmem>>, %arg11: memref<1x256xf32, #tpu.memory_space<vmem>>, %arg12: memref<1x256xf32, #tpu.memory_space<vmem>>, %arg13: memref<1x256xf32, #tpu.memory_space<vmem>>, %arg14: memref<8x256xf32, #tpu.memory_space<vmem>>) attributes {dimension_semantics = [#tpu.dimension_semantics<parallel>], iteration_bounds = array<i64: 2>, scalar_prefetch = 0 : i64, scratch_operands = 0 : i64, tpu.core_type = #tpu.core_type<tc>, window_params = [{transform_indices = @transform_0, window_bounds = array<i64: 8, 256>}, {pipeline_mode = #tpu.pipeline_mode<synchronous>, transform_indices = @transform_1, window_bounds = array<i64: 256, 768>}, {pipeline_mode = #tpu.pipeline_mode<synchronous>, transform_indices = @transform_2, window_bounds = array<i64: 1, 768>}, {pipeline_mode = #tpu.pipeline_mode<synchronous>, transform_indices = @transform_3, window_bounds = array<i64: 256, 256>}, {pipeline_mode = #tpu.pipeline_mode<synchronous>, transform_indices = @transform_4, window_bounds = array<i64: 1, 256>}, {pipeline_mode = #tpu.pipeline_mode<synchronous>, transform_indices = @transform_5, window_bounds = array<i64: 1, 256>}, {pipeline_mode = #tpu.pipeline_mode<synchronous>, transform_indices = @transform_6, window_bounds = array<i64: 1, 256>}, {pipeline_mode = #tpu.pipeline_mode<synchronous>, transform_indices = @transform_7, window_bounds = array<i64: 256, 512>}, {pipeline_mode = #tpu.pipeline_mode<synchronous>, transform_indices = @transform_8, window_bounds = array<i64: 1, 512>}, {pipeline_mode = #tpu.pipeline_mode<synchronous>, transform_indices = @transform_9, window_bounds = array<i64: 512, 256>}, {pipeline_mode = #tpu.pipeline_mode<synchronous>, transform_indices = @transform_10, window_bounds = array<i64: 1, 256>}, {pipeline_mode = #tpu.pipeline_mode<synchronous>, transform_indices = @transform_11, window_bounds = array<i64: 1, 256>}, {pipeline_mode = #tpu.pipeline_mode<synchronous>, transform_indices = @transform_12, window_bounds = array<i64: 1, 256>}, {transform_indices = @transform_13, window_bounds = array<i64: 8, 256>}]} {
    %c0 = arith.constant 0 : index
    %c0_0 = arith.constant 0 : index
    %0 = vector.load %arg1[%c0, %c0_0] : memref<8x256xf32, #tpu.memory_space<vmem>>, vector<8x256xf32>
    %1 = arith.truncf %0 : vector<8x256xf32> to vector<8x256xbf16>
    %c0_1 = arith.constant 0 : index
    %c0_2 = arith.constant 0 : index
    %2 = vector.load %arg2[%c0_1, %c0_2] : memref<256x768xbf16, #tpu.memory_space<vmem>>, vector<256x768xbf16>
    %cst = arith.constant dense<0.000000e+00> : vector<8x768xf32>
    %3 = tpu.matmul %1, %2, %cst {dimension_numbers = #tpu.dot_dimension_numbers<[1], [0], [0], [1], [0, 0, 1, 1], [], []>} : vector<8x256xbf16>, vector<256x768xbf16>, vector<8x768xf32> -> vector<8x768xf32>
    %c0_3 = arith.constant 0 : index
    %c0_4 = arith.constant 0 : index
    %4 = vector.load %arg3[%c0_3, %c0_4] : memref<1x768xf32, #tpu.memory_space<vmem>>, vector<1x768xf32>
    %5 = vector.broadcast %4 : vector<1x768xf32> to vector<8x768xf32>
    %6 = arith.addf %3, %5 : vector<8x768xf32>
    %7 = vector.extract_strided_slice %6 {offsets = [0, 0], sizes = [8, 64], strides = [1, 1]} : vector<8x768xf32> to vector<8x64xf32>
    %8 = arith.truncf %7 : vector<8x64xf32> to vector<8x64xbf16>
    %9 = vector.extract_strided_slice %6 {offsets = [0, 256], sizes = [8, 64], strides = [1, 1]} : vector<8x768xf32> to vector<8x64xf32>
    %10 = arith.truncf %9 : vector<8x64xf32> to vector<8x64xbf16>
    %11 = vector.extract_strided_slice %6 {offsets = [0, 512], sizes = [8, 64], strides = [1, 1]} : vector<8x768xf32> to vector<8x64xf32>
    %12 = arith.truncf %11 : vector<8x64xf32> to vector<8x64xbf16>
    %cst_5 = arith.constant dense<0.000000e+00> : vector<8x8xf32>
    %13 = tpu.matmul %8, %10, %cst_5 {dimension_numbers = #tpu.dot_dimension_numbers<[1], [1], [0], [0], [0, 0, 1, 0], [], []>} : vector<8x64xbf16>, vector<8x64xbf16>, vector<8x8xf32> -> vector<8x8xf32>
    %cst_6 = arith.constant 1.250000e-01 : f32
    %14 = vector.broadcast %cst_6 : f32 to vector<8x8xf32>
    %15 = arith.mulf %13, %14 : vector<8x8xf32>
    %cst_7 = arith.constant dense<0xFF800000> : vector<8xf32>
    %16 = vector.multi_reduction <maximumf>, %15, %cst_7 [1] : vector<8x8xf32> to vector<8xf32>
    %17 = vector.shape_cast %16 : vector<8xf32> to vector<8x1xf32>
    %18 = vector.broadcast %17 : vector<8x1xf32> to vector<8x8xf32>
    %19 = arith.subf %15, %18 : vector<8x8xf32>
    %20 = math.exp %19 : vector<8x8xf32>
    %cst_8 = arith.constant dense<0.000000e+00> : vector<8xf32>
    %21 = vector.multi_reduction <add>, %20, %cst_8 [1] : vector<8x8xf32> to vector<8xf32>
    %22 = vector.shape_cast %21 : vector<8xf32> to vector<8x1xf32>
    %23 = arith.truncf %20 : vector<8x8xf32> to vector<8x8xbf16>
    %cst_9 = arith.constant dense<0.000000e+00> : vector<8x64xf32>
    %24 = tpu.matmul %23, %12, %cst_9 {dimension_numbers = #tpu.dot_dimension_numbers<[1], [0], [0], [1], [0, 0, 1, 1], [], []>} : vector<8x8xbf16>, vector<8x64xbf16>, vector<8x64xf32> -> vector<8x64xf32>
    %25 = tpu.reciprocal %22 {approx = true} : vector<8x1xf32> -> vector<8x1xf32>
    %26 = vector.broadcast %25 : vector<8x1xf32> to vector<8x64xf32>
    %27 = arith.mulf %24, %26 : vector<8x64xf32>
    %28 = vector.extract_strided_slice %6 {offsets = [0, 64], sizes = [8, 64], strides = [1, 1]} : vector<8x768xf32> to vector<8x64xf32>
    %29 = arith.truncf %28 : vector<8x64xf32> to vector<8x64xbf16>
    %30 = vector.extract_strided_slice %6 {offsets = [0, 320], sizes = [8, 64], strides = [1, 1]} : vector<8x768xf32> to vector<8x64xf32>
    %31 = arith.truncf %30 : vector<8x64xf32> to vector<8x64xbf16>
    %32 = vector.extract_strided_slice %6 {offsets = [0, 576], sizes = [8, 64], strides = [1, 1]} : vector<8x768xf32> to vector<8x64xf32>
    %33 = arith.truncf %32 : vector<8x64xf32> to vector<8x64xbf16>
    %cst_10 = arith.constant dense<0.000000e+00> : vector<8x8xf32>
    %34 = tpu.matmul %29, %31, %cst_10 {dimension_numbers = #tpu.dot_dimension_numbers<[1], [1], [0], [0], [0, 0, 1, 0], [], []>} : vector<8x64xbf16>, vector<8x64xbf16>, vector<8x8xf32> -> vector<8x8xf32>
    %cst_11 = arith.constant 1.250000e-01 : f32
    %35 = vector.broadcast %cst_11 : f32 to vector<8x8xf32>
    %36 = arith.mulf %34, %35 : vector<8x8xf32>
    %cst_12 = arith.constant dense<0xFF800000> : vector<8xf32>
    %37 = vector.multi_reduction <maximumf>, %36, %cst_12 [1] : vector<8x8xf32> to vector<8xf32>
    %38 = vector.shape_cast %37 : vector<8xf32> to vector<8x1xf32>
    %39 = vector.broadcast %38 : vector<8x1xf32> to vector<8x8xf32>
    %40 = arith.subf %36, %39 : vector<8x8xf32>
    %41 = math.exp %40 : vector<8x8xf32>
    %cst_13 = arith.constant dense<0.000000e+00> : vector<8xf32>
    %42 = vector.multi_reduction <add>, %41, %cst_13 [1] : vector<8x8xf32> to vector<8xf32>
    %43 = vector.shape_cast %42 : vector<8xf32> to vector<8x1xf32>
    %44 = arith.truncf %41 : vector<8x8xf32> to vector<8x8xbf16>
    %cst_14 = arith.constant dense<0.000000e+00> : vector<8x64xf32>
    %45 = tpu.matmul %44, %33, %cst_14 {dimension_numbers = #tpu.dot_dimension_numbers<[1], [0], [0], [1], [0, 0, 1, 1], [], []>} : vector<8x8xbf16>, vector<8x64xbf16>, vector<8x64xf32> -> vector<8x64xf32>
    %46 = tpu.reciprocal %43 {approx = true} : vector<8x1xf32> -> vector<8x1xf32>
    %47 = vector.broadcast %46 : vector<8x1xf32> to vector<8x64xf32>
    %48 = arith.mulf %45, %47 : vector<8x64xf32>
    %49 = vector.extract_strided_slice %6 {offsets = [0, 128], sizes = [8, 64], strides = [1, 1]} : vector<8x768xf32> to vector<8x64xf32>
    %50 = arith.truncf %49 : vector<8x64xf32> to vector<8x64xbf16>
    %51 = vector.extract_strided_slice %6 {offsets = [0, 384], sizes = [8, 64], strides = [1, 1]} : vector<8x768xf32> to vector<8x64xf32>
    %52 = arith.truncf %51 : vector<8x64xf32> to vector<8x64xbf16>
    %53 = vector.extract_strided_slice %6 {offsets = [0, 640], sizes = [8, 64], strides = [1, 1]} : vector<8x768xf32> to vector<8x64xf32>
    %54 = arith.truncf %53 : vector<8x64xf32> to vector<8x64xbf16>
    %cst_15 = arith.constant dense<0.000000e+00> : vector<8x8xf32>
    %55 = tpu.matmul %50, %52, %cst_15 {dimension_numbers = #tpu.dot_dimension_numbers<[1], [1], [0], [0], [0, 0, 1, 0], [], []>} : vector<8x64xbf16>, vector<8x64xbf16>, vector<8x8xf32> -> vector<8x8xf32>
    %cst_16 = arith.constant 1.250000e-01 : f32
    %56 = vector.broadcast %cst_16 : f32 to vector<8x8xf32>
    %57 = arith.mulf %55, %56 : vector<8x8xf32>
    %cst_17 = arith.constant dense<0xFF800000> : vector<8xf32>
    %58 = vector.multi_reduction <maximumf>, %57, %cst_17 [1] : vector<8x8xf32> to vector<8xf32>
    %59 = vector.shape_cast %58 : vector<8xf32> to vector<8x1xf32>
    %60 = vector.broadcast %59 : vector<8x1xf32> to vector<8x8xf32>
    %61 = arith.subf %57, %60 : vector<8x8xf32>
    %62 = math.exp %61 : vector<8x8xf32>
    %cst_18 = arith.constant dense<0.000000e+00> : vector<8xf32>
    %63 = vector.multi_reduction <add>, %62, %cst_18 [1] : vector<8x8xf32> to vector<8xf32>
    %64 = vector.shape_cast %63 : vector<8xf32> to vector<8x1xf32>
    %65 = arith.truncf %62 : vector<8x8xf32> to vector<8x8xbf16>
    %cst_19 = arith.constant dense<0.000000e+00> : vector<8x64xf32>
    %66 = tpu.matmul %65, %54, %cst_19 {dimension_numbers = #tpu.dot_dimension_numbers<[1], [0], [0], [1], [0, 0, 1, 1], [], []>} : vector<8x8xbf16>, vector<8x64xbf16>, vector<8x64xf32> -> vector<8x64xf32>
    %67 = tpu.reciprocal %64 {approx = true} : vector<8x1xf32> -> vector<8x1xf32>
    %68 = vector.broadcast %67 : vector<8x1xf32> to vector<8x64xf32>
    %69 = arith.mulf %66, %68 : vector<8x64xf32>
    %70 = vector.extract_strided_slice %6 {offsets = [0, 192], sizes = [8, 64], strides = [1, 1]} : vector<8x768xf32> to vector<8x64xf32>
    %71 = arith.truncf %70 : vector<8x64xf32> to vector<8x64xbf16>
    %72 = vector.extract_strided_slice %6 {offsets = [0, 448], sizes = [8, 64], strides = [1, 1]} : vector<8x768xf32> to vector<8x64xf32>
    %73 = arith.truncf %72 : vector<8x64xf32> to vector<8x64xbf16>
    %74 = vector.extract_strided_slice %6 {offsets = [0, 704], sizes = [8, 64], strides = [1, 1]} : vector<8x768xf32> to vector<8x64xf32>
    %75 = arith.truncf %74 : vector<8x64xf32> to vector<8x64xbf16>
    %cst_20 = arith.constant dense<0.000000e+00> : vector<8x8xf32>
    %76 = tpu.matmul %71, %73, %cst_20 {dimension_numbers = #tpu.dot_dimension_numbers<[1], [1], [0], [0], [0, 0, 1, 0], [], []>} : vector<8x64xbf16>, vector<8x64xbf16>, vector<8x8xf32> -> vector<8x8xf32>
    %cst_21 = arith.constant 1.250000e-01 : f32
    %77 = vector.broadcast %cst_21 : f32 to vector<8x8xf32>
    %78 = arith.mulf %76, %77 : vector<8x8xf32>
    %cst_22 = arith.constant dense<0xFF800000> : vector<8xf32>
    %79 = vector.multi_reduction <maximumf>, %78, %cst_22 [1] : vector<8x8xf32> to vector<8xf32>
    %80 = vector.shape_cast %79 : vector<8xf32> to vector<8x1xf32>
    %81 = vector.broadcast %80 : vector<8x1xf32> to vector<8x8xf32>
    %82 = arith.subf %78, %81 : vector<8x8xf32>
    %83 = math.exp %82 : vector<8x8xf32>
    %cst_23 = arith.constant dense<0.000000e+00> : vector<8xf32>
    %84 = vector.multi_reduction <add>, %83, %cst_23 [1] : vector<8x8xf32> to vector<8xf32>
    %85 = vector.shape_cast %84 : vector<8xf32> to vector<8x1xf32>
    %86 = arith.truncf %83 : vector<8x8xf32> to vector<8x8xbf16>
    %cst_24 = arith.constant dense<0.000000e+00> : vector<8x64xf32>
    %87 = tpu.matmul %86, %75, %cst_24 {dimension_numbers = #tpu.dot_dimension_numbers<[1], [0], [0], [1], [0, 0, 1, 1], [], []>} : vector<8x8xbf16>, vector<8x64xbf16>, vector<8x64xf32> -> vector<8x64xf32>
    %88 = tpu.reciprocal %85 {approx = true} : vector<8x1xf32> -> vector<8x1xf32>
    %89 = vector.broadcast %88 : vector<8x1xf32> to vector<8x64xf32>
    %90 = arith.mulf %87, %89 : vector<8x64xf32>
    %91 = tpu.concatenate %27, %48, %69, %90 in 1 : vector<8x64xf32>, vector<8x64xf32>, vector<8x64xf32>, vector<8x64xf32> -> vector<8x256xf32>
    %92 = arith.truncf %91 : vector<8x256xf32> to vector<8x256xbf16>
    %c0_25 = arith.constant 0 : index
    %c0_26 = arith.constant 0 : index
    %93 = vector.load %arg4[%c0_25, %c0_26] : memref<256x256xbf16, #tpu.memory_space<vmem>>, vector<256x256xbf16>
    %cst_27 = arith.constant dense<0.000000e+00> : vector<8x256xf32>
    %94 = tpu.matmul %92, %93, %cst_27 {dimension_numbers = #tpu.dot_dimension_numbers<[1], [0], [0], [1], [0, 0, 1, 1], [], []>} : vector<8x256xbf16>, vector<256x256xbf16>, vector<8x256xf32> -> vector<8x256xf32>
    %c0_28 = arith.constant 0 : index
    %c0_29 = arith.constant 0 : index
    %95 = vector.load %arg5[%c0_28, %c0_29] : memref<1x256xf32, #tpu.memory_space<vmem>>, vector<1x256xf32>
    %96 = vector.broadcast %95 : vector<1x256xf32> to vector<8x256xf32>
    %97 = arith.addf %94, %96 : vector<8x256xf32>
    %98 = arith.addf %0, %97 : vector<8x256xf32>
    %cst_30 = arith.constant dense<0.000000e+00> : vector<8xf32>
    %99 = vector.multi_reduction <add>, %98, %cst_30 [1] : vector<8x256xf32> to vector<8xf32>
    %100 = vector.shape_cast %99 : vector<8xf32> to vector<8x1xf32>
    %cst_31 = arith.constant 2.560000e+02 : f32
    %101 = vector.broadcast %cst_31 : f32 to vector<8x1xf32>
    %102 = arith.divf %100, %101 : vector<8x1xf32>
    %103 = vector.broadcast %102 : vector<8x1xf32> to vector<8x256xf32>
    %104 = arith.subf %98, %103 : vector<8x256xf32>
    %105 = arith.mulf %104, %104 : vector<8x256xf32>
    %cst_32 = arith.constant dense<0.000000e+00> : vector<8xf32>
    %106 = vector.multi_reduction <add>, %105, %cst_32 [1] : vector<8x256xf32> to vector<8xf32>
    %107 = vector.shape_cast %106 : vector<8xf32> to vector<8x1xf32>
    %cst_33 = arith.constant 2.560000e+02 : f32
    %108 = vector.broadcast %cst_33 : f32 to vector<8x1xf32>
    %109 = arith.divf %107, %108 : vector<8x1xf32>
    %cst_34 = arith.constant 9.99999974E-6 : f32
    %110 = vector.broadcast %cst_34 : f32 to vector<8x1xf32>
    %111 = arith.addf %109, %110 : vector<8x1xf32>
    %112 = math.rsqrt %111 : vector<8x1xf32>
    %113 = vector.broadcast %112 : vector<8x1xf32> to vector<8x256xf32>
    %114 = arith.mulf %104, %113 : vector<8x256xf32>
    %c0_35 = arith.constant 0 : index
    %c0_36 = arith.constant 0 : index
    %115 = vector.load %arg6[%c0_35, %c0_36] : memref<1x256xf32, #tpu.memory_space<vmem>>, vector<1x256xf32>
    %116 = vector.broadcast %115 : vector<1x256xf32> to vector<8x256xf32>
    %117 = arith.mulf %114, %116 : vector<8x256xf32>
    %c0_37 = arith.constant 0 : index
    %c0_38 = arith.constant 0 : index
    %118 = vector.load %arg7[%c0_37, %c0_38] : memref<1x256xf32, #tpu.memory_space<vmem>>, vector<1x256xf32>
    %119 = vector.broadcast %118 : vector<1x256xf32> to vector<8x256xf32>
    %120 = arith.addf %117, %119 : vector<8x256xf32>
    %121 = arith.truncf %120 : vector<8x256xf32> to vector<8x256xbf16>
    %c0_39 = arith.constant 0 : index
    %c0_40 = arith.constant 0 : index
    %122 = vector.load %arg8[%c0_39, %c0_40] : memref<256x512xbf16, #tpu.memory_space<vmem>>, vector<256x512xbf16>
    %cst_41 = arith.constant dense<0.000000e+00> : vector<8x512xf32>
    %123 = tpu.matmul %121, %122, %cst_41 {dimension_numbers = #tpu.dot_dimension_numbers<[1], [0], [0], [1], [0, 0, 1, 1], [], []>} : vector<8x256xbf16>, vector<256x512xbf16>, vector<8x512xf32> -> vector<8x512xf32>
    %c0_42 = arith.constant 0 : index
    %c0_43 = arith.constant 0 : index
    %124 = vector.load %arg9[%c0_42, %c0_43] : memref<1x512xf32, #tpu.memory_space<vmem>>, vector<1x512xf32>
    %125 = vector.broadcast %124 : vector<1x512xf32> to vector<8x512xf32>
    %126 = arith.addf %123, %125 : vector<8x512xf32>
    %cst_44 = arith.constant 0.000000e+00 : f32
    %127 = vector.broadcast %cst_44 : f32 to vector<8x512xf32>
    %128 = arith.maximumf %126, %127 : vector<8x512xf32>
    %129 = arith.truncf %128 : vector<8x512xf32> to vector<8x512xbf16>
    %c0_45 = arith.constant 0 : index
    %c0_46 = arith.constant 0 : index
    %130 = vector.load %arg10[%c0_45, %c0_46] : memref<512x256xbf16, #tpu.memory_space<vmem>>, vector<512x256xbf16>
    %cst_47 = arith.constant dense<0.000000e+00> : vector<8x256xf32>
    %131 = tpu.matmul %129, %130, %cst_47 {dimension_numbers = #tpu.dot_dimension_numbers<[1], [0], [0], [1], [0, 0, 1, 1], [], []>} : vector<8x512xbf16>, vector<512x256xbf16>, vector<8x256xf32> -> vector<8x256xf32>
    %c0_48 = arith.constant 0 : index
    %c0_49 = arith.constant 0 : index
    %132 = vector.load %arg11[%c0_48, %c0_49] : memref<1x256xf32, #tpu.memory_space<vmem>>, vector<1x256xf32>
    %133 = vector.broadcast %132 : vector<1x256xf32> to vector<8x256xf32>
    %134 = arith.addf %131, %133 : vector<8x256xf32>
    %135 = arith.addf %120, %134 : vector<8x256xf32>
    %cst_50 = arith.constant dense<0.000000e+00> : vector<8xf32>
    %136 = vector.multi_reduction <add>, %135, %cst_50 [1] : vector<8x256xf32> to vector<8xf32>
    %137 = vector.shape_cast %136 : vector<8xf32> to vector<8x1xf32>
    %cst_51 = arith.constant 2.560000e+02 : f32
    %138 = vector.broadcast %cst_51 : f32 to vector<8x1xf32>
    %139 = arith.divf %137, %138 : vector<8x1xf32>
    %140 = vector.broadcast %139 : vector<8x1xf32> to vector<8x256xf32>
    %141 = arith.subf %135, %140 : vector<8x256xf32>
    %142 = arith.mulf %141, %141 : vector<8x256xf32>
    %cst_52 = arith.constant dense<0.000000e+00> : vector<8xf32>
    %143 = vector.multi_reduction <add>, %142, %cst_52 [1] : vector<8x256xf32> to vector<8xf32>
    %144 = vector.shape_cast %143 : vector<8xf32> to vector<8x1xf32>
    %cst_53 = arith.constant 2.560000e+02 : f32
    %145 = vector.broadcast %cst_53 : f32 to vector<8x1xf32>
    %146 = arith.divf %144, %145 : vector<8x1xf32>
    %cst_54 = arith.constant 9.99999974E-6 : f32
    %147 = vector.broadcast %cst_54 : f32 to vector<8x1xf32>
    %148 = arith.addf %146, %147 : vector<8x1xf32>
    %149 = math.rsqrt %148 : vector<8x1xf32>
    %150 = vector.broadcast %149 : vector<8x1xf32> to vector<8x256xf32>
    %151 = arith.mulf %141, %150 : vector<8x256xf32>
    %c0_55 = arith.constant 0 : index
    %c0_56 = arith.constant 0 : index
    %152 = vector.load %arg12[%c0_55, %c0_56] : memref<1x256xf32, #tpu.memory_space<vmem>>, vector<1x256xf32>
    %153 = vector.broadcast %152 : vector<1x256xf32> to vector<8x256xf32>
    %154 = arith.mulf %151, %153 : vector<8x256xf32>
    %c0_57 = arith.constant 0 : index
    %c0_58 = arith.constant 0 : index
    %155 = vector.load %arg13[%c0_57, %c0_58] : memref<1x256xf32, #tpu.memory_space<vmem>>, vector<1x256xf32>
    %156 = vector.broadcast %155 : vector<1x256xf32> to vector<8x256xf32>
    %157 = arith.addf %154, %156 : vector<8x256xf32>
    %c0_59 = arith.constant 0 : index
    %c0_60 = arith.constant 0 : index
    %158 = vector.load %arg14[%c0_59, %c0_60] : memref<8x256xf32, #tpu.memory_space<vmem>>, vector<8x256xf32>
    tpu.vector_store %arg14[%c0_59, %c0_60], %157 {strides = array<i32>} : memref<8x256xf32, #tpu.memory_space<vmem>>, vector<8x256xf32>,
    return
  }
  func.func @transform_0(%arg0: i32) -> (i32, i32) {
    %c0_i32 = arith.constant 0 : i32
    %c0_i32_0 = arith.constant 0 : i32
    return %arg0, %c0_i32 : i32, i32
  }
  func.func @transform_1(%arg0: i32) -> (i32, i32) {
    %c0_i32 = arith.constant 0 : i32
    %c0_i32_0 = arith.constant 0 : i32
    %c0_i32_1 = arith.constant 0 : i32
    return %c0_i32, %c0_i32_0 : i32, i32
  }
  func.func @transform_2(%arg0: i32) -> (i32, i32) {
    %c0_i32 = arith.constant 0 : i32
    %c0_i32_0 = arith.constant 0 : i32
    %c0_i32_1 = arith.constant 0 : i32
    return %c0_i32, %c0_i32_0 : i32, i32
  }
  func.func @transform_3(%arg0: i32) -> (i32, i32) {
    %c0_i32 = arith.constant 0 : i32
    %c0_i32_0 = arith.constant 0 : i32
    %c0_i32_1 = arith.constant 0 : i32
    return %c0_i32, %c0_i32_0 : i32, i32
  }
  func.func @transform_4(%arg0: i32) -> (i32, i32) {
    %c0_i32 = arith.constant 0 : i32
    %c0_i32_0 = arith.constant 0 : i32
    %c0_i32_1 = arith.constant 0 : i32
    return %c0_i32, %c0_i32_0 : i32, i32
  }
  func.func @transform_5(%arg0: i32) -> (i32, i32) {
    %c0_i32 = arith.constant 0 : i32
    %c0_i32_0 = arith.constant 0 : i32
    %c0_i32_1 = arith.constant 0 : i32
    return %c0_i32, %c0_i32_0 : i32, i32
  }
  func.func @transform_6(%arg0: i32) -> (i32, i32) {
    %c0_i32 = arith.constant 0 : i32
    %c0_i32_0 = arith.constant 0 : i32
    %c0_i32_1 = arith.constant 0 : i32
    return %c0_i32, %c0_i32_0 : i32, i32
  }
  func.func @transform_7(%arg0: i32) -> (i32, i32) {
    %c0_i32 = arith.constant 0 : i32
    %c0_i32_0 = arith.constant 0 : i32
    %c0_i32_1 = arith.constant 0 : i32
    return %c0_i32, %c0_i32_0 : i32, i32
  }
  func.func @transform_8(%arg0: i32) -> (i32, i32) {
    %c0_i32 = arith.constant 0 : i32
    %c0_i32_0 = arith.constant 0 : i32
    %c0_i32_1 = arith.constant 0 : i32
    return %c0_i32, %c0_i32_0 : i32, i32
  }
  func.func @transform_9(%arg0: i32) -> (i32, i32) {
    %c0_i32 = arith.constant 0 : i32
    %c0_i32_0 = arith.constant 0 : i32
    %c0_i32_1 = arith.constant 0 : i32
    return %c0_i32, %c0_i32_0 : i32, i32
  }
  func.func @transform_10(%arg0: i32) -> (i32, i32) {
    %c0_i32 = arith.constant 0 : i32
    %c0_i32_0 = arith.constant 0 : i32
    %c0_i32_1 = arith.constant 0 : i32
    return %c0_i32, %c0_i32_0 : i32, i32
  }
  func.func @transform_11(%arg0: i32) -> (i32, i32) {
    %c0_i32 = arith.constant 0 : i32
    %c0_i32_0 = arith.constant 0 : i32
    %c0_i32_1 = arith.constant 0 : i32
    return %c0_i32, %c0_i32_0 : i32, i32
  }
  func.func @transform_12(%arg0: i32) -> (i32, i32) {
    %c0_i32 = arith.constant 0 : i32
    %c0_i32_0 = arith.constant 0 : i32
    %c0_i32_1 = arith.constant 0 : i32
    return %c0_i32, %c0_i32_0 : i32, i32
  }
  func.func @transform_13(%arg0: i32) -> (i32, i32) {
    %c0_i32 = arith.constant 0 : i32
    %c0_i32_0 = arith.constant 0 : i32
    return %arg0, %c0_i32 : i32, i32
  }
}

module attributes {stable_mosaic.version = 11 : i64} {
  func.func @_linear_kernel(%arg0: i32, %arg1: memref<8x256xf32, #tpu.memory_space<vmem>>, %arg2: memref<256x6xbf16, #tpu.memory_space<vmem>>, %arg3: memref<1x6xf32, #tpu.memory_space<vmem>>, %arg4: memref<8x6xf32, #tpu.memory_space<vmem>>) attributes {dimension_semantics = [#tpu.dimension_semantics<parallel>], iteration_bounds = array<i64: 1>, scalar_prefetch = 0 : i64, scratch_operands = 0 : i64, tpu.core_type = #tpu.core_type<tc>, window_params = [{transform_indices = @transform_0, window_bounds = array<i64: 8, 256>}, {pipeline_mode = #tpu.pipeline_mode<synchronous>, transform_indices = @transform_1, window_bounds = array<i64: 256, 6>}, {pipeline_mode = #tpu.pipeline_mode<synchronous>, transform_indices = @transform_2, window_bounds = array<i64: 1, 6>}, {transform_indices = @transform_3, window_bounds = array<i64: 8, 6>}]} {
    %c0 = arith.constant 0 : index
    %c0_0 = arith.constant 0 : index
    %0 = vector.load %arg1[%c0, %c0_0] : memref<8x256xf32, #tpu.memory_space<vmem>>, vector<8x256xf32>
    %1 = arith.truncf %0 : vector<8x256xf32> to vector<8x256xbf16>
    %c0_1 = arith.constant 0 : index
    %c0_2 = arith.constant 0 : index
    %2 = vector.load %arg2[%c0_1, %c0_2] : memref<256x6xbf16, #tpu.memory_space<vmem>>, vector<256x6xbf16>
    %cst = arith.constant dense<0.000000e+00> : vector<8x6xf32>
    %3 = tpu.matmul %1, %2, %cst {dimension_numbers = #tpu.dot_dimension_numbers<[1], [0], [0], [1], [0, 0, 1, 1], [], []>} : vector<8x256xbf16>, vector<256x6xbf16>, vector<8x6xf32> -> vector<8x6xf32>
    %c0_3 = arith.constant 0 : index
    %c0_4 = arith.constant 0 : index
    %4 = vector.load %arg3[%c0_3, %c0_4] : memref<1x6xf32, #tpu.memory_space<vmem>>, vector<1x6xf32>
    %5 = vector.broadcast %4 : vector<1x6xf32> to vector<8x6xf32>
    %6 = arith.addf %3, %5 : vector<8x6xf32>
    %c0_5 = arith.constant 0 : index
    %c0_6 = arith.constant 0 : index
    %7 = vector.load %arg4[%c0_5, %c0_6] : memref<8x6xf32, #tpu.memory_space<vmem>>, vector<8x6xf32>
    tpu.vector_store %arg4[%c0_5, %c0_6], %6 {strides = array<i32>} : memref<8x6xf32, #tpu.memory_space<vmem>>, vector<8x6xf32>,
    return
  }
  func.func @transform_0(%arg0: i32) -> (i32, i32) {
    %c0_i32 = arith.constant 0 : i32
    %c0_i32_0 = arith.constant 0 : i32
    return %arg0, %c0_i32 : i32, i32
  }
  func.func @transform_1(%arg0: i32) -> (i32, i32) {
    %c0_i32 = arith.constant 0 : i32
    %c0_i32_0 = arith.constant 0 : i32
    %c0_i32_1 = arith.constant 0 : i32
    return %c0_i32, %c0_i32_0 : i32, i32
  }
  func.func @transform_2(%arg0: i32) -> (i32, i32) {
    %c0_i32 = arith.constant 0 : i32
    %c0_i32_0 = arith.constant 0 : i32
    %c0_i32_1 = arith.constant 0 : i32
    return %c0_i32, %c0_i32_0 : i32, i32
  }
  func.func @transform_3(%arg0: i32) -> (i32, i32) {
    %c0_i32 = arith.constant 0 : i32
    %c0_i32_0 = arith.constant 0 : i32
    return %arg0, %c0_i32 : i32, i32
  }
}

</mosaic_0001>

<llo_original>
// kernel: tf_nn_forward.5
$region0: #{tf_nn_forward.5}
  #allocation0 [shape = 'u32[]', space=smem, size = 0x4, offset = 0x4, fixed_abs, tag = 'smem constant byte address 0x4 - core index']
  #allocation1 [shape = 'u32[144,128]{1,0:T(1,128)}', space=vmem, size = 0x12000, scoped, tag = 'internal scratch']
  %s0 = inlined_call_operand.vmem [shape: bf16[2,8,60], index: 0, kind: input, shape index: {}]
  %s1 = inlined_call_operand.vmem [shape: bf16[2,8,60], index: 1, kind: input, shape index: {}]
  %s2 = inlined_call_operand.hbm [shape: bf16[60,512], index: 2, kind: input, shape index: {}]
  %s3 = inlined_call_operand.vmem [shape: f32[1,512], index: 3, kind: input, shape index: {}]
  %s4 = inlined_call_operand.vmem [shape: f32[2,8,512], index: 4, kind: output, shape index: {}]
  %s5 = sld [smem:[#allocation0]]
  $region53: #{tf_nn_forward.5} parent=0
    _
  %s7 = ssub.s32 1, %s5
  %s8 = scalar_select 0, %s7, %s5
  $region1: #{tf_nn_forward.5} parent=0
    #allocation2 [shape = 'u8[65536]{0}', space=vmem, size = 0x10000, scoped, tag = 'input window, operand 2, single buffered']
    #allocation3 [shape = 's32[2]{0}', space=sflag, size = 0x8, scoped, tag = 'scoped memory for tf_nn_forward.5']
    %9 = vsyncpa [#allocation3], 0
    loop: start=0, step=1, limit=4
    $region2: #{tf_nn_forward.5} parent=1 // loop_pre_header
      _
    $region3: #{tf_nn_forward.5} parent=1 // loop_header
      %s11 = sphi 0, %s15
      %p12 = scmp.ge.s32.totalorder %s11, 4
      %s18 = sphi 0, %s30
      %s19 = sphi 0, %s26
      %s20 = sphi 0, %s18
      %s21 = sphi 0, %s19
      %s22 = sphi 0, %s20
      %s23 = sphi 0, %s21
      %s35 = sphi 0, %s37
      %s38 = sphi 0, %s35
      %s39 = sphi 0, %s38
      %s55 = sphi 0, %s39
      %s63 = sphi 0, %s65
      %s66 = sphi 0, %s63
      %s67 = sphi 0, %s66
      %s83 = sphi 0, %s67
      %s87 = sphi 0, %s87
      %s89 = sphi 0, %s87
      %s90 = sphi 0, %s89
      %s104 = sphi 0, %s90
      %s108 = sphi 0, %s108
      %s110 = sphi 0, %s108
      %s111 = sphi 0, %s110
      %s125 = sphi 0, %s111
      %s133 = sphi 0, %s135
      %s136 = sphi 0, %s133
      %s137 = sphi 0, %s136
      %s153 = sphi 0, %s137
    $region4: #{tf_nn_forward.5} parent=1 // loop_header_branch
      %14 = sbr.rel (%p12) target = $region8
    $region5: #{tf_nn_forward.5} parent=1 // loop_body
      %s16 = ssub.s32 %s11, 1
      %s17 = ssub.s32 %s11, 2
      %s24 = sadd.s32 1, %s19
      %p25 = scmp.ge.s32.totalorder %s24, 1
      %s26 = scalar_select %p25, 0, %s24
      %s27 = sadd.s32 1, %s18
      %s28 = scalar_select %p25, %s27, %s18
      %p29 = scmp.ge.s32.totalorder %s28, 2
      %s30 = scalar_select %p29, 0, %s28
      %s31 = ssub.s32 %s18, %s30
      %s32 = ssub.s32 %s19, %s26
      %s33 = sor.u32 %s31, %s32
      %p34 = scmp.eq.s32.totalorder %s33, 0
      %s36 = sadd.s32 %s35, 1
      %s37 = scalar_select %p34, %s35, %s36
      %p40 = pneg %p34
      %p41 = scmp.eq.s32.totalorder %s11, 1
      %p42 = por %p40, %p41
      %p43 = scmp.ne.s32.totalorder %s35, %s38
      %p44 = scmp.eq.s32.totalorder %s11, 0
      %p45 = por %p43, %p44
      %p46 = scmp.ne.s32.totalorder %s35, %s38
      %p47 = scmp.eq.s32.totalorder %s16, 1
      %p48 = por %p46, %p47
      %p49 = scmp.ne.s32.totalorder %s38, %s39
      %p50 = scmp.eq.s32.totalorder %s16, 0
      %p51 = por %p49, %p50
      %p52 = scmp.ne.s32.totalorder %s38, %s39
      %p53 = scmp.eq.s32.totalorder %s17, 1
      %p54 = por %p52, %p53
      %p56 = scmp.ne.s32.totalorder %s39, %s55
      %p57 = scmp.eq.s32.totalorder %s17, 0
      %p58 = por %p56, %p57
      %s59 = ssub.s32 %s18, %s30
      %s60 = ssub.s32 %s19, %s26
      %s61 = sor.u32 %s59, %s60
      %p62 = scmp.eq.s32.totalorder %s61, 0
      %s64 = sadd.s32 %s63, 1
      %s65 = scalar_select %p62, %s63, %s64
      %p68 = pneg %p62
      %p69 = scmp.eq.s32.totalorder %s11, 1
      %p70 = por %p68, %p69
      %p71 = scmp.ne.s32.totalorder %s63, %s66
      %p72 = scmp.eq.s32.totalorder %s11, 0
      %p73 = por %p71, %p72
      %p74 = scmp.ne.s32.totalorder %s63, %s66
      %p75 = scmp.eq.s32.totalorder %s16, 1
      %p76 = por %p74, %p75
      %p77 = scmp.ne.s32.totalorder %s66, %s67
      %p78 = scmp.eq.s32.totalorder %s16, 0
      %p79 = por %p77, %p78
      %p80 = scmp.ne.s32.totalorder %s66, %s67
      %p81 = scmp.eq.s32.totalorder %s17, 1
      %p82 = por %p80, %p81
      %p84 = scmp.ne.s32.totalorder %s67, %s83
      %p85 = scmp.eq.s32.totalorder %s17, 0
      %p86 = por %p84, %p85
      %s88 = sadd.s32 %s87, 1
      %p91 = scmp.eq.s32.totalorder %s11, 1
      %p92 = scmp.ne.s32.totalorder %s87, %s89
      %p93 = scmp.eq.s32.totalorder %s11, 0
      %p94 = por %p92, %p93
      %p95 = scmp.ne.s32.totalorder %s87, %s89
      %p96 = scmp.eq.s32.totalorder %s16, 1
      %p97 = por %p95, %p96
      %p98 = scmp.ne.s32.totalorder %s89, %s90
      %p99 = scmp.eq.s32.totalorder %s16, 0
      %p100 = por %p98, %p99
      %p101 = scmp.ne.s32.totalorder %s89, %s90
      %p102 = scmp.eq.s32.totalorder %s17, 1
      %p103 = por %p101, %p102
      %p105 = scmp.ne.s32.totalorder %s90, %s104
      %p106 = scmp.eq.s32.totalorder %s17, 0
      %p107 = por %p105, %p106
      %s109 = sadd.s32 %s108, 1
      %p112 = scmp.eq.s32.totalorder %s11, 1
      %p113 = scmp.ne.s32.totalorder %s108, %s110
      %p114 = scmp.eq.s32.totalorder %s11, 0
      %p115 = por %p113, %p114
      %p116 = scmp.ne.s32.totalorder %s108, %s110
      %p117 = scmp.eq.s32.totalorder %s16, 1
      %p118 = por %p116, %p117
      %p119 = scmp.ne.s32.totalorder %s110, %s111
      %p120 = scmp.eq.s32.totalorder %s16, 0
      %p121 = por %p119, %p120
      %p122 = scmp.ne.s32.totalorder %s110, %s111
      %p123 = scmp.eq.s32.totalorder %s17, 1
      %p124 = por %p122, %p123
      %p126 = scmp.ne.s32.totalorder %s111, %s125
      %p127 = scmp.eq.s32.totalorder %s17, 0
      %p128 = por %p126, %p127
      %s129 = ssub.s32 %s18, %s30
      %s130 = ssub.s32 %s19, %s26
      %s131 = sor.u32 %s129, %s130
      %p132 = scmp.eq.s32.totalorder %s131, 0
      %s134 = sadd.s32 %s133, 1
      %s135 = scalar_select %p132, %s133, %s134
      %p138 = pneg %p132
      %p139 = scmp.eq.s32.totalorder %s11, 1
      %p140 = por %p138, %p139
      %p141 = scmp.ne.s32.totalorder %s133, %s136
      %p142 = scmp.eq.s32.totalorder %s11, 0
      %p143 = por %p141, %p142
      %p144 = scmp.ne.s32.totalorder %s133, %s136
      %p145 = scmp.eq.s32.totalorder %s16, 1
      %p146 = por %p144, %p145
      %p147 = scmp.ne.s32.totalorder %s136, %s137
      %p148 = scmp.eq.s32.totalorder %s16, 0
      %p149 = por %p147, %p148
      %p150 = scmp.ne.s32.totalorder %s136, %s137
      %p151 = scmp.eq.s32.totalorder %s17, 1
      %p152 = por %p150, %p151
      %p154 = scmp.ne.s32.totalorder %s137, %s153
      %p155 = scmp.eq.s32.totalorder %s17, 0
      %p156 = por %p154, %p155
      %p157 = scmp.le.s32.totalorder 1, %s11
      %p158 = scmp.lt.s32.totalorder %s11, 3
      %p159 = pnand %p157, %p158
      %p160 = pneg %p159
      // Predicated region
      $region9: #{tf_nn_forward.5} parent=5 // pred_check
        _
      $region10: #{tf_nn_forward.5} parent=5 // pred_check_branch
        %162 = sbr.rel (%p159) target = $region12
      $region11: #{tf_nn_forward.5} parent=5 // pred_region
        %s163 = ssub.s32 %s11, 1
        // Predicated region
        $region13: #{tf_nn_forward.5} parent=11 // pred_check
          %p164 = pneg %p100
        $region14: #{tf_nn_forward.5} parent=11 // pred_check_branch
          %166 = sbr.rel (%p164) target = $region16
        $region15: #{tf_nn_forward.5} parent=11 // pred_region
          %s168 = ssub.s32 2048, 2048
          %169 = vsyncadd [#allocation3], %s168
          %s170 = sshll.u32 [#allocation2], 4
          %s171 = int_to_ptr.vmem [resolvable:$true] %s170
          %176 = dma.hbm_to_vmem [thread:$0]  %s2, 2048, %s171, [#allocation3], 256, 256, 16
        $region16: #{tf_nn_forward.5} parent=11 // pred_fallthru
          _
        // Predicated region
        $region17: #{tf_nn_forward.5} parent=11 // pred_check
          %p177 = pneg %p121
        $region18: #{tf_nn_forward.5} parent=11 // pred_check_branch
          %179 = sbr.rel (%p177) target = $region20
        $region19: #{tf_nn_forward.5} parent=11 // pred_region
          _
        $region20: #{tf_nn_forward.5} parent=11 // pred_fallthru
          _
      $region12: #{tf_nn_forward.5} parent=5 // pred_fallthru
        _
      %p180 = scmp.lt.s32.totalorder %s11, 2
      // Predicated region
      $region21: #{tf_nn_forward.5} parent=5 // pred_check
        %p181 = pneg %p180
      $region22: #{tf_nn_forward.5} parent=5 // pred_check_branch
        %183 = sbr.rel (%p181) target = $region24
      $region23: #{tf_nn_forward.5} parent=5 // pred_region
        // Predicated region
        $region25: #{tf_nn_forward.5} parent=23 // pred_check
          %p184 = pneg %p45
        $region26: #{tf_nn_forward.5} parent=23 // pred_check_branch
          %186 = sbr.rel (%p184) target = $region28
        $region27: #{tf_nn_forward.5} parent=23 // pred_region
          %p187 = scmp.lt.s32.totalorder %s18, 1
          %s188 = scalar_select %p187, %s18, 1
          %p189 = scmp.lt.s32.totalorder %s19, 0
          %s190 = scalar_select %p189, %s19, 0
          %s191 = sadd.s32 %s190, %s188
          %s192 = smul.addr %s191, 4
          %s193 = scalar_lea.vmem %s0, %s192
        $region28: #{tf_nn_forward.5} parent=23 // pred_fallthru
          _
        // Predicated region
        $region29: #{tf_nn_forward.5} parent=23 // pred_check
          %p194 = pneg %p73
        $region30: #{tf_nn_forward.5} parent=23 // pred_check_branch
          %196 = sbr.rel (%p194) target = $region32
        $region31: #{tf_nn_forward.5} parent=23 // pred_region
          %p197 = scmp.lt.s32.totalorder %s18, 1
          %s198 = scalar_select %p197, %s18, 1
          %p199 = scmp.lt.s32.totalorder %s19, 0
          %s200 = scalar_select %p199, %s19, 0
          %s201 = sadd.s32 %s200, %s198
          %s202 = smul.addr %s201, 4
          %s203 = scalar_lea.vmem %s1, %s202
        $region32: #{tf_nn_forward.5} parent=23 // pred_fallthru
          _
      $region24: #{tf_nn_forward.5} parent=5 // pred_fallthru
        _
      %p204 = scmp.le.s32.totalorder 1, %s11
      %p205 = scmp.lt.s32.totalorder %s11, 3
      %p206 = pnand %p204, %p205
      %p207 = pneg %p206
      // Predicated region
      $region33: #{tf_nn_forward.5} parent=5 // pred_check
        _
      $region34: #{tf_nn_forward.5} parent=5 // pred_check_branch
        %209 = sbr.rel (%p206) target = $region36
      $region35: #{tf_nn_forward.5} parent=5 // pred_region
        %s210 = ssub.s32 %s11, 1
        // Predicated region
        $region37: #{tf_nn_forward.5} parent=35 // pred_check
          %p211 = pneg %p100
        $region38: #{tf_nn_forward.5} parent=35 // pred_check_branch
          %213 = sbr.rel (%p211) target = $region40
        $region39: #{tf_nn_forward.5} parent=35 // pred_region
          %214 = dma.done [#allocation3], 2048
        $region40: #{tf_nn_forward.5} parent=35 // pred_fallthru
          _
        %p215 = scmp.lt.s32.totalorder %s20, 1
        %s216 = scalar_select %p215, %s20, 1
        %p217 = scmp.lt.s32.totalorder %s21, 0
        %s218 = scalar_select %p217, %s21, 0
        %s219 = sadd.s32 %s218, %s216
        %s220 = smul.addr %s219, 4
        %s221 = scalar_lea.vmem %s0, %s220
        %p222 = pneg %p51
        %p223 = pneg %p48
        %p224 = scmp.lt.s32.totalorder %s20, 1
        %s225 = scalar_select %p224, %s20, 1
        %p226 = scmp.lt.s32.totalorder %s21, 0
        %s227 = scalar_select %p226, %s21, 0
        %s228 = sadd.s32 %s227, %s225
        %s229 = smul.addr %s228, 4
        %s230 = scalar_lea.vmem %s1, %s229
        %p231 = pneg %p79
        %p232 = pneg %p76
        %p233 = pneg %p100
        %p234 = pneg %p97
        %p235 = pneg %p121
        %p236 = pneg %p118
        %p237 = pneg %p149
        %p238 = pneg %p146
        %p239 = scmp.lt.s32.totalorder %s20, 1
        %s240 = scalar_select %p239, %s20, 1
        %p241 = scmp.lt.s32.totalorder %s21, 0
        %s242 = scalar_select %p241, %s21, 0
        %s243 = smul.addr %s242, 4
        %s244 = smul.addr %s240, 4
        %s245 = sadd.s32 %s243, %s244
        %s246 = smul.addr %s245, 8
        %s247 = scalar_lea.vmem %s4, %s246
        %p248 = scmp.lt.s32.totalorder %s20, 1
        %s249 = scalar_select %p248, %s20, 1
        %p250 = scmp.lt.s32.totalorder %s21, 0
        %s251 = scalar_select %p250, %s21, 0
        %s252 = sadd.s32 %s251, %s249
        %s253 = smul.addr %s252, 4
        %s254 = scalar_lea.vmem %s0, %s253
        %p255 = scmp.lt.s32.totalorder %s20, 1
        %s256 = scalar_select %p255, %s20, 1
        %p257 = scmp.lt.s32.totalorder %s21, 0
        %s258 = scalar_select %p257, %s21, 0
        %s259 = sadd.s32 %s258, %s256
        %s260 = smul.addr %s259, 4
        %s261 = scalar_lea.vmem %s1, %s260
        %p262 = scmp.lt.s32.totalorder %s20, 1
        %s263 = scalar_select %p262, %s20, 1
        %p264 = scmp.lt.s32.totalorder %s21, 0
        %s265 = scalar_select %p264, %s21, 0
        %s266 = smul.addr %s265, 4
        %s267 = smul.addr %s263, 4
        %s268 = sadd.s32 %s266, %s267
        %s269 = smul.addr %s268, 8
        %s270 = scalar_lea.vmem %s4, %s269
        %v272 = vld [vmem:[#allocation2] sm:$0xff]
        %v273 = vld [vmem:[#allocation2 + $0x8] sm:$0xff]
        %v274 = vld [vmem:[#allocation2 + $0x10] sm:$0xff]
        %v275 = vld [vmem:[#allocation2 + $0x18] sm:$0xff]
        %v276 = vld [vmem:[#allocation2 + $0x20] sm:$0xff]
        %v277 = vld [vmem:[#allocation2 + $0x28] sm:$0xff]
        %v278 = vld [vmem:[#allocation2 + $0x30] sm:$0xff]
        %v279 = vld [vmem:[#allocation2 + $0x38] sm:$0xff]
        %v280 = vld [vmem:[#allocation2 + $0x40] sm:$0xff]
        %v281 = vld [vmem:[#allocation2 + $0x48] sm:$0xff]
        %v282 = vld [vmem:[#allocation2 + $0x50] sm:$0xff]
        %v283 = vld [vmem:[#allocation2 + $0x58] sm:$0xff]
        %v284 = vld [vmem:[#allocation2 + $0x60] sm:$0xff]
        %v285 = vld [vmem:[#allocation2 + $0x68] sm:$0xff]
        %v286 = vld [vmem:[#allocation2 + $0x70] sm:$0x33]
        %v287 = vld [vmem:[#allocation2 + $0x78] sm:$0x33]
        %v288 = vld [vmem:[%s3] sm:$0xf]
        %v289 = vld [vmem:[%s254] sm:$0xf]
        %v291 = vlaneseq
        %v292 = vshrl.u32 %v291, 7
        %v293 = vsub.s32 0, %v292
        %v294 = vrot.slane %v288, %v293
        %v295 = vlaneseq
        %v296 = vshrl.u32 %v295, 7
        %v297 = vsub.s32 1, %v296
        %v298 = vrot.slane %v288, %v297
        %v299 = vlaneseq
        %v300 = vshrl.u32 %v299, 7
        %v301 = vsub.s32 2, %v300
        %v302 = vrot.slane %v288, %v301
        %v303 = vlaneseq
        %v304 = vshrl.u32 %v303, 7
        %v305 = vsub.s32 3, %v304
        %v306 = vrot.slane %v288, %v305
        %v327 = vunpack.c.l.b16 %v272
        %v328 = vunpack.c.h.b16 %v272
        %v329 = vunpack.c.l.b16 %v273
        %v330 = vunpack.c.h.b16 %v273
        %v331 = vunpack.c.l.b16 %v274
        %v332 = vunpack.c.h.b16 %v274
        %v333 = vunpack.c.l.b16 %v275
        %v334 = vunpack.c.h.b16 %v275
        %v335 = vunpack.c.l.b16 %v276
        %v336 = vunpack.c.h.b16 %v276
        %v337 = vunpack.c.l.b16 %v277
        %v338 = vunpack.c.h.b16 %v277
        %v339 = vunpack.c.l.b16 %v278
        %v340 = vunpack.c.h.b16 %v278
        %v341 = vunpack.c.l.b16 %v279
        %v342 = vunpack.c.h.b16 %v279
        %v343 = vunpack.c.l.b16 %v280
        %v344 = vunpack.c.h.b16 %v280
        %v345 = vunpack.c.l.b16 %v281
        %v346 = vunpack.c.h.b16 %v281
        %v347 = vunpack.c.l.b16 %v282
        %v348 = vunpack.c.h.b16 %v282
        %v349 = vunpack.c.l.b16 %v283
        %v350 = vunpack.c.h.b16 %v283
        %v351 = vunpack.c.l.b16 %v284
        %v352 = vunpack.c.h.b16 %v284
        %v353 = vunpack.c.l.b16 %v285
        %v354 = vunpack.c.h.b16 %v285
        %v355 = vunpack.c.l.b16 %v286
        %v356 = vunpack.c.h.b16 %v286
        %v357 = vunpack.c.l.b16 %v287
        %v358 = vunpack.c.h.b16 %v287
        %v359 = vpack.c.b16 %v331, %v327
        %v360 = vpack.c.b16 %v332, %v328
        %v361 = vpack.c.b16 %v333, %v329
        %v362 = vpack.c.b16 %v334, %v330
        %v363 = vpack.c.b16 %v339, %v335
        %v364 = vpack.c.b16 %v340, %v336
        %v365 = vpack.c.b16 %v341, %v337
        %v366 = vpack.c.b16 %v342, %v338
        %v367 = vpack.c.b16 %v347, %v343
        %v368 = vpack.c.b16 %v348, %v344
        %v369 = vpack.c.b16 %v349, %v345
        %v370 = vpack.c.b16 %v350, %v346
        %v371 = vpack.c.b16 %v355, %v351
        %v372 = vpack.c.b16 %v356, %v352
        %v373 = vpack.c.b16 %v357, %v353
        %v374 = vpack.c.b16 %v358, %v354
        %vm387 = vcmask 490496
        %v389 = vsel %vm387, %v289, 0
        %vm391 = vcmask 1045504
        %v393 = vsel %vm391, %v371, 0
        %v396 = vsel %vm391, %v372, 0
        %v399 = vsel %vm391, %v373, 0
        %v402 = vsel %vm391, %v374, 0
        %404 = vmatprep.subr.bf16.mxu0 %v360
        %405 = vmatpush1.bf16.msra.mxu0 %v359
        %406 = vmatprep.subr.bf16.mxu0 %v364
        %407 = vmatpush1.bf16.msra.mxu0 %v363
        %408 = vmatprep.subr.bf16.mxu0 %v368
        %409 = vmatpush1.bf16.msra.mxu0 %v367
        %410 = vmatprep.subr.bf16.mxu0 %v396
        %411 = vmatpush1.bf16.msra.mxu0 %v393
        %412 = vmatprep.subr.bf16.mxu0 0
        %413 = vmatpush1.bf16.msra.mxu0 0
        %414 = vmatprep.subr.bf16.mxu0 0
        %415 = vmatpush1.bf16.msra.mxu0 0
        %416 = vmatprep.subr.bf16.mxu0 0
        %417 = vmatpush1.bf16.msra.mxu0 0
        %418 = vmatprep.subr.bf16.mxu0 0
        %419 = vmatpush1.bf16.msra.mxu0 0
        %420 = vmatprep.subr.bf16.mxu0 0
        %421 = vmatpush1.bf16.msra.mxu0 0
        %422 = vmatprep.subr.bf16.mxu0 0
        %423 = vmatpush1.bf16.msra.mxu0 0
        %424 = vmatprep.subr.bf16.mxu0 0
        %425 = vmatpush1.bf16.msra.mxu0 0
        %426 = vmatprep.subr.bf16.mxu0 0
        %427 = vmatpush1.bf16.msra.mxu0 0
        %428 = vmatprep.subr.bf16.mxu0 0
        %429 = vmatpush1.bf16.msra.mxu0 0
        %430 = vmatprep.subr.bf16.mxu0 0
        %431 = vmatpush1.bf16.msra.mxu0 0
        %432 = vmatprep.subr.bf16.mxu0 0
        %433 = vmatpush1.bf16.msra.mxu0 0
        %434 = vmatprep.subr.bf16.mxu0 0
        %435 = vmatpush1.bf16.msra.mxu0 0
        %436 = vmatprep.mubr.bf16.mxu0 0
        %437 = vmatmul.mubr.bf16.gmra.mrb[0].mxu0 %v389
        %v438 = vpop.f32.mrb[0].mxu0
        %v439 = vadd.f32 %v294, %v438
        %v440 = vpop.f32.mrb[0].mxu0
        %v441 = vadd.f32 %v298, %v440
        %v442 = vpop.f32.mrb[0].mxu0
        %v443 = vpop.f32.mrb[0].mxu0
        %444 = vdwg.mxu0
        %445 = vmatprep.subr.bf16.mxu0 %v362
        %446 = vmatpush1.bf16.msra.mxu0 %v361
        %447 = vmatprep.subr.bf16.mxu0 %v366
        %448 = vmatpush1.bf16.msra.mxu0 %v365
        %449 = vmatprep.subr.bf16.mxu0 %v370
        %450 = vmatpush1.bf16.msra.mxu0 %v369
        %451 = vmatprep.subr.bf16.mxu0 %v402
        %452 = vmatpush1.bf16.msra.mxu0 %v399
        %453 = vmatprep.subr.bf16.mxu0 0
        %454 = vmatpush1.bf16.msra.mxu0 0
        %455 = vmatprep.subr.bf16.mxu0 0
        %456 = vmatpush1.bf16.msra.mxu0 0
        %457 = vmatprep.subr.bf16.mxu0 0
        %458 = vmatpush1.bf16.msra.mxu0 0
        %459 = vmatprep.subr.bf16.mxu0 0
        %460 = vmatpush1.bf16.msra.mxu0 0
        %461 = vmatprep.subr.bf16.mxu0 0
        %462 = vmatpush1.bf16.msra.mxu0 0
        %463 = vmatprep.subr.bf16.mxu0 0
        %464 = vmatpush1.bf16.msra.mxu0 0
        %465 = vmatprep.subr.bf16.mxu0 0
        %466 = vmatpush1.bf16.msra.mxu0 0
        %467 = vmatprep.subr.bf16.mxu0 0
        %468 = vmatpush1.bf16.msra.mxu0 0
        %469 = vmatprep.subr.bf16.mxu0 0
        %470 = vmatpush1.bf16.msra.mxu0 0
        %471 = vmatprep.subr.bf16.mxu0 0
        %472 = vmatpush1.bf16.msra.mxu0 0
        %473 = vmatprep.subr.bf16.mxu0 0
        %474 = vmatpush1.bf16.msra.mxu0 0
        %475 = vmatprep.subr.bf16.mxu0 0
        %476 = vmatpush1.bf16.msra.mxu0 0
        %477 = vmatprep.mubr.bf16.mxu0 0
        %478 = vmatmul.mubr.bf16.gmra.mrb[0].mxu0 %v389
        %v479 = vpop.f32.mrb[0].mxu0
        %v480 = vadd.f32 %v302, %v479
        %v481 = vpop.f32.mrb[0].mxu0
        %v482 = vadd.f32 %v306, %v481
        %v483 = vpop.f32.mrb[0].mxu0
        %v484 = vpop.f32.mrb[0].mxu0
        %485 = vdwg.mxu0
        %v486 = vmax.f32 %v439, 0.0
        %v487 = vmax.f32 %v441, 0.0
        %v488 = vmax.f32 %v480, 0.0
        %v489 = vmax.f32 %v482, 0.0
        %v490 = vld [vmem:[%s261] sm:$0xf]
        %v492 = vsel %vm387, %v490, 0
        %494 = vmatprep.subr.bf16.mxu0 %v360
        %495 = vmatpush1.bf16.msra.mxu0 %v359
        %496 = vmatprep.subr.bf16.mxu0 %v364
        %497 = vmatpush1.bf16.msra.mxu0 %v363
        %498 = vmatprep.subr.bf16.mxu0 %v368
        %499 = vmatpush1.bf16.msra.mxu0 %v367
        %500 = vmatprep.subr.bf16.mxu0 %v396
        %501 = vmatpush1.bf16.msra.mxu0 %v393
        %502 = vmatprep.subr.bf16.mxu0 0
        %503 = vmatpush1.bf16.msra.mxu0 0
        %504 = vmatprep.subr.bf16.mxu0 0
        %505 = vmatpush1.bf16.msra.mxu0 0
        %506 = vmatprep.subr.bf16.mxu0 0
        %507 = vmatpush1.bf16.msra.mxu0 0
        %508 = vmatprep.subr.bf16.mxu0 0
        %509 = vmatpush1.bf16.msra.mxu0 0
        %510 = vmatprep.subr.bf16.mxu0 0
        %511 = vmatpush1.bf16.msra.mxu0 0
        %512 = vmatprep.subr.bf16.mxu0 0
        %513 = vmatpush1.bf16.msra.mxu0 0
        %514 = vmatprep.subr.bf16.mxu0 0
        %515 = vmatpush1.bf16.msra.mxu0 0
        %516 = vmatprep.subr.bf16.mxu0 0
        %517 = vmatpush1.bf16.msra.mxu0 0
        %518 = vmatprep.subr.bf16.mxu0 0
        %519 = vmatpush1.bf16.msra.mxu0 0
        %520 = vmatprep.subr.bf16.mxu0 0
        %521 = vmatpush1.bf16.msra.mxu0 0
        %522 = vmatprep.subr.bf16.mxu0 0
        %523 = vmatpush1.bf16.msra.mxu0 0
        %524 = vmatprep.subr.bf16.mxu0 0
        %525 = vmatpush1.bf16.msra.mxu0 0
        %526 = vmatprep.mubr.bf16.mxu0 0
        %527 = vmatmul.mubr.bf16.gmra.mrb[0].mxu0 %v492
        %v528 = vpop.f32.mrb[0].mxu0
        %v529 = vadd.f32 %v294, %v528
        %v530 = vpop.f32.mrb[0].mxu0
        %v531 = vadd.f32 %v298, %v530
        %v532 = vpop.f32.mrb[0].mxu0
        %v533 = vpop.f32.mrb[0].mxu0
        %534 = vdwg.mxu0
        %535 = vmatprep.subr.bf16.mxu0 %v362
        %536 = vmatpush1.bf16.msra.mxu0 %v361
        %537 = vmatprep.subr.bf16.mxu0 %v366
        %538 = vmatpush1.bf16.msra.mxu0 %v365
        %539 = vmatprep.subr.bf16.mxu0 %v370
        %540 = vmatpush1.bf16.msra.mxu0 %v369
        %541 = vmatprep.subr.bf16.mxu0 %v402
        %542 = vmatpush1.bf16.msra.mxu0 %v399
        %543 = vmatprep.subr.bf16.mxu0 0
        %544 = vmatpush1.bf16.msra.mxu0 0
        %545 = vmatprep.subr.bf16.mxu0 0
        %546 = vmatpush1.bf16.msra.mxu0 0
        %547 = vmatprep.subr.bf16.mxu0 0
        %548 = vmatpush1.bf16.msra.mxu0 0
        %549 = vmatprep.subr.bf16.mxu0 0
        %550 = vmatpush1.bf16.msra.mxu0 0
        %551 = vmatprep.subr.bf16.mxu0 0
        %552 = vmatpush1.bf16.msra.mxu0 0
        %553 = vmatprep.subr.bf16.mxu0 0
        %554 = vmatpush1.bf16.msra.mxu0 0
        %555 = vmatprep.subr.bf16.mxu0 0
        %556 = vmatpush1.bf16.msra.mxu0 0
        %557 = vmatprep.subr.bf16.mxu0 0
        %558 = vmatpush1.bf16.msra.mxu0 0
        %559 = vmatprep.subr.bf16.mxu0 0
        %560 = vmatpush1.bf16.msra.mxu0 0
        %561 = vmatprep.subr.bf16.mxu0 0
        %562 = vmatpush1.bf16.msra.mxu0 0
        %563 = vmatprep.subr.bf16.mxu0 0
        %564 = vmatpush1.bf16.msra.mxu0 0
        %565 = vmatprep.subr.bf16.mxu0 0
        %566 = vmatpush1.bf16.msra.mxu0 0
        %567 = vmatprep.mubr.bf16.mxu0 0
        %568 = vmatmul.mubr.bf16.gmra.mrb[0].mxu0 %v492
        %v569 = vpop.f32.mrb[0].mxu0
        %v570 = vadd.f32 %v302, %v569
        %v571 = vpop.f32.mrb[0].mxu0
        %v572 = vadd.f32 %v306, %v571
        %v573 = vpop.f32.mrb[0].mxu0
        %v574 = vpop.f32.mrb[0].mxu0
        %575 = vdwg.mxu0
        %v576 = vmax.f32 %v529, 0.0
        %v577 = vmax.f32 %v531, 0.0
        %v578 = vmax.f32 %v570, 0.0
        %v579 = vmax.f32 %v572, 0.0
        %v580 = vmax.f32 %v486, %v576
        %581 = vst [vmem:[%s270] sm:$0xff] %v580
        %v582 = vadd.f32 %v487, %v577
        %v583 = vadd.f32 %v488, %v578
        %v584 = vadd.f32 %v489, %v579
        %v585 = vmul.f32 %v582, 0.5
        %v586 = vmul.f32 %v583, 0.5
        %v587 = vmul.f32 %v584, 0.5
        %588 = vst [vmem:[%s270 + $0x8] sm:$0xff] %v585
        %589 = vst [vmem:[%s270 + $0x10] sm:$0xff] %v586
        %590 = vst [vmem:[%s270 + $0x18] sm:$0xff] %v587
        %p591 = scmp.lt.s32.totalorder %s20, 1
        %s592 = scalar_select %p591, %s20, 1
        %p593 = scmp.lt.s32.totalorder %s21, 0
        %s594 = scalar_select %p593, %s21, 0
        %s595 = smul.addr %s594, 4
        %s596 = smul.addr %s592, 4
        %s597 = sadd.s32 %s595, %s596
        %s598 = smul.addr %s597, 8
        %s599 = scalar_lea.vmem %s4, %s598
        // Predicated region
        $region41: #{tf_nn_forward.5} parent=35 // pred_check
          %p600 = pneg %p146
        $region42: #{tf_nn_forward.5} parent=35 // pred_check_branch
          %602 = sbr.rel (%p600) target = $region44
        $region43: #{tf_nn_forward.5} parent=35 // pred_region
          _
        $region44: #{tf_nn_forward.5} parent=35 // pred_fallthru
          _
      $region36: #{tf_nn_forward.5} parent=5 // pred_fallthru
        _
      %p603 = scmp.le.s32.totalorder 2, %s11
      // Predicated region
      $region45: #{tf_nn_forward.5} parent=5 // pred_check
        %p604 = pneg %p603
      $region46: #{tf_nn_forward.5} parent=5 // pred_check_branch
        %606 = sbr.rel (%p604) target = $region48
      $region47: #{tf_nn_forward.5} parent=5 // pred_region
        %s607 = ssub.s32 %s11, 2
        // Predicated region
        $region49: #{tf_nn_forward.5} parent=47 // pred_check
          %p608 = pneg %p152
        $region50: #{tf_nn_forward.5} parent=47 // pred_check_branch
          %610 = sbr.rel (%p608) target = $region52
        $region51: #{tf_nn_forward.5} parent=47 // pred_region
          %p611 = scmp.lt.s32.totalorder %s22, 1
          %s612 = scalar_select %p611, %s22, 1
          %p613 = scmp.lt.s32.totalorder %s23, 0
          %s614 = scalar_select %p613, %s23, 0
          %s615 = smul.addr %s614, 4
          %s616 = smul.addr %s612, 4
          %s617 = sadd.s32 %s615, %s616
          %s618 = smul.addr %s617, 8
          %s619 = scalar_lea.vmem %s4, %s618
        $region52: #{tf_nn_forward.5} parent=47 // pred_fallthru
          _
      $region48: #{tf_nn_forward.5} parent=5 // pred_fallthru
        _
    $region6: #{tf_nn_forward.5} parent=1 // loop_footer
      %s15 = sadd.s32 1, %s11
    $region7: #{tf_nn_forward.5} parent=1 // loop_footer_branch
      %10 = sbr.rel target = $region3
    $region8: #{tf_nn_forward.5} parent=1 // loop_exit
      _
    %620 = vsyncpa [#allocation3], 1
    %s621 = scalar_lea.sflag [#allocation3], 1
    %622 = vsyncpa %s621, 1

// kernel: tf_nn_forward.6
$region0: #{tf_nn_forward.6}
  #allocation0 [shape = 'u32[]', space=smem, size = 0x4, offset = 0x4, fixed_abs, tag = 'smem constant byte address 0x4 - core index']
  #allocation1 [shape = 'u32[144,128]{1,0:T(1,128)}', space=vmem, size = 0x12000, scoped, tag = 'internal scratch']
  %s0 = inlined_call_operand.vmem [shape: f32[16,512], index: 0, kind: input, shape index: {}]
  %s1 = inlined_call_operand.hbm [shape: bf16[256,128], index: 1, kind: input, shape index: {}]
  %s2 = inlined_call_operand.vmem [shape: f32[1,128], index: 2, kind: input, shape index: {}]
  %s3 = inlined_call_operand.hbm [shape: bf16[128,256], index: 3, kind: input, shape index: {}]
  %s4 = inlined_call_operand.vmem [shape: bf16[256,256], index: 4, kind: input, shape index: {}]
  %s5 = inlined_call_operand.vmem [shape: f32[1,256], index: 5, kind: input, shape index: {}]
  %s6 = inlined_call_operand.vmem [shape: f32[16,256], index: 6, kind: output, shape index: {}]
  %s7 = sld [smem:[#allocation0]]
  $region65: #{tf_nn_forward.6} parent=0
    _
  %s9 = ssub.s32 1, %s7
  %s10 = scalar_select 0, %s9, %s7
  $region1: #{tf_nn_forward.6} parent=0
    #allocation2 [shape = 'u8[65536]{0}', space=vmem, size = 0x10000, scoped, tag = 'input window, operand 1, single buffered']
    #allocation3 [shape = 's32[2]{0}', space=sflag, size = 0x8, scoped, tag = 'scoped memory for tf_nn_forward.6']
    #allocation4 [shape = 'u8[65536]{0}', space=vmem, size = 0x10000, scoped, tag = 'input window, operand 3, single buffered']
    #allocation5 [shape = 's32[1]{0}', space=sflag, size = 0x4, scoped, tag = 'scoped memory for tf_nn_forward.6']
    %11 = vsyncpa [#allocation3], 0
    %12 = vsyncpa [#allocation5], 0
    loop: start=0, step=1, limit=4
    $region2: #{tf_nn_forward.6} parent=1 // loop_pre_header
      _
    $region3: #{tf_nn_forward.6} parent=1 // loop_header
      %s14 = sphi 0, %s18
      %p15 = scmp.ge.s32.totalorder %s14, 4
      %s24 = sphi 0, %s26
      %s27 = sphi 0, %s24
      %s28 = sphi 0, %s27
      %s44 = sphi 0, %s28
      %s48 = sphi 0, %s48
      %s50 = sphi 0, %s48
      %s51 = sphi 0, %s50
      %s65 = sphi 0, %s51
      %s69 = sphi 0, %s69
      %s71 = sphi 0, %s69
      %s72 = sphi 0, %s71
      %s86 = sphi 0, %s72
      %s90 = sphi 0, %s90
      %s92 = sphi 0, %s90
      %s93 = sphi 0, %s92
      %s107 = sphi 0, %s93
      %s111 = sphi 0, %s111
      %s113 = sphi 0, %s111
      %s114 = sphi 0, %s113
      %s128 = sphi 0, %s114
      %s132 = sphi 0, %s132
      %s134 = sphi 0, %s132
      %s135 = sphi 0, %s134
      %s149 = sphi 0, %s135
      %s155 = sphi 0, %s157
      %s158 = sphi 0, %s155
      %s159 = sphi 0, %s158
      %s175 = sphi 0, %s159
    $region4: #{tf_nn_forward.6} parent=1 // loop_header_branch
      %17 = sbr.rel (%p15) target = $region8
    $region5: #{tf_nn_forward.6} parent=1 // loop_body
      %s19 = ssub.s32 %s14, 1
      %s20 = ssub.s32 %s14, 2
      %s21 = sadd.s32 %s14, 1
      %s22 = ssub.s32 %s14, %s21
      %p23 = scmp.eq.s32.totalorder %s22, 0
      %s25 = sadd.s32 %s24, 1
      %s26 = scalar_select %p23, %s24, %s25
      %p29 = pneg %p23
      %p30 = scmp.eq.s32.totalorder %s14, 1
      %p31 = por %p29, %p30
      %p32 = scmp.ne.s32.totalorder %s24, %s27
      %p33 = scmp.eq.s32.totalorder %s14, 0
      %p34 = por %p32, %p33
      %p35 = scmp.ne.s32.totalorder %s24, %s27
      %p36 = scmp.eq.s32.totalorder %s19, 1
      %p37 = por %p35, %p36
      %p38 = scmp.ne.s32.totalorder %s27, %s28
      %p39 = scmp.eq.s32.totalorder %s19, 0
      %p40 = por %p38, %p39
      %p41 = scmp.ne.s32.totalorder %s27, %s28
      %p42 = scmp.eq.s32.totalorder %s20, 1
      %p43 = por %p41, %p42
      %p45 = scmp.ne.s32.totalorder %s28, %s44
      %p46 = scmp.eq.s32.totalorder %s20, 0
      %p47 = por %p45, %p46
      %s49 = sadd.s32 %s48, 1
      %p52 = scmp.eq.s32.totalorder %s14, 1
      %p53 = scmp.ne.s32.totalorder %s48, %s50
      %p54 = scmp.eq.s32.totalorder %s14, 0
      %p55 = por %p53, %p54
      %p56 = scmp.ne.s32.totalorder %s48, %s50
      %p57 = scmp.eq.s32.totalorder %s19, 1
      %p58 = por %p56, %p57
      %p59 = scmp.ne.s32.totalorder %s50, %s51
      %p60 = scmp.eq.s32.totalorder %s19, 0
      %p61 = por %p59, %p60
      %p62 = scmp.ne.s32.totalorder %s50, %s51
      %p63 = scmp.eq.s32.totalorder %s20, 1
      %p64 = por %p62, %p63
      %p66 = scmp.ne.s32.totalorder %s51, %s65
      %p67 = scmp.eq.s32.totalorder %s20, 0
      %p68 = por %p66, %p67
      %s70 = sadd.s32 %s69, 1
      %p73 = scmp.eq.s32.totalorder %s14, 1
      %p74 = scmp.ne.s32.totalorder %s69, %s71
      %p75 = scmp.eq.s32.totalorder %s14, 0
      %p76 = por %p74, %p75
      %p77 = scmp.ne.s32.totalorder %s69, %s71
      %p78 = scmp.eq.s32.totalorder %s19, 1
      %p79 = por %p77, %p78
      %p80 = scmp.ne.s32.totalorder %s71, %s72
      %p81 = scmp.eq.s32.totalorder %s19, 0
      %p82 = por %p80, %p81
      %p83 = scmp.ne.s32.totalorder %s71, %s72
      %p84 = scmp.eq.s32.totalorder %s20, 1
      %p85 = por %p83, %p84
      %p87 = scmp.ne.s32.totalorder %s72, %s86
      %p88 = scmp.eq.s32.totalorder %s20, 0
      %p89 = por %p87, %p88
      %s91 = sadd.s32 %s90, 1
      %p94 = scmp.eq.s32.totalorder %s14, 1
      %p95 = scmp.ne.s32.totalorder %s90, %s92
      %p96 = scmp.eq.s32.totalorder %s14, 0
      %p97 = por %p95, %p96
      %p98 = scmp.ne.s32.totalorder %s90, %s92
      %p99 = scmp.eq.s32.totalorder %s19, 1
      %p100 = por %p98, %p99
      %p101 = scmp.ne.s32.totalorder %s92, %s93
      %p102 = scmp.eq.s32.totalorder %s19, 0
      %p103 = por %p101, %p102
      %p104 = scmp.ne.s32.totalorder %s92, %s93
      %p105 = scmp.eq.s32.totalorder %s20, 1
      %p106 = por %p104, %p105
      %p108 = scmp.ne.s32.totalorder %s93, %s107
      %p109 = scmp.eq.s32.totalorder %s20, 0
      %p110 = por %p108, %p109
      %s112 = sadd.s32 %s111, 1
      %p115 = scmp.eq.s32.totalorder %s14, 1
      %p116 = scmp.ne.s32.totalorder %s111, %s113
      %p117 = scmp.eq.s32.totalorder %s14, 0
      %p118 = por %p116, %p117
      %p119 = scmp.ne.s32.totalorder %s111, %s113
      %p120 = scmp.eq.s32.totalorder %s19, 1
      %p121 = por %p119, %p120
      %p122 = scmp.ne.s32.totalorder %s113, %s114
      %p123 = scmp.eq.s32.totalorder %s19, 0
      %p124 = por %p122, %p123
      %p125 = scmp.ne.s32.totalorder %s113, %s114
      %p126 = scmp.eq.s32.totalorder %s20, 1
      %p127 = por %p125, %p126
      %p129 = scmp.ne.s32.totalorder %s114, %s128
      %p130 = scmp.eq.s32.totalorder %s20, 0
      %p131 = por %p129, %p130
      %s133 = sadd.s32 %s132, 1
      %p136 = scmp.eq.s32.totalorder %s14, 1
      %p137 = scmp.ne.s32.totalorder %s132, %s134
      %p138 = scmp.eq.s32.totalorder %s14, 0
      %p139 = por %p137, %p138
      %p140 = scmp.ne.s32.totalorder %s132, %s134
      %p141 = scmp.eq.s32.totalorder %s19, 1
      %p142 = por %p140, %p141
      %p143 = scmp.ne.s32.totalorder %s134, %s135
      %p144 = scmp.eq.s32.totalorder %s19, 0
      %p145 = por %p143, %p144
      %p146 = scmp.ne.s32.totalorder %s134, %s135
      %p147 = scmp.eq.s32.totalorder %s20, 1
      %p148 = por %p146, %p147
      %p150 = scmp.ne.s32.totalorder %s135, %s149
      %p151 = scmp.eq.s32.totalorder %s20, 0
      %p152 = por %p150, %p151
      %s153 = ssub.s32 %s14, %s21
      %p154 = scmp.eq.s32.totalorder %s153, 0
      %s156 = sadd.s32 %s155, 1
      %s157 = scalar_select %p154, %s155, %s156
      %p160 = pneg %p154
      %p161 = scmp.eq.s32.totalorder %s14, 1
      %p162 = por %p160, %p161
      %p163 = scmp.ne.s32.totalorder %s155, %s158
      %p164 = scmp.eq.s32.totalorder %s14, 0
      %p165 = por %p163, %p164
      %p166 = scmp.ne.s32.totalorder %s155, %s158
      %p167 = scmp.eq.s32.totalorder %s19, 1
      %p168 = por %p166, %p167
      %p169 = scmp.ne.s32.totalorder %s158, %s159
      %p170 = scmp.eq.s32.totalorder %s19, 0
      %p171 = por %p169, %p170
      %p172 = scmp.ne.s32.totalorder %s158, %s159
      %p173 = scmp.eq.s32.totalorder %s20, 1
      %p174 = por %p172, %p173
      %p176 = scmp.ne.s32.totalorder %s159, %s175
      %p177 = scmp.eq.s32.totalorder %s20, 0
      %p178 = por %p176, %p177
      %p179 = scmp.le.s32.totalorder 1, %s14
      %p180 = scmp.lt.s32.totalorder %s14, 3
      %p181 = pnand %p179, %p180
      %p182 = pneg %p181
      // Predicated region
      $region9: #{tf_nn_forward.6} parent=5 // pred_check
        _
      $region10: #{tf_nn_forward.6} parent=5 // pred_check_branch
        %184 = sbr.rel (%p181) target = $region12
      $region11: #{tf_nn_forward.6} parent=5 // pred_region
        %s185 = ssub.s32 %s14, 1
        // Predicated region
        $region13: #{tf_nn_forward.6} parent=11 // pred_check
          %p186 = pneg %p61
        $region14: #{tf_nn_forward.6} parent=11 // pred_check_branch
          %188 = sbr.rel (%p186) target = $region16
        $region15: #{tf_nn_forward.6} parent=11 // pred_region
          %s190 = ssub.s32 2048, 2048
          %191 = vsyncadd [#allocation3], %s190
          %s192 = sshll.u32 [#allocation2], 4
          %s193 = int_to_ptr.vmem [resolvable:$true] %s192
          %198 = dma.hbm_to_vmem [thread:$0]  %s1, 2048, %s193, [#allocation3], 64, 64, 4
        $region16: #{tf_nn_forward.6} parent=11 // pred_fallthru
          _
        // Predicated region
        $region17: #{tf_nn_forward.6} parent=11 // pred_check
          %p199 = pneg %p82
        $region18: #{tf_nn_forward.6} parent=11 // pred_check_branch
          %201 = sbr.rel (%p199) target = $region20
        $region19: #{tf_nn_forward.6} parent=11 // pred_region
          _
        $region20: #{tf_nn_forward.6} parent=11 // pred_fallthru
          _
        // Predicated region
        $region21: #{tf_nn_forward.6} parent=11 // pred_check
          %p202 = pneg %p103
        $region22: #{tf_nn_forward.6} parent=11 // pred_check_branch
          %204 = sbr.rel (%p202) target = $region24
        $region23: #{tf_nn_forward.6} parent=11 // pred_region
          %s206 = ssub.s32 2048, 2048
          %207 = vsyncadd [#allocation5], %s206
          %s208 = sshll.u32 [#allocation4], 4
          %s209 = int_to_ptr.vmem [resolvable:$true] %s208
          %214 = dma.hbm_to_vmem [thread:$0]  %s3, 2048, %s209, [#allocation5], 128, 128, 8
        $region24: #{tf_nn_forward.6} parent=11 // pred_fallthru
          _
        // Predicated region
        $region25: #{tf_nn_forward.6} parent=11 // pred_check
          %p215 = pneg %p124
        $region26: #{tf_nn_forward.6} parent=11 // pred_check_branch
          %217 = sbr.rel (%p215) target = $region28
        $region27: #{tf_nn_forward.6} parent=11 // pred_region
          _
        $region28: #{tf_nn_forward.6} parent=11 // pred_fallthru
          _
        // Predicated region
        $region29: #{tf_nn_forward.6} parent=11 // pred_check
          %p218 = pneg %p145
        $region30: #{tf_nn_forward.6} parent=11 // pred_check_branch
          %220 = sbr.rel (%p218) target = $region32
        $region31: #{tf_nn_forward.6} parent=11 // pred_region
          _
        $region32: #{tf_nn_forward.6} parent=11 // pred_fallthru
          _
      $region12: #{tf_nn_forward.6} parent=5 // pred_fallthru
        _
      %p221 = scmp.lt.s32.totalorder %s14, 2
      // Predicated region
      $region33: #{tf_nn_forward.6} parent=5 // pred_check
        %p222 = pneg %p221
      $region34: #{tf_nn_forward.6} parent=5 // pred_check_branch
        %224 = sbr.rel (%p222) target = $region36
      $region35: #{tf_nn_forward.6} parent=5 // pred_region
        // Predicated region
        $region37: #{tf_nn_forward.6} parent=35 // pred_check
          %p225 = pneg %p34
        $region38: #{tf_nn_forward.6} parent=35 // pred_check_branch
          %227 = sbr.rel (%p225) target = $region40
        $region39: #{tf_nn_forward.6} parent=35 // pred_region
          %p228 = scmp.lt.s32.totalorder %s14, 1
          %s229 = scalar_select %p228, %s14, 1
          %s230 = smul.addr %s229, 4
          %s231 = smul.addr %s230, 8
          %s232 = scalar_lea.vmem %s0, %s231
        $region40: #{tf_nn_forward.6} parent=35 // pred_fallthru
          _
      $region36: #{tf_nn_forward.6} parent=5 // pred_fallthru
        _
      %p233 = scmp.le.s32.totalorder 1, %s14
      %p234 = scmp.lt.s32.totalorder %s14, 3
      %p235 = pnand %p233, %p234
      %p236 = pneg %p235
      // Predicated region
      $region41: #{tf_nn_forward.6} parent=5 // pred_check
        _
      $region42: #{tf_nn_forward.6} parent=5 // pred_check_branch
        %238 = sbr.rel (%p235) target = $region44
      $region43: #{tf_nn_forward.6} parent=5 // pred_region
        %s239 = ssub.s32 %s14, 1
        // Predicated region
        $region45: #{tf_nn_forward.6} parent=43 // pred_check
          %p240 = pneg %p61
        $region46: #{tf_nn_forward.6} parent=43 // pred_check_branch
          %242 = sbr.rel (%p240) target = $region48
        $region47: #{tf_nn_forward.6} parent=43 // pred_region
          %243 = dma.done [#allocation3], 2048
        $region48: #{tf_nn_forward.6} parent=43 // pred_fallthru
          _
        // Predicated region
        $region49: #{tf_nn_forward.6} parent=43 // pred_check
          %p244 = pneg %p103
        $region50: #{tf_nn_forward.6} parent=43 // pred_check_branch
          %246 = sbr.rel (%p244) target = $region52
        $region51: #{tf_nn_forward.6} parent=43 // pred_region
          %247 = dma.done [#allocation5], 2048
        $region52: #{tf_nn_forward.6} parent=43 // pred_fallthru
          _
        %p248 = scmp.lt.s32.totalorder %s19, 1
        %s249 = scalar_select %p248, %s19, 1
        %s250 = smul.addr %s249, 4
        %s251 = smul.addr %s250, 8
        %s252 = scalar_lea.vmem %s0, %s251
        %p253 = pneg %p40
        %p254 = pneg %p37
        %p255 = pneg %p61
        %p256 = pneg %p58
        %p257 = pneg %p82
        %p258 = pneg %p79
        %p259 = pneg %p103
        %p260 = pneg %p100
        %p261 = pneg %p124
        %p262 = pneg %p121
        %p263 = pneg %p145
        %p264 = pneg %p142
        %p265 = pneg %p171
        %p266 = pneg %p168
        %p267 = scmp.lt.s32.totalorder %s19, 1
        %s268 = scalar_select %p267, %s19, 1
        %s269 = smul.addr %s268, 2
        %s270 = smul.addr %s269, 8
        %s271 = scalar_lea.vmem %s6, %s270
        %p272 = scmp.lt.s32.totalorder %s19, 1
        %s273 = scalar_select %p272, %s19, 1
        %s274 = smul.addr %s273, 4
        %s275 = smul.addr %s274, 8
        %s276 = scalar_lea.vmem %s0, %s275
        %p277 = scmp.lt.s32.totalorder %s19, 1
        %s278 = scalar_select %p277, %s19, 1
        %s279 = smul.addr %s278, 2
        %s280 = smul.addr %s279, 8
        %s281 = scalar_lea.vmem %s6, %s280
        %v283 = vld [vmem:[%s276] sm:$0xff]
        %v284 = vld [vmem:[%s276 + $0x8] sm:$0xff]
        %v285 = vld [vmem:[%s276 + $0x10] sm:$0xff]
        %v286 = vld [vmem:[%s276 + $0x18] sm:$0xff]
        %v287 = vpack.c.bf16 %v283, %v283
        %v288 = vpack.c.bf16 %v284, %v284
        %v289 = vld [vmem:[#allocation2] sm:$0xf]
        %v290 = vld [vmem:[#allocation2 + $0x4] sm:$0xf]
        %v291 = vld [vmem:[#allocation2 + $0x8] sm:$0xf]
        %v292 = vld [vmem:[#allocation2 + $0xc] sm:$0xf]
        %v293 = vld [vmem:[#allocation2 + $0x10] sm:$0xf]
        %v294 = vld [vmem:[#allocation2 + $0x14] sm:$0xf]
        %v295 = vld [vmem:[#allocation2 + $0x18] sm:$0xf]
        %v296 = vld [vmem:[#allocation2 + $0x1c] sm:$0xf]
        %v297 = vld [vmem:[#allocation2 + $0x20] sm:$0xf]
        %v298 = vld [vmem:[#allocation2 + $0x24] sm:$0xf]
        %v299 = vld [vmem:[#allocation2 + $0x28] sm:$0xf]
        %v300 = vld [vmem:[#allocation2 + $0x2c] sm:$0xf]
        %v301 = vld [vmem:[#allocation2 + $0x30] sm:$0xf]
        %v302 = vld [vmem:[#allocation2 + $0x34] sm:$0xf]
        %v303 = vld [vmem:[#allocation2 + $0x38] sm:$0xf]
        %v304 = vld [vmem:[#allocation2 + $0x3c] sm:$0xf]
        %v305 = vld [vmem:[#allocation2 + $0x40] sm:$0xf]
        %v306 = vld [vmem:[#allocation2 + $0x44] sm:$0xf]
        %v307 = vld [vmem:[#allocation2 + $0x48] sm:$0xf]
        %v308 = vld [vmem:[#allocation2 + $0x4c] sm:$0xf]
        %v309 = vld [vmem:[#allocation2 + $0x50] sm:$0xf]
        %v310 = vld [vmem:[#allocation2 + $0x54] sm:$0xf]
        %v311 = vld [vmem:[#allocation2 + $0x58] sm:$0xf]
        %v312 = vld [vmem:[#allocation2 + $0x5c] sm:$0xf]
        %v313 = vld [vmem:[#allocation2 + $0x60] sm:$0xf]
        %v314 = vld [vmem:[#allocation2 + $0x64] sm:$0xf]
        %v315 = vld [vmem:[#allocation2 + $0x68] sm:$0xf]
        %v316 = vld [vmem:[#allocation2 + $0x6c] sm:$0xf]
        %v317 = vld [vmem:[#allocation2 + $0x70] sm:$0xf]
        %v318 = vld [vmem:[#allocation2 + $0x74] sm:$0xf]
        %v319 = vld [vmem:[#allocation2 + $0x78] sm:$0xf]
        %v320 = vld [vmem:[#allocation2 + $0x7c] sm:$0xf]
        %v321 = vld [vmem:[%s2] sm:$0x1]
        %v323 = vlaneseq
        %v324 = vshrl.u32 %v323, 7
        %v325 = vsub.s32 0, %v324
        %v326 = vrot.slane %v321, %v325
        %v360 = vunpack.c.l.b16 %v289
        %v361 = vunpack.c.l.b16 %v290
        %v362 = vunpack.c.l.b16 %v291
        %v363 = vunpack.c.l.b16 %v292
        %v364 = vunpack.c.l.b16 %v293
        %v365 = vunpack.c.l.b16 %v294
        %v366 = vunpack.c.l.b16 %v295
        %v367 = vunpack.c.l.b16 %v296
        %v368 = vunpack.c.l.b16 %v297
        %v369 = vunpack.c.l.b16 %v298
        %v370 = vunpack.c.l.b16 %v299
        %v371 = vunpack.c.l.b16 %v300
        %v372 = vunpack.c.l.b16 %v301
        %v373 = vunpack.c.l.b16 %v302
        %v374 = vunpack.c.l.b16 %v303
        %v375 = vunpack.c.l.b16 %v304
        %v376 = vunpack.c.l.b16 %v305
        %v377 = vunpack.c.l.b16 %v306
        %v378 = vunpack.c.l.b16 %v307
        %v379 = vunpack.c.l.b16 %v308
        %v380 = vunpack.c.l.b16 %v309
        %v381 = vunpack.c.l.b16 %v310
        %v382 = vunpack.c.l.b16 %v311
        %v383 = vunpack.c.l.b16 %v312
        %v384 = vunpack.c.l.b16 %v313
        %v385 = vunpack.c.l.b16 %v314
        %v386 = vunpack.c.l.b16 %v315
        %v387 = vunpack.c.l.b16 %v316
        %v388 = vunpack.c.l.b16 %v317
        %v389 = vunpack.c.l.b16 %v318
        %v390 = vunpack.c.l.b16 %v319
        %v391 = vunpack.c.l.b16 %v320
        %v392 = vpack.c.b16 %v361, %v360
        %v393 = vpack.c.b16 %v363, %v362
        %v394 = vpack.c.b16 %v365, %v364
        %v395 = vpack.c.b16 %v367, %v366
        %v396 = vpack.c.b16 %v369, %v368
        %v397 = vpack.c.b16 %v371, %v370
        %v398 = vpack.c.b16 %v373, %v372
        %v399 = vpack.c.b16 %v375, %v374
        %v400 = vpack.c.b16 %v377, %v376
        %v401 = vpack.c.b16 %v379, %v378
        %v402 = vpack.c.b16 %v381, %v380
        %v403 = vpack.c.b16 %v383, %v382
        %v404 = vpack.c.b16 %v385, %v384
        %v405 = vpack.c.b16 %v387, %v386
        %v406 = vpack.c.b16 %v389, %v388
        %v407 = vpack.c.b16 %v391, %v390
        %424 = vmatprep.subr.bf16.mxu0 0
        %425 = vmatpush1.bf16.msra.mxu0 %v392
        %426 = vmatprep.subr.bf16.mxu0 0
        %427 = vmatpush1.bf16.msra.mxu0 %v393
        %428 = vmatprep.subr.bf16.mxu0 0
        %429 = vmatpush1.bf16.msra.mxu0 %v394
        %430 = vmatprep.subr.bf16.mxu0 0
        %431 = vmatpush1.bf16.msra.mxu0 %v395
        %432 = vmatprep.subr.bf16.mxu0 0
        %433 = vmatpush1.bf16.msra.mxu0 %v396
        %434 = vmatprep.subr.bf16.mxu0 0
        %435 = vmatpush1.bf16.msra.mxu0 %v397
        %436 = vmatprep.subr.bf16.mxu0 0
        %437 = vmatpush1.bf16.msra.mxu0 %v398
        %438 = vmatprep.subr.bf16.mxu0 0
        %439 = vmatpush1.bf16.msra.mxu0 %v399
        %440 = vmatprep.subr.bf16.mxu0 0
        %441 = vmatpush1.bf16.msra.mxu0 %v400
        %442 = vmatprep.subr.bf16.mxu0 0
        %443 = vmatpush1.bf16.msra.mxu0 %v401
        %444 = vmatprep.subr.bf16.mxu0 0
        %445 = vmatpush1.bf16.msra.mxu0 %v402
        %446 = vmatprep.subr.bf16.mxu0 0
        %447 = vmatpush1.bf16.msra.mxu0 %v403
        %448 = vmatprep.subr.bf16.mxu0 0
        %449 = vmatpush1.bf16.msra.mxu0 %v404
        %450 = vmatprep.subr.bf16.mxu0 0
        %451 = vmatpush1.bf16.msra.mxu0 %v405
        %452 = vmatprep.subr.bf16.mxu0 0
        %453 = vmatpush1.bf16.msra.mxu0 %v406
        %454 = vmatprep.subr.bf16.mxu0 0
        %455 = vmatpush1.bf16.msra.mxu0 %v407
        %456 = vmatprep.mubr.bf16.mxu0 %v288
        %457 = vmatmul.mubr.bf16.gmra.mrb[0].mxu0 %v287
        %v458 = vpop.f32.mrb[0].mxu0
        %v459 = vadd.f32 %v326, %v458
        %v460 = vpop.f32.mrb[0].mxu0
        %v461 = vpop.f32.mrb[0].mxu0
        %v462 = vpop.f32.mrb[0].mxu0
        %463 = vdwg.mxu0
        %v464 = vmax.f32 %v459, 0.0
        %v465 = vadd.f32 %v464, %v284
        %v466 = vpack.c.bf16 %v465, %v465
        %v467 = vld [vmem:[#allocation4] sm:$0xff]
        %v468 = vld [vmem:[#allocation4 + $0x8] sm:$0xff]
        %v469 = vld [vmem:[#allocation4 + $0x10] sm:$0xff]
        %v470 = vld [vmem:[#allocation4 + $0x18] sm:$0xff]
        %v471 = vld [vmem:[#allocation4 + $0x20] sm:$0xff]
        %v472 = vld [vmem:[#allocation4 + $0x28] sm:$0xff]
        %v473 = vld [vmem:[#allocation4 + $0x30] sm:$0xff]
        %v474 = vld [vmem:[#allocation4 + $0x38] sm:$0xff]
        %v475 = vld [vmem:[#allocation4 + $0x40] sm:$0xff]
        %v476 = vld [vmem:[#allocation4 + $0x48] sm:$0xff]
        %v477 = vld [vmem:[#allocation4 + $0x50] sm:$0xff]
        %v478 = vld [vmem:[#allocation4 + $0x58] sm:$0xff]
        %v479 = vld [vmem:[#allocation4 + $0x60] sm:$0xff]
        %v480 = vld [vmem:[#allocation4 + $0x68] sm:$0xff]
        %v481 = vld [vmem:[#allocation4 + $0x70] sm:$0xff]
        %v482 = vld [vmem:[#allocation4 + $0x78] sm:$0xff]
        %v483 = vpack.c.bf16 %v285, %v285
        %v484 = vpack.c.bf16 %v286, %v286
        %v485 = vld [vmem:[%s4] sm:$0xff]
        %v486 = vld [vmem:[%s4 + $0x8] sm:$0xff]
        %v487 = vld [vmem:[%s4 + $0x10] sm:$0xff]
        %v488 = vld [vmem:[%s4 + $0x18] sm:$0xff]
        %v489 = vld [vmem:[%s4 + $0x20] sm:$0xff]
        %v490 = vld [vmem:[%s4 + $0x28] sm:$0xff]
        %v491 = vld [vmem:[%s4 + $0x30] sm:$0xff]
        %v492 = vld [vmem:[%s4 + $0x38] sm:$0xff]
        %v493 = vld [vmem:[%s4 + $0x40] sm:$0xff]
        %v494 = vld [vmem:[%s4 + $0x48] sm:$0xff]
        %v495 = vld [vmem:[%s4 + $0x50] sm:$0xff]
        %v496 = vld [vmem:[%s4 + $0x58] sm:$0xff]
        %v497 = vld [vmem:[%s4 + $0x60] sm:$0xff]
        %v498 = vld [vmem:[%s4 + $0x68] sm:$0xff]
        %v499 = vld [vmem:[%s4 + $0x70] sm:$0xff]
        %v500 = vld [vmem:[%s4 + $0x78] sm:$0xff]
        %v501 = vld [vmem:[%s4 + $0x80] sm:$0xff]
        %v502 = vld [vmem:[%s4 + $0x88] sm:$0xff]
        %v503 = vld [vmem:[%s4 + $0x90] sm:$0xff]
        %v504 = vld [vmem:[%s4 + $0x98] sm:$0xff]
        %v505 = vld [vmem:[%s4 + $0xa0] sm:$0xff]
        %v506 = vld [vmem:[%s4 + $0xa8] sm:$0xff]
        %v507 = vld [vmem:[%s4 + $0xb0] sm:$0xff]
        %v508 = vld [vmem:[%s4 + $0xb8] sm:$0xff]
        %v509 = vld [vmem:[%s4 + $0xc0] sm:$0xff]
        %v510 = vld [vmem:[%s4 + $0xc8] sm:$0xff]
        %v511 = vld [vmem:[%s4 + $0xd0] sm:$0xff]
        %v512 = vld [vmem:[%s4 + $0xd8] sm:$0xff]
        %v513 = vld [vmem:[%s4 + $0xe0] sm:$0xff]
        %v514 = vld [vmem:[%s4 + $0xe8] sm:$0xff]
        %v515 = vld [vmem:[%s4 + $0xf0] sm:$0xff]
        %v516 = vld [vmem:[%s4 + $0xf8] sm:$0xff]
        %v549 = vunpack.c.l.b16 %v485
        %v550 = vunpack.c.h.b16 %v485
        %v551 = vunpack.c.l.b16 %v486
        %v552 = vunpack.c.h.b16 %v486
        %v553 = vunpack.c.l.b16 %v487
        %v554 = vunpack.c.h.b16 %v487
        %v555 = vunpack.c.l.b16 %v488
        %v556 = vunpack.c.h.b16 %v488
        %v557 = vunpack.c.l.b16 %v489
        %v558 = vunpack.c.h.b16 %v489
        %v559 = vunpack.c.l.b16 %v490
        %v560 = vunpack.c.h.b16 %v490
        %v561 = vunpack.c.l.b16 %v491
        %v562 = vunpack.c.h.b16 %v491
        %v563 = vunpack.c.l.b16 %v492
        %v564 = vunpack.c.h.b16 %v492
        %v565 = vunpack.c.l.b16 %v493
        %v566 = vunpack.c.h.b16 %v493
        %v567 = vunpack.c.l.b16 %v494
        %v568 = vunpack.c.h.b16 %v494
        %v569 = vunpack.c.l.b16 %v495
        %v570 = vunpack.c.h.b16 %v495
        %v571 = vunpack.c.l.b16 %v496
        %v572 = vunpack.c.h.b16 %v496
        %v573 = vunpack.c.l.b16 %v497
        %v574 = vunpack.c.h.b16 %v497
        %v575 = vunpack.c.l.b16 %v498
        %v576 = vunpack.c.h.b16 %v498
        %v577 = vunpack.c.l.b16 %v499
        %v578 = vunpack.c.h.b16 %v499
        %v579 = vunpack.c.l.b16 %v500
        %v580 = vunpack.c.h.b16 %v500
        %v581 = vunpack.c.l.b16 %v501
        %v582 = vunpack.c.h.b16 %v501
        %v583 = vunpack.c.l.b16 %v502
        %v584 = vunpack.c.h.b16 %v502
        %v585 = vunpack.c.l.b16 %v503
        %v586 = vunpack.c.h.b16 %v503
        %v587 = vunpack.c.l.b16 %v504
        %v588 = vunpack.c.h.b16 %v504
        %v589 = vunpack.c.l.b16 %v505
        %v590 = vunpack.c.h.b16 %v505
        %v591 = vunpack.c.l.b16 %v506
        %v592 = vunpack.c.h.b16 %v506
        %v593 = vunpack.c.l.b16 %v507
        %v594 = vunpack.c.h.b16 %v507
        %v595 = vunpack.c.l.b16 %v508
        %v596 = vunpack.c.h.b16 %v508
        %v597 = vunpack.c.l.b16 %v509
        %v598 = vunpack.c.h.b16 %v509
        %v599 = vunpack.c.l.b16 %v510
        %v600 = vunpack.c.h.b16 %v510
        %v601 = vunpack.c.l.b16 %v511
        %v602 = vunpack.c.h.b16 %v511
        %v603 = vunpack.c.l.b16 %v512
        %v604 = vunpack.c.h.b16 %v512
        %v605 = vunpack.c.l.b16 %v513
        %v606 = vunpack.c.h.b16 %v513
        %v607 = vunpack.c.l.b16 %v514
        %v608 = vunpack.c.h.b16 %v514
        %v609 = vunpack.c.l.b16 %v515
        %v610 = vunpack.c.h.b16 %v515
        %v611 = vunpack.c.l.b16 %v516
        %v612 = vunpack.c.h.b16 %v516
        %v613 = vpack.c.b16 %v551, %v549
        %v614 = vpack.c.b16 %v552, %v550
        %v615 = vpack.c.b16 %v555, %v553
        %v616 = vpack.c.b16 %v556, %v554
        %v617 = vpack.c.b16 %v559, %v557
        %v618 = vpack.c.b16 %v560, %v558
        %v619 = vpack.c.b16 %v563, %v561
        %v620 = vpack.c.b16 %v564, %v562
        %v621 = vpack.c.b16 %v567, %v565
        %v622 = vpack.c.b16 %v568, %v566
        %v623 = vpack.c.b16 %v571, %v569
        %v624 = vpack.c.b16 %v572, %v570
        %v625 = vpack.c.b16 %v575, %v573
        %v626 = vpack.c.b16 %v576, %v574
        %v627 = vpack.c.b16 %v579, %v577
        %v628 = vpack.c.b16 %v580, %v578
        %v629 = vpack.c.b16 %v583, %v581
        %v630 = vpack.c.b16 %v584, %v582
        %v631 = vpack.c.b16 %v587, %v585
        %v632 = vpack.c.b16 %v588, %v586
        %v633 = vpack.c.b16 %v591, %v589
        %v634 = vpack.c.b16 %v592, %v590
        %v635 = vpack.c.b16 %v595, %v593
        %v636 = vpack.c.b16 %v596, %v594
        %v637 = vpack.c.b16 %v599, %v597
        %v638 = vpack.c.b16 %v600, %v598
        %v639 = vpack.c.b16 %v603, %v601
        %v640 = vpack.c.b16 %v604, %v602
        %v641 = vpack.c.b16 %v607, %v605
        %v642 = vpack.c.b16 %v608, %v606
        %v643 = vpack.c.b16 %v611, %v609
        %v644 = vpack.c.b16 %v612, %v610
        %677 = vmatprep.subr.bf16.mxu0 %v614
        %678 = vmatpush1.bf16.msra.mxu0 %v613
        %679 = vmatprep.subr.bf16.mxu0 %v616
        %680 = vmatpush1.bf16.msra.mxu0 %v615
        %681 = vmatprep.subr.bf16.mxu0 %v618
        %682 = vmatpush1.bf16.msra.mxu0 %v617
        %683 = vmatprep.subr.bf16.mxu0 %v620
        %684 = vmatpush1.bf16.msra.mxu0 %v619
        %685 = vmatprep.subr.bf16.mxu0 %v622
        %686 = vmatpush1.bf16.msra.mxu0 %v621
        %687 = vmatprep.subr.bf16.mxu0 %v624
        %688 = vmatpush1.bf16.msra.mxu0 %v623
        %689 = vmatprep.subr.bf16.mxu0 %v626
        %690 = vmatpush1.bf16.msra.mxu0 %v625
        %691 = vmatprep.subr.bf16.mxu0 %v628
        %692 = vmatpush1.bf16.msra.mxu0 %v627
        %693 = vmatprep.subr.bf16.mxu0 %v630
        %694 = vmatpush1.bf16.msra.mxu0 %v629
        %695 = vmatprep.subr.bf16.mxu0 %v632
        %696 = vmatpush1.bf16.msra.mxu0 %v631
        %697 = vmatprep.subr.bf16.mxu0 %v634
        %698 = vmatpush1.bf16.msra.mxu0 %v633
        %699 = vmatprep.subr.bf16.mxu0 %v636
        %700 = vmatpush1.bf16.msra.mxu0 %v635
        %701 = vmatprep.subr.bf16.mxu0 %v638
        %702 = vmatpush1.bf16.msra.mxu0 %v637
        %703 = vmatprep.subr.bf16.mxu0 %v640
        %704 = vmatpush1.bf16.msra.mxu0 %v639
        %705 = vmatprep.subr.bf16.mxu0 %v642
        %706 = vmatpush1.bf16.msra.mxu0 %v641
        %707 = vmatprep.subr.bf16.mxu0 %v644
        %708 = vmatpush1.bf16.msra.mxu0 %v643
        %709 = vmatprep.mubr.bf16.mxu0 %v484
        %710 = vmatmul.mubr.bf16.gmra.mrb[0].mxu0 %v483
        %v711 = vpop.f32.mrb[0].mxu0
        %v712 = vadd.f32 0.0, %v711
        %v713 = vpop.f32.mrb[0].mxu0
        %v714 = vadd.f32 0.0, %v713
        %v715 = vpop.f32.mrb[0].mxu0
        %v716 = vpop.f32.mrb[0].mxu0
        %717 = vdwg.mxu0
        %v734 = vunpack.c.l.b16 %v467
        %v735 = vunpack.c.h.b16 %v467
        %v736 = vunpack.c.l.b16 %v468
        %v737 = vunpack.c.h.b16 %v468
        %v738 = vunpack.c.l.b16 %v469
        %v739 = vunpack.c.h.b16 %v469
        %v740 = vunpack.c.l.b16 %v470
        %v741 = vunpack.c.h.b16 %v470
        %v742 = vunpack.c.l.b16 %v471
        %v743 = vunpack.c.h.b16 %v471
        %v744 = vunpack.c.l.b16 %v472
        %v745 = vunpack.c.h.b16 %v472
        %v746 = vunpack.c.l.b16 %v473
        %v747 = vunpack.c.h.b16 %v473
        %v748 = vunpack.c.l.b16 %v474
        %v749 = vunpack.c.h.b16 %v474
        %v750 = vunpack.c.l.b16 %v475
        %v751 = vunpack.c.h.b16 %v475
        %v752 = vunpack.c.l.b16 %v476
        %v753 = vunpack.c.h.b16 %v476
        %v754 = vunpack.c.l.b16 %v477
        %v755 = vunpack.c.h.b16 %v477
        %v756 = vunpack.c.l.b16 %v478
        %v757 = vunpack.c.h.b16 %v478
        %v758 = vunpack.c.l.b16 %v479
        %v759 = vunpack.c.h.b16 %v479
        %v760 = vunpack.c.l.b16 %v480
        %v761 = vunpack.c.h.b16 %v480
        %v762 = vunpack.c.l.b16 %v481
        %v763 = vunpack.c.h.b16 %v481
        %v764 = vunpack.c.l.b16 %v482
        %v765 = vunpack.c.h.b16 %v482
        %v766 = vpack.c.b16 %v736, %v734
        %v767 = vpack.c.b16 %v737, %v735
        %v768 = vpack.c.b16 %v740, %v738
        %v769 = vpack.c.b16 %v741, %v739
        %v770 = vpack.c.b16 %v744, %v742
        %v771 = vpack.c.b16 %v745, %v743
        %v772 = vpack.c.b16 %v748, %v746
        %v773 = vpack.c.b16 %v749, %v747
        %v774 = vpack.c.b16 %v752, %v750
        %v775 = vpack.c.b16 %v753, %v751
        %v776 = vpack.c.b16 %v756, %v754
        %v777 = vpack.c.b16 %v757, %v755
        %v778 = vpack.c.b16 %v760, %v758
        %v779 = vpack.c.b16 %v761, %v759
        %v780 = vpack.c.b16 %v764, %v762
        %v781 = vpack.c.b16 %v765, %v763
        %798 = vmatprep.subr.bf16.mxu0 %v767
        %799 = vmatpush1.bf16.msra.mxu0 %v766
        %800 = vmatprep.subr.bf16.mxu0 %v769
        %801 = vmatpush1.bf16.msra.mxu0 %v768
        %802 = vmatprep.subr.bf16.mxu0 %v771
        %803 = vmatpush1.bf16.msra.mxu0 %v770
        %804 = vmatprep.subr.bf16.mxu0 %v773
        %805 = vmatpush1.bf16.msra.mxu0 %v772
        %806 = vmatprep.subr.bf16.mxu0 %v775
        %807 = vmatpush1.bf16.msra.mxu0 %v774
        %808 = vmatprep.subr.bf16.mxu0 %v777
        %809 = vmatpush1.bf16.msra.mxu0 %v776
        %810 = vmatprep.subr.bf16.mxu0 %v779
        %811 = vmatpush1.bf16.msra.mxu0 %v778
        %812 = vmatprep.subr.bf16.mxu0 %v781
        %813 = vmatpush1.bf16.msra.mxu0 %v780
        %814 = vmatprep.subr.bf16.mxu0 0
        %815 = vmatpush1.bf16.msra.mxu0 0
        %816 = vmatprep.subr.bf16.mxu0 0
        %817 = vmatpush1.bf16.msra.mxu0 0
        %818 = vmatprep.subr.bf16.mxu0 0
        %819 = vmatpush1.bf16.msra.mxu0 0
        %820 = vmatprep.subr.bf16.mxu0 0
        %821 = vmatpush1.bf16.msra.mxu0 0
        %822 = vmatprep.subr.bf16.mxu0 0
        %823 = vmatpush1.bf16.msra.mxu0 0
        %824 = vmatprep.subr.bf16.mxu0 0
        %825 = vmatpush1.bf16.msra.mxu0 0
        %826 = vmatprep.subr.bf16.mxu0 0
        %827 = vmatpush1.bf16.msra.mxu0 0
        %828 = vmatprep.subr.bf16.mxu0 0
        %829 = vmatpush1.bf16.msra.mxu0 0
        %830 = vmatprep.mubr.bf16.mxu0 0
        %831 = vmatmul.mubr.bf16.gmra.mrb[0].mxu0 %v466
        %v832 = vpop.f32.mrb[0].mxu0
        %v833 = vadd.f32 %v712, %v832
        %v834 = vpop.f32.mrb[0].mxu0
        %v835 = vadd.f32 %v714, %v834
        %v836 = vpop.f32.mrb[0].mxu0
        %v837 = vpop.f32.mrb[0].mxu0
        %838 = vdwg.mxu0
        %v839 = vld [vmem:[%s5] sm:$0x3]
        %v841 = vlaneseq
        %v842 = vshrl.u32 %v841, 7
        %v843 = vsub.s32 0, %v842
        %v844 = vrot.slane %v839, %v843
        %v845 = vlaneseq
        %v846 = vshrl.u32 %v845, 7
        %v847 = vsub.s32 1, %v846
        %v848 = vrot.slane %v839, %v847
        %v851 = vadd.f32 %v833, %v844
        %v852 = vadd.f32 %v835, %v848
        %v853 = vmax.f32 %v851, 0.0
        %v854 = vmax.f32 %v852, 0.0
        %v855 = vadd.f32 %v853, %v285
        %v856 = vadd.f32 %v854, %v286
        %857 = vst [vmem:[%s281] sm:$0xff] %v855
        %858 = vst [vmem:[%s281 + $0x8] sm:$0xff] %v856
        %p859 = scmp.lt.s32.totalorder %s19, 1
        %s860 = scalar_select %p859, %s19, 1
        %s861 = smul.addr %s860, 2
        %s862 = smul.addr %s861, 8
        %s863 = scalar_lea.vmem %s6, %s862
        // Predicated region
        $region53: #{tf_nn_forward.6} parent=43 // pred_check
          %p864 = pneg %p168
        $region54: #{tf_nn_forward.6} parent=43 // pred_check_branch
          %866 = sbr.rel (%p864) target = $region56
        $region55: #{tf_nn_forward.6} parent=43 // pred_region
          _
        $region56: #{tf_nn_forward.6} parent=43 // pred_fallthru
          _
      $region44: #{tf_nn_forward.6} parent=5 // pred_fallthru
        _
      %p867 = scmp.le.s32.totalorder 2, %s14
      // Predicated region
      $region57: #{tf_nn_forward.6} parent=5 // pred_check
        %p868 = pneg %p867
      $region58: #{tf_nn_forward.6} parent=5 // pred_check_branch
        %870 = sbr.rel (%p868) target = $region60
      $region59: #{tf_nn_forward.6} parent=5 // pred_region
        %s871 = ssub.s32 %s14, 2
        // Predicated region
        $region61: #{tf_nn_forward.6} parent=59 // pred_check
          %p872 = pneg %p174
        $region62: #{tf_nn_forward.6} parent=59 // pred_check_branch
          %874 = sbr.rel (%p872) target = $region64
        $region63: #{tf_nn_forward.6} parent=59 // pred_region
          %p875 = scmp.lt.s32.totalorder %s20, 1
          %s876 = scalar_select %p875, %s20, 1
          %s877 = smul.addr %s876, 2
          %s878 = smul.addr %s877, 8
          %s879 = scalar_lea.vmem %s6, %s878
        $region64: #{tf_nn_forward.6} parent=59 // pred_fallthru
          _
      $region60: #{tf_nn_forward.6} parent=5 // pred_fallthru
        _
    $region6: #{tf_nn_forward.6} parent=1 // loop_footer
      %s18 = sadd.s32 1, %s14
    $region7: #{tf_nn_forward.6} parent=1 // loop_footer_branch
      %13 = sbr.rel target = $region3
    $region8: #{tf_nn_forward.6} parent=1 // loop_exit
      _
    %880 = vsyncpa [#allocation3], 1
    %s881 = scalar_lea.sflag [#allocation3], 1
    %882 = vsyncpa %s881, 1
    %883 = vsyncpa [#allocation5], 1

// kernel: tf_nn_forward.9
$region0: #{tf_nn_forward.9}
  #allocation0 [shape = 'u32[]', space=smem, size = 0x4, offset = 0x4, fixed_abs, tag = 'smem constant byte address 0x4 - core index']
  #allocation1 [shape = 'u32[144,128]{1,0:T(1,128)}', space=vmem, size = 0x12000, scoped, tag = 'internal scratch']
  %s0 = inlined_call_operand.vmem [shape: f32[8,256], index: 0, kind: input, shape index: {}]
  %s1 = inlined_call_operand.vmem [shape: bf16[256,6], index: 1, kind: input, shape index: {}]
  %s2 = inlined_call_operand.vmem [shape: f32[1,6], index: 2, kind: input, shape index: {}]
  %s3 = inlined_call_operand.hbm [shape: f32[8,6], index: 3, kind: output, shape index: {}]
  %s4 = sld [smem:[#allocation0]]
  $region22: #{tf_nn_forward.9} parent=0
    _
  %s6 = ssub.s32 1, %s4
  %s7 = scalar_select 0, %s6, %s4
  $region1: #{tf_nn_forward.9} parent=0
    #allocation2 [shape = 'u8[4096]{0}', space=vmem, size = 0x1000, scoped, tag = 'output window, operand 0, single buffered']
    #allocation3 [shape = 's32[1]{0}', space=sflag, size = 0x4, scoped, tag = 'scoped memory for tf_nn_forward.9']
    %8 = vsyncpa [#allocation3], 0
    // Predicated region
    $region2: #{tf_nn_forward.9} parent=1 // pred_check
      _
    $region3: #{tf_nn_forward.9} parent=1 // pred_check_branch
      %10 = sbr.rel (0) target = $region5
    $region4: #{tf_nn_forward.9} parent=1 // pred_region
      _
    $region5: #{tf_nn_forward.9} parent=1 // pred_fallthru
      _
    // Predicated region
    $region6: #{tf_nn_forward.9} parent=1 // pred_check
      _
    $region7: #{tf_nn_forward.9} parent=1 // pred_check_branch
      %12 = sbr.rel (0) target = $region9
    $region8: #{tf_nn_forward.9} parent=1 // pred_region
      _
    $region9: #{tf_nn_forward.9} parent=1 // pred_fallthru
      _
    // Predicated region
    $region10: #{tf_nn_forward.9} parent=1 // pred_check
      _
    $region11: #{tf_nn_forward.9} parent=1 // pred_check_branch
      %14 = sbr.rel (0) target = $region13
    $region12: #{tf_nn_forward.9} parent=1 // pred_region
      _
    $region13: #{tf_nn_forward.9} parent=1 // pred_fallthru
      _
    %v16 = vld [vmem:[%s0] sm:$0xff]
    %v17 = vld [vmem:[%s0 + $0x8] sm:$0xff]
    %v18 = vpack.c.bf16 %v16, %v16
    %v19 = vpack.c.bf16 %v17, %v17
    %v20 = vld [vmem:[%s1] sm:$0xf]
    %v21 = vld [vmem:[%s1 + $0x4] sm:$0xf]
    %v22 = vld [vmem:[%s1 + $0x8] sm:$0xf]
    %v23 = vld [vmem:[%s1 + $0xc] sm:$0xf]
    %v24 = vld [vmem:[%s1 + $0x10] sm:$0xf]
    %v25 = vld [vmem:[%s1 + $0x14] sm:$0xf]
    %v26 = vld [vmem:[%s1 + $0x18] sm:$0xf]
    %v27 = vld [vmem:[%s1 + $0x1c] sm:$0xf]
    %v28 = vld [vmem:[%s1 + $0x20] sm:$0xf]
    %v29 = vld [vmem:[%s1 + $0x24] sm:$0xf]
    %v30 = vld [vmem:[%s1 + $0x28] sm:$0xf]
    %v31 = vld [vmem:[%s1 + $0x2c] sm:$0xf]
    %v32 = vld [vmem:[%s1 + $0x30] sm:$0xf]
    %v33 = vld [vmem:[%s1 + $0x34] sm:$0xf]
    %v34 = vld [vmem:[%s1 + $0x38] sm:$0xf]
    %v35 = vld [vmem:[%s1 + $0x3c] sm:$0xf]
    %v36 = vld [vmem:[%s1 + $0x40] sm:$0xf]
    %v37 = vld [vmem:[%s1 + $0x44] sm:$0xf]
    %v38 = vld [vmem:[%s1 + $0x48] sm:$0xf]
    %v39 = vld [vmem:[%s1 + $0x4c] sm:$0xf]
    %v40 = vld [vmem:[%s1 + $0x50] sm:$0xf]
    %v41 = vld [vmem:[%s1 + $0x54] sm:$0xf]
    %v42 = vld [vmem:[%s1 + $0x58] sm:$0xf]
    %v43 = vld [vmem:[%s1 + $0x5c] sm:$0xf]
    %v44 = vld [vmem:[%s1 + $0x60] sm:$0xf]
    %v45 = vld [vmem:[%s1 + $0x64] sm:$0xf]
    %v46 = vld [vmem:[%s1 + $0x68] sm:$0xf]
    %v47 = vld [vmem:[%s1 + $0x6c] sm:$0xf]
    %v48 = vld [vmem:[%s1 + $0x70] sm:$0xf]
    %v49 = vld [vmem:[%s1 + $0x74] sm:$0xf]
    %v50 = vld [vmem:[%s1 + $0x78] sm:$0xf]
    %v51 = vld [vmem:[%s1 + $0x7c] sm:$0xf]
    %v52 = vld [vmem:[%s2] sm:$0x1]
    %v54 = vlaneseq
    %v55 = vshrl.u32 %v54, 7
    %v56 = vsub.s32 0, %v55
    %v57 = vrot.slane %v52, %v56
    %v91 = vunpack.c.l.b16 %v20
    %v92 = vunpack.c.l.b16 %v21
    %v93 = vunpack.c.l.b16 %v22
    %v94 = vunpack.c.l.b16 %v23
    %v95 = vunpack.c.l.b16 %v24
    %v96 = vunpack.c.l.b16 %v25
    %v97 = vunpack.c.l.b16 %v26
    %v98 = vunpack.c.l.b16 %v27
    %v99 = vunpack.c.l.b16 %v28
    %v100 = vunpack.c.l.b16 %v29
    %v101 = vunpack.c.l.b16 %v30
    %v102 = vunpack.c.l.b16 %v31
    %v103 = vunpack.c.l.b16 %v32
    %v104 = vunpack.c.l.b16 %v33
    %v105 = vunpack.c.l.b16 %v34
    %v106 = vunpack.c.l.b16 %v35
    %v107 = vunpack.c.l.b16 %v36
    %v108 = vunpack.c.l.b16 %v37
    %v109 = vunpack.c.l.b16 %v38
    %v110 = vunpack.c.l.b16 %v39
    %v111 = vunpack.c.l.b16 %v40
    %v112 = vunpack.c.l.b16 %v41
    %v113 = vunpack.c.l.b16 %v42
    %v114 = vunpack.c.l.b16 %v43
    %v115 = vunpack.c.l.b16 %v44
    %v116 = vunpack.c.l.b16 %v45
    %v117 = vunpack.c.l.b16 %v46
    %v118 = vunpack.c.l.b16 %v47
    %v119 = vunpack.c.l.b16 %v48
    %v120 = vunpack.c.l.b16 %v49
    %v121 = vunpack.c.l.b16 %v50
    %v122 = vunpack.c.l.b16 %v51
    %v123 = vpack.c.b16 %v92, %v91
    %v124 = vpack.c.b16 %v94, %v93
    %v125 = vpack.c.b16 %v96, %v95
    %v126 = vpack.c.b16 %v98, %v97
    %v127 = vpack.c.b16 %v100, %v99
    %v128 = vpack.c.b16 %v102, %v101
    %v129 = vpack.c.b16 %v104, %v103
    %v130 = vpack.c.b16 %v106, %v105
    %v131 = vpack.c.b16 %v108, %v107
    %v132 = vpack.c.b16 %v110, %v109
    %v133 = vpack.c.b16 %v112, %v111
    %v134 = vpack.c.b16 %v114, %v113
    %v135 = vpack.c.b16 %v116, %v115
    %v136 = vpack.c.b16 %v118, %v117
    %v137 = vpack.c.b16 %v120, %v119
    %v138 = vpack.c.b16 %v122, %v121
    %155 = vmatprep.subr.bf16.mxu0 0
    %156 = vmatpush1.bf16.msra.mxu0 %v123
    %157 = vmatprep.subr.bf16.mxu0 0
    %158 = vmatpush1.bf16.msra.mxu0 %v124
    %159 = vmatprep.subr.bf16.mxu0 0
    %160 = vmatpush1.bf16.msra.mxu0 %v125
    %161 = vmatprep.subr.bf16.mxu0 0
    %162 = vmatpush1.bf16.msra.mxu0 %v126
    %163 = vmatprep.subr.bf16.mxu0 0
    %164 = vmatpush1.bf16.msra.mxu0 %v127
    %165 = vmatprep.subr.bf16.mxu0 0
    %166 = vmatpush1.bf16.msra.mxu0 %v128
    %167 = vmatprep.subr.bf16.mxu0 0
    %168 = vmatpush1.bf16.msra.mxu0 %v129
    %169 = vmatprep.subr.bf16.mxu0 0
    %170 = vmatpush1.bf16.msra.mxu0 %v130
    %171 = vmatprep.subr.bf16.mxu0 0
    %172 = vmatpush1.bf16.msra.mxu0 %v131
    %173 = vmatprep.subr.bf16.mxu0 0
    %174 = vmatpush1.bf16.msra.mxu0 %v132
    %175 = vmatprep.subr.bf16.mxu0 0
    %176 = vmatpush1.bf16.msra.mxu0 %v133
    %177 = vmatprep.subr.bf16.mxu0 0
    %178 = vmatpush1.bf16.msra.mxu0 %v134
    %179 = vmatprep.subr.bf16.mxu0 0
    %180 = vmatpush1.bf16.msra.mxu0 %v135
    %181 = vmatprep.subr.bf16.mxu0 0
    %182 = vmatpush1.bf16.msra.mxu0 %v136
    %183 = vmatprep.subr.bf16.mxu0 0
    %184 = vmatpush1.bf16.msra.mxu0 %v137
    %185 = vmatprep.subr.bf16.mxu0 0
    %186 = vmatpush1.bf16.msra.mxu0 %v138
    %187 = vmatprep.mubr.bf16.mxu0 %v19
    %188 = vmatmul.mubr.bf16.gmra.mrb[0].mxu0 %v18
    %v189 = vpop.f32.mrb[0].mxu0
    %v190 = vadd.f32 %v57, %v189
    %v191 = vpop.f32.mrb[0].mxu0
    %v192 = vpop.f32.mrb[0].mxu0
    %v193 = vpop.f32.mrb[0].mxu0
    %194 = vdwg.mxu0
    %vm195 = vcmask 48128
    %196 = vst.msk [vmem:[#allocation2] sm:$0xff] %vm195, %v190
    // Predicated region
    $region14: #{tf_nn_forward.9} parent=1 // pred_check
      _
    $region15: #{tf_nn_forward.9} parent=1 // pred_check_branch
      %198 = sbr.rel (0) target = $region17
    $region16: #{tf_nn_forward.9} parent=1 // pred_region
      %s200 = ssub.s32 128, 128
      %201 = vsyncadd [#allocation3], %s200
      %s203 = sshll.u32 [#allocation2], 4
      %s204 = int_to_ptr.vmem [resolvable:$true] %s203
      %206 = dma.vmem_to_hbm [thread:$0]  %s204, 128, %s3, [#allocation3]
    $region17: #{tf_nn_forward.9} parent=1 // pred_fallthru
      _
    // Predicated region
    $region18: #{tf_nn_forward.9} parent=1 // pred_check
      _
    $region19: #{tf_nn_forward.9} parent=1 // pred_check_branch
      %208 = sbr.rel (0) target = $region21
    $region20: #{tf_nn_forward.9} parent=1 // pred_region
      %209 = dma.done [#allocation3], 128
    $region21: #{tf_nn_forward.9} parent=1 // pred_fallthru
      _
    %210 = vsyncpa [#allocation3], 1

// kernel: tf_nn_forward.7
$region0: #{tf_nn_forward.7}
  #allocation0 [shape = 'u32[]', space=smem, size = 0x4, offset = 0x4, fixed_abs, tag = 'smem constant byte address 0x4 - core index']
  #allocation1 [shape = 'u32[144,128]{1,0:T(1,128)}', space=vmem, size = 0x12000, scoped, tag = 'internal scratch']
  %s0 = inlined_call_operand.vmem [shape: f32[16,256], index: 0, kind: input, shape index: {}]
  %s1 = inlined_call_operand.vmem [shape: bf16[256,768], index: 1, kind: input, shape index: {}]
  %s2 = inlined_call_operand.vmem [shape: f32[1,768], index: 2, kind: input, shape index: {}]
  %s3 = inlined_call_operand.hbm [shape: bf16[256,256], index: 3, kind: input, shape index: {}]
  %s4 = inlined_call_operand.vmem [shape: f32[1,256], index: 4, kind: input, shape index: {}]
  %s5 = inlined_call_operand.vmem [shape: f32[1,256], index: 5, kind: input, shape index: {}]
  %s6 = inlined_call_operand.hbm [shape: f32[1,256], index: 6, kind: input, shape index: {}]
  %s7 = inlined_call_operand.vmem [shape: bf16[256,512], index: 7, kind: input, shape index: {}]
  %s8 = inlined_call_operand.hbm [shape: f32[1,512], index: 8, kind: input, shape index: {}]
  %s9 = inlined_call_operand.hbm [shape: bf16[512,256], index: 9, kind: input, shape index: {}]
  %s10 = inlined_call_operand.hbm [shape: f32[1,256], index: 10, kind: input, shape index: {}]
  %s11 = inlined_call_operand.hbm [shape: f32[1,256], index: 11, kind: input, shape index: {}]
  %s12 = inlined_call_operand.hbm [shape: f32[1,256], index: 12, kind: input, shape index: {}]
  %s13 = inlined_call_operand.vmem [shape: f32[16,256], index: 13, kind: output, shape index: {}]
  %s14 = sld [smem:[#allocation0]]
  $region113: #{tf_nn_forward.7} parent=0
    _
  %s16 = ssub.s32 1, %s14
  %s17 = scalar_select 0, %s16, %s14
  $region1: #{tf_nn_forward.7} parent=0
    #allocation2 [shape = 'u8[131072]{0}', space=vmem, size = 0x20000, scoped, tag = 'input window, operand 3, single buffered']
    #allocation3 [shape = 's32[2]{0}', space=sflag, size = 0x8, scoped, tag = 'scoped memory for tf_nn_forward.7']
    #allocation4 [shape = 'u8[1024]{0}', space=vmem, size = 0x400, scoped, tag = 'input window, operand 6, single buffered']
    #allocation5 [shape = 's32[1]{0}', space=sflag, size = 0x4, scoped, tag = 'scoped memory for tf_nn_forward.7']
    #allocation6 [shape = 'u8[2048]{0}', space=vmem, size = 0x800, scoped, tag = 'input window, operand 8, single buffered']
    #allocation7 [shape = 'u8[262144]{0}', space=vmem, size = 0x40000, scoped, tag = 'input window, operand 9, single buffered']
    #allocation8 [shape = 's32[1]{0}', space=sflag, size = 0x4, scoped, tag = 'scoped memory for tf_nn_forward.7']
    #allocation9 [shape = 'u8[1024]{0}', space=vmem, size = 0x400, scoped, tag = 'input window, operand 10, single buffered']
    #allocation10 [shape = 'u8[1024]{0}', space=vmem, size = 0x400, scoped, tag = 'input window, operand 11, single buffered']
    #allocation11 [shape = 's32[1]{0}', space=sflag, size = 0x4, scoped, tag = 'scoped memory for tf_nn_forward.7']
    #allocation12 [shape = 'u8[1024]{0}', space=vmem, size = 0x400, scoped, tag = 'input window, operand 12, single buffered']
    %18 = vsyncpa [#allocation3], 0
    %19 = vsyncpa [#allocation5], 0
    %20 = vsyncpa [#allocation8], 0
    %21 = vsyncpa [#allocation11], 0
    loop: start=0, step=1, limit=4
    $region2: #{tf_nn_forward.7} parent=1 // loop_pre_header
      _
    $region3: #{tf_nn_forward.7} parent=1 // loop_header
      %s23 = sphi 0, %s27
      %p24 = scmp.ge.s32.totalorder %s23, 4
      %s33 = sphi 0, %s35
      %s36 = sphi 0, %s33
      %s37 = sphi 0, %s36
      %s53 = sphi 0, %s37
      %s57 = sphi 0, %s57
      %s59 = sphi 0, %s57
      %s60 = sphi 0, %s59
      %s74 = sphi 0, %s60
      %s78 = sphi 0, %s78
      %s80 = sphi 0, %s78
      %s81 = sphi 0, %s80
      %s95 = sphi 0, %s81
      %s99 = sphi 0, %s99
      %s101 = sphi 0, %s99
      %s102 = sphi 0, %s101
      %s116 = sphi 0, %s102
      %s120 = sphi 0, %s120
      %s122 = sphi 0, %s120
      %s123 = sphi 0, %s122
      %s137 = sphi 0, %s123
      %s141 = sphi 0, %s141
      %s143 = sphi 0, %s141
      %s144 = sphi 0, %s143
      %s158 = sphi 0, %s144
      %s162 = sphi 0, %s162
      %s164 = sphi 0, %s162
      %s165 = sphi 0, %s164
      %s179 = sphi 0, %s165
      %s183 = sphi 0, %s183
      %s185 = sphi 0, %s183
      %s186 = sphi 0, %s185
      %s200 = sphi 0, %s186
      %s204 = sphi 0, %s204
      %s206 = sphi 0, %s204
      %s207 = sphi 0, %s206
      %s221 = sphi 0, %s207
      %s225 = sphi 0, %s225
      %s227 = sphi 0, %s225
      %s228 = sphi 0, %s227
      %s242 = sphi 0, %s228
      %s246 = sphi 0, %s246
      %s248 = sphi 0, %s246
      %s249 = sphi 0, %s248
      %s263 = sphi 0, %s249
      %s267 = sphi 0, %s267
      %s269 = sphi 0, %s267
      %s270 = sphi 0, %s269
      %s284 = sphi 0, %s270
      %s288 = sphi 0, %s288
      %s290 = sphi 0, %s288
      %s291 = sphi 0, %s290
      %s305 = sphi 0, %s291
      %s311 = sphi 0, %s313
      %s314 = sphi 0, %s311
      %s315 = sphi 0, %s314
      %s331 = sphi 0, %s315
    $region4: #{tf_nn_forward.7} parent=1 // loop_header_branch
      %26 = sbr.rel (%p24) target = $region8
    $region5: #{tf_nn_forward.7} parent=1 // loop_body
      %s28 = ssub.s32 %s23, 1
      %s29 = ssub.s32 %s23, 2
      %s30 = sadd.s32 %s23, 1
      %s31 = ssub.s32 %s23, %s30
      %p32 = scmp.eq.s32.totalorder %s31, 0
      %s34 = sadd.s32 %s33, 1
      %s35 = scalar_select %p32, %s33, %s34
      %p38 = pneg %p32
      %p39 = scmp.eq.s32.totalorder %s23, 1
      %p40 = por %p38, %p39
      %p41 = scmp.ne.s32.totalorder %s33, %s36
      %p42 = scmp.eq.s32.totalorder %s23, 0
      %p43 = por %p41, %p42
      %p44 = scmp.ne.s32.totalorder %s33, %s36
      %p45 = scmp.eq.s32.totalorder %s28, 1
      %p46 = por %p44, %p45
      %p47 = scmp.ne.s32.totalorder %s36, %s37
      %p48 = scmp.eq.s32.totalorder %s28, 0
      %p49 = por %p47, %p48
      %p50 = scmp.ne.s32.totalorder %s36, %s37
      %p51 = scmp.eq.s32.totalorder %s29, 1
      %p52 = por %p50, %p51
      %p54 = scmp.ne.s32.totalorder %s37, %s53
      %p55 = scmp.eq.s32.totalorder %s29, 0
      %p56 = por %p54, %p55
      %s58 = sadd.s32 %s57, 1
      %p61 = scmp.eq.s32.totalorder %s23, 1
      %p62 = scmp.ne.s32.totalorder %s57, %s59
      %p63 = scmp.eq.s32.totalorder %s23, 0
      %p64 = por %p62, %p63
      %p65 = scmp.ne.s32.totalorder %s57, %s59
      %p66 = scmp.eq.s32.totalorder %s28, 1
      %p67 = por %p65, %p66
      %p68 = scmp.ne.s32.totalorder %s59, %s60
      %p69 = scmp.eq.s32.totalorder %s28, 0
      %p70 = por %p68, %p69
      %p71 = scmp.ne.s32.totalorder %s59, %s60
      %p72 = scmp.eq.s32.totalorder %s29, 1
      %p73 = por %p71, %p72
      %p75 = scmp.ne.s32.totalorder %s60, %s74
      %p76 = scmp.eq.s32.totalorder %s29, 0
      %p77 = por %p75, %p76
      %s79 = sadd.s32 %s78, 1
      %p82 = scmp.eq.s32.totalorder %s23, 1
      %p83 = scmp.ne.s32.totalorder %s78, %s80
      %p84 = scmp.eq.s32.totalorder %s23, 0
      %p85 = por %p83, %p84
      %p86 = scmp.ne.s32.totalorder %s78, %s80
      %p87 = scmp.eq.s32.totalorder %s28, 1
      %p88 = por %p86, %p87
      %p89 = scmp.ne.s32.totalorder %s80, %s81
      %p90 = scmp.eq.s32.totalorder %s28, 0
      %p91 = por %p89, %p90
      %p92 = scmp.ne.s32.totalorder %s80, %s81
      %p93 = scmp.eq.s32.totalorder %s29, 1
      %p94 = por %p92, %p93
      %p96 = scmp.ne.s32.totalorder %s81, %s95
      %p97 = scmp.eq.s32.totalorder %s29, 0
      %p98 = por %p96, %p97
      %s100 = sadd.s32 %s99, 1
      %p103 = scmp.eq.s32.totalorder %s23, 1
      %p104 = scmp.ne.s32.totalorder %s99, %s101
      %p105 = scmp.eq.s32.totalorder %s23, 0
      %p106 = por %p104, %p105
      %p107 = scmp.ne.s32.totalorder %s99, %s101
      %p108 = scmp.eq.s32.totalorder %s28, 1
      %p109 = por %p107, %p108
      %p110 = scmp.ne.s32.totalorder %s101, %s102
      %p111 = scmp.eq.s32.totalorder %s28, 0
      %p112 = por %p110, %p111
      %p113 = scmp.ne.s32.totalorder %s101, %s102
      %p114 = scmp.eq.s32.totalorder %s29, 1
      %p115 = por %p113, %p114
      %p117 = scmp.ne.s32.totalorder %s102, %s116
      %p118 = scmp.eq.s32.totalorder %s29, 0
      %p119 = por %p117, %p118
      %s121 = sadd.s32 %s120, 1
      %p124 = scmp.eq.s32.totalorder %s23, 1
      %p125 = scmp.ne.s32.totalorder %s120, %s122
      %p126 = scmp.eq.s32.totalorder %s23, 0
      %p127 = por %p125, %p126
      %p128 = scmp.ne.s32.totalorder %s120, %s122
      %p129 = scmp.eq.s32.totalorder %s28, 1
      %p130 = por %p128, %p129
      %p131 = scmp.ne.s32.totalorder %s122, %s123
      %p132 = scmp.eq.s32.totalorder %s28, 0
      %p133 = por %p131, %p132
      %p134 = scmp.ne.s32.totalorder %s122, %s123
      %p135 = scmp.eq.s32.totalorder %s29, 1
      %p136 = por %p134, %p135
      %p138 = scmp.ne.s32.totalorder %s123, %s137
      %p139 = scmp.eq.s32.totalorder %s29, 0
      %p140 = por %p138, %p139
      %s142 = sadd.s32 %s141, 1
      %p145 = scmp.eq.s32.totalorder %s23, 1
      %p146 = scmp.ne.s32.totalorder %s141, %s143
      %p147 = scmp.eq.s32.totalorder %s23, 0
      %p148 = por %p146, %p147
      %p149 = scmp.ne.s32.totalorder %s141, %s143
      %p150 = scmp.eq.s32.totalorder %s28, 1
      %p151 = por %p149, %p150
      %p152 = scmp.ne.s32.totalorder %s143, %s144
      %p153 = scmp.eq.s32.totalorder %s28, 0
      %p154 = por %p152, %p153
      %p155 = scmp.ne.s32.totalorder %s143, %s144
      %p156 = scmp.eq.s32.totalorder %s29, 1
      %p157 = por %p155, %p156
      %p159 = scmp.ne.s32.totalorder %s144, %s158
      %p160 = scmp.eq.s32.totalorder %s29, 0
      %p161 = por %p159, %p160
      %s163 = sadd.s32 %s162, 1
      %p166 = scmp.eq.s32.totalorder %s23, 1
      %p167 = scmp.ne.s32.totalorder %s162, %s164
      %p168 = scmp.eq.s32.totalorder %s23, 0
      %p169 = por %p167, %p168
      %p170 = scmp.ne.s32.totalorder %s162, %s164
      %p171 = scmp.eq.s32.totalorder %s28, 1
      %p172 = por %p170, %p171
      %p173 = scmp.ne.s32.totalorder %s164, %s165
      %p174 = scmp.eq.s32.totalorder %s28, 0
      %p175 = por %p173, %p174
      %p176 = scmp.ne.s32.totalorder %s164, %s165
      %p177 = scmp.eq.s32.totalorder %s29, 1
      %p178 = por %p176, %p177
      %p180 = scmp.ne.s32.totalorder %s165, %s179
      %p181 = scmp.eq.s32.totalorder %s29, 0
      %p182 = por %p180, %p181
      %s184 = sadd.s32 %s183, 1
      %p187 = scmp.eq.s32.totalorder %s23, 1
      %p188 = scmp.ne.s32.totalorder %s183, %s185
      %p189 = scmp.eq.s32.totalorder %s23, 0
      %p190 = por %p188, %p189
      %p191 = scmp.ne.s32.totalorder %s183, %s185
      %p192 = scmp.eq.s32.totalorder %s28, 1
      %p193 = por %p191, %p192
      %p194 = scmp.ne.s32.totalorder %s185, %s186
      %p195 = scmp.eq.s32.totalorder %s28, 0
      %p196 = por %p194, %p195
      %p197 = scmp.ne.s32.totalorder %s185, %s186
      %p198 = scmp.eq.s32.totalorder %s29, 1
      %p199 = por %p197, %p198
      %p201 = scmp.ne.s32.totalorder %s186, %s200
      %p202 = scmp.eq.s32.totalorder %s29, 0
      %p203 = por %p201, %p202
      %s205 = sadd.s32 %s204, 1
      %p208 = scmp.eq.s32.totalorder %s23, 1
      %p209 = scmp.ne.s32.totalorder %s204, %s206
      %p210 = scmp.eq.s32.totalorder %s23, 0
      %p211 = por %p209, %p210
      %p212 = scmp.ne.s32.totalorder %s204, %s206
      %p213 = scmp.eq.s32.totalorder %s28, 1
      %p214 = por %p212, %p213
      %p215 = scmp.ne.s32.totalorder %s206, %s207
      %p216 = scmp.eq.s32.totalorder %s28, 0
      %p217 = por %p215, %p216
      %p218 = scmp.ne.s32.totalorder %s206, %s207
      %p219 = scmp.eq.s32.totalorder %s29, 1
      %p220 = por %p218, %p219
      %p222 = scmp.ne.s32.totalorder %s207, %s221
      %p223 = scmp.eq.s32.totalorder %s29, 0
      %p224 = por %p222, %p223
      %s226 = sadd.s32 %s225, 1
      %p229 = scmp.eq.s32.totalorder %s23, 1
      %p230 = scmp.ne.s32.totalorder %s225, %s227
      %p231 = scmp.eq.s32.totalorder %s23, 0
      %p232 = por %p230, %p231
      %p233 = scmp.ne.s32.totalorder %s225, %s227
      %p234 = scmp.eq.s32.totalorder %s28, 1
      %p235 = por %p233, %p234
      %p236 = scmp.ne.s32.totalorder %s227, %s228
      %p237 = scmp.eq.s32.totalorder %s28, 0
      %p238 = por %p236, %p237
      %p239 = scmp.ne.s32.totalorder %s227, %s228
      %p240 = scmp.eq.s32.totalorder %s29, 1
      %p241 = por %p239, %p240
      %p243 = scmp.ne.s32.totalorder %s228, %s242
      %p244 = scmp.eq.s32.totalorder %s29, 0
      %p245 = por %p243, %p244
      %s247 = sadd.s32 %s246, 1
      %p250 = scmp.eq.s32.totalorder %s23, 1
      %p251 = scmp.ne.s32.totalorder %s246, %s248
      %p252 = scmp.eq.s32.totalorder %s23, 0
      %p253 = por %p251, %p252
      %p254 = scmp.ne.s32.totalorder %s246, %s248
      %p255 = scmp.eq.s32.totalorder %s28, 1
      %p256 = por %p254, %p255
      %p257 = scmp.ne.s32.totalorder %s248, %s249
      %p258 = scmp.eq.s32.totalorder %s28, 0
      %p259 = por %p257, %p258
      %p260 = scmp.ne.s32.totalorder %s248, %s249
      %p261 = scmp.eq.s32.totalorder %s29, 1
      %p262 = por %p260, %p261
      %p264 = scmp.ne.s32.totalorder %s249, %s263
      %p265 = scmp.eq.s32.totalorder %s29, 0
      %p266 = por %p264, %p265
      %s268 = sadd.s32 %s267, 1
      %p271 = scmp.eq.s32.totalorder %s23, 1
      %p272 = scmp.ne.s32.totalorder %s267, %s269
      %p273 = scmp.eq.s32.totalorder %s23, 0
      %p274 = por %p272, %p273
      %p275 = scmp.ne.s32.totalorder %s267, %s269
      %p276 = scmp.eq.s32.totalorder %s28, 1
      %p277 = por %p275, %p276
      %p278 = scmp.ne.s32.totalorder %s269, %s270
      %p279 = scmp.eq.s32.totalorder %s28, 0
      %p280 = por %p278, %p279
      %p281 = scmp.ne.s32.totalorder %s269, %s270
      %p282 = scmp.eq.s32.totalorder %s29, 1
      %p283 = por %p281, %p282
      %p285 = scmp.ne.s32.totalorder %s270, %s284
      %p286 = scmp.eq.s32.totalorder %s29, 0
      %p287 = por %p285, %p286
      %s289 = sadd.s32 %s288, 1
      %p292 = scmp.eq.s32.totalorder %s23, 1
      %p293 = scmp.ne.s32.totalorder %s288, %s290
      %p294 = scmp.eq.s32.totalorder %s23, 0
      %p295 = por %p293, %p294
      %p296 = scmp.ne.s32.totalorder %s288, %s290
      %p297 = scmp.eq.s32.totalorder %s28, 1
      %p298 = por %p296, %p297
      %p299 = scmp.ne.s32.totalorder %s290, %s291
      %p300 = scmp.eq.s32.totalorder %s28, 0
      %p301 = por %p299, %p300
      %p302 = scmp.ne.s32.totalorder %s290, %s291
      %p303 = scmp.eq.s32.totalorder %s29, 1
      %p304 = por %p302, %p303
      %p306 = scmp.ne.s32.totalorder %s291, %s305
      %p307 = scmp.eq.s32.totalorder %s29, 0
      %p308 = por %p306, %p307
      %s309 = ssub.s32 %s23, %s30
      %p310 = scmp.eq.s32.totalorder %s309, 0
      %s312 = sadd.s32 %s311, 1
      %s313 = scalar_select %p310, %s311, %s312
      %p316 = pneg %p310
      %p317 = scmp.eq.s32.totalorder %s23, 1
      %p318 = por %p316, %p317
      %p319 = scmp.ne.s32.totalorder %s311, %s314
      %p320 = scmp.eq.s32.totalorder %s23, 0
      %p321 = por %p319, %p320
      %p322 = scmp.ne.s32.totalorder %s311, %s314
      %p323 = scmp.eq.s32.totalorder %s28, 1
      %p324 = por %p322, %p323
      %p325 = scmp.ne.s32.totalorder %s314, %s315
      %p326 = scmp.eq.s32.totalorder %s28, 0
      %p327 = por %p325, %p326
      %p328 = scmp.ne.s32.totalorder %s314, %s315
      %p329 = scmp.eq.s32.totalorder %s29, 1
      %p330 = por %p328, %p329
      %p332 = scmp.ne.s32.totalorder %s315, %s331
      %p333 = scmp.eq.s32.totalorder %s29, 0
      %p334 = por %p332, %p333
      %p335 = scmp.le.s32.totalorder 1, %s23
      %p336 = scmp.lt.s32.totalorder %s23, 3
      %p337 = pnand %p335, %p336
      %p338 = pneg %p337
      // Predicated region
      $region9: #{tf_nn_forward.7} parent=5 // pred_check
        _
      $region10: #{tf_nn_forward.7} parent=5 // pred_check_branch
        %340 = sbr.rel (%p337) target = $region12
      $region11: #{tf_nn_forward.7} parent=5 // pred_region
        %s341 = ssub.s32 %s23, 1
        // Predicated region
        $region13: #{tf_nn_forward.7} parent=11 // pred_check
          %p342 = pneg %p70
        $region14: #{tf_nn_forward.7} parent=11 // pred_check_branch
          %344 = sbr.rel (%p342) target = $region16
        $region15: #{tf_nn_forward.7} parent=11 // pred_region
          _
        $region16: #{tf_nn_forward.7} parent=11 // pred_fallthru
          _
        // Predicated region
        $region17: #{tf_nn_forward.7} parent=11 // pred_check
          %p345 = pneg %p91
        $region18: #{tf_nn_forward.7} parent=11 // pred_check_branch
          %347 = sbr.rel (%p345) target = $region20
        $region19: #{tf_nn_forward.7} parent=11 // pred_region
          _
        $region20: #{tf_nn_forward.7} parent=11 // pred_fallthru
          _
        // Predicated region
        $region21: #{tf_nn_forward.7} parent=11 // pred_check
          %p348 = pneg %p112
        $region22: #{tf_nn_forward.7} parent=11 // pred_check_branch
          %350 = sbr.rel (%p348) target = $region24
        $region23: #{tf_nn_forward.7} parent=11 // pred_region
          %s352 = ssub.s32 4096, 4096
          %353 = vsyncadd [#allocation3], %s352
          %s354 = sshll.u32 [#allocation2], 4
          %s355 = int_to_ptr.vmem [resolvable:$true] %s354
          %360 = dma.hbm_to_vmem [thread:$0]  %s3, 4096, %s355, [#allocation3], 128, 128, 8
        $region24: #{tf_nn_forward.7} parent=11 // pred_fallthru
          _
        // Predicated region
        $region25: #{tf_nn_forward.7} parent=11 // pred_check
          %p361 = pneg %p133
        $region26: #{tf_nn_forward.7} parent=11 // pred_check_branch
          %363 = sbr.rel (%p361) target = $region28
        $region27: #{tf_nn_forward.7} parent=11 // pred_region
          _
        $region28: #{tf_nn_forward.7} parent=11 // pred_fallthru
          _
        // Predicated region
        $region29: #{tf_nn_forward.7} parent=11 // pred_check
          %p364 = pneg %p154
        $region30: #{tf_nn_forward.7} parent=11 // pred_check_branch
          %366 = sbr.rel (%p364) target = $region32
        $region31: #{tf_nn_forward.7} parent=11 // pred_region
          _
        $region32: #{tf_nn_forward.7} parent=11 // pred_fallthru
          _
        // Predicated region
        $region33: #{tf_nn_forward.7} parent=11 // pred_check
          %p367 = pneg %p175
        $region34: #{tf_nn_forward.7} parent=11 // pred_check_branch
          %369 = sbr.rel (%p367) target = $region36
        $region35: #{tf_nn_forward.7} parent=11 // pred_region
          %s371 = ssub.s32 32, 32
          %372 = vsyncadd [#allocation5], %s371
          %s374 = sshll.u32 [#allocation4], 4
          %s375 = int_to_ptr.vmem [resolvable:$true] %s374
          %377 = dma.hbm_to_vmem [thread:$0]  %s6, 32, %s375, [#allocation5]
        $region36: #{tf_nn_forward.7} parent=11 // pred_fallthru
          _
        // Predicated region
        $region37: #{tf_nn_forward.7} parent=11 // pred_check
          %p378 = pneg %p196
        $region38: #{tf_nn_forward.7} parent=11 // pred_check_branch
          %380 = sbr.rel (%p378) target = $region40
        $region39: #{tf_nn_forward.7} parent=11 // pred_region
          _
        $region40: #{tf_nn_forward.7} parent=11 // pred_fallthru
          _
        // Predicated region
        $region41: #{tf_nn_forward.7} parent=11 // pred_check
          %p381 = pneg %p217
        $region42: #{tf_nn_forward.7} parent=11 // pred_check_branch
          %383 = sbr.rel (%p381) target = $region44
        $region43: #{tf_nn_forward.7} parent=11 // pred_region
          %s385 = ssub.s32 64, 64
          %386 = vsyncadd [#allocation5], %s385
          %s388 = sshll.u32 [#allocation6], 4
          %s389 = int_to_ptr.vmem [resolvable:$true] %s388
          %391 = dma.hbm_to_vmem [thread:$0]  %s8, 64, %s389, [#allocation5]
        $region44: #{tf_nn_forward.7} parent=11 // pred_fallthru
          _
        // Predicated region
        $region45: #{tf_nn_forward.7} parent=11 // pred_check
          %p392 = pneg %p238
        $region46: #{tf_nn_forward.7} parent=11 // pred_check_branch
          %394 = sbr.rel (%p392) target = $region48
        $region47: #{tf_nn_forward.7} parent=11 // pred_region
          %s396 = ssub.s32 8192, 8192
          %397 = vsyncadd [#allocation8], %s396
          %s398 = sshll.u32 [#allocation7], 4
          %s399 = int_to_ptr.vmem [resolvable:$true] %s398
          %404 = dma.hbm_to_vmem [thread:$0]  %s9, 8192, %s399, [#allocation8], 128, 128, 8
        $region48: #{tf_nn_forward.7} parent=11 // pred_fallthru
          _
        // Predicated region
        $region49: #{tf_nn_forward.7} parent=11 // pred_check
          %p405 = pneg %p259
        $region50: #{tf_nn_forward.7} parent=11 // pred_check_branch
          %407 = sbr.rel (%p405) target = $region52
        $region51: #{tf_nn_forward.7} parent=11 // pred_region
          %s409 = ssub.s32 32, 32
          %410 = vsyncadd [#allocation8], %s409
          %s412 = sshll.u32 [#allocation9], 4
          %s413 = int_to_ptr.vmem [resolvable:$true] %s412
          %415 = dma.hbm_to_vmem [thread:$0]  %s10, 32, %s413, [#allocation8]
        $region52: #{tf_nn_forward.7} parent=11 // pred_fallthru
          _
        // Predicated region
        $region53: #{tf_nn_forward.7} parent=11 // pred_check
          %p416 = pneg %p280
        $region54: #{tf_nn_forward.7} parent=11 // pred_check_branch
          %418 = sbr.rel (%p416) target = $region56
        $region55: #{tf_nn_forward.7} parent=11 // pred_region
          %s420 = ssub.s32 32, 32
          %421 = vsyncadd [#allocation11], %s420
          %s423 = sshll.u32 [#allocation10], 4
          %s424 = int_to_ptr.vmem [resolvable:$true] %s423
          %426 = dma.hbm_to_vmem [thread:$0]  %s11, 32, %s424, [#allocation11]
        $region56: #{tf_nn_forward.7} parent=11 // pred_fallthru
          _
        // Predicated region
        $region57: #{tf_nn_forward.7} parent=11 // pred_check
          %p427 = pneg %p301
        $region58: #{tf_nn_forward.7} parent=11 // pred_check_branch
          %429 = sbr.rel (%p427) target = $region60
        $region59: #{tf_nn_forward.7} parent=11 // pred_region
          %s431 = ssub.s32 32, 32
          %432 = vsyncadd [#allocation11], %s431
          %s434 = sshll.u32 [#allocation12], 4
          %s435 = int_to_ptr.vmem [resolvable:$true] %s434
          %437 = dma.hbm_to_vmem [thread:$0]  %s12, 32, %s435, [#allocation11]
        $region60: #{tf_nn_forward.7} parent=11 // pred_fallthru
          _
      $region12: #{tf_nn_forward.7} parent=5 // pred_fallthru
        _
      %p438 = scmp.lt.s32.totalorder %s23, 2
      // Predicated region
      $region61: #{tf_nn_forward.7} parent=5 // pred_check
        %p439 = pneg %p438
      $region62: #{tf_nn_forward.7} parent=5 // pred_check_branch
        %441 = sbr.rel (%p439) target = $region64
      $region63: #{tf_nn_forward.7} parent=5 // pred_region
        // Predicated region
        $region65: #{tf_nn_forward.7} parent=63 // pred_check
          %p442 = pneg %p43
        $region66: #{tf_nn_forward.7} parent=63 // pred_check_branch
          %444 = sbr.rel (%p442) target = $region68
        $region67: #{tf_nn_forward.7} parent=63 // pred_region
          %p445 = scmp.lt.s32.totalorder %s23, 1
          %s446 = scalar_select %p445, %s23, 1
          %s447 = smul.addr %s446, 2
          %s448 = smul.addr %s447, 8
          %s449 = scalar_lea.vmem %s0, %s448
        $region68: #{tf_nn_forward.7} parent=63 // pred_fallthru
          _
      $region64: #{tf_nn_forward.7} parent=5 // pred_fallthru
        _
      %p450 = scmp.le.s32.totalorder 1, %s23
      %p451 = scmp.lt.s32.totalorder %s23, 3
      %p452 = pnand %p450, %p451
      %p453 = pneg %p452
      // Predicated region
      $region69: #{tf_nn_forward.7} parent=5 // pred_check
        _
      $region70: #{tf_nn_forward.7} parent=5 // pred_check_branch
        %455 = sbr.rel (%p452) target = $region72
      $region71: #{tf_nn_forward.7} parent=5 // pred_region
        %s456 = ssub.s32 %s23, 1
        // Predicated region
        $region73: #{tf_nn_forward.7} parent=71 // pred_check
          %p457 = pneg %p112
        $region74: #{tf_nn_forward.7} parent=71 // pred_check_branch
          %459 = sbr.rel (%p457) target = $region76
        $region75: #{tf_nn_forward.7} parent=71 // pred_region
          %460 = dma.done [#allocation3], 4096
        $region76: #{tf_nn_forward.7} parent=71 // pred_fallthru
          _
        // Predicated region
        $region77: #{tf_nn_forward.7} parent=71 // pred_check
          %p461 = pneg %p175
        $region78: #{tf_nn_forward.7} parent=71 // pred_check_branch
          %463 = sbr.rel (%p461) target = $region80
        $region79: #{tf_nn_forward.7} parent=71 // pred_region
          %464 = dma.done [#allocation5], 32
        $region80: #{tf_nn_forward.7} parent=71 // pred_fallthru
          _
        // Predicated region
        $region81: #{tf_nn_forward.7} parent=71 // pred_check
          %p465 = pneg %p217
        $region82: #{tf_nn_forward.7} parent=71 // pred_check_branch
          %467 = sbr.rel (%p465) target = $region84
        $region83: #{tf_nn_forward.7} parent=71 // pred_region
          %468 = dma.done [#allocation5], 64
        $region84: #{tf_nn_forward.7} parent=71 // pred_fallthru
          _
        // Predicated region
        $region85: #{tf_nn_forward.7} parent=71 // pred_check
          %p469 = pneg %p238
        $region86: #{tf_nn_forward.7} parent=71 // pred_check_branch
          %471 = sbr.rel (%p469) target = $region88
        $region87: #{tf_nn_forward.7} parent=71 // pred_region
          %472 = dma.done [#allocation8], 8192
        $region88: #{tf_nn_forward.7} parent=71 // pred_fallthru
          _
        // Predicated region
        $region89: #{tf_nn_forward.7} parent=71 // pred_check
          %p473 = pneg %p259
        $region90: #{tf_nn_forward.7} parent=71 // pred_check_branch
          %475 = sbr.rel (%p473) target = $region92
        $region91: #{tf_nn_forward.7} parent=71 // pred_region
          %476 = dma.done [#allocation8], 32
        $region92: #{tf_nn_forward.7} parent=71 // pred_fallthru
          _
        // Predicated region
        $region93: #{tf_nn_forward.7} parent=71 // pred_check
          %p477 = pneg %p280
        $region94: #{tf_nn_forward.7} parent=71 // pred_check_branch
          %479 = sbr.rel (%p477) target = $region96
        $region95: #{tf_nn_forward.7} parent=71 // pred_region
          %480 = dma.done [#allocation11], 32
        $region96: #{tf_nn_forward.7} parent=71 // pred_fallthru
          _
        // Predicated region
        $region97: #{tf_nn_forward.7} parent=71 // pred_check
          %p481 = pneg %p301
        $region98: #{tf_nn_forward.7} parent=71 // pred_check_branch
          %483 = sbr.rel (%p481) target = $region100
        $region99: #{tf_nn_forward.7} parent=71 // pred_region
          %484 = dma.done [#allocation11], 32
        $region100: #{tf_nn_forward.7} parent=71 // pred_fallthru
          _
        %p485 = scmp.lt.s32.totalorder %s28, 1
        %s486 = scalar_select %p485, %s28, 1
        %s487 = smul.addr %s486, 2
        %s488 = smul.addr %s487, 8
        %s489 = scalar_lea.vmem %s0, %s488
        %p490 = pneg %p49
        %p491 = pneg %p46
        %p492 = pneg %p70
        %p493 = pneg %p67
        %p494 = pneg %p91
        %p495 = pneg %p88
        %p496 = pneg %p112
        %p497 = pneg %p109
        %p498 = pneg %p133
        %p499 = pneg %p130
        %p500 = pneg %p154
        %p501 = pneg %p151
        %p502 = pneg %p175
        %p503 = pneg %p172
        %p504 = pneg %p196
        %p505 = pneg %p193
        %p506 = pneg %p217
        %p507 = pneg %p214
        %p508 = pneg %p238
        %p509 = pneg %p235
        %p510 = pneg %p259
        %p511 = pneg %p256
        %p512 = pneg %p280
        %p513 = pneg %p277
        %p514 = pneg %p301
        %p515 = pneg %p298
        %p516 = pneg %p327
        %p517 = pneg %p324
        %p518 = scmp.lt.s32.totalorder %s28, 1
        %s519 = scalar_select %p518, %s28, 1
        %s520 = smul.addr %s519, 2
        %s521 = smul.addr %s520, 8
        %s522 = scalar_lea.vmem %s13, %s521
        %p523 = scmp.lt.s32.totalorder %s28, 1
        %s524 = scalar_select %p523, %s28, 1
        %s525 = smul.addr %s524, 2
        %s526 = smul.addr %s525, 8
        %s527 = scalar_lea.vmem %s0, %s526
        %p528 = scmp.lt.s32.totalorder %s28, 1
        %s529 = scalar_select %p528, %s28, 1
        %s530 = smul.addr %s529, 2
        %s531 = smul.addr %s530, 8
        %s532 = scalar_lea.vmem %s13, %s531
        %v534 = vld [vmem:[%s527] sm:$0xff]
        %v535 = vld [vmem:[%s527 + $0x8] sm:$0xff]
        %v536 = vpack.c.bf16 %v534, %v534
        %v537 = vpack.c.bf16 %v535, %v535
        %v538 = vld [vmem:[%s1] sm:$0xff]
        %v539 = vld [vmem:[%s1 + $0x8] sm:$0xff]
        %v540 = vld [vmem:[%s1 + $0x10] sm:$0xff]
        %v541 = vld [vmem:[%s1 + $0x18] sm:$0xff]
        %v542 = vld [vmem:[%s1 + $0x20] sm:$0xff]
        %v543 = vld [vmem:[%s1 + $0x28] sm:$0xff]
        %v544 = vld [vmem:[%s1 + $0x30] sm:$0xff]
        %v545 = vld [vmem:[%s1 + $0x38] sm:$0xff]
        %v546 = vld [vmem:[%s1 + $0x40] sm:$0xff]
        %v547 = vld [vmem:[%s1 + $0x48] sm:$0xff]
        %v548 = vld [vmem:[%s1 + $0x50] sm:$0xff]
        %v549 = vld [vmem:[%s1 + $0x58] sm:$0xff]
        %v550 = vld [vmem:[%s1 + $0x60] sm:$0xff]
        %v551 = vld [vmem:[%s1 + $0x68] sm:$0xff]
        %v552 = vld [vmem:[%s1 + $0x70] sm:$0xff]
        %v553 = vld [vmem:[%s1 + $0x78] sm:$0xff]
        %v554 = vld [vmem:[%s1 + $0x80] sm:$0xff]
        %v555 = vld [vmem:[%s1 + $0x88] sm:$0xff]
        %v556 = vld [vmem:[%s1 + $0x90] sm:$0xff]
        %v557 = vld [vmem:[%s1 + $0x98] sm:$0xff]
        %v558 = vld [vmem:[%s1 + $0xa0] sm:$0xff]
        %v559 = vld [vmem:[%s1 + $0xa8] sm:$0xff]
        %v560 = vld [vmem:[%s1 + $0xb0] sm:$0xff]
        %v561 = vld [vmem:[%s1 + $0xb8] sm:$0xff]
        %v562 = vld [vmem:[%s1 + $0xc0] sm:$0xff]
        %v563 = vld [vmem:[%s1 + $0xc8] sm:$0xff]
        %v564 = vld [vmem:[%s1 + $0xd0] sm:$0xff]
        %v565 = vld [vmem:[%s1 + $0xd8] sm:$0xff]
        %v566 = vld [vmem:[%s1 + $0xe0] sm:$0xff]
        %v567 = vld [vmem:[%s1 + $0xe8] sm:$0xff]
        %v568 = vld [vmem:[%s1 + $0xf0] sm:$0xff]
        %v569 = vld [vmem:[%s1 + $0xf8] sm:$0xff]
        %v570 = vld [vmem:[%s1 + $0x100] sm:$0xff]
        %v571 = vld [vmem:[%s1 + $0x108] sm:$0xff]
        %v572 = vld [vmem:[%s1 + $0x110] sm:$0xff]
        %v573 = vld [vmem:[%s1 + $0x118] sm:$0xff]
        %v574 = vld [vmem:[%s1 + $0x120] sm:$0xff]
        %v575 = vld [vmem:[%s1 + $0x128] sm:$0xff]
        %v576 = vld [vmem:[%s1 + $0x130] sm:$0xff]
        %v577 = vld [vmem:[%s1 + $0x138] sm:$0xff]
        %v578 = vld [vmem:[%s1 + $0x140] sm:$0xff]
        %v579 = vld [vmem:[%s1 + $0x148] sm:$0xff]
        %v580 = vld [vmem:[%s1 + $0x150] sm:$0xff]
        %v581 = vld [vmem:[%s1 + $0x158] sm:$0xff]
        %v582 = vld [vmem:[%s1 + $0x160] sm:$0xff]
        %v583 = vld [vmem:[%s1 + $0x168] sm:$0xff]
        %v584 = vld [vmem:[%s1 + $0x170] sm:$0xff]
        %v585 = vld [vmem:[%s1 + $0x178] sm:$0xff]
        %v586 = vld [vmem:[%s1 + $0x180] sm:$0xff]
        %v587 = vld [vmem:[%s1 + $0x188] sm:$0xff]
        %v588 = vld [vmem:[%s1 + $0x190] sm:$0xff]
        %v589 = vld [vmem:[%s1 + $0x198] sm:$0xff]
        %v590 = vld [vmem:[%s1 + $0x1a0] sm:$0xff]
        %v591 = vld [vmem:[%s1 + $0x1a8] sm:$0xff]
        %v592 = vld [vmem:[%s1 + $0x1b0] sm:$0xff]
        %v593 = vld [vmem:[%s1 + $0x1b8] sm:$0xff]
        %v594 = vld [vmem:[%s1 + $0x1c0] sm:$0xff]
        %v595 = vld [vmem:[%s1 + $0x1c8] sm:$0xff]
        %v596 = vld [vmem:[%s1 + $0x1d0] sm:$0xff]
        %v597 = vld [vmem:[%s1 + $0x1d8] sm:$0xff]
        %v598 = vld [vmem:[%s1 + $0x1e0] sm:$0xff]
        %v599 = vld [vmem:[%s1 + $0x1e8] sm:$0xff]
        %v600 = vld [vmem:[%s1 + $0x1f0] sm:$0xff]
        %v601 = vld [vmem:[%s1 + $0x1f8] sm:$0xff]
        %v602 = vld [vmem:[%s1 + $0x200] sm:$0xff]
        %v603 = vld [vmem:[%s1 + $0x208] sm:$0xff]
        %v604 = vld [vmem:[%s1 + $0x210] sm:$0xff]
        %v605 = vld [vmem:[%s1 + $0x218] sm:$0xff]
        %v606 = vld [vmem:[%s1 + $0x220] sm:$0xff]
        %v607 = vld [vmem:[%s1 + $0x228] sm:$0xff]
        %v608 = vld [vmem:[%s1 + $0x230] sm:$0xff]
        %v609 = vld [vmem:[%s1 + $0x238] sm:$0xff]
        %v610 = vld [vmem:[%s1 + $0x240] sm:$0xff]
        %v611 = vld [vmem:[%s1 + $0x248] sm:$0xff]
        %v612 = vld [vmem:[%s1 + $0x250] sm:$0xff]
        %v613 = vld [vmem:[%s1 + $0x258] sm:$0xff]
        %v614 = vld [vmem:[%s1 + $0x260] sm:$0xff]
        %v615 = vld [vmem:[%s1 + $0x268] sm:$0xff]
        %v616 = vld [vmem:[%s1 + $0x270] sm:$0xff]
        %v617 = vld [vmem:[%s1 + $0x278] sm:$0xff]
        %v618 = vld [vmem:[%s1 + $0x280] sm:$0xff]
        %v619 = vld [vmem:[%s1 + $0x288] sm:$0xff]
        %v620 = vld [vmem:[%s1 + $0x290] sm:$0xff]
        %v621 = vld [vmem:[%s1 + $0x298] sm:$0xff]
        %v622 = vld [vmem:[%s1 + $0x2a0] sm:$0xff]
        %v623 = vld [vmem:[%s1 + $0x2a8] sm:$0xff]
        %v624 = vld [vmem:[%s1 + $0x2b0] sm:$0xff]
        %v625 = vld [vmem:[%s1 + $0x2b8] sm:$0xff]
        %v626 = vld [vmem:[%s1 + $0x2c0] sm:$0xff]
        %v627 = vld [vmem:[%s1 + $0x2c8] sm:$0xff]
        %v628 = vld [vmem:[%s1 + $0x2d0] sm:$0xff]
        %v629 = vld [vmem:[%s1 + $0x2d8] sm:$0xff]
        %v630 = vld [vmem:[%s1 + $0x2e0] sm:$0xff]
        %v631 = vld [vmem:[%s1 + $0x2e8] sm:$0xff]
        %v632 = vld [vmem:[%s1 + $0x2f0] sm:$0xff]
        %v633 = vld [vmem:[%s1 + $0x2f8] sm:$0xff]
        %v634 = vld [vmem:[%s2] sm:$0x3f]
        %v636 = vlaneseq
        %v637 = vshrl.u32 %v636, 7
        %v638 = vsub.s32 0, %v637
        %v639 = vrot.slane %v634, %v638
        %v640 = vlaneseq
        %v641 = vshrl.u32 %v640, 7
        %v642 = vsub.s32 1, %v641
        %v643 = vrot.slane %v634, %v642
        %v644 = vlaneseq
        %v645 = vshrl.u32 %v644, 7
        %v646 = vsub.s32 2, %v645
        %v647 = vrot.slane %v634, %v646
        %v648 = vlaneseq
        %v649 = vshrl.u32 %v648, 7
        %v650 = vsub.s32 3, %v649
        %v651 = vrot.slane %v634, %v650
        %v652 = vlaneseq
        %v653 = vshrl.u32 %v652, 7
        %v654 = vsub.s32 4, %v653
        %v655 = vrot.slane %v634, %v654
        %v656 = vlaneseq
        %v657 = vshrl.u32 %v656, 7
        %v658 = vsub.s32 5, %v657
        %v659 = vrot.slane %v634, %v658
        %v762 = vunpack.c.l.b16 %v538
        %v763 = vunpack.c.h.b16 %v538
        %v764 = vunpack.c.l.b16 %v539
        %v765 = vunpack.c.h.b16 %v539
        %v766 = vunpack.c.l.b16 %v540
        %v767 = vunpack.c.h.b16 %v540
        %v768 = vunpack.c.l.b16 %v541
        %v769 = vunpack.c.h.b16 %v541
        %v770 = vunpack.c.l.b16 %v542
        %v771 = vunpack.c.h.b16 %v542
        %v772 = vunpack.c.l.b16 %v543
        %v773 = vunpack.c.h.b16 %v543
        %v774 = vunpack.c.l.b16 %v544
        %v775 = vunpack.c.h.b16 %v544
        %v776 = vunpack.c.l.b16 %v545
        %v777 = vunpack.c.h.b16 %v545
        %v778 = vunpack.c.l.b16 %v546
        %v779 = vunpack.c.h.b16 %v546
        %v780 = vunpack.c.l.b16 %v547
        %v781 = vunpack.c.h.b16 %v547
        %v782 = vunpack.c.l.b16 %v548
        %v783 = vunpack.c.h.b16 %v548
        %v784 = vunpack.c.l.b16 %v549
        %v785 = vunpack.c.h.b16 %v549
        %v786 = vunpack.c.l.b16 %v550
        %v787 = vunpack.c.h.b16 %v550
        %v788 = vunpack.c.l.b16 %v551
        %v789 = vunpack.c.h.b16 %v551
        %v790 = vunpack.c.l.b16 %v552
        %v791 = vunpack.c.h.b16 %v552
        %v792 = vunpack.c.l.b16 %v553
        %v793 = vunpack.c.h.b16 %v553
        %v794 = vunpack.c.l.b16 %v554
        %v795 = vunpack.c.h.b16 %v554
        %v796 = vunpack.c.l.b16 %v555
        %v797 = vunpack.c.h.b16 %v555
        %v798 = vunpack.c.l.b16 %v556
        %v799 = vunpack.c.h.b16 %v556
        %v800 = vunpack.c.l.b16 %v557
        %v801 = vunpack.c.h.b16 %v557
        %v802 = vunpack.c.l.b16 %v558
        %v803 = vunpack.c.h.b16 %v558
        %v804 = vunpack.c.l.b16 %v559
        %v805 = vunpack.c.h.b16 %v559
        %v806 = vunpack.c.l.b16 %v560
        %v807 = vunpack.c.h.b16 %v560
        %v808 = vunpack.c.l.b16 %v561
        %v809 = vunpack.c.h.b16 %v561
        %v810 = vunpack.c.l.b16 %v562
        %v811 = vunpack.c.h.b16 %v562
        %v812 = vunpack.c.l.b16 %v563
        %v813 = vunpack.c.h.b16 %v563
        %v814 = vunpack.c.l.b16 %v564
        %v815 = vunpack.c.h.b16 %v564
        %v816 = vunpack.c.l.b16 %v565
        %v817 = vunpack.c.h.b16 %v565
        %v818 = vunpack.c.l.b16 %v566
        %v819 = vunpack.c.h.b16 %v566
        %v820 = vunpack.c.l.b16 %v567
        %v821 = vunpack.c.h.b16 %v567
        %v822 = vunpack.c.l.b16 %v568
        %v823 = vunpack.c.h.b16 %v568
        %v824 = vunpack.c.l.b16 %v569
        %v825 = vunpack.c.h.b16 %v569
        %v826 = vunpack.c.l.b16 %v570
        %v827 = vunpack.c.h.b16 %v570
        %v828 = vunpack.c.l.b16 %v571
        %v829 = vunpack.c.h.b16 %v571
        %v830 = vunpack.c.l.b16 %v572
        %v831 = vunpack.c.h.b16 %v572
        %v832 = vunpack.c.l.b16 %v573
        %v833 = vunpack.c.h.b16 %v573
        %v834 = vunpack.c.l.b16 %v574
        %v835 = vunpack.c.h.b16 %v574
        %v836 = vunpack.c.l.b16 %v575
        %v837 = vunpack.c.h.b16 %v575
        %v838 = vunpack.c.l.b16 %v576
        %v839 = vunpack.c.h.b16 %v576
        %v840 = vunpack.c.l.b16 %v577
        %v841 = vunpack.c.h.b16 %v577
        %v842 = vunpack.c.l.b16 %v578
        %v843 = vunpack.c.h.b16 %v578
        %v844 = vunpack.c.l.b16 %v579
        %v845 = vunpack.c.h.b16 %v579
        %v846 = vunpack.c.l.b16 %v580
        %v847 = vunpack.c.h.b16 %v580
        %v848 = vunpack.c.l.b16 %v581
        %v849 = vunpack.c.h.b16 %v581
        %v850 = vunpack.c.l.b16 %v582
        %v851 = vunpack.c.h.b16 %v582
        %v852 = vunpack.c.l.b16 %v583
        %v853 = vunpack.c.h.b16 %v583
        %v854 = vunpack.c.l.b16 %v584
        %v855 = vunpack.c.h.b16 %v584
        %v856 = vunpack.c.l.b16 %v585
        %v857 = vunpack.c.h.b16 %v585
        %v858 = vunpack.c.l.b16 %v586
        %v859 = vunpack.c.h.b16 %v586
        %v860 = vunpack.c.l.b16 %v587
        %v861 = vunpack.c.h.b16 %v587
        %v862 = vunpack.c.l.b16 %v588
        %v863 = vunpack.c.h.b16 %v588
        %v864 = vunpack.c.l.b16 %v589
        %v865 = vunpack.c.h.b16 %v589
        %v866 = vunpack.c.l.b16 %v590
        %v867 = vunpack.c.h.b16 %v590
        %v868 = vunpack.c.l.b16 %v591
        %v869 = vunpack.c.h.b16 %v591
        %v870 = vunpack.c.l.b16 %v592
        %v871 = vunpack.c.h.b16 %v592
        %v872 = vunpack.c.l.b16 %v593
        %v873 = vunpack.c.h.b16 %v593
        %v874 = vunpack.c.l.b16 %v594
        %v875 = vunpack.c.h.b16 %v594
        %v876 = vunpack.c.l.b16 %v595
        %v877 = vunpack.c.h.b16 %v595
        %v878 = vunpack.c.l.b16 %v596
        %v879 = vunpack.c.h.b16 %v596
        %v880 = vunpack.c.l.b16 %v597
        %v881 = vunpack.c.h.b16 %v597
        %v882 = vunpack.c.l.b16 %v598
        %v883 = vunpack.c.h.b16 %v598
        %v884 = vunpack.c.l.b16 %v599
        %v885 = vunpack.c.h.b16 %v599
        %v886 = vunpack.c.l.b16 %v600
        %v887 = vunpack.c.h.b16 %v600
        %v888 = vunpack.c.l.b16 %v601
        %v889 = vunpack.c.h.b16 %v601
        %v890 = vunpack.c.l.b16 %v602
        %v891 = vunpack.c.h.b16 %v602
        %v892 = vunpack.c.l.b16 %v603
        %v893 = vunpack.c.h.b16 %v603
        %v894 = vunpack.c.l.b16 %v604
        %v895 = vunpack.c.h.b16 %v604
        %v896 = vunpack.c.l.b16 %v605
        %v897 = vunpack.c.h.b16 %v605
        %v898 = vunpack.c.l.b16 %v606
        %v899 = vunpack.c.h.b16 %v606
        %v900 = vunpack.c.l.b16 %v607
        %v901 = vunpack.c.h.b16 %v607
        %v902 = vunpack.c.l.b16 %v608
        %v903 = vunpack.c.h.b16 %v608
        %v904 = vunpack.c.l.b16 %v609
        %v905 = vunpack.c.h.b16 %v609
        %v906 = vunpack.c.l.b16 %v610
        %v907 = vunpack.c.h.b16 %v610
        %v908 = vunpack.c.l.b16 %v611
        %v909 = vunpack.c.h.b16 %v611
        %v910 = vunpack.c.l.b16 %v612
        %v911 = vunpack.c.h.b16 %v612
        %v912 = vunpack.c.l.b16 %v613
        %v913 = vunpack.c.h.b16 %v613
        %v914 = vunpack.c.l.b16 %v614
        %v915 = vunpack.c.h.b16 %v614
        %v916 = vunpack.c.l.b16 %v615
        %v917 = vunpack.c.h.b16 %v615
        %v918 = vunpack.c.l.b16 %v616
        %v919 = vunpack.c.h.b16 %v616
        %v920 = vunpack.c.l.b16 %v617
        %v921 = vunpack.c.h.b16 %v617
        %v922 = vunpack.c.l.b16 %v618
        %v923 = vunpack.c.h.b16 %v618
        %v924 = vunpack.c.l.b16 %v619
        %v925 = vunpack.c.h.b16 %v619
        %v926 = vunpack.c.l.b16 %v620
        %v927 = vunpack.c.h.b16 %v620
        %v928 = vunpack.c.l.b16 %v621
        %v929 = vunpack.c.h.b16 %v621
        %v930 = vunpack.c.l.b16 %v622
        %v931 = vunpack.c.h.b16 %v622
        %v932 = vunpack.c.l.b16 %v623
        %v933 = vunpack.c.h.b16 %v623
        %v934 = vunpack.c.l.b16 %v624
        %v935 = vunpack.c.h.b16 %v624
        %v936 = vunpack.c.l.b16 %v625
        %v937 = vunpack.c.h.b16 %v625
        %v938 = vunpack.c.l.b16 %v626
        %v939 = vunpack.c.h.b16 %v626
        %v940 = vunpack.c.l.b16 %v627
        %v941 = vunpack.c.h.b16 %v627
        %v942 = vunpack.c.l.b16 %v628
        %v943 = vunpack.c.h.b16 %v628
        %v944 = vunpack.c.l.b16 %v629
        %v945 = vunpack.c.h.b16 %v629
        %v946 = vunpack.c.l.b16 %v630
        %v947 = vunpack.c.h.b16 %v630
        %v948 = vunpack.c.l.b16 %v631
        %v949 = vunpack.c.h.b16 %v631
        %v950 = vunpack.c.l.b16 %v632
        %v951 = vunpack.c.h.b16 %v632
        %v952 = vunpack.c.l.b16 %v633
        %v953 = vunpack.c.h.b16 %v633
        %v954 = vpack.c.b16 %v768, %v762
        %v955 = vpack.c.b16 %v769, %v763
        %v956 = vpack.c.b16 %v770, %v764
        %v957 = vpack.c.b16 %v771, %v765
        %v958 = vpack.c.b16 %v772, %v766
        %v959 = vpack.c.b16 %v773, %v767
        %v960 = vpack.c.b16 %v780, %v774
        %v961 = vpack.c.b16 %v781, %v775
        %v962 = vpack.c.b16 %v782, %v776
        %v963 = vpack.c.b16 %v783, %v777
        %v964 = vpack.c.b16 %v784, %v778
        %v965 = vpack.c.b16 %v785, %v779
        %v966 = vpack.c.b16 %v792, %v786
        %v967 = vpack.c.b16 %v793, %v787
        %v968 = vpack.c.b16 %v794, %v788
        %v969 = vpack.c.b16 %v795, %v789
        %v970 = vpack.c.b16 %v796, %v790
        %v971 = vpack.c.b16 %v797, %v791
        %v972 = vpack.c.b16 %v804, %v798
        %v973 = vpack.c.b16 %v805, %v799
        %v974 = vpack.c.b16 %v806, %v800
        %v975 = vpack.c.b16 %v807, %v801
        %v976 = vpack.c.b16 %v808, %v802
        %v977 = vpack.c.b16 %v809, %v803
        %v978 = vpack.c.b16 %v816, %v810
        %v979 = vpack.c.b16 %v817, %v811
        %v980 = vpack.c.b16 %v818, %v812
        %v981 = vpack.c.b16 %v819, %v813
        %v982 = vpack.c.b16 %v820, %v814
        %v983 = vpack.c.b16 %v821, %v815
        %v984 = vpack.c.b16 %v828, %v822
        %v985 = vpack.c.b16 %v829, %v823
        %v986 = vpack.c.b16 %v830, %v824
        %v987 = vpack.c.b16 %v831, %v825
        %v988 = vpack.c.b16 %v832, %v826
        %v989 = vpack.c.b16 %v833, %v827
        %v990 = vpack.c.b16 %v840, %v834
        %v991 = vpack.c.b16 %v841, %v835
        %v992 = vpack.c.b16 %v842, %v836
        %v993 = vpack.c.b16 %v843, %v837
        %v994 = vpack.c.b16 %v844, %v838
        %v995 = vpack.c.b16 %v845, %v839
        %v996 = vpack.c.b16 %v852, %v846
        %v997 = vpack.c.b16 %v853, %v847
        %v998 = vpack.c.b16 %v854, %v848
        %v999 = vpack.c.b16 %v855, %v849
        %v1000 = vpack.c.b16 %v856, %v850
        %v1001 = vpack.c.b16 %v857, %v851
        %v1002 = vpack.c.b16 %v864, %v858
        %v1003 = vpack.c.b16 %v865, %v859
        %v1004 = vpack.c.b16 %v866, %v860
        %v1005 = vpack.c.b16 %v867, %v861
        %v1006 = vpack.c.b16 %v868, %v862
        %v1007 = vpack.c.b16 %v869, %v863
        %v1008 = vpack.c.b16 %v876, %v870
        %v1009 = vpack.c.b16 %v877, %v871
        %v1010 = vpack.c.b16 %v878, %v872
        %v1011 = vpack.c.b16 %v879, %v873
        %v1012 = vpack.c.b16 %v880, %v874
        %v1013 = vpack.c.b16 %v881, %v875
        %v1014 = vpack.c.b16 %v888, %v882
        %v1015 = vpack.c.b16 %v889, %v883
        %v1016 = vpack.c.b16 %v890, %v884
        %v1017 = vpack.c.b16 %v891, %v885
        %v1018 = vpack.c.b16 %v892, %v886
        %v1019 = vpack.c.b16 %v893, %v887
        %v1020 = vpack.c.b16 %v900, %v894
        %v1021 = vpack.c.b16 %v901, %v895
        %v1022 = vpack.c.b16 %v902, %v896
        %v1023 = vpack.c.b16 %v903, %v897
        %v1024 = vpack.c.b16 %v904, %v898
        %v1025 = vpack.c.b16 %v905, %v899
        %v1026 = vpack.c.b16 %v912, %v906
        %v1027 = vpack.c.b16 %v913, %v907
        %v1028 = vpack.c.b16 %v914, %v908
        %v1029 = vpack.c.b16 %v915, %v909
        %v1030 = vpack.c.b16 %v916, %v910
        %v1031 = vpack.c.b16 %v917, %v911
        %v1032 = vpack.c.b16 %v924, %v918
        %v1033 = vpack.c.b16 %v925, %v919
        %v1034 = vpack.c.b16 %v926, %v920
        %v1035 = vpack.c.b16 %v927, %v921
        %v1036 = vpack.c.b16 %v928, %v922
        %v1037 = vpack.c.b16 %v929, %v923
        %v1038 = vpack.c.b16 %v936, %v930
        %v1039 = vpack.c.b16 %v937, %v931
        %v1040 = vpack.c.b16 %v938, %v932
        %v1041 = vpack.c.b16 %v939, %v933
        %v1042 = vpack.c.b16 %v940, %v934
        %v1043 = vpack.c.b16 %v941, %v935
        %v1044 = vpack.c.b16 %v948, %v942
        %v1045 = vpack.c.b16 %v949, %v943
        %v1046 = vpack.c.b16 %v950, %v944
        %v1047 = vpack.c.b16 %v951, %v945
        %v1048 = vpack.c.b16 %v952, %v946
        %v1049 = vpack.c.b16 %v953, %v947
        %1146 = vmatprep.subr.bf16.mxu0 %v955
        %1147 = vmatpush1.bf16.msra.mxu0 %v954
        %1148 = vmatprep.subr.bf16.mxu0 %v961
        %1149 = vmatpush1.bf16.msra.mxu0 %v960
        %1150 = vmatprep.subr.bf16.mxu0 %v967
        %1151 = vmatpush1.bf16.msra.mxu0 %v966
        %1152 = vmatprep.subr.bf16.mxu0 %v973
        %1153 = vmatpush1.bf16.msra.mxu0 %v972
        %1154 = vmatprep.subr.bf16.mxu0 %v979
        %1155 = vmatpush1.bf16.msra.mxu0 %v978
        %1156 = vmatprep.subr.bf16.mxu0 %v985
        %1157 = vmatpush1.bf16.msra.mxu0 %v984
        %1158 = vmatprep.subr.bf16.mxu0 %v991
        %1159 = vmatpush1.bf16.msra.mxu0 %v990
        %1160 = vmatprep.subr.bf16.mxu0 %v997
        %1161 = vmatpush1.bf16.msra.mxu0 %v996
        %1162 = vmatprep.subr.bf16.mxu0 %v1003
        %1163 = vmatpush1.bf16.msra.mxu0 %v1002
        %1164 = vmatprep.subr.bf16.mxu0 %v1009
        %1165 = vmatpush1.bf16.msra.mxu0 %v1008
        %1166 = vmatprep.subr.bf16.mxu0 %v1015
        %1167 = vmatpush1.bf16.msra.mxu0 %v1014
        %1168 = vmatprep.subr.bf16.mxu0 %v1021
        %1169 = vmatpush1.bf16.msra.mxu0 %v1020
        %1170 = vmatprep.subr.bf16.mxu0 %v1027
        %1171 = vmatpush1.bf16.msra.mxu0 %v1026
        %1172 = vmatprep.subr.bf16.mxu0 %v1033
        %1173 = vmatpush1.bf16.msra.mxu0 %v1032
        %1174 = vmatprep.subr.bf16.mxu0 %v1039
        %1175 = vmatpush1.bf16.msra.mxu0 %v1038
        %1176 = vmatprep.subr.bf16.mxu0 %v1045
        %1177 = vmatpush1.bf16.msra.mxu0 %v1044
        %1178 = vmatprep.mubr.bf16.mxu0 %v537
        %1179 = vmatmul.mubr.bf16.gmra.mrb[0].mxu0 %v536
        %v1180 = vpop.f32.mrb[0].mxu0
        %v1181 = vadd.f32 %v639, %v1180
        %v1182 = vpop.f32.mrb[0].mxu0
        %v1183 = vadd.f32 %v643, %v1182
        %v1184 = vpop.f32.mrb[0].mxu0
        %v1185 = vpop.f32.mrb[0].mxu0
        %1186 = vdwg.mxu0
        %1187 = vmatprep.subr.bf16.mxu0 %v957
        %1188 = vmatpush1.bf16.msra.mxu0 %v956
        %1189 = vmatprep.subr.bf16.mxu0 %v963
        %1190 = vmatpush1.bf16.msra.mxu0 %v962
        %1191 = vmatprep.subr.bf16.mxu0 %v969
        %1192 = vmatpush1.bf16.msra.mxu0 %v968
        %1193 = vmatprep.subr.bf16.mxu0 %v975
        %1194 = vmatpush1.bf16.msra.mxu0 %v974
        %1195 = vmatprep.subr.bf16.mxu0 %v981
        %1196 = vmatpush1.bf16.msra.mxu0 %v980
        %1197 = vmatprep.subr.bf16.mxu0 %v987
        %1198 = vmatpush1.bf16.msra.mxu0 %v986
        %1199 = vmatprep.subr.bf16.mxu0 %v993
        %1200 = vmatpush1.bf16.msra.mxu0 %v992
        %1201 = vmatprep.subr.bf16.mxu0 %v999
        %1202 = vmatpush1.bf16.msra.mxu0 %v998
        %1203 = vmatprep.subr.bf16.mxu0 %v1005
        %1204 = vmatpush1.bf16.msra.mxu0 %v1004
        %1205 = vmatprep.subr.bf16.mxu0 %v1011
        %1206 = vmatpush1.bf16.msra.mxu0 %v1010
        %1207 = vmatprep.subr.bf16.mxu0 %v1017
        %1208 = vmatpush1.bf16.msra.mxu0 %v1016
        %1209 = vmatprep.subr.bf16.mxu0 %v1023
        %1210 = vmatpush1.bf16.msra.mxu0 %v1022
        %1211 = vmatprep.subr.bf16.mxu0 %v1029
        %1212 = vmatpush1.bf16.msra.mxu0 %v1028
        %1213 = vmatprep.subr.bf16.mxu0 %v1035
        %1214 = vmatpush1.bf16.msra.mxu0 %v1034
        %1215 = vmatprep.subr.bf16.mxu0 %v1041
        %1216 = vmatpush1.bf16.msra.mxu0 %v1040
        %1217 = vmatprep.subr.bf16.mxu0 %v1047
        %1218 = vmatpush1.bf16.msra.mxu0 %v1046
        %1219 = vmatprep.mubr.bf16.mxu0 %v537
        %1220 = vmatmul.mubr.bf16.gmra.mrb[0].mxu0 %v536
        %v1221 = vpop.f32.mrb[0].mxu0
        %v1222 = vadd.f32 %v647, %v1221
        %v1223 = vpop.f32.mrb[0].mxu0
        %v1224 = vadd.f32 %v651, %v1223
        %v1225 = vpop.f32.mrb[0].mxu0
        %v1226 = vpop.f32.mrb[0].mxu0
        %1227 = vdwg.mxu0
        %1228 = vmatprep.subr.bf16.mxu0 %v959
        %1229 = vmatpush1.bf16.msra.mxu0 %v958
        %1230 = vmatprep.subr.bf16.mxu0 %v965
        %1231 = vmatpush1.bf16.msra.mxu0 %v964
        %1232 = vmatprep.subr.bf16.mxu0 %v971
        %1233 = vmatpush1.bf16.msra.mxu0 %v970
        %1234 = vmatprep.subr.bf16.mxu0 %v977
        %1235 = vmatpush1.bf16.msra.mxu0 %v976
        %1236 = vmatprep.subr.bf16.mxu0 %v983
        %1237 = vmatpush1.bf16.msra.mxu0 %v982
        %1238 = vmatprep.subr.bf16.mxu0 %v989
        %1239 = vmatpush1.bf16.msra.mxu0 %v988
        %1240 = vmatprep.subr.bf16.mxu0 %v995
        %1241 = vmatpush1.bf16.msra.mxu0 %v994
        %1242 = vmatprep.subr.bf16.mxu0 %v1001
        %1243 = vmatpush1.bf16.msra.mxu0 %v1000
        %1244 = vmatprep.subr.bf16.mxu0 %v1007
        %1245 = vmatpush1.bf16.msra.mxu0 %v1006
        %1246 = vmatprep.subr.bf16.mxu0 %v1013
        %1247 = vmatpush1.bf16.msra.mxu0 %v1012
        %1248 = vmatprep.subr.bf16.mxu0 %v1019
        %1249 = vmatpush1.bf16.msra.mxu0 %v1018
        %1250 = vmatprep.subr.bf16.mxu0 %v1025
        %1251 = vmatpush1.bf16.msra.mxu0 %v1024
        %1252 = vmatprep.subr.bf16.mxu0 %v1031
        %1253 = vmatpush1.bf16.msra.mxu0 %v1030
        %1254 = vmatprep.subr.bf16.mxu0 %v1037
        %1255 = vmatpush1.bf16.msra.mxu0 %v1036
        %1256 = vmatprep.subr.bf16.mxu0 %v1043
        %1257 = vmatpush1.bf16.msra.mxu0 %v1042
        %1258 = vmatprep.subr.bf16.mxu0 %v1049
        %1259 = vmatpush1.bf16.msra.mxu0 %v1048
        %1260 = vmatprep.mubr.bf16.mxu0 %v537
        %1261 = vmatmul.mubr.bf16.gmra.mrb[0].mxu0 %v536
        %v1262 = vpop.f32.mrb[0].mxu0
        %v1263 = vadd.f32 %v655, %v1262
        %v1264 = vpop.f32.mrb[0].mxu0
        %v1265 = vadd.f32 %v659, %v1264
        %v1266 = vpop.f32.mrb[0].mxu0
        %v1267 = vpop.f32.mrb[0].mxu0
        %1268 = vdwg.mxu0
        %v1269 = vpack.c.bf16 %v1181, %v1181
        %v1270 = vpack.c.bf16 %v1222, %v1222
        %v1271 = vpack.c.bf16 %v1263, %v1263
        %vm1272 = vcmask 523264
        %v1274 = vsel %vm1272, %v1269, 0
        %v1277 = vsel %vm1272, %v1270, 0
        %1279 = vmatprep.subr.bf16.mxu0 0
        %1280 = vmatpush1.bf16.xpose.msra.mxu0 %v1277
        %1281 = vmatprep.subr.bf16.mxu0 0
        %1282 = vmatpush1.bf16.xpose.msra.mxu0 0
        %1283 = vmatprep.subr.bf16.mxu0 0
        %1284 = vmatpush1.bf16.xpose.msra.mxu0 0
        %1285 = vmatprep.subr.bf16.mxu0 0
        %1286 = vmatpush1.bf16.xpose.msra.mxu0 0
        %1287 = vmatprep.subr.bf16.mxu0 0
        %1288 = vmatpush1.bf16.xpose.msra.mxu0 0
        %1289 = vmatprep.subr.bf16.mxu0 0
        %1290 = vmatpush1.bf16.xpose.msra.mxu0 0
        %1291 = vmatprep.subr.bf16.mxu0 0
        %1292 = vmatpush1.bf16.xpose.msra.mxu0 0
        %1293 = vmatprep.subr.bf16.mxu0 0
        %1294 = vmatpush1.bf16.xpose.msra.mxu0 0
        %1295 = vmatprep.subr.bf16.mxu0 0
        %1296 = vmatpush1.bf16.xpose.msra.mxu0 0
        %1297 = vmatprep.subr.bf16.mxu0 0
        %1298 = vmatpush1.bf16.xpose.msra.mxu0 0
        %1299 = vmatprep.subr.bf16.mxu0 0
        %1300 = vmatpush1.bf16.xpose.msra.mxu0 0
        %1301 = vmatprep.subr.bf16.mxu0 0
        %1302 = vmatpush1.bf16.xpose.msra.mxu0 0
        %1303 = vmatprep.subr.bf16.mxu0 0
        %1304 = vmatpush1.bf16.xpose.msra.mxu0 0
        %1305 = vmatprep.subr.bf16.mxu0 0
        %1306 = vmatpush1.bf16.xpose.msra.mxu0 0
        %1307 = vmatprep.subr.bf16.mxu0 0
        %1308 = vmatpush1.bf16.xpose.msra.mxu0 0
        %1309 = vmatprep.subr.bf16.mxu0 0
        %1310 = vmatpush1.bf16.xpose.msra.mxu0 0
        %1311 = vmatprep.mubr.bf16.mxu0 0
        %1312 = vmatmul.mubr.bf16.gmra.mrb[0].mxu0 %v1274
        %v1313 = vpop.f32.mrb[0].mxu0
        %v1314 = vadd.f32 0.0, %v1313
        %v1315 = vpop.f32.mrb[0].mxu0
        %v1316 = vpop.f32.mrb[0].mxu0
        %v1317 = vpop.f32.mrb[0].mxu0
        %1318 = vdwg.mxu0
        %v1319 = vmul.f32 %v1314, 0.125
        %vm1320 = vcmask 64512
        %v1321 = vsel %vm1320, %v1319, -inf
        %1322 = vmax.xlane.f32.xlu0 %v1321
        %v1323 = vpop.xlane.xlu0 %1322
        %v1324 = vsub.f32 %v1319, %v1323
        %v1325 = vmul.f32 %v1324, 1.442695
        %v1326 = vpow.pop %v1325
        %v1327 = vsel %vm1320, %v1326, 0.0
        %1328 = vadd.xlane.f32.xlu0 %v1327
        %v1329 = vpop.xlane.xlu0 %1328
        %v1330 = vpack.c.bf16 %v1326, %v1326
        %v1332 = vsel %vm1320, %v1330, 0
        %vm1334 = vcmask 1043456
        %v1336 = vsel %vm1334, %v1271, 0
        %1338 = vmatprep.subr.bf16.mxu0 0
        %1339 = vmatpush1.bf16.msra.mxu0 %v1336
        %1340 = vmatprep.subr.bf16.mxu0 0
        %1341 = vmatpush1.bf16.msra.mxu0 0
        %1342 = vmatprep.subr.bf16.mxu0 0
        %1343 = vmatpush1.bf16.msra.mxu0 0
        %1344 = vmatprep.subr.bf16.mxu0 0
        %1345 = vmatpush1.bf16.msra.mxu0 0
        %1346 = vmatprep.subr.bf16.mxu0 0
        %1347 = vmatpush1.bf16.msra.mxu0 0
        %1348 = vmatprep.subr.bf16.mxu0 0
        %1349 = vmatpush1.bf16.msra.mxu0 0
        %1350 = vmatprep.subr.bf16.mxu0 0
        %1351 = vmatpush1.bf16.msra.mxu0 0
        %1352 = vmatprep.subr.bf16.mxu0 0
        %1353 = vmatpush1.bf16.msra.mxu0 0
        %1354 = vmatprep.subr.bf16.mxu0 0
        %1355 = vmatpush1.bf16.msra.mxu0 0
        %1356 = vmatprep.subr.bf16.mxu0 0
        %1357 = vmatpush1.bf16.msra.mxu0 0
        %1358 = vmatprep.subr.bf16.mxu0 0
        %1359 = vmatpush1.bf16.msra.mxu0 0
        %1360 = vmatprep.subr.bf16.mxu0 0
        %1361 = vmatpush1.bf16.msra.mxu0 0
        %1362 = vmatprep.subr.bf16.mxu0 0
        %1363 = vmatpush1.bf16.msra.mxu0 0
        %1364 = vmatprep.subr.bf16.mxu0 0
        %1365 = vmatpush1.bf16.msra.mxu0 0
        %1366 = vmatprep.subr.bf16.mxu0 0
        %1367 = vmatpush1.bf16.msra.mxu0 0
        %1368 = vmatprep.subr.bf16.mxu0 0
        %1369 = vmatpush1.bf16.msra.mxu0 0
        %1370 = vmatprep.mubr.bf16.mxu0 0
        %1371 = vmatmul.mubr.bf16.gmra.mrb[0].mxu0 %v1332
        %v1372 = vpop.f32.mrb[0].mxu0
        %v1373 = vadd.f32 0.0, %v1372
        %v1374 = vpop.f32.mrb[0].mxu0
        %v1375 = vpop.f32.mrb[0].mxu0
        %v1376 = vpop.f32.mrb[0].mxu0
        %1377 = vdwg.mxu0
        %v1378 = vrcp.pop %v1329
        %v1379 = vmul.f32 %v1373, %v1378
        %1381 = vrot.lane.b32.xlu0 %v1269, 64
        %v1382 = vpop.permute.xlu0 %1381
        %1384 = vrot.lane.b32.xlu0 %v1270, 64
        %v1385 = vpop.permute.xlu0 %1384
        %v1387 = vsel %vm1272, %v1382, 0
        %v1390 = vsel %vm1272, %v1385, 0
        %1392 = vmatprep.subr.bf16.mxu0 0
        %1393 = vmatpush1.bf16.xpose.msra.mxu0 %v1390
        %1394 = vmatprep.subr.bf16.mxu0 0
        %1395 = vmatpush1.bf16.xpose.msra.mxu0 0
        %1396 = vmatprep.subr.bf16.mxu0 0
        %1397 = vmatpush1.bf16.xpose.msra.mxu0 0
        %1398 = vmatprep.subr.bf16.mxu0 0
        %1399 = vmatpush1.bf16.xpose.msra.mxu0 0
        %1400 = vmatprep.subr.bf16.mxu0 0
        %1401 = vmatpush1.bf16.xpose.msra.mxu0 0
        %1402 = vmatprep.subr.bf16.mxu0 0
        %1403 = vmatpush1.bf16.xpose.msra.mxu0 0
        %1404 = vmatprep.subr.bf16.mxu0 0
        %1405 = vmatpush1.bf16.xpose.msra.mxu0 0
        %1406 = vmatprep.subr.bf16.mxu0 0
        %1407 = vmatpush1.bf16.xpose.msra.mxu0 0
        %1408 = vmatprep.subr.bf16.mxu0 0
        %1409 = vmatpush1.bf16.xpose.msra.mxu0 0
        %1410 = vmatprep.subr.bf16.mxu0 0
        %1411 = vmatpush1.bf16.xpose.msra.mxu0 0
        %1412 = vmatprep.subr.bf16.mxu0 0
        %1413 = vmatpush1.bf16.xpose.msra.mxu0 0
        %1414 = vmatprep.subr.bf16.mxu0 0
        %1415 = vmatpush1.bf16.xpose.msra.mxu0 0
        %1416 = vmatprep.subr.bf16.mxu0 0
        %1417 = vmatpush1.bf16.xpose.msra.mxu0 0
        %1418 = vmatprep.subr.bf16.mxu0 0
        %1419 = vmatpush1.bf16.xpose.msra.mxu0 0
        %1420 = vmatprep.subr.bf16.mxu0 0
        %1421 = vmatpush1.bf16.xpose.msra.mxu0 0
        %1422 = vmatprep.subr.bf16.mxu0 0
        %1423 = vmatpush1.bf16.xpose.msra.mxu0 0
        %1424 = vmatprep.mubr.bf16.mxu0 0
        %1425 = vmatmul.mubr.bf16.gmra.mrb[0].mxu0 %v1387
        %v1426 = vpop.f32.mrb[0].mxu0
        %v1427 = vadd.f32 0.0, %v1426
        %v1428 = vpop.f32.mrb[0].mxu0
        %v1429 = vpop.f32.mrb[0].mxu0
        %v1430 = vpop.f32.mrb[0].mxu0
        %1431 = vdwg.mxu0
        %v1432 = vmul.f32 %v1427, 0.125
        %v1433 = vsel %vm1320, %v1432, -inf
        %1434 = vmax.xlane.f32.xlu0 %v1433
        %v1435 = vpop.xlane.xlu0 %1434
        %v1436 = vsub.f32 %v1432, %v1435
        %v1437 = vmul.f32 %v1436, 1.442695
        %v1438 = vpow.pop %v1437
        %v1439 = vsel %vm1320, %v1438, 0.0
        %1440 = vadd.xlane.f32.xlu0 %v1439
        %v1441 = vpop.xlane.xlu0 %1440
        %v1442 = vpack.c.bf16 %v1438, %v1438
        %1444 = vrot.lane.b32.xlu0 %v1271, 64
        %v1445 = vpop.permute.xlu0 %1444
        %v1447 = vsel %vm1320, %v1442, 0
        %v1450 = vsel %vm1334, %v1445, 0
        %1452 = vmatprep.subr.bf16.mxu0 0
        %1453 = vmatpush1.bf16.msra.mxu0 %v1450
        %1454 = vmatprep.subr.bf16.mxu0 0
        %1455 = vmatpush1.bf16.msra.mxu0 0
        %1456 = vmatprep.subr.bf16.mxu0 0
        %1457 = vmatpush1.bf16.msra.mxu0 0
        %1458 = vmatprep.subr.bf16.mxu0 0
        %1459 = vmatpush1.bf16.msra.mxu0 0
        %1460 = vmatprep.subr.bf16.mxu0 0
        %1461 = vmatpush1.bf16.msra.mxu0 0
        %1462 = vmatprep.subr.bf16.mxu0 0
        %1463 = vmatpush1.bf16.msra.mxu0 0
        %1464 = vmatprep.subr.bf16.mxu0 0
        %1465 = vmatpush1.bf16.msra.mxu0 0
        %1466 = vmatprep.subr.bf16.mxu0 0
        %1467 = vmatpush1.bf16.msra.mxu0 0
        %1468 = vmatprep.subr.bf16.mxu0 0
        %1469 = vmatpush1.bf16.msra.mxu0 0
        %1470 = vmatprep.subr.bf16.mxu0 0
        %1471 = vmatpush1.bf16.msra.mxu0 0
        %1472 = vmatprep.subr.bf16.mxu0 0
        %1473 = vmatpush1.bf16.msra.mxu0 0
        %1474 = vmatprep.subr.bf16.mxu0 0
        %1475 = vmatpush1.bf16.msra.mxu0 0
        %1476 = vmatprep.subr.bf16.mxu0 0
        %1477 = vmatpush1.bf16.msra.mxu0 0
        %1478 = vmatprep.subr.bf16.mxu0 0
        %1479 = vmatpush1.bf16.msra.mxu0 0
        %1480 = vmatprep.subr.bf16.mxu0 0
        %1481 = vmatpush1.bf16.msra.mxu0 0
        %1482 = vmatprep.subr.bf16.mxu0 0
        %1483 = vmatpush1.bf16.msra.mxu0 0
        %1484 = vmatprep.mubr.bf16.mxu0 0
        %1485 = vmatmul.mubr.bf16.gmra.mrb[0].mxu0 %v1447
        %v1486 = vpop.f32.mrb[0].mxu0
        %v1487 = vadd.f32 0.0, %v1486
        %v1488 = vpop.f32.mrb[0].mxu0
        %v1489 = vpop.f32.mrb[0].mxu0
        %v1490 = vpop.f32.mrb[0].mxu0
        %1491 = vdwg.mxu0
        %v1492 = vrcp.pop %v1441
        %v1493 = vmul.f32 %v1487, %v1492
        %v1494 = vpack.c.bf16 %v1183, %v1183
        %v1495 = vpack.c.bf16 %v1224, %v1224
        %v1496 = vpack.c.bf16 %v1265, %v1265
        %v1498 = vsel %vm1272, %v1494, 0
        %v1501 = vsel %vm1272, %v1495, 0
        %1503 = vmatprep.subr.bf16.mxu0 0
        %1504 = vmatpush1.bf16.xpose.msra.mxu0 %v1501
        %1505 = vmatprep.subr.bf16.mxu0 0
        %1506 = vmatpush1.bf16.xpose.msra.mxu0 0
        %1507 = vmatprep.subr.bf16.mxu0 0
        %1508 = vmatpush1.bf16.xpose.msra.mxu0 0
        %1509 = vmatprep.subr.bf16.mxu0 0
        %1510 = vmatpush1.bf16.xpose.msra.mxu0 0
        %1511 = vmatprep.subr.bf16.mxu0 0
        %1512 = vmatpush1.bf16.xpose.msra.mxu0 0
        %1513 = vmatprep.subr.bf16.mxu0 0
        %1514 = vmatpush1.bf16.xpose.msra.mxu0 0
        %1515 = vmatprep.subr.bf16.mxu0 0
        %1516 = vmatpush1.bf16.xpose.msra.mxu0 0
        %1517 = vmatprep.subr.bf16.mxu0 0
        %1518 = vmatpush1.bf16.xpose.msra.mxu0 0
        %1519 = vmatprep.subr.bf16.mxu0 0
        %1520 = vmatpush1.bf16.xpose.msra.mxu0 0
        %1521 = vmatprep.subr.bf16.mxu0 0
        %1522 = vmatpush1.bf16.xpose.msra.mxu0 0
        %1523 = vmatprep.subr.bf16.mxu0 0
        %1524 = vmatpush1.bf16.xpose.msra.mxu0 0
        %1525 = vmatprep.subr.bf16.mxu0 0
        %1526 = vmatpush1.bf16.xpose.msra.mxu0 0
        %1527 = vmatprep.subr.bf16.mxu0 0
        %1528 = vmatpush1.bf16.xpose.msra.mxu0 0
        %1529 = vmatprep.subr.bf16.mxu0 0
        %1530 = vmatpush1.bf16.xpose.msra.mxu0 0
        %1531 = vmatprep.subr.bf16.mxu0 0
        %1532 = vmatpush1.bf16.xpose.msra.mxu0 0
        %1533 = vmatprep.subr.bf16.mxu0 0
        %1534 = vmatpush1.bf16.xpose.msra.mxu0 0
        %1535 = vmatprep.mubr.bf16.mxu0 0
        %1536 = vmatmul.mubr.bf16.gmra.mrb[0].mxu0 %v1498
        %v1537 = vpop.f32.mrb[0].mxu0
        %v1538 = vadd.f32 0.0, %v1537
        %v1539 = vpop.f32.mrb[0].mxu0
        %v1540 = vpop.f32.mrb[0].mxu0
        %v1541 = vpop.f32.mrb[0].mxu0
        %1542 = vdwg.mxu0
        %v1543 = vmul.f32 %v1538, 0.125
        %v1544 = vsel %vm1320, %v1543, -inf
        %1545 = vmax.xlane.f32.xlu0 %v1544
        %v1546 = vpop.xlane.xlu0 %1545
        %v1547 = vsub.f32 %v1543, %v1546
        %v1548 = vmul.f32 %v1547, 1.442695
        %v1549 = vpow.pop %v1548
        %v1550 = vsel %vm1320, %v1549, 0.0
        %1551 = vadd.xlane.f32.xlu0 %v1550
        %v1552 = vpop.xlane.xlu0 %1551
        %v1553 = vpack.c.bf16 %v1549, %v1549
        %v1555 = vsel %vm1320, %v1553, 0
        %v1558 = vsel %vm1334, %v1496, 0
        %1560 = vmatprep.subr.bf16.mxu0 0
        %1561 = vmatpush1.bf16.msra.mxu0 %v1558
        %1562 = vmatprep.subr.bf16.mxu0 0
        %1563 = vmatpush1.bf16.msra.mxu0 0
        %1564 = vmatprep.subr.bf16.mxu0 0
        %1565 = vmatpush1.bf16.msra.mxu0 0
        %1566 = vmatprep.subr.bf16.mxu0 0
        %1567 = vmatpush1.bf16.msra.mxu0 0
        %1568 = vmatprep.subr.bf16.mxu0 0
        %1569 = vmatpush1.bf16.msra.mxu0 0
        %1570 = vmatprep.subr.bf16.mxu0 0
        %1571 = vmatpush1.bf16.msra.mxu0 0
        %1572 = vmatprep.subr.bf16.mxu0 0
        %1573 = vmatpush1.bf16.msra.mxu0 0
        %1574 = vmatprep.subr.bf16.mxu0 0
        %1575 = vmatpush1.bf16.msra.mxu0 0
        %1576 = vmatprep.subr.bf16.mxu0 0
        %1577 = vmatpush1.bf16.msra.mxu0 0
        %1578 = vmatprep.subr.bf16.mxu0 0
        %1579 = vmatpush1.bf16.msra.mxu0 0
        %1580 = vmatprep.subr.bf16.mxu0 0
        %1581 = vmatpush1.bf16.msra.mxu0 0
        %1582 = vmatprep.subr.bf16.mxu0 0
        %1583 = vmatpush1.bf16.msra.mxu0 0
        %1584 = vmatprep.subr.bf16.mxu0 0
        %1585 = vmatpush1.bf16.msra.mxu0 0
        %1586 = vmatprep.subr.bf16.mxu0 0
        %1587 = vmatpush1.bf16.msra.mxu0 0
        %1588 = vmatprep.subr.bf16.mxu0 0
        %1589 = vmatpush1.bf16.msra.mxu0 0
        %1590 = vmatprep.subr.bf16.mxu0 0
        %1591 = vmatpush1.bf16.msra.mxu0 0
        %1592 = vmatprep.mubr.bf16.mxu0 0
        %1593 = vmatmul.mubr.bf16.gmra.mrb[0].mxu0 %v1555
        %v1594 = vpop.f32.mrb[0].mxu0
        %v1595 = vadd.f32 0.0, %v1594
        %v1596 = vpop.f32.mrb[0].mxu0
        %v1597 = vpop.f32.mrb[0].mxu0
        %v1598 = vpop.f32.mrb[0].mxu0
        %1599 = vdwg.mxu0
        %v1600 = vrcp.pop %v1552
        %v1601 = vmul.f32 %v1595, %v1600
        %1603 = vrot.lane.b32.xlu0 %v1494, 64
        %v1604 = vpop.permute.xlu0 %1603
        %1606 = vrot.lane.b32.xlu0 %v1495, 64
        %v1607 = vpop.permute.xlu0 %1606
        %v1609 = vsel %vm1272, %v1604, 0
        %v1612 = vsel %vm1272, %v1607, 0
        %1614 = vmatprep.subr.bf16.mxu0 0
        %1615 = vmatpush1.bf16.xpose.msra.mxu0 %v1612
        %1616 = vmatprep.subr.bf16.mxu0 0
        %1617 = vmatpush1.bf16.xpose.msra.mxu0 0
        %1618 = vmatprep.subr.bf16.mxu0 0
        %1619 = vmatpush1.bf16.xpose.msra.mxu0 0
        %1620 = vmatprep.subr.bf16.mxu0 0
        %1621 = vmatpush1.bf16.xpose.msra.mxu0 0
        %1622 = vmatprep.subr.bf16.mxu0 0
        %1623 = vmatpush1.bf16.xpose.msra.mxu0 0
        %1624 = vmatprep.subr.bf16.mxu0 0
        %1625 = vmatpush1.bf16.xpose.msra.mxu0 0
        %1626 = vmatprep.subr.bf16.mxu0 0
        %1627 = vmatpush1.bf16.xpose.msra.mxu0 0
        %1628 = vmatprep.subr.bf16.mxu0 0
        %1629 = vmatpush1.bf16.xpose.msra.mxu0 0
        %1630 = vmatprep.subr.bf16.mxu0 0
        %1631 = vmatpush1.bf16.xpose.msra.mxu0 0
        %1632 = vmatprep.subr.bf16.mxu0 0
        %1633 = vmatpush1.bf16.xpose.msra.mxu0 0
        %1634 = vmatprep.subr.bf16.mxu0 0
        %1635 = vmatpush1.bf16.xpose.msra.mxu0 0
        %1636 = vmatprep.subr.bf16.mxu0 0
        %1637 = vmatpush1.bf16.xpose.msra.mxu0 0
        %1638 = vmatprep.subr.bf16.mxu0 0
        %1639 = vmatpush1.bf16.xpose.msra.mxu0 0
        %1640 = vmatprep.subr.bf16.mxu0 0
        %1641 = vmatpush1.bf16.xpose.msra.mxu0 0
        %1642 = vmatprep.subr.bf16.mxu0 0
        %1643 = vmatpush1.bf16.xpose.msra.mxu0 0
        %1644 = vmatprep.subr.bf16.mxu0 0
        %1645 = vmatpush1.bf16.xpose.msra.mxu0 0
        %1646 = vmatprep.mubr.bf16.mxu0 0
        %1647 = vmatmul.mubr.bf16.gmra.mrb[0].mxu0 %v1609
        %v1648 = vpop.f32.mrb[0].mxu0
        %v1649 = vadd.f32 0.0, %v1648
        %v1650 = vpop.f32.mrb[0].mxu0
        %v1651 = vpop.f32.mrb[0].mxu0
        %v1652 = vpop.f32.mrb[0].mxu0
        %1653 = vdwg.mxu0
        %v1654 = vmul.f32 %v1649, 0.125
        %v1655 = vsel %vm1320, %v1654, -inf
        %1656 = vmax.xlane.f32.xlu0 %v1655
        %v1657 = vpop.xlane.xlu0 %1656
        %v1658 = vsub.f32 %v1654, %v1657
        %v1659 = vmul.f32 %v1658, 1.442695
        %v1660 = vpow.pop %v1659
        %v1661 = vsel %vm1320, %v1660, 0.0
        %1662 = vadd.xlane.f32.xlu0 %v1661
        %v1663 = vpop.xlane.xlu0 %1662
        %v1664 = vpack.c.bf16 %v1660, %v1660
        %1666 = vrot.lane.b32.xlu0 %v1496, 64
        %v1667 = vpop.permute.xlu0 %1666
        %v1669 = vsel %vm1320, %v1664, 0
        %v1672 = vsel %vm1334, %v1667, 0
        %1674 = vmatprep.subr.bf16.mxu0 0
        %1675 = vmatpush1.bf16.msra.mxu0 %v1672
        %1676 = vmatprep.subr.bf16.mxu0 0
        %1677 = vmatpush1.bf16.msra.mxu0 0
        %1678 = vmatprep.subr.bf16.mxu0 0
        %1679 = vmatpush1.bf16.msra.mxu0 0
        %1680 = vmatprep.subr.bf16.mxu0 0
        %1681 = vmatpush1.bf16.msra.mxu0 0
        %1682 = vmatprep.subr.bf16.mxu0 0
        %1683 = vmatpush1.bf16.msra.mxu0 0
        %1684 = vmatprep.subr.bf16.mxu0 0
        %1685 = vmatpush1.bf16.msra.mxu0 0
        %1686 = vmatprep.subr.bf16.mxu0 0
        %1687 = vmatpush1.bf16.msra.mxu0 0
        %1688 = vmatprep.subr.bf16.mxu0 0
        %1689 = vmatpush1.bf16.msra.mxu0 0
        %1690 = vmatprep.subr.bf16.mxu0 0
        %1691 = vmatpush1.bf16.msra.mxu0 0
        %1692 = vmatprep.subr.bf16.mxu0 0
        %1693 = vmatpush1.bf16.msra.mxu0 0
        %1694 = vmatprep.subr.bf16.mxu0 0
        %1695 = vmatpush1.bf16.msra.mxu0 0
        %1696 = vmatprep.subr.bf16.mxu0 0
        %1697 = vmatpush1.bf16.msra.mxu0 0
        %1698 = vmatprep.subr.bf16.mxu0 0
        %1699 = vmatpush1.bf16.msra.mxu0 0
        %1700 = vmatprep.subr.bf16.mxu0 0
        %1701 = vmatpush1.bf16.msra.mxu0 0
        %1702 = vmatprep.subr.bf16.mxu0 0
        %1703 = vmatpush1.bf16.msra.mxu0 0
        %1704 = vmatprep.subr.bf16.mxu0 0
        %1705 = vmatpush1.bf16.msra.mxu0 0
        %1706 = vmatprep.mubr.bf16.mxu0 0
        %1707 = vmatmul.mubr.bf16.gmra.mrb[0].mxu0 %v1669
        %v1708 = vpop.f32.mrb[0].mxu0
        %v1709 = vadd.f32 0.0, %v1708
        %v1710 = vpop.f32.mrb[0].mxu0
        %v1711 = vpop.f32.mrb[0].mxu0
        %v1712 = vpop.f32.mrb[0].mxu0
        %1713 = vdwg.mxu0
        %v1714 = vrcp.pop %v1663
        %v1715 = vmul.f32 %v1709, %v1714
        %1717 = vrot.lane.b32.xlu0 %v1493, 64
        %v1718 = vpop.permute.xlu0 %1717
        %1721 = vrot.lane.b32.xlu0 %v1715, 64
        %v1722 = vpop.permute.xlu0 %1721
        %v1724 = vsel %vm1272, %v1379, %v1718
        %v1725 = vsel %vm1272, %v1601, %v1722
        %v1726 = vpack.c.bf16 %v1724, %v1724
        %v1727 = vpack.c.bf16 %v1725, %v1725
        %v1728 = vld [vmem:[#allocation2] sm:$0xff]
        %v1729 = vld [vmem:[#allocation2 + $0x8] sm:$0xff]
        %v1730 = vld [vmem:[#allocation2 + $0x10] sm:$0xff]
        %v1731 = vld [vmem:[#allocation2 + $0x18] sm:$0xff]
        %v1732 = vld [vmem:[#allocation2 + $0x20] sm:$0xff]
        %v1733 = vld [vmem:[#allocation2 + $0x28] sm:$0xff]
        %v1734 = vld [vmem:[#allocation2 + $0x30] sm:$0xff]
        %v1735 = vld [vmem:[#allocation2 + $0x38] sm:$0xff]
        %v1736 = vld [vmem:[#allocation2 + $0x40] sm:$0xff]
        %v1737 = vld [vmem:[#allocation2 + $0x48] sm:$0xff]
        %v1738 = vld [vmem:[#allocation2 + $0x50] sm:$0xff]
        %v1739 = vld [vmem:[#allocation2 + $0x58] sm:$0xff]
        %v1740 = vld [vmem:[#allocation2 + $0x60] sm:$0xff]
        %v1741 = vld [vmem:[#allocation2 + $0x68] sm:$0xff]
        %v1742 = vld [vmem:[#allocation2 + $0x70] sm:$0xff]
        %v1743 = vld [vmem:[#allocation2 + $0x78] sm:$0xff]
        %v1744 = vld [vmem:[#allocation2 + $0x80] sm:$0xff]
        %v1745 = vld [vmem:[#allocation2 + $0x88] sm:$0xff]
        %v1746 = vld [vmem:[#allocation2 + $0x90] sm:$0xff]
        %v1747 = vld [vmem:[#allocation2 + $0x98] sm:$0xff]
        %v1748 = vld [vmem:[#allocation2 + $0xa0] sm:$0xff]
        %v1749 = vld [vmem:[#allocation2 + $0xa8] sm:$0xff]
        %v1750 = vld [vmem:[#allocation2 + $0xb0] sm:$0xff]
        %v1751 = vld [vmem:[#allocation2 + $0xb8] sm:$0xff]
        %v1752 = vld [vmem:[#allocation2 + $0xc0] sm:$0xff]
        %v1753 = vld [vmem:[#allocation2 + $0xc8] sm:$0xff]
        %v1754 = vld [vmem:[#allocation2 + $0xd0] sm:$0xff]
        %v1755 = vld [vmem:[#allocation2 + $0xd8] sm:$0xff]
        %v1756 = vld [vmem:[#allocation2 + $0xe0] sm:$0xff]
        %v1757 = vld [vmem:[#allocation2 + $0xe8] sm:$0xff]
        %v1758 = vld [vmem:[#allocation2 + $0xf0] sm:$0xff]
        %v1759 = vld [vmem:[#allocation2 + $0xf8] sm:$0xff]
        %v1760 = vld [vmem:[%s4] sm:$0x3]
        %v1762 = vlaneseq
        %v1763 = vshrl.u32 %v1762, 7
        %v1764 = vsub.s32 0, %v1763
        %v1765 = vrot.slane %v1760, %v1764
        %v1766 = vlaneseq
        %v1767 = vshrl.u32 %v1766, 7
        %v1768 = vsub.s32 1, %v1767
        %v1769 = vrot.slane %v1760, %v1768
        %v1804 = vunpack.c.l.b16 %v1728
        %v1805 = vunpack.c.h.b16 %v1728
        %v1806 = vunpack.c.l.b16 %v1729
        %v1807 = vunpack.c.h.b16 %v1729
        %v1808 = vunpack.c.l.b16 %v1730
        %v1809 = vunpack.c.h.b16 %v1730
        %v1810 = vunpack.c.l.b16 %v1731
        %v1811 = vunpack.c.h.b16 %v1731
        %v1812 = vunpack.c.l.b16 %v1732
        %v1813 = vunpack.c.h.b16 %v1732
        %v1814 = vunpack.c.l.b16 %v1733
        %v1815 = vunpack.c.h.b16 %v1733
        %v1816 = vunpack.c.l.b16 %v1734
        %v1817 = vunpack.c.h.b16 %v1734
        %v1818 = vunpack.c.l.b16 %v1735
        %v1819 = vunpack.c.h.b16 %v1735
        %v1820 = vunpack.c.l.b16 %v1736
        %v1821 = vunpack.c.h.b16 %v1736
        %v1822 = vunpack.c.l.b16 %v1737
        %v1823 = vunpack.c.h.b16 %v1737
        %v1824 = vunpack.c.l.b16 %v1738
        %v1825 = vunpack.c.h.b16 %v1738
        %v1826 = vunpack.c.l.b16 %v1739
        %v1827 = vunpack.c.h.b16 %v1739
        %v1828 = vunpack.c.l.b16 %v1740
        %v1829 = vunpack.c.h.b16 %v1740
        %v1830 = vunpack.c.l.b16 %v1741
        %v1831 = vunpack.c.h.b16 %v1741
        %v1832 = vunpack.c.l.b16 %v1742
        %v1833 = vunpack.c.h.b16 %v1742
        %v1834 = vunpack.c.l.b16 %v1743
        %v1835 = vunpack.c.h.b16 %v1743
        %v1836 = vunpack.c.l.b16 %v1744
        %v1837 = vunpack.c.h.b16 %v1744
        %v1838 = vunpack.c.l.b16 %v1745
        %v1839 = vunpack.c.h.b16 %v1745
        %v1840 = vunpack.c.l.b16 %v1746
        %v1841 = vunpack.c.h.b16 %v1746
        %v1842 = vunpack.c.l.b16 %v1747
        %v1843 = vunpack.c.h.b16 %v1747
        %v1844 = vunpack.c.l.b16 %v1748
        %v1845 = vunpack.c.h.b16 %v1748
        %v1846 = vunpack.c.l.b16 %v1749
        %v1847 = vunpack.c.h.b16 %v1749
        %v1848 = vunpack.c.l.b16 %v1750
        %v1849 = vunpack.c.h.b16 %v1750
        %v1850 = vunpack.c.l.b16 %v1751
        %v1851 = vunpack.c.h.b16 %v1751
        %v1852 = vunpack.c.l.b16 %v1752
        %v1853 = vunpack.c.h.b16 %v1752
        %v1854 = vunpack.c.l.b16 %v1753
        %v1855 = vunpack.c.h.b16 %v1753
        %v1856 = vunpack.c.l.b16 %v1754
        %v1857 = vunpack.c.h.b16 %v1754
        %v1858 = vunpack.c.l.b16 %v1755
        %v1859 = vunpack.c.h.b16 %v1755
        %v1860 = vunpack.c.l.b16 %v1756
        %v1861 = vunpack.c.h.b16 %v1756
        %v1862 = vunpack.c.l.b16 %v1757
        %v1863 = vunpack.c.h.b16 %v1757
        %v1864 = vunpack.c.l.b16 %v1758
        %v1865 = vunpack.c.h.b16 %v1758
        %v1866 = vunpack.c.l.b16 %v1759
        %v1867 = vunpack.c.h.b16 %v1759
        %v1868 = vpack.c.b16 %v1806, %v1804
        %v1869 = vpack.c.b16 %v1807, %v1805
        %v1870 = vpack.c.b16 %v1810, %v1808
        %v1871 = vpack.c.b16 %v1811, %v1809
        %v1872 = vpack.c.b16 %v1814, %v1812
        %v1873 = vpack.c.b16 %v1815, %v1813
        %v1874 = vpack.c.b16 %v1818, %v1816
        %v1875 = vpack.c.b16 %v1819, %v1817
        %v1876 = vpack.c.b16 %v1822, %v1820
        %v1877 = vpack.c.b16 %v1823, %v1821
        %v1878 = vpack.c.b16 %v1826, %v1824
        %v1879 = vpack.c.b16 %v1827, %v1825
        %v1880 = vpack.c.b16 %v1830, %v1828
        %v1881 = vpack.c.b16 %v1831, %v1829
        %v1882 = vpack.c.b16 %v1834, %v1832
        %v1883 = vpack.c.b16 %v1835, %v1833
        %v1884 = vpack.c.b16 %v1838, %v1836
        %v1885 = vpack.c.b16 %v1839, %v1837
        %v1886 = vpack.c.b16 %v1842, %v1840
        %v1887 = vpack.c.b16 %v1843, %v1841
        %v1888 = vpack.c.b16 %v1846, %v1844
        %v1889 = vpack.c.b16 %v1847, %v1845
        %v1890 = vpack.c.b16 %v1850, %v1848
        %v1891 = vpack.c.b16 %v1851, %v1849
        %v1892 = vpack.c.b16 %v1854, %v1852
        %v1893 = vpack.c.b16 %v1855, %v1853
        %v1894 = vpack.c.b16 %v1858, %v1856
        %v1895 = vpack.c.b16 %v1859, %v1857
        %v1896 = vpack.c.b16 %v1862, %v1860
        %v1897 = vpack.c.b16 %v1863, %v1861
        %v1898 = vpack.c.b16 %v1866, %v1864
        %v1899 = vpack.c.b16 %v1867, %v1865
        %1932 = vmatprep.subr.bf16.mxu0 %v1869
        %1933 = vmatpush1.bf16.msra.mxu0 %v1868
        %1934 = vmatprep.subr.bf16.mxu0 %v1871
        %1935 = vmatpush1.bf16.msra.mxu0 %v1870
        %1936 = vmatprep.subr.bf16.mxu0 %v1873
        %1937 = vmatpush1.bf16.msra.mxu0 %v1872
        %1938 = vmatprep.subr.bf16.mxu0 %v1875
        %1939 = vmatpush1.bf16.msra.mxu0 %v1874
        %1940 = vmatprep.subr.bf16.mxu0 %v1877
        %1941 = vmatpush1.bf16.msra.mxu0 %v1876
        %1942 = vmatprep.subr.bf16.mxu0 %v1879
        %1943 = vmatpush1.bf16.msra.mxu0 %v1878
        %1944 = vmatprep.subr.bf16.mxu0 %v1881
        %1945 = vmatpush1.bf16.msra.mxu0 %v1880
        %1946 = vmatprep.subr.bf16.mxu0 %v1883
        %1947 = vmatpush1.bf16.msra.mxu0 %v1882
        %1948 = vmatprep.subr.bf16.mxu0 %v1885
        %1949 = vmatpush1.bf16.msra.mxu0 %v1884
        %1950 = vmatprep.subr.bf16.mxu0 %v1887
        %1951 = vmatpush1.bf16.msra.mxu0 %v1886
        %1952 = vmatprep.subr.bf16.mxu0 %v1889
        %1953 = vmatpush1.bf16.msra.mxu0 %v1888
        %1954 = vmatprep.subr.bf16.mxu0 %v1891
        %1955 = vmatpush1.bf16.msra.mxu0 %v1890
        %1956 = vmatprep.subr.bf16.mxu0 %v1893
        %1957 = vmatpush1.bf16.msra.mxu0 %v1892
        %1958 = vmatprep.subr.bf16.mxu0 %v1895
        %1959 = vmatpush1.bf16.msra.mxu0 %v1894
        %1960 = vmatprep.subr.bf16.mxu0 %v1897
        %1961 = vmatpush1.bf16.msra.mxu0 %v1896
        %1962 = vmatprep.subr.bf16.mxu0 %v1899
        %1963 = vmatpush1.bf16.msra.mxu0 %v1898
        %1964 = vmatprep.mubr.bf16.mxu0 %v1727
        %1965 = vmatmul.mubr.bf16.gmra.mrb[0].mxu0 %v1726
        %v1966 = vpop.f32.mrb[0].mxu0
        %v1967 = vadd.f32 %v1765, %v1966
        %v1968 = vpop.f32.mrb[0].mxu0
        %v1969 = vadd.f32 %v1769, %v1968
        %v1970 = vpop.f32.mrb[0].mxu0
        %v1971 = vpop.f32.mrb[0].mxu0
        %1972 = vdwg.mxu0
        %v1973 = vadd.f32 %v534, %v1967
        %v1974 = vadd.f32 %v535, %v1969
        %v1975 = vadd.f32 %v1973, %v1974
        %1976 = vadd.xlane.f32.xlu0 %v1975
        %v1977 = vpop.xlane.xlu0 %1976
        %v1978 = vrcp.pop 256.0
        %v1979 = vmul.f32 %v1977, %v1978
        %v1980 = vsub.f32 %v1973, %v1979
        %v1981 = vsub.f32 %v1974, %v1979
        %v1982 = vmul.f32 %v1980, %v1980
        %v1983 = vmul.f32 %v1981, %v1981
        %v1984 = vadd.f32 %v1982, %v1983
        %1985 = vadd.xlane.f32.xlu0 %v1984
        %v1986 = vpop.xlane.xlu0 %1985
        %v1987 = vmul.f32 %v1986, %v1978
        %v1988 = vadd.f32 %v1987, 1e-05
        %v1989 = vrsqrt.pop %v1988
        %v1990 = vmul.f32 %v1980, %v1989
        %v1991 = vmul.f32 %v1981, %v1989
        %v1992 = vld [vmem:[%s5] sm:$0x3]
        %v1994 = vlaneseq
        %v1995 = vshrl.u32 %v1994, 7
        %v1996 = vsub.s32 0, %v1995
        %v1997 = vrot.slane %v1992, %v1996
        %v1998 = vlaneseq
        %v1999 = vshrl.u32 %v1998, 7
        %v2000 = vsub.s32 1, %v1999
        %v2001 = vrot.slane %v1992, %v2000
        %v2004 = vmul.f32 %v1990, %v1997
        %v2005 = vmul.f32 %v1991, %v2001
        %v2006 = vld [vmem:[#allocation4] sm:$0x3]
        %v2008 = vlaneseq
        %v2009 = vshrl.u32 %v2008, 7
        %v2010 = vsub.s32 0, %v2009
        %v2011 = vrot.slane %v2006, %v2010
        %v2012 = vlaneseq
        %v2013 = vshrl.u32 %v2012, 7
        %v2014 = vsub.s32 1, %v2013
        %v2015 = vrot.slane %v2006, %v2014
        %v2018 = vadd.f32 %v2004, %v2011
        %v2019 = vadd.f32 %v2005, %v2015
        %v2020 = vpack.c.bf16 %v2018, %v2018
        %v2021 = vpack.c.bf16 %v2019, %v2019
        %v2022 = vld [vmem:[%s7] sm:$0xff]
        %v2023 = vld [vmem:[%s7 + $0x8] sm:$0xff]
        %v2024 = vld [vmem:[%s7 + $0x10] sm:$0xff]
        %v2025 = vld [vmem:[%s7 + $0x18] sm:$0xff]
        %v2026 = vld [vmem:[%s7 + $0x20] sm:$0xff]
        %v2027 = vld [vmem:[%s7 + $0x28] sm:$0xff]
        %v2028 = vld [vmem:[%s7 + $0x30] sm:$0xff]
        %v2029 = vld [vmem:[%s7 + $0x38] sm:$0xff]
        %v2030 = vld [vmem:[%s7 + $0x40] sm:$0xff]
        %v2031 = vld [vmem:[%s7 + $0x48] sm:$0xff]
        %v2032 = vld [vmem:[%s7 + $0x50] sm:$0xff]
        %v2033 = vld [vmem:[%s7 + $0x58] sm:$0xff]
        %v2034 = vld [vmem:[%s7 + $0x60] sm:$0xff]
        %v2035 = vld [vmem:[%s7 + $0x68] sm:$0xff]
        %v2036 = vld [vmem:[%s7 + $0x70] sm:$0xff]
        %v2037 = vld [vmem:[%s7 + $0x78] sm:$0xff]
        %v2038 = vld [vmem:[%s7 + $0x80] sm:$0xff]
        %v2039 = vld [vmem:[%s7 + $0x88] sm:$0xff]
        %v2040 = vld [vmem:[%s7 + $0x90] sm:$0xff]
        %v2041 = vld [vmem:[%s7 + $0x98] sm:$0xff]
        %v2042 = vld [vmem:[%s7 + $0xa0] sm:$0xff]
        %v2043 = vld [vmem:[%s7 + $0xa8] sm:$0xff]
        %v2044 = vld [vmem:[%s7 + $0xb0] sm:$0xff]
        %v2045 = vld [vmem:[%s7 + $0xb8] sm:$0xff]
        %v2046 = vld [vmem:[%s7 + $0xc0] sm:$0xff]
        %v2047 = vld [vmem:[%s7 + $0xc8] sm:$0xff]
        %v2048 = vld [vmem:[%s7 + $0xd0] sm:$0xff]
        %v2049 = vld [vmem:[%s7 + $0xd8] sm:$0xff]
        %v2050 = vld [vmem:[%s7 + $0xe0] sm:$0xff]
        %v2051 = vld [vmem:[%s7 + $0xe8] sm:$0xff]
        %v2052 = vld [vmem:[%s7 + $0xf0] sm:$0xff]
        %v2053 = vld [vmem:[%s7 + $0xf8] sm:$0xff]
        %v2054 = vld [vmem:[%s7 + $0x100] sm:$0xff]
        %v2055 = vld [vmem:[%s7 + $0x108] sm:$0xff]
        %v2056 = vld [vmem:[%s7 + $0x110] sm:$0xff]
        %v2057 = vld [vmem:[%s7 + $0x118] sm:$0xff]
        %v2058 = vld [vmem:[%s7 + $0x120] sm:$0xff]
        %v2059 = vld [vmem:[%s7 + $0x128] sm:$0xff]
        %v2060 = vld [vmem:[%s7 + $0x130] sm:$0xff]
        %v2061 = vld [vmem:[%s7 + $0x138] sm:$0xff]
        %v2062 = vld [vmem:[%s7 + $0x140] sm:$0xff]
        %v2063 = vld [vmem:[%s7 + $0x148] sm:$0xff]
        %v2064 = vld [vmem:[%s7 + $0x150] sm:$0xff]
        %v2065 = vld [vmem:[%s7 + $0x158] sm:$0xff]
        %v2066 = vld [vmem:[%s7 + $0x160] sm:$0xff]
        %v2067 = vld [vmem:[%s7 + $0x168] sm:$0xff]
        %v2068 = vld [vmem:[%s7 + $0x170] sm:$0xff]
        %v2069 = vld [vmem:[%s7 + $0x178] sm:$0xff]
        %v2070 = vld [vmem:[%s7 + $0x180] sm:$0xff]
        %v2071 = vld [vmem:[%s7 + $0x188] sm:$0xff]
        %v2072 = vld [vmem:[%s7 + $0x190] sm:$0xff]
        %v2073 = vld [vmem:[%s7 + $0x198] sm:$0xff]
        %v2074 = vld [vmem:[%s7 + $0x1a0] sm:$0xff]
        %v2075 = vld [vmem:[%s7 + $0x1a8] sm:$0xff]
        %v2076 = vld [vmem:[%s7 + $0x1b0] sm:$0xff]
        %v2077 = vld [vmem:[%s7 + $0x1b8] sm:$0xff]
        %v2078 = vld [vmem:[%s7 + $0x1c0] sm:$0xff]
        %v2079 = vld [vmem:[%s7 + $0x1c8] sm:$0xff]
        %v2080 = vld [vmem:[%s7 + $0x1d0] sm:$0xff]
        %v2081 = vld [vmem:[%s7 + $0x1d8] sm:$0xff]
        %v2082 = vld [vmem:[%s7 + $0x1e0] sm:$0xff]
        %v2083 = vld [vmem:[%s7 + $0x1e8] sm:$0xff]
        %v2084 = vld [vmem:[%s7 + $0x1f0] sm:$0xff]
        %v2085 = vld [vmem:[%s7 + $0x1f8] sm:$0xff]
        %v2086 = vld [vmem:[#allocation6] sm:$0xf]
        %v2088 = vlaneseq
        %v2089 = vshrl.u32 %v2088, 7
        %v2090 = vsub.s32 0, %v2089
        %v2091 = vrot.slane %v2086, %v2090
        %v2092 = vlaneseq
        %v2093 = vshrl.u32 %v2092, 7
        %v2094 = vsub.s32 1, %v2093
        %v2095 = vrot.slane %v2086, %v2094
        %v2096 = vlaneseq
        %v2097 = vshrl.u32 %v2096, 7
        %v2098 = vsub.s32 2, %v2097
        %v2099 = vrot.slane %v2086, %v2098
        %v2100 = vlaneseq
        %v2101 = vshrl.u32 %v2100, 7
        %v2102 = vsub.s32 3, %v2101
        %v2103 = vrot.slane %v2086, %v2102
        %v2172 = vunpack.c.l.b16 %v2022
        %v2173 = vunpack.c.h.b16 %v2022
        %v2174 = vunpack.c.l.b16 %v2023
        %v2175 = vunpack.c.h.b16 %v2023
        %v2176 = vunpack.c.l.b16 %v2024
        %v2177 = vunpack.c.h.b16 %v2024
        %v2178 = vunpack.c.l.b16 %v2025
        %v2179 = vunpack.c.h.b16 %v2025
        %v2180 = vunpack.c.l.b16 %v2026
        %v2181 = vunpack.c.h.b16 %v2026
        %v2182 = vunpack.c.l.b16 %v2027
        %v2183 = vunpack.c.h.b16 %v2027
        %v2184 = vunpack.c.l.b16 %v2028
        %v2185 = vunpack.c.h.b16 %v2028
        %v2186 = vunpack.c.l.b16 %v2029
        %v2187 = vunpack.c.h.b16 %v2029
        %v2188 = vunpack.c.l.b16 %v2030
        %v2189 = vunpack.c.h.b16 %v2030
        %v2190 = vunpack.c.l.b16 %v2031
        %v2191 = vunpack.c.h.b16 %v2031
        %v2192 = vunpack.c.l.b16 %v2032
        %v2193 = vunpack.c.h.b16 %v2032
        %v2194 = vunpack.c.l.b16 %v2033
        %v2195 = vunpack.c.h.b16 %v2033
        %v2196 = vunpack.c.l.b16 %v2034
        %v2197 = vunpack.c.h.b16 %v2034
        %v2198 = vunpack.c.l.b16 %v2035
        %v2199 = vunpack.c.h.b16 %v2035
        %v2200 = vunpack.c.l.b16 %v2036
        %v2201 = vunpack.c.h.b16 %v2036
        %v2202 = vunpack.c.l.b16 %v2037
        %v2203 = vunpack.c.h.b16 %v2037
        %v2204 = vunpack.c.l.b16 %v2038
        %v2205 = vunpack.c.h.b16 %v2038
        %v2206 = vunpack.c.l.b16 %v2039
        %v2207 = vunpack.c.h.b16 %v2039
        %v2208 = vunpack.c.l.b16 %v2040
        %v2209 = vunpack.c.h.b16 %v2040
        %v2210 = vunpack.c.l.b16 %v2041
        %v2211 = vunpack.c.h.b16 %v2041
        %v2212 = vunpack.c.l.b16 %v2042
        %v2213 = vunpack.c.h.b16 %v2042
        %v2214 = vunpack.c.l.b16 %v2043
        %v2215 = vunpack.c.h.b16 %v2043
        %v2216 = vunpack.c.l.b16 %v2044
        %v2217 = vunpack.c.h.b16 %v2044
        %v2218 = vunpack.c.l.b16 %v2045
        %v2219 = vunpack.c.h.b16 %v2045
        %v2220 = vunpack.c.l.b16 %v2046
        %v2221 = vunpack.c.h.b16 %v2046
        %v2222 = vunpack.c.l.b16 %v2047
        %v2223 = vunpack.c.h.b16 %v2047
        %v2224 = vunpack.c.l.b16 %v2048
        %v2225 = vunpack.c.h.b16 %v2048
        %v2226 = vunpack.c.l.b16 %v2049
        %v2227 = vunpack.c.h.b16 %v2049
        %v2228 = vunpack.c.l.b16 %v2050
        %v2229 = vunpack.c.h.b16 %v2050
        %v2230 = vunpack.c.l.b16 %v2051
        %v2231 = vunpack.c.h.b16 %v2051
        %v2232 = vunpack.c.l.b16 %v2052
        %v2233 = vunpack.c.h.b16 %v2052
        %v2234 = vunpack.c.l.b16 %v2053
        %v2235 = vunpack.c.h.b16 %v2053
        %v2236 = vunpack.c.l.b16 %v2054
        %v2237 = vunpack.c.h.b16 %v2054
        %v2238 = vunpack.c.l.b16 %v2055
        %v2239 = vunpack.c.h.b16 %v2055
        %v2240 = vunpack.c.l.b16 %v2056
        %v2241 = vunpack.c.h.b16 %v2056
        %v2242 = vunpack.c.l.b16 %v2057
        %v2243 = vunpack.c.h.b16 %v2057
        %v2244 = vunpack.c.l.b16 %v2058
        %v2245 = vunpack.c.h.b16 %v2058
        %v2246 = vunpack.c.l.b16 %v2059
        %v2247 = vunpack.c.h.b16 %v2059
        %v2248 = vunpack.c.l.b16 %v2060
        %v2249 = vunpack.c.h.b16 %v2060
        %v2250 = vunpack.c.l.b16 %v2061
        %v2251 = vunpack.c.h.b16 %v2061
        %v2252 = vunpack.c.l.b16 %v2062
        %v2253 = vunpack.c.h.b16 %v2062
        %v2254 = vunpack.c.l.b16 %v2063
        %v2255 = vunpack.c.h.b16 %v2063
        %v2256 = vunpack.c.l.b16 %v2064
        %v2257 = vunpack.c.h.b16 %v2064
        %v2258 = vunpack.c.l.b16 %v2065
        %v2259 = vunpack.c.h.b16 %v2065
        %v2260 = vunpack.c.l.b16 %v2066
        %v2261 = vunpack.c.h.b16 %v2066
        %v2262 = vunpack.c.l.b16 %v2067
        %v2263 = vunpack.c.h.b16 %v2067
        %v2264 = vunpack.c.l.b16 %v2068
        %v2265 = vunpack.c.h.b16 %v2068
        %v2266 = vunpack.c.l.b16 %v2069
        %v2267 = vunpack.c.h.b16 %v2069
        %v2268 = vunpack.c.l.b16 %v2070
        %v2269 = vunpack.c.h.b16 %v2070
        %v2270 = vunpack.c.l.b16 %v2071
        %v2271 = vunpack.c.h.b16 %v2071
        %v2272 = vunpack.c.l.b16 %v2072
        %v2273 = vunpack.c.h.b16 %v2072
        %v2274 = vunpack.c.l.b16 %v2073
        %v2275 = vunpack.c.h.b16 %v2073
        %v2276 = vunpack.c.l.b16 %v2074
        %v2277 = vunpack.c.h.b16 %v2074
        %v2278 = vunpack.c.l.b16 %v2075
        %v2279 = vunpack.c.h.b16 %v2075
        %v2280 = vunpack.c.l.b16 %v2076
        %v2281 = vunpack.c.h.b16 %v2076
        %v2282 = vunpack.c.l.b16 %v2077
        %v2283 = vunpack.c.h.b16 %v2077
        %v2284 = vunpack.c.l.b16 %v2078
        %v2285 = vunpack.c.h.b16 %v2078
        %v2286 = vunpack.c.l.b16 %v2079
        %v2287 = vunpack.c.h.b16 %v2079
        %v2288 = vunpack.c.l.b16 %v2080
        %v2289 = vunpack.c.h.b16 %v2080
        %v2290 = vunpack.c.l.b16 %v2081
        %v2291 = vunpack.c.h.b16 %v2081
        %v2292 = vunpack.c.l.b16 %v2082
        %v2293 = vunpack.c.h.b16 %v2082
        %v2294 = vunpack.c.l.b16 %v2083
        %v2295 = vunpack.c.h.b16 %v2083
        %v2296 = vunpack.c.l.b16 %v2084
        %v2297 = vunpack.c.h.b16 %v2084
        %v2298 = vunpack.c.l.b16 %v2085
        %v2299 = vunpack.c.h.b16 %v2085
        %v2300 = vpack.c.b16 %v2176, %v2172
        %v2301 = vpack.c.b16 %v2177, %v2173
        %v2302 = vpack.c.b16 %v2178, %v2174
        %v2303 = vpack.c.b16 %v2179, %v2175
        %v2304 = vpack.c.b16 %v2184, %v2180
        %v2305 = vpack.c.b16 %v2185, %v2181
        %v2306 = vpack.c.b16 %v2186, %v2182
        %v2307 = vpack.c.b16 %v2187, %v2183
        %v2308 = vpack.c.b16 %v2192, %v2188
        %v2309 = vpack.c.b16 %v2193, %v2189
        %v2310 = vpack.c.b16 %v2194, %v2190
        %v2311 = vpack.c.b16 %v2195, %v2191
        %v2312 = vpack.c.b16 %v2200, %v2196
        %v2313 = vpack.c.b16 %v2201, %v2197
        %v2314 = vpack.c.b16 %v2202, %v2198
        %v2315 = vpack.c.b16 %v2203, %v2199
        %v2316 = vpack.c.b16 %v2208, %v2204
        %v2317 = vpack.c.b16 %v2209, %v2205
        %v2318 = vpack.c.b16 %v2210, %v2206
        %v2319 = vpack.c.b16 %v2211, %v2207
        %v2320 = vpack.c.b16 %v2216, %v2212
        %v2321 = vpack.c.b16 %v2217, %v2213
        %v2322 = vpack.c.b16 %v2218, %v2214
        %v2323 = vpack.c.b16 %v2219, %v2215
        %v2324 = vpack.c.b16 %v2224, %v2220
        %v2325 = vpack.c.b16 %v2225, %v2221
        %v2326 = vpack.c.b16 %v2226, %v2222
        %v2327 = vpack.c.b16 %v2227, %v2223
        %v2328 = vpack.c.b16 %v2232, %v2228
        %v2329 = vpack.c.b16 %v2233, %v2229
        %v2330 = vpack.c.b16 %v2234, %v2230
        %v2331 = vpack.c.b16 %v2235, %v2231
        %v2332 = vpack.c.b16 %v2240, %v2236
        %v2333 = vpack.c.b16 %v2241, %v2237
        %v2334 = vpack.c.b16 %v2242, %v2238
        %v2335 = vpack.c.b16 %v2243, %v2239
        %v2336 = vpack.c.b16 %v2248, %v2244
        %v2337 = vpack.c.b16 %v2249, %v2245
        %v2338 = vpack.c.b16 %v2250, %v2246
        %v2339 = vpack.c.b16 %v2251, %v2247
        %v2340 = vpack.c.b16 %v2256, %v2252
        %v2341 = vpack.c.b16 %v2257, %v2253
        %v2342 = vpack.c.b16 %v2258, %v2254
        %v2343 = vpack.c.b16 %v2259, %v2255
        %v2344 = vpack.c.b16 %v2264, %v2260
        %v2345 = vpack.c.b16 %v2265, %v2261
        %v2346 = vpack.c.b16 %v2266, %v2262
        %v2347 = vpack.c.b16 %v2267, %v2263
        %v2348 = vpack.c.b16 %v2272, %v2268
        %v2349 = vpack.c.b16 %v2273, %v2269
        %v2350 = vpack.c.b16 %v2274, %v2270
        %v2351 = vpack.c.b16 %v2275, %v2271
        %v2352 = vpack.c.b16 %v2280, %v2276
        %v2353 = vpack.c.b16 %v2281, %v2277
        %v2354 = vpack.c.b16 %v2282, %v2278
        %v2355 = vpack.c.b16 %v2283, %v2279
        %v2356 = vpack.c.b16 %v2288, %v2284
        %v2357 = vpack.c.b16 %v2289, %v2285
        %v2358 = vpack.c.b16 %v2290, %v2286
        %v2359 = vpack.c.b16 %v2291, %v2287
        %v2360 = vpack.c.b16 %v2296, %v2292
        %v2361 = vpack.c.b16 %v2297, %v2293
        %v2362 = vpack.c.b16 %v2298, %v2294
        %v2363 = vpack.c.b16 %v2299, %v2295
        %2428 = vmatprep.subr.bf16.mxu0 %v2301
        %2429 = vmatpush1.bf16.msra.mxu0 %v2300
        %2430 = vmatprep.subr.bf16.mxu0 %v2305
        %2431 = vmatpush1.bf16.msra.mxu0 %v2304
        %2432 = vmatprep.subr.bf16.mxu0 %v2309
        %2433 = vmatpush1.bf16.msra.mxu0 %v2308
        %2434 = vmatprep.subr.bf16.mxu0 %v2313
        %2435 = vmatpush1.bf16.msra.mxu0 %v2312
        %2436 = vmatprep.subr.bf16.mxu0 %v2317
        %2437 = vmatpush1.bf16.msra.mxu0 %v2316
        %2438 = vmatprep.subr.bf16.mxu0 %v2321
        %2439 = vmatpush1.bf16.msra.mxu0 %v2320
        %2440 = vmatprep.subr.bf16.mxu0 %v2325
        %2441 = vmatpush1.bf16.msra.mxu0 %v2324
        %2442 = vmatprep.subr.bf16.mxu0 %v2329
        %2443 = vmatpush1.bf16.msra.mxu0 %v2328
        %2444 = vmatprep.subr.bf16.mxu0 %v2333
        %2445 = vmatpush1.bf16.msra.mxu0 %v2332
        %2446 = vmatprep.subr.bf16.mxu0 %v2337
        %2447 = vmatpush1.bf16.msra.mxu0 %v2336
        %2448 = vmatprep.subr.bf16.mxu0 %v2341
        %2449 = vmatpush1.bf16.msra.mxu0 %v2340
        %2450 = vmatprep.subr.bf16.mxu0 %v2345
        %2451 = vmatpush1.bf16.msra.mxu0 %v2344
        %2452 = vmatprep.subr.bf16.mxu0 %v2349
        %2453 = vmatpush1.bf16.msra.mxu0 %v2348
        %2454 = vmatprep.subr.bf16.mxu0 %v2353
        %2455 = vmatpush1.bf16.msra.mxu0 %v2352
        %2456 = vmatprep.subr.bf16.mxu0 %v2357
        %2457 = vmatpush1.bf16.msra.mxu0 %v2356
        %2458 = vmatprep.subr.bf16.mxu0 %v2361
        %2459 = vmatpush1.bf16.msra.mxu0 %v2360
        %2460 = vmatprep.mubr.bf16.mxu0 %v2021
        %2461 = vmatmul.mubr.bf16.gmra.mrb[0].mxu0 %v2020
        %v2462 = vpop.f32.mrb[0].mxu0
        %v2463 = vadd.f32 %v2091, %v2462
        %v2464 = vpop.f32.mrb[0].mxu0
        %v2465 = vadd.f32 %v2095, %v2464
        %v2466 = vpop.f32.mrb[0].mxu0
        %v2467 = vpop.f32.mrb[0].mxu0
        %2468 = vdwg.mxu0
        %2469 = vmatprep.subr.bf16.mxu0 %v2303
        %2470 = vmatpush1.bf16.msra.mxu0 %v2302
        %2471 = vmatprep.subr.bf16.mxu0 %v2307
        %2472 = vmatpush1.bf16.msra.mxu0 %v2306
        %2473 = vmatprep.subr.bf16.mxu0 %v2311
        %2474 = vmatpush1.bf16.msra.mxu0 %v2310
        %2475 = vmatprep.subr.bf16.mxu0 %v2315
        %2476 = vmatpush1.bf16.msra.mxu0 %v2314
        %2477 = vmatprep.subr.bf16.mxu0 %v2319
        %2478 = vmatpush1.bf16.msra.mxu0 %v2318
        %2479 = vmatprep.subr.bf16.mxu0 %v2323
        %2480 = vmatpush1.bf16.msra.mxu0 %v2322
        %2481 = vmatprep.subr.bf16.mxu0 %v2327
        %2482 = vmatpush1.bf16.msra.mxu0 %v2326
        %2483 = vmatprep.subr.bf16.mxu0 %v2331
        %2484 = vmatpush1.bf16.msra.mxu0 %v2330
        %2485 = vmatprep.subr.bf16.mxu0 %v2335
        %2486 = vmatpush1.bf16.msra.mxu0 %v2334
        %2487 = vmatprep.subr.bf16.mxu0 %v2339
        %2488 = vmatpush1.bf16.msra.mxu0 %v2338
        %2489 = vmatprep.subr.bf16.mxu0 %v2343
        %2490 = vmatpush1.bf16.msra.mxu0 %v2342
        %2491 = vmatprep.subr.bf16.mxu0 %v2347
        %2492 = vmatpush1.bf16.msra.mxu0 %v2346
        %2493 = vmatprep.subr.bf16.mxu0 %v2351
        %2494 = vmatpush1.bf16.msra.mxu0 %v2350
        %2495 = vmatprep.subr.bf16.mxu0 %v2355
        %2496 = vmatpush1.bf16.msra.mxu0 %v2354
        %2497 = vmatprep.subr.bf16.mxu0 %v2359
        %2498 = vmatpush1.bf16.msra.mxu0 %v2358
        %2499 = vmatprep.subr.bf16.mxu0 %v2363
        %2500 = vmatpush1.bf16.msra.mxu0 %v2362
        %2501 = vmatprep.mubr.bf16.mxu0 %v2021
        %2502 = vmatmul.mubr.bf16.gmra.mrb[0].mxu0 %v2020
        %v2503 = vpop.f32.mrb[0].mxu0
        %v2504 = vadd.f32 %v2099, %v2503
        %v2505 = vpop.f32.mrb[0].mxu0
        %v2506 = vadd.f32 %v2103, %v2505
        %v2507 = vpop.f32.mrb[0].mxu0
        %v2508 = vpop.f32.mrb[0].mxu0
        %2509 = vdwg.mxu0
        %v2510 = vmax.f32 %v2463, 0.0
        %v2511 = vmax.f32 %v2465, 0.0
        %v2512 = vmax.f32 %v2504, 0.0
        %v2513 = vmax.f32 %v2506, 0.0
        %v2514 = vpack.c.bf16 %v2510, %v2510
        %v2515 = vpack.c.bf16 %v2511, %v2511
        %v2516 = vpack.c.bf16 %v2512, %v2512
        %v2517 = vpack.c.bf16 %v2513, %v2513
        %v2518 = vld [vmem:[#allocation7] sm:$0xff]
        %v2519 = vld [vmem:[#allocation7 + $0x8] sm:$0xff]
        %v2520 = vld [vmem:[#allocation7 + $0x10] sm:$0xff]
        %v2521 = vld [vmem:[#allocation7 + $0x18] sm:$0xff]
        %v2522 = vld [vmem:[#allocation7 + $0x20] sm:$0xff]
        %v2523 = vld [vmem:[#allocation7 + $0x28] sm:$0xff]
        %v2524 = vld [vmem:[#allocation7 + $0x30] sm:$0xff]
        %v2525 = vld [vmem:[#allocation7 + $0x38] sm:$0xff]
        %v2526 = vld [vmem:[#allocation7 + $0x40] sm:$0xff]
        %v2527 = vld [vmem:[#allocation7 + $0x48] sm:$0xff]
        %v2528 = vld [vmem:[#allocation7 + $0x50] sm:$0xff]
        %v2529 = vld [vmem:[#allocation7 + $0x58] sm:$0xff]
        %v2530 = vld [vmem:[#allocation7 + $0x60] sm:$0xff]
        %v2531 = vld [vmem:[#allocation7 + $0x68] sm:$0xff]
        %v2532 = vld [vmem:[#allocation7 + $0x70] sm:$0xff]
        %v2533 = vld [vmem:[#allocation7 + $0x78] sm:$0xff]
        %v2534 = vld [vmem:[#allocation7 + $0x80] sm:$0xff]
        %v2535 = vld [vmem:[#allocation7 + $0x88] sm:$0xff]
        %v2536 = vld [vmem:[#allocation7 + $0x90] sm:$0xff]
        %v2537 = vld [vmem:[#allocation7 + $0x98] sm:$0xff]
        %v2538 = vld [vmem:[#allocation7 + $0xa0] sm:$0xff]
        %v2539 = vld [vmem:[#allocation7 + $0xa8] sm:$0xff]
        %v2540 = vld [vmem:[#allocation7 + $0xb0] sm:$0xff]
        %v2541 = vld [vmem:[#allocation7 + $0xb8] sm:$0xff]
        %v2542 = vld [vmem:[#allocation7 + $0xc0] sm:$0xff]
        %v2543 = vld [vmem:[#allocation7 + $0xc8] sm:$0xff]
        %v2544 = vld [vmem:[#allocation7 + $0xd0] sm:$0xff]
        %v2545 = vld [vmem:[#allocation7 + $0xd8] sm:$0xff]
        %v2546 = vld [vmem:[#allocation7 + $0xe0] sm:$0xff]
        %v2547 = vld [vmem:[#allocation7 + $0xe8] sm:$0xff]
        %v2548 = vld [vmem:[#allocation7 + $0xf0] sm:$0xff]
        %v2549 = vld [vmem:[#allocation7 + $0xf8] sm:$0xff]
        %v2550 = vld [vmem:[#allocation7 + $0x100] sm:$0xff]
        %v2551 = vld [vmem:[#allocation7 + $0x108] sm:$0xff]
        %v2552 = vld [vmem:[#allocation7 + $0x110] sm:$0xff]
        %v2553 = vld [vmem:[#allocation7 + $0x118] sm:$0xff]
        %v2554 = vld [vmem:[#allocation7 + $0x120] sm:$0xff]
        %v2555 = vld [vmem:[#allocation7 + $0x128] sm:$0xff]
        %v2556 = vld [vmem:[#allocation7 + $0x130] sm:$0xff]
        %v2557 = vld [vmem:[#allocation7 + $0x138] sm:$0xff]
        %v2558 = vld [vmem:[#allocation7 + $0x140] sm:$0xff]
        %v2559 = vld [vmem:[#allocation7 + $0x148] sm:$0xff]
        %v2560 = vld [vmem:[#allocation7 + $0x150] sm:$0xff]
        %v2561 = vld [vmem:[#allocation7 + $0x158] sm:$0xff]
        %v2562 = vld [vmem:[#allocation7 + $0x160] sm:$0xff]
        %v2563 = vld [vmem:[#allocation7 + $0x168] sm:$0xff]
        %v2564 = vld [vmem:[#allocation7 + $0x170] sm:$0xff]
        %v2565 = vld [vmem:[#allocation7 + $0x178] sm:$0xff]
        %v2566 = vld [vmem:[#allocation7 + $0x180] sm:$0xff]
        %v2567 = vld [vmem:[#allocation7 + $0x188] sm:$0xff]
        %v2568 = vld [vmem:[#allocation7 + $0x190] sm:$0xff]
        %v2569 = vld [vmem:[#allocation7 + $0x198] sm:$0xff]
        %v2570 = vld [vmem:[#allocation7 + $0x1a0] sm:$0xff]
        %v2571 = vld [vmem:[#allocation7 + $0x1a8] sm:$0xff]
        %v2572 = vld [vmem:[#allocation7 + $0x1b0] sm:$0xff]
        %v2573 = vld [vmem:[#allocation7 + $0x1b8] sm:$0xff]
        %v2574 = vld [vmem:[#allocation7 + $0x1c0] sm:$0xff]
        %v2575 = vld [vmem:[#allocation7 + $0x1c8] sm:$0xff]
        %v2576 = vld [vmem:[#allocation7 + $0x1d0] sm:$0xff]
        %v2577 = vld [vmem:[#allocation7 + $0x1d8] sm:$0xff]
        %v2578 = vld [vmem:[#allocation7 + $0x1e0] sm:$0xff]
        %v2579 = vld [vmem:[#allocation7 + $0x1e8] sm:$0xff]
        %v2580 = vld [vmem:[#allocation7 + $0x1f0] sm:$0xff]
        %v2581 = vld [vmem:[#allocation7 + $0x1f8] sm:$0xff]
        %v2582 = vld [vmem:[#allocation9] sm:$0x3]
        %v2584 = vlaneseq
        %v2585 = vshrl.u32 %v2584, 7
        %v2586 = vsub.s32 0, %v2585
        %v2587 = vrot.slane %v2582, %v2586
        %v2588 = vlaneseq
        %v2589 = vshrl.u32 %v2588, 7
        %v2590 = vsub.s32 1, %v2589
        %v2591 = vrot.slane %v2582, %v2590
        %v2658 = vunpack.c.l.b16 %v2518
        %v2659 = vunpack.c.h.b16 %v2518
        %v2660 = vunpack.c.l.b16 %v2519
        %v2661 = vunpack.c.h.b16 %v2519
        %v2662 = vunpack.c.l.b16 %v2520
        %v2663 = vunpack.c.h.b16 %v2520
        %v2664 = vunpack.c.l.b16 %v2521
        %v2665 = vunpack.c.h.b16 %v2521
        %v2666 = vunpack.c.l.b16 %v2522
        %v2667 = vunpack.c.h.b16 %v2522
        %v2668 = vunpack.c.l.b16 %v2523
        %v2669 = vunpack.c.h.b16 %v2523
        %v2670 = vunpack.c.l.b16 %v2524
        %v2671 = vunpack.c.h.b16 %v2524
        %v2672 = vunpack.c.l.b16 %v2525
        %v2673 = vunpack.c.h.b16 %v2525
        %v2674 = vunpack.c.l.b16 %v2526
        %v2675 = vunpack.c.h.b16 %v2526
        %v2676 = vunpack.c.l.b16 %v2527
        %v2677 = vunpack.c.h.b16 %v2527
        %v2678 = vunpack.c.l.b16 %v2528
        %v2679 = vunpack.c.h.b16 %v2528
        %v2680 = vunpack.c.l.b16 %v2529
        %v2681 = vunpack.c.h.b16 %v2529
        %v2682 = vunpack.c.l.b16 %v2530
        %v2683 = vunpack.c.h.b16 %v2530
        %v2684 = vunpack.c.l.b16 %v2531
        %v2685 = vunpack.c.h.b16 %v2531
        %v2686 = vunpack.c.l.b16 %v2532
        %v2687 = vunpack.c.h.b16 %v2532
        %v2688 = vunpack.c.l.b16 %v2533
        %v2689 = vunpack.c.h.b16 %v2533
        %v2690 = vunpack.c.l.b16 %v2534
        %v2691 = vunpack.c.h.b16 %v2534
        %v2692 = vunpack.c.l.b16 %v2535
        %v2693 = vunpack.c.h.b16 %v2535
        %v2694 = vunpack.c.l.b16 %v2536
        %v2695 = vunpack.c.h.b16 %v2536
        %v2696 = vunpack.c.l.b16 %v2537
        %v2697 = vunpack.c.h.b16 %v2537
        %v2698 = vunpack.c.l.b16 %v2538
        %v2699 = vunpack.c.h.b16 %v2538
        %v2700 = vunpack.c.l.b16 %v2539
        %v2701 = vunpack.c.h.b16 %v2539
        %v2702 = vunpack.c.l.b16 %v2540
        %v2703 = vunpack.c.h.b16 %v2540
        %v2704 = vunpack.c.l.b16 %v2541
        %v2705 = vunpack.c.h.b16 %v2541
        %v2706 = vunpack.c.l.b16 %v2542
        %v2707 = vunpack.c.h.b16 %v2542
        %v2708 = vunpack.c.l.b16 %v2543
        %v2709 = vunpack.c.h.b16 %v2543
        %v2710 = vunpack.c.l.b16 %v2544
        %v2711 = vunpack.c.h.b16 %v2544
        %v2712 = vunpack.c.l.b16 %v2545
        %v2713 = vunpack.c.h.b16 %v2545
        %v2714 = vunpack.c.l.b16 %v2546
        %v2715 = vunpack.c.h.b16 %v2546
        %v2716 = vunpack.c.l.b16 %v2547
        %v2717 = vunpack.c.h.b16 %v2547
        %v2718 = vunpack.c.l.b16 %v2548
        %v2719 = vunpack.c.h.b16 %v2548
        %v2720 = vunpack.c.l.b16 %v2549
        %v2721 = vunpack.c.h.b16 %v2549
        %v2722 = vunpack.c.l.b16 %v2550
        %v2723 = vunpack.c.h.b16 %v2550
        %v2724 = vunpack.c.l.b16 %v2551
        %v2725 = vunpack.c.h.b16 %v2551
        %v2726 = vunpack.c.l.b16 %v2552
        %v2727 = vunpack.c.h.b16 %v2552
        %v2728 = vunpack.c.l.b16 %v2553
        %v2729 = vunpack.c.h.b16 %v2553
        %v2730 = vunpack.c.l.b16 %v2554
        %v2731 = vunpack.c.h.b16 %v2554
        %v2732 = vunpack.c.l.b16 %v2555
        %v2733 = vunpack.c.h.b16 %v2555
        %v2734 = vunpack.c.l.b16 %v2556
        %v2735 = vunpack.c.h.b16 %v2556
        %v2736 = vunpack.c.l.b16 %v2557
        %v2737 = vunpack.c.h.b16 %v2557
        %v2738 = vunpack.c.l.b16 %v2558
        %v2739 = vunpack.c.h.b16 %v2558
        %v2740 = vunpack.c.l.b16 %v2559
        %v2741 = vunpack.c.h.b16 %v2559
        %v2742 = vunpack.c.l.b16 %v2560
        %v2743 = vunpack.c.h.b16 %v2560
        %v2744 = vunpack.c.l.b16 %v2561
        %v2745 = vunpack.c.h.b16 %v2561
        %v2746 = vunpack.c.l.b16 %v2562
        %v2747 = vunpack.c.h.b16 %v2562
        %v2748 = vunpack.c.l.b16 %v2563
        %v2749 = vunpack.c.h.b16 %v2563
        %v2750 = vunpack.c.l.b16 %v2564
        %v2751 = vunpack.c.h.b16 %v2564
        %v2752 = vunpack.c.l.b16 %v2565
        %v2753 = vunpack.c.h.b16 %v2565
        %v2754 = vunpack.c.l.b16 %v2566
        %v2755 = vunpack.c.h.b16 %v2566
        %v2756 = vunpack.c.l.b16 %v2567
        %v2757 = vunpack.c.h.b16 %v2567
        %v2758 = vunpack.c.l.b16 %v2568
        %v2759 = vunpack.c.h.b16 %v2568
        %v2760 = vunpack.c.l.b16 %v2569
        %v2761 = vunpack.c.h.b16 %v2569
        %v2762 = vunpack.c.l.b16 %v2570
        %v2763 = vunpack.c.h.b16 %v2570
        %v2764 = vunpack.c.l.b16 %v2571
        %v2765 = vunpack.c.h.b16 %v2571
        %v2766 = vunpack.c.l.b16 %v2572
        %v2767 = vunpack.c.h.b16 %v2572
        %v2768 = vunpack.c.l.b16 %v2573
        %v2769 = vunpack.c.h.b16 %v2573
        %v2770 = vunpack.c.l.b16 %v2574
        %v2771 = vunpack.c.h.b16 %v2574
        %v2772 = vunpack.c.l.b16 %v2575
        %v2773 = vunpack.c.h.b16 %v2575
        %v2774 = vunpack.c.l.b16 %v2576
        %v2775 = vunpack.c.h.b16 %v2576
        %v2776 = vunpack.c.l.b16 %v2577
        %v2777 = vunpack.c.h.b16 %v2577
        %v2778 = vunpack.c.l.b16 %v2578
        %v2779 = vunpack.c.h.b16 %v2578
        %v2780 = vunpack.c.l.b16 %v2579
        %v2781 = vunpack.c.h.b16 %v2579
        %v2782 = vunpack.c.l.b16 %v2580
        %v2783 = vunpack.c.h.b16 %v2580
        %v2784 = vunpack.c.l.b16 %v2581
        %v2785 = vunpack.c.h.b16 %v2581
        %v2786 = vpack.c.b16 %v2660, %v2658
        %v2787 = vpack.c.b16 %v2661, %v2659
        %v2788 = vpack.c.b16 %v2664, %v2662
        %v2789 = vpack.c.b16 %v2665, %v2663
        %v2790 = vpack.c.b16 %v2668, %v2666
        %v2791 = vpack.c.b16 %v2669, %v2667
        %v2792 = vpack.c.b16 %v2672, %v2670
        %v2793 = vpack.c.b16 %v2673, %v2671
        %v2794 = vpack.c.b16 %v2676, %v2674
        %v2795 = vpack.c.b16 %v2677, %v2675
        %v2796 = vpack.c.b16 %v2680, %v2678
        %v2797 = vpack.c.b16 %v2681, %v2679
        %v2798 = vpack.c.b16 %v2684, %v2682
        %v2799 = vpack.c.b16 %v2685, %v2683
        %v2800 = vpack.c.b16 %v2688, %v2686
        %v2801 = vpack.c.b16 %v2689, %v2687
        %v2802 = vpack.c.b16 %v2692, %v2690
        %v2803 = vpack.c.b16 %v2693, %v2691
        %v2804 = vpack.c.b16 %v2696, %v2694
        %v2805 = vpack.c.b16 %v2697, %v2695
        %v2806 = vpack.c.b16 %v2700, %v2698
        %v2807 = vpack.c.b16 %v2701, %v2699
        %v2808 = vpack.c.b16 %v2704, %v2702
        %v2809 = vpack.c.b16 %v2705, %v2703
        %v2810 = vpack.c.b16 %v2708, %v2706
        %v2811 = vpack.c.b16 %v2709, %v2707
        %v2812 = vpack.c.b16 %v2712, %v2710
        %v2813 = vpack.c.b16 %v2713, %v2711
        %v2814 = vpack.c.b16 %v2716, %v2714
        %v2815 = vpack.c.b16 %v2717, %v2715
        %v2816 = vpack.c.b16 %v2720, %v2718
        %v2817 = vpack.c.b16 %v2721, %v2719
        %v2818 = vpack.c.b16 %v2724, %v2722
        %v2819 = vpack.c.b16 %v2725, %v2723
        %v2820 = vpack.c.b16 %v2728, %v2726
        %v2821 = vpack.c.b16 %v2729, %v2727
        %v2822 = vpack.c.b16 %v2732, %v2730
        %v2823 = vpack.c.b16 %v2733, %v2731
        %v2824 = vpack.c.b16 %v2736, %v2734
        %v2825 = vpack.c.b16 %v2737, %v2735
        %v2826 = vpack.c.b16 %v2740, %v2738
        %v2827 = vpack.c.b16 %v2741, %v2739
        %v2828 = vpack.c.b16 %v2744, %v2742
        %v2829 = vpack.c.b16 %v2745, %v2743
        %v2830 = vpack.c.b16 %v2748, %v2746
        %v2831 = vpack.c.b16 %v2749, %v2747
        %v2832 = vpack.c.b16 %v2752, %v2750
        %v2833 = vpack.c.b16 %v2753, %v2751
        %v2834 = vpack.c.b16 %v2756, %v2754
        %v2835 = vpack.c.b16 %v2757, %v2755
        %v2836 = vpack.c.b16 %v2760, %v2758
        %v2837 = vpack.c.b16 %v2761, %v2759
        %v2838 = vpack.c.b16 %v2764, %v2762
        %v2839 = vpack.c.b16 %v2765, %v2763
        %v2840 = vpack.c.b16 %v2768, %v2766
        %v2841 = vpack.c.b16 %v2769, %v2767
        %v2842 = vpack.c.b16 %v2772, %v2770
        %v2843 = vpack.c.b16 %v2773, %v2771
        %v2844 = vpack.c.b16 %v2776, %v2774
        %v2845 = vpack.c.b16 %v2777, %v2775
        %v2846 = vpack.c.b16 %v2780, %v2778
        %v2847 = vpack.c.b16 %v2781, %v2779
        %v2848 = vpack.c.b16 %v2784, %v2782
        %v2849 = vpack.c.b16 %v2785, %v2783
        %2914 = vmatprep.subr.bf16.mxu0 %v2787
        %2915 = vmatpush1.bf16.msra.mxu0 %v2786
        %2916 = vmatprep.subr.bf16.mxu0 %v2789
        %2917 = vmatpush1.bf16.msra.mxu0 %v2788
        %2918 = vmatprep.subr.bf16.mxu0 %v2791
        %2919 = vmatpush1.bf16.msra.mxu0 %v2790
        %2920 = vmatprep.subr.bf16.mxu0 %v2793
        %2921 = vmatpush1.bf16.msra.mxu0 %v2792
        %2922 = vmatprep.subr.bf16.mxu0 %v2795
        %2923 = vmatpush1.bf16.msra.mxu0 %v2794
        %2924 = vmatprep.subr.bf16.mxu0 %v2797
        %2925 = vmatpush1.bf16.msra.mxu0 %v2796
        %2926 = vmatprep.subr.bf16.mxu0 %v2799
        %2927 = vmatpush1.bf16.msra.mxu0 %v2798
        %2928 = vmatprep.subr.bf16.mxu0 %v2801
        %2929 = vmatpush1.bf16.msra.mxu0 %v2800
        %2930 = vmatprep.subr.bf16.mxu0 %v2803
        %2931 = vmatpush1.bf16.msra.mxu0 %v2802
        %2932 = vmatprep.subr.bf16.mxu0 %v2805
        %2933 = vmatpush1.bf16.msra.mxu0 %v2804
        %2934 = vmatprep.subr.bf16.mxu0 %v2807
        %2935 = vmatpush1.bf16.msra.mxu0 %v2806
        %2936 = vmatprep.subr.bf16.mxu0 %v2809
        %2937 = vmatpush1.bf16.msra.mxu0 %v2808
        %2938 = vmatprep.subr.bf16.mxu0 %v2811
        %2939 = vmatpush1.bf16.msra.mxu0 %v2810
        %2940 = vmatprep.subr.bf16.mxu0 %v2813
        %2941 = vmatpush1.bf16.msra.mxu0 %v2812
        %2942 = vmatprep.subr.bf16.mxu0 %v2815
        %2943 = vmatpush1.bf16.msra.mxu0 %v2814
        %2944 = vmatprep.subr.bf16.mxu0 %v2817
        %2945 = vmatpush1.bf16.msra.mxu0 %v2816
        %2946 = vmatprep.mubr.bf16.mxu0 %v2515
        %2947 = vmatmul.mubr.bf16.gmra.mrb[0].mxu0 %v2514
        %v2948 = vpop.f32.mrb[0].mxu0
        %v2949 = vadd.f32 %v2587, %v2948
        %v2950 = vpop.f32.mrb[0].mxu0
        %v2951 = vadd.f32 %v2591, %v2950
        %v2952 = vpop.f32.mrb[0].mxu0
        %v2953 = vpop.f32.mrb[0].mxu0
        %2954 = vdwg.mxu0
        %2955 = vmatprep.subr.bf16.mxu0 %v2819
        %2956 = vmatpush1.bf16.msra.mxu0 %v2818
        %2957 = vmatprep.subr.bf16.mxu0 %v2821
        %2958 = vmatpush1.bf16.msra.mxu0 %v2820
        %2959 = vmatprep.subr.bf16.mxu0 %v2823
        %2960 = vmatpush1.bf16.msra.mxu0 %v2822
        %2961 = vmatprep.subr.bf16.mxu0 %v2825
        %2962 = vmatpush1.bf16.msra.mxu0 %v2824
        %2963 = vmatprep.subr.bf16.mxu0 %v2827
        %2964 = vmatpush1.bf16.msra.mxu0 %v2826
        %2965 = vmatprep.subr.bf16.mxu0 %v2829
        %2966 = vmatpush1.bf16.msra.mxu0 %v2828
        %2967 = vmatprep.subr.bf16.mxu0 %v2831
        %2968 = vmatpush1.bf16.msra.mxu0 %v2830
        %2969 = vmatprep.subr.bf16.mxu0 %v2833
        %2970 = vmatpush1.bf16.msra.mxu0 %v2832
        %2971 = vmatprep.subr.bf16.mxu0 %v2835
        %2972 = vmatpush1.bf16.msra.mxu0 %v2834
        %2973 = vmatprep.subr.bf16.mxu0 %v2837
        %2974 = vmatpush1.bf16.msra.mxu0 %v2836
        %2975 = vmatprep.subr.bf16.mxu0 %v2839
        %2976 = vmatpush1.bf16.msra.mxu0 %v2838
        %2977 = vmatprep.subr.bf16.mxu0 %v2841
        %2978 = vmatpush1.bf16.msra.mxu0 %v2840
        %2979 = vmatprep.subr.bf16.mxu0 %v2843
        %2980 = vmatpush1.bf16.msra.mxu0 %v2842
        %2981 = vmatprep.subr.bf16.mxu0 %v2845
        %2982 = vmatpush1.bf16.msra.mxu0 %v2844
        %2983 = vmatprep.subr.bf16.mxu0 %v2847
        %2984 = vmatpush1.bf16.msra.mxu0 %v2846
        %2985 = vmatprep.subr.bf16.mxu0 %v2849
        %2986 = vmatpush1.bf16.msra.mxu0 %v2848
        %2987 = vmatprep.mubr.bf16.mxu0 %v2517
        %2988 = vmatmul.mubr.bf16.gmra.mrb[0].mxu0 %v2516
        %v2989 = vpop.f32.mrb[0].mxu0
        %v2990 = vadd.f32 %v2949, %v2989
        %v2991 = vpop.f32.mrb[0].mxu0
        %v2992 = vadd.f32 %v2951, %v2991
        %v2993 = vpop.f32.mrb[0].mxu0
        %v2994 = vpop.f32.mrb[0].mxu0
        %2995 = vdwg.mxu0
        %v2996 = vadd.f32 %v2018, %v2990
        %v2997 = vadd.f32 %v2019, %v2992
        %v2998 = vadd.f32 %v2996, %v2997
        %2999 = vadd.xlane.f32.xlu0 %v2998
        %v3000 = vpop.xlane.xlu0 %2999
        %v3001 = vmul.f32 %v3000, %v1978
        %v3002 = vsub.f32 %v2996, %v3001
        %v3003 = vsub.f32 %v2997, %v3001
        %v3004 = vmul.f32 %v3002, %v3002
        %v3005 = vmul.f32 %v3003, %v3003
        %v3006 = vadd.f32 %v3004, %v3005
        %3007 = vadd.xlane.f32.xlu0 %v3006
        %v3008 = vpop.xlane.xlu0 %3007
        %v3009 = vmul.f32 %v3008, %v1978
        %v3010 = vadd.f32 %v3009, 1e-05
        %v3011 = vrsqrt.pop %v3010
        %v3012 = vmul.f32 %v3002, %v3011
        %v3013 = vmul.f32 %v3003, %v3011
        %v3014 = vld [vmem:[#allocation10] sm:$0x3]
        %v3016 = vlaneseq
        %v3017 = vshrl.u32 %v3016, 7
        %v3018 = vsub.s32 0, %v3017
        %v3019 = vrot.slane %v3014, %v3018
        %v3020 = vlaneseq
        %v3021 = vshrl.u32 %v3020, 7
        %v3022 = vsub.s32 1, %v3021
        %v3023 = vrot.slane %v3014, %v3022
        %v3026 = vmul.f32 %v3012, %v3019
        %v3027 = vmul.f32 %v3013, %v3023
        %v3028 = vld [vmem:[#allocation12] sm:$0x3]
        %v3030 = vlaneseq
        %v3031 = vshrl.u32 %v3030, 7
        %v3032 = vsub.s32 0, %v3031
        %v3033 = vrot.slane %v3028, %v3032
        %v3034 = vlaneseq
        %v3035 = vshrl.u32 %v3034, 7
        %v3036 = vsub.s32 1, %v3035
        %v3037 = vrot.slane %v3028, %v3036
        %v3040 = vadd.f32 %v3026, %v3033
        %v3041 = vadd.f32 %v3027, %v3037
        %3042 = vst [vmem:[%s532] sm:$0xff] %v3040
        %3043 = vst [vmem:[%s532 + $0x8] sm:$0xff] %v3041
        %p3044 = scmp.lt.s32.totalorder %s28, 1
        %s3045 = scalar_select %p3044, %s28, 1
        %s3046 = smul.addr %s3045, 2
        %s3047 = smul.addr %s3046, 8
        %s3048 = scalar_lea.vmem %s13, %s3047
        // Predicated region
        $region101: #{tf_nn_forward.7} parent=71 // pred_check
          %p3049 = pneg %p324
        $region102: #{tf_nn_forward.7} parent=71 // pred_check_branch
          %3051 = sbr.rel (%p3049) target = $region104
        $region103: #{tf_nn_forward.7} parent=71 // pred_region
          _
        $region104: #{tf_nn_forward.7} parent=71 // pred_fallthru
          _
      $region72: #{tf_nn_forward.7} parent=5 // pred_fallthru
        _
      %p3052 = scmp.le.s32.totalorder 2, %s23
      // Predicated region
      $region105: #{tf_nn_forward.7} parent=5 // pred_check
        %p3053 = pneg %p3052
      $region106: #{tf_nn_forward.7} parent=5 // pred_check_branch
        %3055 = sbr.rel (%p3053) target = $region108
      $region107: #{tf_nn_forward.7} parent=5 // pred_region
        %s3056 = ssub.s32 %s23, 2
        // Predicated region
        $region109: #{tf_nn_forward.7} parent=107 // pred_check
          %p3057 = pneg %p330
        $region110: #{tf_nn_forward.7} parent=107 // pred_check_branch
          %3059 = sbr.rel (%p3057) target = $region112
        $region111: #{tf_nn_forward.7} parent=107 // pred_region
          %p3060 = scmp.lt.s32.totalorder %s29, 1
          %s3061 = scalar_select %p3060, %s29, 1
          %s3062 = smul.addr %s3061, 2
          %s3063 = smul.addr %s3062, 8
          %s3064 = scalar_lea.vmem %s13, %s3063
        $region112: #{tf_nn_forward.7} parent=107 // pred_fallthru
          _
      $region108: #{tf_nn_forward.7} parent=5 // pred_fallthru
        _
    $region6: #{tf_nn_forward.7} parent=1 // loop_footer
      %s27 = sadd.s32 1, %s23
    $region7: #{tf_nn_forward.7} parent=1 // loop_footer_branch
      %22 = sbr.rel target = $region3
    $region8: #{tf_nn_forward.7} parent=1 // loop_exit
      _
    %3065 = vsyncpa [#allocation3], 1
    %s3066 = scalar_lea.sflag [#allocation3], 1
    %3067 = vsyncpa %s3066, 1
    %3068 = vsyncpa [#allocation5], 1
    %3069 = vsyncpa [#allocation8], 1
    %3070 = vsyncpa [#allocation11], 1

// kernel: tf_nn_forward.8
$region0: #{tf_nn_forward.8}
  #allocation0 [shape = 'u32[]', space=smem, size = 0x4, offset = 0x4, fixed_abs, tag = 'smem constant byte address 0x4 - core index']
  #allocation1 [shape = 'u32[144,128]{1,0:T(1,128)}', space=vmem, size = 0x12000, scoped, tag = 'internal scratch']
  %s0 = inlined_call_operand.vmem [shape: f32[16,256], index: 0, kind: input, shape index: {}]
  %s1 = inlined_call_operand.vmem [shape: bf16[256,768], index: 1, kind: input, shape index: {}]
  %s2 = inlined_call_operand.vmem [shape: f32[1,768], index: 2, kind: input, shape index: {}]
  %s3 = inlined_call_operand.vmem [shape: bf16[256,256], index: 3, kind: input, shape index: {}]
  %s4 = inlined_call_operand.vmem [shape: f32[1,256], index: 4, kind: input, shape index: {}]
  %s5 = inlined_call_operand.vmem [shape: f32[1,256], index: 5, kind: input, shape index: {}]
  %s6 = inlined_call_operand.vmem [shape: f32[1,256], index: 6, kind: input, shape index: {}]
  %s7 = inlined_call_operand.vmem [shape: bf16[256,512], index: 7, kind: input, shape index: {}]
  %s8 = inlined_call_operand.vmem [shape: f32[1,512], index: 8, kind: input, shape index: {}]
  %s9 = inlined_call_operand.vmem [shape: bf16[512,256], index: 9, kind: input, shape index: {}]
  %s10 = inlined_call_operand.vmem [shape: f32[1,256], index: 10, kind: input, shape index: {}]
  %s11 = inlined_call_operand.vmem [shape: f32[1,256], index: 11, kind: input, shape index: {}]
  %s12 = inlined_call_operand.vmem [shape: f32[1,256], index: 12, kind: input, shape index: {}]
  %s13 = inlined_call_operand.vmem [shape: f32[16,256], index: 13, kind: output, shape index: {}]
  %s14 = sld [smem:[#allocation0]]
  $region85: #{tf_nn_forward.8} parent=0
    _
  %s16 = ssub.s32 1, %s14
  %s17 = scalar_select 0, %s16, %s14
  loop: start=0, step=1, limit=4
  $region2: #{tf_nn_forward.8} parent=0 // loop_pre_header
    _
  $region3: #{tf_nn_forward.8} parent=0 // loop_header
    %s19 = sphi 0, %s23
    %p20 = scmp.ge.s32.totalorder %s19, 4
    %s29 = sphi 0, %s31
    %s32 = sphi 0, %s29
    %s33 = sphi 0, %s32
    %s49 = sphi 0, %s33
    %s53 = sphi 0, %s53
    %s55 = sphi 0, %s53
    %s56 = sphi 0, %s55
    %s70 = sphi 0, %s56
    %s74 = sphi 0, %s74
    %s76 = sphi 0, %s74
    %s77 = sphi 0, %s76
    %s91 = sphi 0, %s77
    %s95 = sphi 0, %s95
    %s97 = sphi 0, %s95
    %s98 = sphi 0, %s97
    %s112 = sphi 0, %s98
    %s116 = sphi 0, %s116
    %s118 = sphi 0, %s116
    %s119 = sphi 0, %s118
    %s133 = sphi 0, %s119
    %s137 = sphi 0, %s137
    %s139 = sphi 0, %s137
    %s140 = sphi 0, %s139
    %s154 = sphi 0, %s140
    %s158 = sphi 0, %s158
    %s160 = sphi 0, %s158
    %s161 = sphi 0, %s160
    %s175 = sphi 0, %s161
    %s179 = sphi 0, %s179
    %s181 = sphi 0, %s179
    %s182 = sphi 0, %s181
    %s196 = sphi 0, %s182
    %s200 = sphi 0, %s200
    %s202 = sphi 0, %s200
    %s203 = sphi 0, %s202
    %s217 = sphi 0, %s203
    %s221 = sphi 0, %s221
    %s223 = sphi 0, %s221
    %s224 = sphi 0, %s223
    %s238 = sphi 0, %s224
    %s242 = sphi 0, %s242
    %s244 = sphi 0, %s242
    %s245 = sphi 0, %s244
    %s259 = sphi 0, %s245
    %s263 = sphi 0, %s263
    %s265 = sphi 0, %s263
    %s266 = sphi 0, %s265
    %s280 = sphi 0, %s266
    %s284 = sphi 0, %s284
    %s286 = sphi 0, %s284
    %s287 = sphi 0, %s286
    %s301 = sphi 0, %s287
    %s307 = sphi 0, %s309
    %s310 = sphi 0, %s307
    %s311 = sphi 0, %s310
    %s327 = sphi 0, %s311
  $region4: #{tf_nn_forward.8} parent=0 // loop_header_branch
    %22 = sbr.rel (%p20) target = $region8
  $region5: #{tf_nn_forward.8} parent=0 // loop_body
    %s24 = ssub.s32 %s19, 1
    %s25 = ssub.s32 %s19, 2
    %s26 = sadd.s32 %s19, 1
    %s27 = ssub.s32 %s19, %s26
    %p28 = scmp.eq.s32.totalorder %s27, 0
    %s30 = sadd.s32 %s29, 1
    %s31 = scalar_select %p28, %s29, %s30
    %p34 = pneg %p28
    %p35 = scmp.eq.s32.totalorder %s19, 1
    %p36 = por %p34, %p35
    %p37 = scmp.ne.s32.totalorder %s29, %s32
    %p38 = scmp.eq.s32.totalorder %s19, 0
    %p39 = por %p37, %p38
    %p40 = scmp.ne.s32.totalorder %s29, %s32
    %p41 = scmp.eq.s32.totalorder %s24, 1
    %p42 = por %p40, %p41
    %p43 = scmp.ne.s32.totalorder %s32, %s33
    %p44 = scmp.eq.s32.totalorder %s24, 0
    %p45 = por %p43, %p44
    %p46 = scmp.ne.s32.totalorder %s32, %s33
    %p47 = scmp.eq.s32.totalorder %s25, 1
    %p48 = por %p46, %p47
    %p50 = scmp.ne.s32.totalorder %s33, %s49
    %p51 = scmp.eq.s32.totalorder %s25, 0
    %p52 = por %p50, %p51
    %s54 = sadd.s32 %s53, 1
    %p57 = scmp.eq.s32.totalorder %s19, 1
    %p58 = scmp.ne.s32.totalorder %s53, %s55
    %p59 = scmp.eq.s32.totalorder %s19, 0
    %p60 = por %p58, %p59
    %p61 = scmp.ne.s32.totalorder %s53, %s55
    %p62 = scmp.eq.s32.totalorder %s24, 1
    %p63 = por %p61, %p62
    %p64 = scmp.ne.s32.totalorder %s55, %s56
    %p65 = scmp.eq.s32.totalorder %s24, 0
    %p66 = por %p64, %p65
    %p67 = scmp.ne.s32.totalorder %s55, %s56
    %p68 = scmp.eq.s32.totalorder %s25, 1
    %p69 = por %p67, %p68
    %p71 = scmp.ne.s32.totalorder %s56, %s70
    %p72 = scmp.eq.s32.totalorder %s25, 0
    %p73 = por %p71, %p72
    %s75 = sadd.s32 %s74, 1
    %p78 = scmp.eq.s32.totalorder %s19, 1
    %p79 = scmp.ne.s32.totalorder %s74, %s76
    %p80 = scmp.eq.s32.totalorder %s19, 0
    %p81 = por %p79, %p80
    %p82 = scmp.ne.s32.totalorder %s74, %s76
    %p83 = scmp.eq.s32.totalorder %s24, 1
    %p84 = por %p82, %p83
    %p85 = scmp.ne.s32.totalorder %s76, %s77
    %p86 = scmp.eq.s32.totalorder %s24, 0
    %p87 = por %p85, %p86
    %p88 = scmp.ne.s32.totalorder %s76, %s77
    %p89 = scmp.eq.s32.totalorder %s25, 1
    %p90 = por %p88, %p89
    %p92 = scmp.ne.s32.totalorder %s77, %s91
    %p93 = scmp.eq.s32.totalorder %s25, 0
    %p94 = por %p92, %p93
    %s96 = sadd.s32 %s95, 1
    %p99 = scmp.eq.s32.totalorder %s19, 1
    %p100 = scmp.ne.s32.totalorder %s95, %s97
    %p101 = scmp.eq.s32.totalorder %s19, 0
    %p102 = por %p100, %p101
    %p103 = scmp.ne.s32.totalorder %s95, %s97
    %p104 = scmp.eq.s32.totalorder %s24, 1
    %p105 = por %p103, %p104
    %p106 = scmp.ne.s32.totalorder %s97, %s98
    %p107 = scmp.eq.s32.totalorder %s24, 0
    %p108 = por %p106, %p107
    %p109 = scmp.ne.s32.totalorder %s97, %s98
    %p110 = scmp.eq.s32.totalorder %s25, 1
    %p111 = por %p109, %p110
    %p113 = scmp.ne.s32.totalorder %s98, %s112
    %p114 = scmp.eq.s32.totalorder %s25, 0
    %p115 = por %p113, %p114
    %s117 = sadd.s32 %s116, 1
    %p120 = scmp.eq.s32.totalorder %s19, 1
    %p121 = scmp.ne.s32.totalorder %s116, %s118
    %p122 = scmp.eq.s32.totalorder %s19, 0
    %p123 = por %p121, %p122
    %p124 = scmp.ne.s32.totalorder %s116, %s118
    %p125 = scmp.eq.s32.totalorder %s24, 1
    %p126 = por %p124, %p125
    %p127 = scmp.ne.s32.totalorder %s118, %s119
    %p128 = scmp.eq.s32.totalorder %s24, 0
    %p129 = por %p127, %p128
    %p130 = scmp.ne.s32.totalorder %s118, %s119
    %p131 = scmp.eq.s32.totalorder %s25, 1
    %p132 = por %p130, %p131
    %p134 = scmp.ne.s32.totalorder %s119, %s133
    %p135 = scmp.eq.s32.totalorder %s25, 0
    %p136 = por %p134, %p135
    %s138 = sadd.s32 %s137, 1
    %p141 = scmp.eq.s32.totalorder %s19, 1
    %p142 = scmp.ne.s32.totalorder %s137, %s139
    %p143 = scmp.eq.s32.totalorder %s19, 0
    %p144 = por %p142, %p143
    %p145 = scmp.ne.s32.totalorder %s137, %s139
    %p146 = scmp.eq.s32.totalorder %s24, 1
    %p147 = por %p145, %p146
    %p148 = scmp.ne.s32.totalorder %s139, %s140
    %p149 = scmp.eq.s32.totalorder %s24, 0
    %p150 = por %p148, %p149
    %p151 = scmp.ne.s32.totalorder %s139, %s140
    %p152 = scmp.eq.s32.totalorder %s25, 1
    %p153 = por %p151, %p152
    %p155 = scmp.ne.s32.totalorder %s140, %s154
    %p156 = scmp.eq.s32.totalorder %s25, 0
    %p157 = por %p155, %p156
    %s159 = sadd.s32 %s158, 1
    %p162 = scmp.eq.s32.totalorder %s19, 1
    %p163 = scmp.ne.s32.totalorder %s158, %s160
    %p164 = scmp.eq.s32.totalorder %s19, 0
    %p165 = por %p163, %p164
    %p166 = scmp.ne.s32.totalorder %s158, %s160
    %p167 = scmp.eq.s32.totalorder %s24, 1
    %p168 = por %p166, %p167
    %p169 = scmp.ne.s32.totalorder %s160, %s161
    %p170 = scmp.eq.s32.totalorder %s24, 0
    %p171 = por %p169, %p170
    %p172 = scmp.ne.s32.totalorder %s160, %s161
    %p173 = scmp.eq.s32.totalorder %s25, 1
    %p174 = por %p172, %p173
    %p176 = scmp.ne.s32.totalorder %s161, %s175
    %p177 = scmp.eq.s32.totalorder %s25, 0
    %p178 = por %p176, %p177
    %s180 = sadd.s32 %s179, 1
    %p183 = scmp.eq.s32.totalorder %s19, 1
    %p184 = scmp.ne.s32.totalorder %s179, %s181
    %p185 = scmp.eq.s32.totalorder %s19, 0
    %p186 = por %p184, %p185
    %p187 = scmp.ne.s32.totalorder %s179, %s181
    %p188 = scmp.eq.s32.totalorder %s24, 1
    %p189 = por %p187, %p188
    %p190 = scmp.ne.s32.totalorder %s181, %s182
    %p191 = scmp.eq.s32.totalorder %s24, 0
    %p192 = por %p190, %p191
    %p193 = scmp.ne.s32.totalorder %s181, %s182
    %p194 = scmp.eq.s32.totalorder %s25, 1
    %p195 = por %p193, %p194
    %p197 = scmp.ne.s32.totalorder %s182, %s196
    %p198 = scmp.eq.s32.totalorder %s25, 0
    %p199 = por %p197, %p198
    %s201 = sadd.s32 %s200, 1
    %p204 = scmp.eq.s32.totalorder %s19, 1
    %p205 = scmp.ne.s32.totalorder %s200, %s202
    %p206 = scmp.eq.s32.totalorder %s19, 0
    %p207 = por %p205, %p206
    %p208 = scmp.ne.s32.totalorder %s200, %s202
    %p209 = scmp.eq.s32.totalorder %s24, 1
    %p210 = por %p208, %p209
    %p211 = scmp.ne.s32.totalorder %s202, %s203
    %p212 = scmp.eq.s32.totalorder %s24, 0
    %p213 = por %p211, %p212
    %p214 = scmp.ne.s32.totalorder %s202, %s203
    %p215 = scmp.eq.s32.totalorder %s25, 1
    %p216 = por %p214, %p215
    %p218 = scmp.ne.s32.totalorder %s203, %s217
    %p219 = scmp.eq.s32.totalorder %s25, 0
    %p220 = por %p218, %p219
    %s222 = sadd.s32 %s221, 1
    %p225 = scmp.eq.s32.totalorder %s19, 1
    %p226 = scmp.ne.s32.totalorder %s221, %s223
    %p227 = scmp.eq.s32.totalorder %s19, 0
    %p228 = por %p226, %p227
    %p229 = scmp.ne.s32.totalorder %s221, %s223
    %p230 = scmp.eq.s32.totalorder %s24, 1
    %p231 = por %p229, %p230
    %p232 = scmp.ne.s32.totalorder %s223, %s224
    %p233 = scmp.eq.s32.totalorder %s24, 0
    %p234 = por %p232, %p233
    %p235 = scmp.ne.s32.totalorder %s223, %s224
    %p236 = scmp.eq.s32.totalorder %s25, 1
    %p237 = por %p235, %p236
    %p239 = scmp.ne.s32.totalorder %s224, %s238
    %p240 = scmp.eq.s32.totalorder %s25, 0
    %p241 = por %p239, %p240
    %s243 = sadd.s32 %s242, 1
    %p246 = scmp.eq.s32.totalorder %s19, 1
    %p247 = scmp.ne.s32.totalorder %s242, %s244
    %p248 = scmp.eq.s32.totalorder %s19, 0
    %p249 = por %p247, %p248
    %p250 = scmp.ne.s32.totalorder %s242, %s244
    %p251 = scmp.eq.s32.totalorder %s24, 1
    %p252 = por %p250, %p251
    %p253 = scmp.ne.s32.totalorder %s244, %s245
    %p254 = scmp.eq.s32.totalorder %s24, 0
    %p255 = por %p253, %p254
    %p256 = scmp.ne.s32.totalorder %s244, %s245
    %p257 = scmp.eq.s32.totalorder %s25, 1
    %p258 = por %p256, %p257
    %p260 = scmp.ne.s32.totalorder %s245, %s259
    %p261 = scmp.eq.s32.totalorder %s25, 0
    %p262 = por %p260, %p261
    %s264 = sadd.s32 %s263, 1
    %p267 = scmp.eq.s32.totalorder %s19, 1
    %p268 = scmp.ne.s32.totalorder %s263, %s265
    %p269 = scmp.eq.s32.totalorder %s19, 0
    %p270 = por %p268, %p269
    %p271 = scmp.ne.s32.totalorder %s263, %s265
    %p272 = scmp.eq.s32.totalorder %s24, 1
    %p273 = por %p271, %p272
    %p274 = scmp.ne.s32.totalorder %s265, %s266
    %p275 = scmp.eq.s32.totalorder %s24, 0
    %p276 = por %p274, %p275
    %p277 = scmp.ne.s32.totalorder %s265, %s266
    %p278 = scmp.eq.s32.totalorder %s25, 1
    %p279 = por %p277, %p278
    %p281 = scmp.ne.s32.totalorder %s266, %s280
    %p282 = scmp.eq.s32.totalorder %s25, 0
    %p283 = por %p281, %p282
    %s285 = sadd.s32 %s284, 1
    %p288 = scmp.eq.s32.totalorder %s19, 1
    %p289 = scmp.ne.s32.totalorder %s284, %s286
    %p290 = scmp.eq.s32.totalorder %s19, 0
    %p291 = por %p289, %p290
    %p292 = scmp.ne.s32.totalorder %s284, %s286
    %p293 = scmp.eq.s32.totalorder %s24, 1
    %p294 = por %p292, %p293
    %p295 = scmp.ne.s32.totalorder %s286, %s287
    %p296 = scmp.eq.s32.totalorder %s24, 0
    %p297 = por %p295, %p296
    %p298 = scmp.ne.s32.totalorder %s286, %s287
    %p299 = scmp.eq.s32.totalorder %s25, 1
    %p300 = por %p298, %p299
    %p302 = scmp.ne.s32.totalorder %s287, %s301
    %p303 = scmp.eq.s32.totalorder %s25, 0
    %p304 = por %p302, %p303
    %s305 = ssub.s32 %s19, %s26
    %p306 = scmp.eq.s32.totalorder %s305, 0
    %s308 = sadd.s32 %s307, 1
    %s309 = scalar_select %p306, %s307, %s308
    %p312 = pneg %p306
    %p313 = scmp.eq.s32.totalorder %s19, 1
    %p314 = por %p312, %p313
    %p315 = scmp.ne.s32.totalorder %s307, %s310
    %p316 = scmp.eq.s32.totalorder %s19, 0
    %p317 = por %p315, %p316
    %p318 = scmp.ne.s32.totalorder %s307, %s310
    %p319 = scmp.eq.s32.totalorder %s24, 1
    %p320 = por %p318, %p319
    %p321 = scmp.ne.s32.totalorder %s310, %s311
    %p322 = scmp.eq.s32.totalorder %s24, 0
    %p323 = por %p321, %p322
    %p324 = scmp.ne.s32.totalorder %s310, %s311
    %p325 = scmp.eq.s32.totalorder %s25, 1
    %p326 = por %p324, %p325
    %p328 = scmp.ne.s32.totalorder %s311, %s327
    %p329 = scmp.eq.s32.totalorder %s25, 0
    %p330 = por %p328, %p329
    %p331 = scmp.le.s32.totalorder 1, %s19
    %p332 = scmp.lt.s32.totalorder %s19, 3
    %p333 = pnand %p331, %p332
    %p334 = pneg %p333
    // Predicated region
    $region9: #{tf_nn_forward.8} parent=5 // pred_check
      _
    $region10: #{tf_nn_forward.8} parent=5 // pred_check_branch
      %336 = sbr.rel (%p333) target = $region12
    $region11: #{tf_nn_forward.8} parent=5 // pred_region
      %s337 = ssub.s32 %s19, 1
      // Predicated region
      $region13: #{tf_nn_forward.8} parent=11 // pred_check
        %p338 = pneg %p66
      $region14: #{tf_nn_forward.8} parent=11 // pred_check_branch
        %340 = sbr.rel (%p338) target = $region16
      $region15: #{tf_nn_forward.8} parent=11 // pred_region
        _
      $region16: #{tf_nn_forward.8} parent=11 // pred_fallthru
        _
      // Predicated region
      $region17: #{tf_nn_forward.8} parent=11 // pred_check
        %p341 = pneg %p87
      $region18: #{tf_nn_forward.8} parent=11 // pred_check_branch
        %343 = sbr.rel (%p341) target = $region20
      $region19: #{tf_nn_forward.8} parent=11 // pred_region
        _
      $region20: #{tf_nn_forward.8} parent=11 // pred_fallthru
        _
      // Predicated region
      $region21: #{tf_nn_forward.8} parent=11 // pred_check
        %p344 = pneg %p108
      $region22: #{tf_nn_forward.8} parent=11 // pred_check_branch
        %346 = sbr.rel (%p344) target = $region24
      $region23: #{tf_nn_forward.8} parent=11 // pred_region
        _
      $region24: #{tf_nn_forward.8} parent=11 // pred_fallthru
        _
      // Predicated region
      $region25: #{tf_nn_forward.8} parent=11 // pred_check
        %p347 = pneg %p129
      $region26: #{tf_nn_forward.8} parent=11 // pred_check_branch
        %349 = sbr.rel (%p347) target = $region28
      $region27: #{tf_nn_forward.8} parent=11 // pred_region
        _
      $region28: #{tf_nn_forward.8} parent=11 // pred_fallthru
        _
      // Predicated region
      $region29: #{tf_nn_forward.8} parent=11 // pred_check
        %p350 = pneg %p150
      $region30: #{tf_nn_forward.8} parent=11 // pred_check_branch
        %352 = sbr.rel (%p350) target = $region32
      $region31: #{tf_nn_forward.8} parent=11 // pred_region
        _
      $region32: #{tf_nn_forward.8} parent=11 // pred_fallthru
        _
      // Predicated region
      $region33: #{tf_nn_forward.8} parent=11 // pred_check
        %p353 = pneg %p171
      $region34: #{tf_nn_forward.8} parent=11 // pred_check_branch
        %355 = sbr.rel (%p353) target = $region36
      $region35: #{tf_nn_forward.8} parent=11 // pred_region
        _
      $region36: #{tf_nn_forward.8} parent=11 // pred_fallthru
        _
      // Predicated region
      $region37: #{tf_nn_forward.8} parent=11 // pred_check
        %p356 = pneg %p192
      $region38: #{tf_nn_forward.8} parent=11 // pred_check_branch
        %358 = sbr.rel (%p356) target = $region40
      $region39: #{tf_nn_forward.8} parent=11 // pred_region
        _
      $region40: #{tf_nn_forward.8} parent=11 // pred_fallthru
        _
      // Predicated region
      $region41: #{tf_nn_forward.8} parent=11 // pred_check
        %p359 = pneg %p213
      $region42: #{tf_nn_forward.8} parent=11 // pred_check_branch
        %361 = sbr.rel (%p359) target = $region44
      $region43: #{tf_nn_forward.8} parent=11 // pred_region
        _
      $region44: #{tf_nn_forward.8} parent=11 // pred_fallthru
        _
      // Predicated region
      $region45: #{tf_nn_forward.8} parent=11 // pred_check
        %p362 = pneg %p234
      $region46: #{tf_nn_forward.8} parent=11 // pred_check_branch
        %364 = sbr.rel (%p362) target = $region48
      $region47: #{tf_nn_forward.8} parent=11 // pred_region
        _
      $region48: #{tf_nn_forward.8} parent=11 // pred_fallthru
        _
      // Predicated region
      $region49: #{tf_nn_forward.8} parent=11 // pred_check
        %p365 = pneg %p255
      $region50: #{tf_nn_forward.8} parent=11 // pred_check_branch
        %367 = sbr.rel (%p365) target = $region52
      $region51: #{tf_nn_forward.8} parent=11 // pred_region
        _
      $region52: #{tf_nn_forward.8} parent=11 // pred_fallthru
        _
      // Predicated region
      $region53: #{tf_nn_forward.8} parent=11 // pred_check
        %p368 = pneg %p276
      $region54: #{tf_nn_forward.8} parent=11 // pred_check_branch
        %370 = sbr.rel (%p368) target = $region56
      $region55: #{tf_nn_forward.8} parent=11 // pred_region
        _
      $region56: #{tf_nn_forward.8} parent=11 // pred_fallthru
        _
      // Predicated region
      $region57: #{tf_nn_forward.8} parent=11 // pred_check
        %p371 = pneg %p297
      $region58: #{tf_nn_forward.8} parent=11 // pred_check_branch
        %373 = sbr.rel (%p371) target = $region60
      $region59: #{tf_nn_forward.8} parent=11 // pred_region
        _
      $region60: #{tf_nn_forward.8} parent=11 // pred_fallthru
        _
    $region12: #{tf_nn_forward.8} parent=5 // pred_fallthru
      _
    %p374 = scmp.lt.s32.totalorder %s19, 2
    // Predicated region
    $region61: #{tf_nn_forward.8} parent=5 // pred_check
      %p375 = pneg %p374
    $region62: #{tf_nn_forward.8} parent=5 // pred_check_branch
      %377 = sbr.rel (%p375) target = $region64
    $region63: #{tf_nn_forward.8} parent=5 // pred_region
      // Predicated region
      $region65: #{tf_nn_forward.8} parent=63 // pred_check
        %p378 = pneg %p39
      $region66: #{tf_nn_forward.8} parent=63 // pred_check_branch
        %380 = sbr.rel (%p378) target = $region68
      $region67: #{tf_nn_forward.8} parent=63 // pred_region
        %p381 = scmp.lt.s32.totalorder %s19, 1
        %s382 = scalar_select %p381, %s19, 1
        %s383 = smul.addr %s382, 2
        %s384 = smul.addr %s383, 8
        %s385 = scalar_lea.vmem %s0, %s384
      $region68: #{tf_nn_forward.8} parent=63 // pred_fallthru
        _
    $region64: #{tf_nn_forward.8} parent=5 // pred_fallthru
      _
    %p386 = scmp.le.s32.totalorder 1, %s19
    %p387 = scmp.lt.s32.totalorder %s19, 3
    %p388 = pnand %p386, %p387
    %p389 = pneg %p388
    // Predicated region
    $region69: #{tf_nn_forward.8} parent=5 // pred_check
      _
    $region70: #{tf_nn_forward.8} parent=5 // pred_check_branch
      %391 = sbr.rel (%p388) target = $region72
    $region71: #{tf_nn_forward.8} parent=5 // pred_region
      %s392 = ssub.s32 %s19, 1
      %p393 = scmp.lt.s32.totalorder %s24, 1
      %s394 = scalar_select %p393, %s24, 1
      %s395 = smul.addr %s394, 2
      %s396 = smul.addr %s395, 8
      %s397 = scalar_lea.vmem %s0, %s396
      %p398 = pneg %p45
      %p399 = pneg %p42
      %p400 = pneg %p66
      %p401 = pneg %p63
      %p402 = pneg %p87
      %p403 = pneg %p84
      %p404 = pneg %p108
      %p405 = pneg %p105
      %p406 = pneg %p129
      %p407 = pneg %p126
      %p408 = pneg %p150
      %p409 = pneg %p147
      %p410 = pneg %p171
      %p411 = pneg %p168
      %p412 = pneg %p192
      %p413 = pneg %p189
      %p414 = pneg %p213
      %p415 = pneg %p210
      %p416 = pneg %p234
      %p417 = pneg %p231
      %p418 = pneg %p255
      %p419 = pneg %p252
      %p420 = pneg %p276
      %p421 = pneg %p273
      %p422 = pneg %p297
      %p423 = pneg %p294
      %p424 = pneg %p323
      %p425 = pneg %p320
      %p426 = scmp.lt.s32.totalorder %s24, 1
      %s427 = scalar_select %p426, %s24, 1
      %s428 = smul.addr %s427, 2
      %s429 = smul.addr %s428, 8
      %s430 = scalar_lea.vmem %s13, %s429
      %p431 = scmp.lt.s32.totalorder %s24, 1
      %s432 = scalar_select %p431, %s24, 1
      %s433 = smul.addr %s432, 2
      %s434 = smul.addr %s433, 8
      %s435 = scalar_lea.vmem %s0, %s434
      %p436 = scmp.lt.s32.totalorder %s24, 1
      %s437 = scalar_select %p436, %s24, 1
      %s438 = smul.addr %s437, 2
      %s439 = smul.addr %s438, 8
      %s440 = scalar_lea.vmem %s13, %s439
      %v442 = vld [vmem:[%s435] sm:$0xff]
      %v443 = vld [vmem:[%s435 + $0x8] sm:$0xff]
      %v444 = vpack.c.bf16 %v442, %v442
      %v445 = vpack.c.bf16 %v443, %v443
      %v446 = vld [vmem:[%s1] sm:$0xff]
      %v447 = vld [vmem:[%s1 + $0x8] sm:$0xff]
      %v448 = vld [vmem:[%s1 + $0x10] sm:$0xff]
      %v449 = vld [vmem:[%s1 + $0x18] sm:$0xff]
      %v450 = vld [vmem:[%s1 + $0x20] sm:$0xff]
      %v451 = vld [vmem:[%s1 + $0x28] sm:$0xff]
      %v452 = vld [vmem:[%s1 + $0x30] sm:$0xff]
      %v453 = vld [vmem:[%s1 + $0x38] sm:$0xff]
      %v454 = vld [vmem:[%s1 + $0x40] sm:$0xff]
      %v455 = vld [vmem:[%s1 + $0x48] sm:$0xff]
      %v456 = vld [vmem:[%s1 + $0x50] sm:$0xff]
      %v457 = vld [vmem:[%s1 + $0x58] sm:$0xff]
      %v458 = vld [vmem:[%s1 + $0x60] sm:$0xff]
      %v459 = vld [vmem:[%s1 + $0x68] sm:$0xff]
      %v460 = vld [vmem:[%s1 + $0x70] sm:$0xff]
      %v461 = vld [vmem:[%s1 + $0x78] sm:$0xff]
      %v462 = vld [vmem:[%s1 + $0x80] sm:$0xff]
      %v463 = vld [vmem:[%s1 + $0x88] sm:$0xff]
      %v464 = vld [vmem:[%s1 + $0x90] sm:$0xff]
      %v465 = vld [vmem:[%s1 + $0x98] sm:$0xff]
      %v466 = vld [vmem:[%s1 + $0xa0] sm:$0xff]
      %v467 = vld [vmem:[%s1 + $0xa8] sm:$0xff]
      %v468 = vld [vmem:[%s1 + $0xb0] sm:$0xff]
      %v469 = vld [vmem:[%s1 + $0xb8] sm:$0xff]
      %v470 = vld [vmem:[%s1 + $0xc0] sm:$0xff]
      %v471 = vld [vmem:[%s1 + $0xc8] sm:$0xff]
      %v472 = vld [vmem:[%s1 + $0xd0] sm:$0xff]
      %v473 = vld [vmem:[%s1 + $0xd8] sm:$0xff]
      %v474 = vld [vmem:[%s1 + $0xe0] sm:$0xff]
      %v475 = vld [vmem:[%s1 + $0xe8] sm:$0xff]
      %v476 = vld [vmem:[%s1 + $0xf0] sm:$0xff]
      %v477 = vld [vmem:[%s1 + $0xf8] sm:$0xff]
      %v478 = vld [vmem:[%s1 + $0x100] sm:$0xff]
      %v479 = vld [vmem:[%s1 + $0x108] sm:$0xff]
      %v480 = vld [vmem:[%s1 + $0x110] sm:$0xff]
      %v481 = vld [vmem:[%s1 + $0x118] sm:$0xff]
      %v482 = vld [vmem:[%s1 + $0x120] sm:$0xff]
      %v483 = vld [vmem:[%s1 + $0x128] sm:$0xff]
      %v484 = vld [vmem:[%s1 + $0x130] sm:$0xff]
      %v485 = vld [vmem:[%s1 + $0x138] sm:$0xff]
      %v486 = vld [vmem:[%s1 + $0x140] sm:$0xff]
      %v487 = vld [vmem:[%s1 + $0x148] sm:$0xff]
      %v488 = vld [vmem:[%s1 + $0x150] sm:$0xff]
      %v489 = vld [vmem:[%s1 + $0x158] sm:$0xff]
      %v490 = vld [vmem:[%s1 + $0x160] sm:$0xff]
      %v491 = vld [vmem:[%s1 + $0x168] sm:$0xff]
      %v492 = vld [vmem:[%s1 + $0x170] sm:$0xff]
      %v493 = vld [vmem:[%s1 + $0x178] sm:$0xff]
      %v494 = vld [vmem:[%s1 + $0x180] sm:$0xff]
      %v495 = vld [vmem:[%s1 + $0x188] sm:$0xff]
      %v496 = vld [vmem:[%s1 + $0x190] sm:$0xff]
      %v497 = vld [vmem:[%s1 + $0x198] sm:$0xff]
      %v498 = vld [vmem:[%s1 + $0x1a0] sm:$0xff]
      %v499 = vld [vmem:[%s1 + $0x1a8] sm:$0xff]
      %v500 = vld [vmem:[%s1 + $0x1b0] sm:$0xff]
      %v501 = vld [vmem:[%s1 + $0x1b8] sm:$0xff]
      %v502 = vld [vmem:[%s1 + $0x1c0] sm:$0xff]
      %v503 = vld [vmem:[%s1 + $0x1c8] sm:$0xff]
      %v504 = vld [vmem:[%s1 + $0x1d0] sm:$0xff]
      %v505 = vld [vmem:[%s1 + $0x1d8] sm:$0xff]
      %v506 = vld [vmem:[%s1 + $0x1e0] sm:$0xff]
      %v507 = vld [vmem:[%s1 + $0x1e8] sm:$0xff]
      %v508 = vld [vmem:[%s1 + $0x1f0] sm:$0xff]
      %v509 = vld [vmem:[%s1 + $0x1f8] sm:$0xff]
      %v510 = vld [vmem:[%s1 + $0x200] sm:$0xff]
      %v511 = vld [vmem:[%s1 + $0x208] sm:$0xff]
      %v512 = vld [vmem:[%s1 + $0x210] sm:$0xff]
      %v513 = vld [vmem:[%s1 + $0x218] sm:$0xff]
      %v514 = vld [vmem:[%s1 + $0x220] sm:$0xff]
      %v515 = vld [vmem:[%s1 + $0x228] sm:$0xff]
      %v516 = vld [vmem:[%s1 + $0x230] sm:$0xff]
      %v517 = vld [vmem:[%s1 + $0x238] sm:$0xff]
      %v518 = vld [vmem:[%s1 + $0x240] sm:$0xff]
      %v519 = vld [vmem:[%s1 + $0x248] sm:$0xff]
      %v520 = vld [vmem:[%s1 + $0x250] sm:$0xff]
      %v521 = vld [vmem:[%s1 + $0x258] sm:$0xff]
      %v522 = vld [vmem:[%s1 + $0x260] sm:$0xff]
      %v523 = vld [vmem:[%s1 + $0x268] sm:$0xff]
      %v524 = vld [vmem:[%s1 + $0x270] sm:$0xff]
      %v525 = vld [vmem:[%s1 + $0x278] sm:$0xff]
      %v526 = vld [vmem:[%s1 + $0x280] sm:$0xff]
      %v527 = vld [vmem:[%s1 + $0x288] sm:$0xff]
      %v528 = vld [vmem:[%s1 + $0x290] sm:$0xff]
      %v529 = vld [vmem:[%s1 + $0x298] sm:$0xff]
      %v530 = vld [vmem:[%s1 + $0x2a0] sm:$0xff]
      %v531 = vld [vmem:[%s1 + $0x2a8] sm:$0xff]
      %v532 = vld [vmem:[%s1 + $0x2b0] sm:$0xff]
      %v533 = vld [vmem:[%s1 + $0x2b8] sm:$0xff]
      %v534 = vld [vmem:[%s1 + $0x2c0] sm:$0xff]
      %v535 = vld [vmem:[%s1 + $0x2c8] sm:$0xff]
      %v536 = vld [vmem:[%s1 + $0x2d0] sm:$0xff]
      %v537 = vld [vmem:[%s1 + $0x2d8] sm:$0xff]
      %v538 = vld [vmem:[%s1 + $0x2e0] sm:$0xff]
      %v539 = vld [vmem:[%s1 + $0x2e8] sm:$0xff]
      %v540 = vld [vmem:[%s1 + $0x2f0] sm:$0xff]
      %v541 = vld [vmem:[%s1 + $0x2f8] sm:$0xff]
      %v542 = vld [vmem:[%s2] sm:$0x3f]
      %v544 = vlaneseq
      %v545 = vshrl.u32 %v544, 7
      %v546 = vsub.s32 0, %v545
      %v547 = vrot.slane %v542, %v546
      %v548 = vlaneseq
      %v549 = vshrl.u32 %v548, 7
      %v550 = vsub.s32 1, %v549
      %v551 = vrot.slane %v542, %v550
      %v552 = vlaneseq
      %v553 = vshrl.u32 %v552, 7
      %v554 = vsub.s32 2, %v553
      %v555 = vrot.slane %v542, %v554
      %v556 = vlaneseq
      %v557 = vshrl.u32 %v556, 7
      %v558 = vsub.s32 3, %v557
      %v559 = vrot.slane %v542, %v558
      %v560 = vlaneseq
      %v561 = vshrl.u32 %v560, 7
      %v562 = vsub.s32 4, %v561
      %v563 = vrot.slane %v542, %v562
      %v564 = vlaneseq
      %v565 = vshrl.u32 %v564, 7
      %v566 = vsub.s32 5, %v565
      %v567 = vrot.slane %v542, %v566
      %v670 = vunpack.c.l.b16 %v446
      %v671 = vunpack.c.h.b16 %v446
      %v672 = vunpack.c.l.b16 %v447
      %v673 = vunpack.c.h.b16 %v447
      %v674 = vunpack.c.l.b16 %v448
      %v675 = vunpack.c.h.b16 %v448
      %v676 = vunpack.c.l.b16 %v449
      %v677 = vunpack.c.h.b16 %v449
      %v678 = vunpack.c.l.b16 %v450
      %v679 = vunpack.c.h.b16 %v450
      %v680 = vunpack.c.l.b16 %v451
      %v681 = vunpack.c.h.b16 %v451
      %v682 = vunpack.c.l.b16 %v452
      %v683 = vunpack.c.h.b16 %v452
      %v684 = vunpack.c.l.b16 %v453
      %v685 = vunpack.c.h.b16 %v453
      %v686 = vunpack.c.l.b16 %v454
      %v687 = vunpack.c.h.b16 %v454
      %v688 = vunpack.c.l.b16 %v455
      %v689 = vunpack.c.h.b16 %v455
      %v690 = vunpack.c.l.b16 %v456
      %v691 = vunpack.c.h.b16 %v456
      %v692 = vunpack.c.l.b16 %v457
      %v693 = vunpack.c.h.b16 %v457
      %v694 = vunpack.c.l.b16 %v458
      %v695 = vunpack.c.h.b16 %v458
      %v696 = vunpack.c.l.b16 %v459
      %v697 = vunpack.c.h.b16 %v459
      %v698 = vunpack.c.l.b16 %v460
      %v699 = vunpack.c.h.b16 %v460
      %v700 = vunpack.c.l.b16 %v461
      %v701 = vunpack.c.h.b16 %v461
      %v702 = vunpack.c.l.b16 %v462
      %v703 = vunpack.c.h.b16 %v462
      %v704 = vunpack.c.l.b16 %v463
      %v705 = vunpack.c.h.b16 %v463
      %v706 = vunpack.c.l.b16 %v464
      %v707 = vunpack.c.h.b16 %v464
      %v708 = vunpack.c.l.b16 %v465
      %v709 = vunpack.c.h.b16 %v465
      %v710 = vunpack.c.l.b16 %v466
      %v711 = vunpack.c.h.b16 %v466
      %v712 = vunpack.c.l.b16 %v467
      %v713 = vunpack.c.h.b16 %v467
      %v714 = vunpack.c.l.b16 %v468
      %v715 = vunpack.c.h.b16 %v468
      %v716 = vunpack.c.l.b16 %v469
      %v717 = vunpack.c.h.b16 %v469
      %v718 = vunpack.c.l.b16 %v470
      %v719 = vunpack.c.h.b16 %v470
      %v720 = vunpack.c.l.b16 %v471
      %v721 = vunpack.c.h.b16 %v471
      %v722 = vunpack.c.l.b16 %v472
      %v723 = vunpack.c.h.b16 %v472
      %v724 = vunpack.c.l.b16 %v473
      %v725 = vunpack.c.h.b16 %v473
      %v726 = vunpack.c.l.b16 %v474
      %v727 = vunpack.c.h.b16 %v474
      %v728 = vunpack.c.l.b16 %v475
      %v729 = vunpack.c.h.b16 %v475
      %v730 = vunpack.c.l.b16 %v476
      %v731 = vunpack.c.h.b16 %v476
      %v732 = vunpack.c.l.b16 %v477
      %v733 = vunpack.c.h.b16 %v477
      %v734 = vunpack.c.l.b16 %v478
      %v735 = vunpack.c.h.b16 %v478
      %v736 = vunpack.c.l.b16 %v479
      %v737 = vunpack.c.h.b16 %v479
      %v738 = vunpack.c.l.b16 %v480
      %v739 = vunpack.c.h.b16 %v480
      %v740 = vunpack.c.l.b16 %v481
      %v741 = vunpack.c.h.b16 %v481
      %v742 = vunpack.c.l.b16 %v482
      %v743 = vunpack.c.h.b16 %v482
      %v744 = vunpack.c.l.b16 %v483
      %v745 = vunpack.c.h.b16 %v483
      %v746 = vunpack.c.l.b16 %v484
      %v747 = vunpack.c.h.b16 %v484
      %v748 = vunpack.c.l.b16 %v485
      %v749 = vunpack.c.h.b16 %v485
      %v750 = vunpack.c.l.b16 %v486
      %v751 = vunpack.c.h.b16 %v486
      %v752 = vunpack.c.l.b16 %v487
      %v753 = vunpack.c.h.b16 %v487
      %v754 = vunpack.c.l.b16 %v488
      %v755 = vunpack.c.h.b16 %v488
      %v756 = vunpack.c.l.b16 %v489
      %v757 = vunpack.c.h.b16 %v489
      %v758 = vunpack.c.l.b16 %v490
      %v759 = vunpack.c.h.b16 %v490
      %v760 = vunpack.c.l.b16 %v491
      %v761 = vunpack.c.h.b16 %v491
      %v762 = vunpack.c.l.b16 %v492
      %v763 = vunpack.c.h.b16 %v492
      %v764 = vunpack.c.l.b16 %v493
      %v765 = vunpack.c.h.b16 %v493
      %v766 = vunpack.c.l.b16 %v494
      %v767 = vunpack.c.h.b16 %v494
      %v768 = vunpack.c.l.b16 %v495
      %v769 = vunpack.c.h.b16 %v495
      %v770 = vunpack.c.l.b16 %v496
      %v771 = vunpack.c.h.b16 %v496
      %v772 = vunpack.c.l.b16 %v497
      %v773 = vunpack.c.h.b16 %v497
      %v774 = vunpack.c.l.b16 %v498
      %v775 = vunpack.c.h.b16 %v498
      %v776 = vunpack.c.l.b16 %v499
      %v777 = vunpack.c.h.b16 %v499
      %v778 = vunpack.c.l.b16 %v500
      %v779 = vunpack.c.h.b16 %v500
      %v780 = vunpack.c.l.b16 %v501
      %v781 = vunpack.c.h.b16 %v501
      %v782 = vunpack.c.l.b16 %v502
      %v783 = vunpack.c.h.b16 %v502
      %v784 = vunpack.c.l.b16 %v503
      %v785 = vunpack.c.h.b16 %v503
      %v786 = vunpack.c.l.b16 %v504
      %v787 = vunpack.c.h.b16 %v504
      %v788 = vunpack.c.l.b16 %v505
      %v789 = vunpack.c.h.b16 %v505
      %v790 = vunpack.c.l.b16 %v506
      %v791 = vunpack.c.h.b16 %v506
      %v792 = vunpack.c.l.b16 %v507
      %v793 = vunpack.c.h.b16 %v507
      %v794 = vunpack.c.l.b16 %v508
      %v795 = vunpack.c.h.b16 %v508
      %v796 = vunpack.c.l.b16 %v509
      %v797 = vunpack.c.h.b16 %v509
      %v798 = vunpack.c.l.b16 %v510
      %v799 = vunpack.c.h.b16 %v510
      %v800 = vunpack.c.l.b16 %v511
      %v801 = vunpack.c.h.b16 %v511
      %v802 = vunpack.c.l.b16 %v512
      %v803 = vunpack.c.h.b16 %v512
      %v804 = vunpack.c.l.b16 %v513
      %v805 = vunpack.c.h.b16 %v513
      %v806 = vunpack.c.l.b16 %v514
      %v807 = vunpack.c.h.b16 %v514
      %v808 = vunpack.c.l.b16 %v515
      %v809 = vunpack.c.h.b16 %v515
      %v810 = vunpack.c.l.b16 %v516
      %v811 = vunpack.c.h.b16 %v516
      %v812 = vunpack.c.l.b16 %v517
      %v813 = vunpack.c.h.b16 %v517
      %v814 = vunpack.c.l.b16 %v518
      %v815 = vunpack.c.h.b16 %v518
      %v816 = vunpack.c.l.b16 %v519
      %v817 = vunpack.c.h.b16 %v519
      %v818 = vunpack.c.l.b16 %v520
      %v819 = vunpack.c.h.b16 %v520
      %v820 = vunpack.c.l.b16 %v521
      %v821 = vunpack.c.h.b16 %v521
      %v822 = vunpack.c.l.b16 %v522
      %v823 = vunpack.c.h.b16 %v522
      %v824 = vunpack.c.l.b16 %v523
      %v825 = vunpack.c.h.b16 %v523
      %v826 = vunpack.c.l.b16 %v524
      %v827 = vunpack.c.h.b16 %v524
      %v828 = vunpack.c.l.b16 %v525
      %v829 = vunpack.c.h.b16 %v525
      %v830 = vunpack.c.l.b16 %v526
      %v831 = vunpack.c.h.b16 %v526
      %v832 = vunpack.c.l.b16 %v527
      %v833 = vunpack.c.h.b16 %v527
      %v834 = vunpack.c.l.b16 %v528
      %v835 = vunpack.c.h.b16 %v528
      %v836 = vunpack.c.l.b16 %v529
      %v837 = vunpack.c.h.b16 %v529
      %v838 = vunpack.c.l.b16 %v530
      %v839 = vunpack.c.h.b16 %v530
      %v840 = vunpack.c.l.b16 %v531
      %v841 = vunpack.c.h.b16 %v531
      %v842 = vunpack.c.l.b16 %v532
      %v843 = vunpack.c.h.b16 %v532
      %v844 = vunpack.c.l.b16 %v533
      %v845 = vunpack.c.h.b16 %v533
      %v846 = vunpack.c.l.b16 %v534
      %v847 = vunpack.c.h.b16 %v534
      %v848 = vunpack.c.l.b16 %v535
      %v849 = vunpack.c.h.b16 %v535
      %v850 = vunpack.c.l.b16 %v536
      %v851 = vunpack.c.h.b16 %v536
      %v852 = vunpack.c.l.b16 %v537
      %v853 = vunpack.c.h.b16 %v537
      %v854 = vunpack.c.l.b16 %v538
      %v855 = vunpack.c.h.b16 %v538
      %v856 = vunpack.c.l.b16 %v539
      %v857 = vunpack.c.h.b16 %v539
      %v858 = vunpack.c.l.b16 %v540
      %v859 = vunpack.c.h.b16 %v540
      %v860 = vunpack.c.l.b16 %v541
      %v861 = vunpack.c.h.b16 %v541
      %v862 = vpack.c.b16 %v676, %v670
      %v863 = vpack.c.b16 %v677, %v671
      %v864 = vpack.c.b16 %v678, %v672
      %v865 = vpack.c.b16 %v679, %v673
      %v866 = vpack.c.b16 %v680, %v674
      %v867 = vpack.c.b16 %v681, %v675
      %v868 = vpack.c.b16 %v688, %v682
      %v869 = vpack.c.b16 %v689, %v683
      %v870 = vpack.c.b16 %v690, %v684
      %v871 = vpack.c.b16 %v691, %v685
      %v872 = vpack.c.b16 %v692, %v686
      %v873 = vpack.c.b16 %v693, %v687
      %v874 = vpack.c.b16 %v700, %v694
      %v875 = vpack.c.b16 %v701, %v695
      %v876 = vpack.c.b16 %v702, %v696
      %v877 = vpack.c.b16 %v703, %v697
      %v878 = vpack.c.b16 %v704, %v698
      %v879 = vpack.c.b16 %v705, %v699
      %v880 = vpack.c.b16 %v712, %v706
      %v881 = vpack.c.b16 %v713, %v707
      %v882 = vpack.c.b16 %v714, %v708
      %v883 = vpack.c.b16 %v715, %v709
      %v884 = vpack.c.b16 %v716, %v710
      %v885 = vpack.c.b16 %v717, %v711
      %v886 = vpack.c.b16 %v724, %v718
      %v887 = vpack.c.b16 %v725, %v719
      %v888 = vpack.c.b16 %v726, %v720
      %v889 = vpack.c.b16 %v727, %v721
      %v890 = vpack.c.b16 %v728, %v722
      %v891 = vpack.c.b16 %v729, %v723
      %v892 = vpack.c.b16 %v736, %v730
      %v893 = vpack.c.b16 %v737, %v731
      %v894 = vpack.c.b16 %v738, %v732
      %v895 = vpack.c.b16 %v739, %v733
      %v896 = vpack.c.b16 %v740, %v734
      %v897 = vpack.c.b16 %v741, %v735
      %v898 = vpack.c.b16 %v748, %v742
      %v899 = vpack.c.b16 %v749, %v743
      %v900 = vpack.c.b16 %v750, %v744
      %v901 = vpack.c.b16 %v751, %v745
      %v902 = vpack.c.b16 %v752, %v746
      %v903 = vpack.c.b16 %v753, %v747
      %v904 = vpack.c.b16 %v760, %v754
      %v905 = vpack.c.b16 %v761, %v755
      %v906 = vpack.c.b16 %v762, %v756
      %v907 = vpack.c.b16 %v763, %v757
      %v908 = vpack.c.b16 %v764, %v758
      %v909 = vpack.c.b16 %v765, %v759
      %v910 = vpack.c.b16 %v772, %v766
      %v911 = vpack.c.b16 %v773, %v767
      %v912 = vpack.c.b16 %v774, %v768
      %v913 = vpack.c.b16 %v775, %v769
      %v914 = vpack.c.b16 %v776, %v770
      %v915 = vpack.c.b16 %v777, %v771
      %v916 = vpack.c.b16 %v784, %v778
      %v917 = vpack.c.b16 %v785, %v779
      %v918 = vpack.c.b16 %v786, %v780
      %v919 = vpack.c.b16 %v787, %v781
      %v920 = vpack.c.b16 %v788, %v782
      %v921 = vpack.c.b16 %v789, %v783
      %v922 = vpack.c.b16 %v796, %v790
      %v923 = vpack.c.b16 %v797, %v791
      %v924 = vpack.c.b16 %v798, %v792
      %v925 = vpack.c.b16 %v799, %v793
      %v926 = vpack.c.b16 %v800, %v794
      %v927 = vpack.c.b16 %v801, %v795
      %v928 = vpack.c.b16 %v808, %v802
      %v929 = vpack.c.b16 %v809, %v803
      %v930 = vpack.c.b16 %v810, %v804
      %v931 = vpack.c.b16 %v811, %v805
      %v932 = vpack.c.b16 %v812, %v806
      %v933 = vpack.c.b16 %v813, %v807
      %v934 = vpack.c.b16 %v820, %v814
      %v935 = vpack.c.b16 %v821, %v815
      %v936 = vpack.c.b16 %v822, %v816
      %v937 = vpack.c.b16 %v823, %v817
      %v938 = vpack.c.b16 %v824, %v818
      %v939 = vpack.c.b16 %v825, %v819
      %v940 = vpack.c.b16 %v832, %v826
      %v941 = vpack.c.b16 %v833, %v827
      %v942 = vpack.c.b16 %v834, %v828
      %v943 = vpack.c.b16 %v835, %v829
      %v944 = vpack.c.b16 %v836, %v830
      %v945 = vpack.c.b16 %v837, %v831
      %v946 = vpack.c.b16 %v844, %v838
      %v947 = vpack.c.b16 %v845, %v839
      %v948 = vpack.c.b16 %v846, %v840
      %v949 = vpack.c.b16 %v847, %v841
      %v950 = vpack.c.b16 %v848, %v842
      %v951 = vpack.c.b16 %v849, %v843
      %v952 = vpack.c.b16 %v856, %v850
      %v953 = vpack.c.b16 %v857, %v851
      %v954 = vpack.c.b16 %v858, %v852
      %v955 = vpack.c.b16 %v859, %v853
      %v956 = vpack.c.b16 %v860, %v854
      %v957 = vpack.c.b16 %v861, %v855
      %1054 = vmatprep.subr.bf16.mxu0 %v863
      %1055 = vmatpush1.bf16.msra.mxu0 %v862
      %1056 = vmatprep.subr.bf16.mxu0 %v869
      %1057 = vmatpush1.bf16.msra.mxu0 %v868
      %1058 = vmatprep.subr.bf16.mxu0 %v875
      %1059 = vmatpush1.bf16.msra.mxu0 %v874
      %1060 = vmatprep.subr.bf16.mxu0 %v881
      %1061 = vmatpush1.bf16.msra.mxu0 %v880
      %1062 = vmatprep.subr.bf16.mxu0 %v887
      %1063 = vmatpush1.bf16.msra.mxu0 %v886
      %1064 = vmatprep.subr.bf16.mxu0 %v893
      %1065 = vmatpush1.bf16.msra.mxu0 %v892
      %1066 = vmatprep.subr.bf16.mxu0 %v899
      %1067 = vmatpush1.bf16.msra.mxu0 %v898
      %1068 = vmatprep.subr.bf16.mxu0 %v905
      %1069 = vmatpush1.bf16.msra.mxu0 %v904
      %1070 = vmatprep.subr.bf16.mxu0 %v911
      %1071 = vmatpush1.bf16.msra.mxu0 %v910
      %1072 = vmatprep.subr.bf16.mxu0 %v917
      %1073 = vmatpush1.bf16.msra.mxu0 %v916
      %1074 = vmatprep.subr.bf16.mxu0 %v923
      %1075 = vmatpush1.bf16.msra.mxu0 %v922
      %1076 = vmatprep.subr.bf16.mxu0 %v929
      %1077 = vmatpush1.bf16.msra.mxu0 %v928
      %1078 = vmatprep.subr.bf16.mxu0 %v935
      %1079 = vmatpush1.bf16.msra.mxu0 %v934
      %1080 = vmatprep.subr.bf16.mxu0 %v941
      %1081 = vmatpush1.bf16.msra.mxu0 %v940
      %1082 = vmatprep.subr.bf16.mxu0 %v947
      %1083 = vmatpush1.bf16.msra.mxu0 %v946
      %1084 = vmatprep.subr.bf16.mxu0 %v953
      %1085 = vmatpush1.bf16.msra.mxu0 %v952
      %1086 = vmatprep.mubr.bf16.mxu0 %v445
      %1087 = vmatmul.mubr.bf16.gmra.mrb[0].mxu0 %v444
      %v1088 = vpop.f32.mrb[0].mxu0
      %v1089 = vadd.f32 %v547, %v1088
      %v1090 = vpop.f32.mrb[0].mxu0
      %v1091 = vadd.f32 %v551, %v1090
      %v1092 = vpop.f32.mrb[0].mxu0
      %v1093 = vpop.f32.mrb[0].mxu0
      %1094 = vdwg.mxu0
      %1095 = vmatprep.subr.bf16.mxu0 %v865
      %1096 = vmatpush1.bf16.msra.mxu0 %v864
      %1097 = vmatprep.subr.bf16.mxu0 %v871
      %1098 = vmatpush1.bf16.msra.mxu0 %v870
      %1099 = vmatprep.subr.bf16.mxu0 %v877
      %1100 = vmatpush1.bf16.msra.mxu0 %v876
      %1101 = vmatprep.subr.bf16.mxu0 %v883
      %1102 = vmatpush1.bf16.msra.mxu0 %v882
      %1103 = vmatprep.subr.bf16.mxu0 %v889
      %1104 = vmatpush1.bf16.msra.mxu0 %v888
      %1105 = vmatprep.subr.bf16.mxu0 %v895
      %1106 = vmatpush1.bf16.msra.mxu0 %v894
      %1107 = vmatprep.subr.bf16.mxu0 %v901
      %1108 = vmatpush1.bf16.msra.mxu0 %v900
      %1109 = vmatprep.subr.bf16.mxu0 %v907
      %1110 = vmatpush1.bf16.msra.mxu0 %v906
      %1111 = vmatprep.subr.bf16.mxu0 %v913
      %1112 = vmatpush1.bf16.msra.mxu0 %v912
      %1113 = vmatprep.subr.bf16.mxu0 %v919
      %1114 = vmatpush1.bf16.msra.mxu0 %v918
      %1115 = vmatprep.subr.bf16.mxu0 %v925
      %1116 = vmatpush1.bf16.msra.mxu0 %v924
      %1117 = vmatprep.subr.bf16.mxu0 %v931
      %1118 = vmatpush1.bf16.msra.mxu0 %v930
      %1119 = vmatprep.subr.bf16.mxu0 %v937
      %1120 = vmatpush1.bf16.msra.mxu0 %v936
      %1121 = vmatprep.subr.bf16.mxu0 %v943
      %1122 = vmatpush1.bf16.msra.mxu0 %v942
      %1123 = vmatprep.subr.bf16.mxu0 %v949
      %1124 = vmatpush1.bf16.msra.mxu0 %v948
      %1125 = vmatprep.subr.bf16.mxu0 %v955
      %1126 = vmatpush1.bf16.msra.mxu0 %v954
      %1127 = vmatprep.mubr.bf16.mxu0 %v445
      %1128 = vmatmul.mubr.bf16.gmra.mrb[0].mxu0 %v444
      %v1129 = vpop.f32.mrb[0].mxu0
      %v1130 = vadd.f32 %v555, %v1129
      %v1131 = vpop.f32.mrb[0].mxu0
      %v1132 = vadd.f32 %v559, %v1131
      %v1133 = vpop.f32.mrb[0].mxu0
      %v1134 = vpop.f32.mrb[0].mxu0
      %1135 = vdwg.mxu0
      %1136 = vmatprep.subr.bf16.mxu0 %v867
      %1137 = vmatpush1.bf16.msra.mxu0 %v866
      %1138 = vmatprep.subr.bf16.mxu0 %v873
      %1139 = vmatpush1.bf16.msra.mxu0 %v872
      %1140 = vmatprep.subr.bf16.mxu0 %v879
      %1141 = vmatpush1.bf16.msra.mxu0 %v878
      %1142 = vmatprep.subr.bf16.mxu0 %v885
      %1143 = vmatpush1.bf16.msra.mxu0 %v884
      %1144 = vmatprep.subr.bf16.mxu0 %v891
      %1145 = vmatpush1.bf16.msra.mxu0 %v890
      %1146 = vmatprep.subr.bf16.mxu0 %v897
      %1147 = vmatpush1.bf16.msra.mxu0 %v896
      %1148 = vmatprep.subr.bf16.mxu0 %v903
      %1149 = vmatpush1.bf16.msra.mxu0 %v902
      %1150 = vmatprep.subr.bf16.mxu0 %v909
      %1151 = vmatpush1.bf16.msra.mxu0 %v908
      %1152 = vmatprep.subr.bf16.mxu0 %v915
      %1153 = vmatpush1.bf16.msra.mxu0 %v914
      %1154 = vmatprep.subr.bf16.mxu0 %v921
      %1155 = vmatpush1.bf16.msra.mxu0 %v920
      %1156 = vmatprep.subr.bf16.mxu0 %v927
      %1157 = vmatpush1.bf16.msra.mxu0 %v926
      %1158 = vmatprep.subr.bf16.mxu0 %v933
      %1159 = vmatpush1.bf16.msra.mxu0 %v932
      %1160 = vmatprep.subr.bf16.mxu0 %v939
      %1161 = vmatpush1.bf16.msra.mxu0 %v938
      %1162 = vmatprep.subr.bf16.mxu0 %v945
      %1163 = vmatpush1.bf16.msra.mxu0 %v944
      %1164 = vmatprep.subr.bf16.mxu0 %v951
      %1165 = vmatpush1.bf16.msra.mxu0 %v950
      %1166 = vmatprep.subr.bf16.mxu0 %v957
      %1167 = vmatpush1.bf16.msra.mxu0 %v956
      %1168 = vmatprep.mubr.bf16.mxu0 %v445
      %1169 = vmatmul.mubr.bf16.gmra.mrb[0].mxu0 %v444
      %v1170 = vpop.f32.mrb[0].mxu0
      %v1171 = vadd.f32 %v563, %v1170
      %v1172 = vpop.f32.mrb[0].mxu0
      %v1173 = vadd.f32 %v567, %v1172
      %v1174 = vpop.f32.mrb[0].mxu0
      %v1175 = vpop.f32.mrb[0].mxu0
      %1176 = vdwg.mxu0
      %v1177 = vpack.c.bf16 %v1089, %v1089
      %v1178 = vpack.c.bf16 %v1130, %v1130
      %v1179 = vpack.c.bf16 %v1171, %v1171
      %vm1180 = vcmask 523264
      %v1182 = vsel %vm1180, %v1177, 0
      %v1185 = vsel %vm1180, %v1178, 0
      %1187 = vmatprep.subr.bf16.mxu0 0
      %1188 = vmatpush1.bf16.xpose.msra.mxu0 %v1185
      %1189 = vmatprep.subr.bf16.mxu0 0
      %1190 = vmatpush1.bf16.xpose.msra.mxu0 0
      %1191 = vmatprep.subr.bf16.mxu0 0
      %1192 = vmatpush1.bf16.xpose.msra.mxu0 0
      %1193 = vmatprep.subr.bf16.mxu0 0
      %1194 = vmatpush1.bf16.xpose.msra.mxu0 0
      %1195 = vmatprep.subr.bf16.mxu0 0
      %1196 = vmatpush1.bf16.xpose.msra.mxu0 0
      %1197 = vmatprep.subr.bf16.mxu0 0
      %1198 = vmatpush1.bf16.xpose.msra.mxu0 0
      %1199 = vmatprep.subr.bf16.mxu0 0
      %1200 = vmatpush1.bf16.xpose.msra.mxu0 0
      %1201 = vmatprep.subr.bf16.mxu0 0
      %1202 = vmatpush1.bf16.xpose.msra.mxu0 0
      %1203 = vmatprep.subr.bf16.mxu0 0
      %1204 = vmatpush1.bf16.xpose.msra.mxu0 0
      %1205 = vmatprep.subr.bf16.mxu0 0
      %1206 = vmatpush1.bf16.xpose.msra.mxu0 0
      %1207 = vmatprep.subr.bf16.mxu0 0
      %1208 = vmatpush1.bf16.xpose.msra.mxu0 0
      %1209 = vmatprep.subr.bf16.mxu0 0
      %1210 = vmatpush1.bf16.xpose.msra.mxu0 0
      %1211 = vmatprep.subr.bf16.mxu0 0
      %1212 = vmatpush1.bf16.xpose.msra.mxu0 0
      %1213 = vmatprep.subr.bf16.mxu0 0
      %1214 = vmatpush1.bf16.xpose.msra.mxu0 0
      %1215 = vmatprep.subr.bf16.mxu0 0
      %1216 = vmatpush1.bf16.xpose.msra.mxu0 0
      %1217 = vmatprep.subr.bf16.mxu0 0
      %1218 = vmatpush1.bf16.xpose.msra.mxu0 0
      %1219 = vmatprep.mubr.bf16.mxu0 0
      %1220 = vmatmul.mubr.bf16.gmra.mrb[0].mxu0 %v1182
      %v1221 = vpop.f32.mrb[0].mxu0
      %v1222 = vadd.f32 0.0, %v1221
      %v1223 = vpop.f32.mrb[0].mxu0
      %v1224 = vpop.f32.mrb[0].mxu0
      %v1225 = vpop.f32.mrb[0].mxu0
      %1226 = vdwg.mxu0
      %v1227 = vmul.f32 %v1222, 0.125
      %vm1228 = vcmask 64512
      %v1229 = vsel %vm1228, %v1227, -inf
      %1230 = vmax.xlane.f32.xlu0 %v1229
      %v1231 = vpop.xlane.xlu0 %1230
      %v1232 = vsub.f32 %v1227, %v1231
      %v1233 = vmul.f32 %v1232, 1.442695
      %v1234 = vpow.pop %v1233
      %v1235 = vsel %vm1228, %v1234, 0.0
      %1236 = vadd.xlane.f32.xlu0 %v1235
      %v1237 = vpop.xlane.xlu0 %1236
      %v1238 = vpack.c.bf16 %v1234, %v1234
      %v1240 = vsel %vm1228, %v1238, 0
      %vm1242 = vcmask 1043456
      %v1244 = vsel %vm1242, %v1179, 0
      %1246 = vmatprep.subr.bf16.mxu0 0
      %1247 = vmatpush1.bf16.msra.mxu0 %v1244
      %1248 = vmatprep.subr.bf16.mxu0 0
      %1249 = vmatpush1.bf16.msra.mxu0 0
      %1250 = vmatprep.subr.bf16.mxu0 0
      %1251 = vmatpush1.bf16.msra.mxu0 0
      %1252 = vmatprep.subr.bf16.mxu0 0
      %1253 = vmatpush1.bf16.msra.mxu0 0
      %1254 = vmatprep.subr.bf16.mxu0 0
      %1255 = vmatpush1.bf16.msra.mxu0 0
      %1256 = vmatprep.subr.bf16.mxu0 0
      %1257 = vmatpush1.bf16.msra.mxu0 0
      %1258 = vmatprep.subr.bf16.mxu0 0
      %1259 = vmatpush1.bf16.msra.mxu0 0
      %1260 = vmatprep.subr.bf16.mxu0 0
      %1261 = vmatpush1.bf16.msra.mxu0 0
      %1262 = vmatprep.subr.bf16.mxu0 0
      %1263 = vmatpush1.bf16.msra.mxu0 0
      %1264 = vmatprep.subr.bf16.mxu0 0
      %1265 = vmatpush1.bf16.msra.mxu0 0
      %1266 = vmatprep.subr.bf16.mxu0 0
      %1267 = vmatpush1.bf16.msra.mxu0 0
      %1268 = vmatprep.subr.bf16.mxu0 0
      %1269 = vmatpush1.bf16.msra.mxu0 0
      %1270 = vmatprep.subr.bf16.mxu0 0
      %1271 = vmatpush1.bf16.msra.mxu0 0
      %1272 = vmatprep.subr.bf16.mxu0 0
      %1273 = vmatpush1.bf16.msra.mxu0 0
      %1274 = vmatprep.subr.bf16.mxu0 0
      %1275 = vmatpush1.bf16.msra.mxu0 0
      %1276 = vmatprep.subr.bf16.mxu0 0
      %1277 = vmatpush1.bf16.msra.mxu0 0
      %1278 = vmatprep.mubr.bf16.mxu0 0
      %1279 = vmatmul.mubr.bf16.gmra.mrb[0].mxu0 %v1240
      %v1280 = vpop.f32.mrb[0].mxu0
      %v1281 = vadd.f32 0.0, %v1280
      %v1282 = vpop.f32.mrb[0].mxu0
      %v1283 = vpop.f32.mrb[0].mxu0
      %v1284 = vpop.f32.mrb[0].mxu0
      %1285 = vdwg.mxu0
      %v1286 = vrcp.pop %v1237
      %v1287 = vmul.f32 %v1281, %v1286
      %1289 = vrot.lane.b32.xlu0 %v1177, 64
      %v1290 = vpop.permute.xlu0 %1289
      %1292 = vrot.lane.b32.xlu0 %v1178, 64
      %v1293 = vpop.permute.xlu0 %1292
      %v1295 = vsel %vm1180, %v1290, 0
      %v1298 = vsel %vm1180, %v1293, 0
      %1300 = vmatprep.subr.bf16.mxu0 0
      %1301 = vmatpush1.bf16.xpose.msra.mxu0 %v1298
      %1302 = vmatprep.subr.bf16.mxu0 0
      %1303 = vmatpush1.bf16.xpose.msra.mxu0 0
      %1304 = vmatprep.subr.bf16.mxu0 0
      %1305 = vmatpush1.bf16.xpose.msra.mxu0 0
      %1306 = vmatprep.subr.bf16.mxu0 0
      %1307 = vmatpush1.bf16.xpose.msra.mxu0 0
      %1308 = vmatprep.subr.bf16.mxu0 0
      %1309 = vmatpush1.bf16.xpose.msra.mxu0 0
      %1310 = vmatprep.subr.bf16.mxu0 0
      %1311 = vmatpush1.bf16.xpose.msra.mxu0 0
      %1312 = vmatprep.subr.bf16.mxu0 0
      %1313 = vmatpush1.bf16.xpose.msra.mxu0 0
      %1314 = vmatprep.subr.bf16.mxu0 0
      %1315 = vmatpush1.bf16.xpose.msra.mxu0 0
      %1316 = vmatprep.subr.bf16.mxu0 0
      %1317 = vmatpush1.bf16.xpose.msra.mxu0 0
      %1318 = vmatprep.subr.bf16.mxu0 0
      %1319 = vmatpush1.bf16.xpose.msra.mxu0 0
      %1320 = vmatprep.subr.bf16.mxu0 0
      %1321 = vmatpush1.bf16.xpose.msra.mxu0 0
      %1322 = vmatprep.subr.bf16.mxu0 0
      %1323 = vmatpush1.bf16.xpose.msra.mxu0 0
      %1324 = vmatprep.subr.bf16.mxu0 0
      %1325 = vmatpush1.bf16.xpose.msra.mxu0 0
      %1326 = vmatprep.subr.bf16.mxu0 0
      %1327 = vmatpush1.bf16.xpose.msra.mxu0 0
      %1328 = vmatprep.subr.bf16.mxu0 0
      %1329 = vmatpush1.bf16.xpose.msra.mxu0 0
      %1330 = vmatprep.subr.bf16.mxu0 0
      %1331 = vmatpush1.bf16.xpose.msra.mxu0 0
      %1332 = vmatprep.mubr.bf16.mxu0 0
      %1333 = vmatmul.mubr.bf16.gmra.mrb[0].mxu0 %v1295
      %v1334 = vpop.f32.mrb[0].mxu0
      %v1335 = vadd.f32 0.0, %v1334
      %v1336 = vpop.f32.mrb[0].mxu0
      %v1337 = vpop.f32.mrb[0].mxu0
      %v1338 = vpop.f32.mrb[0].mxu0
      %1339 = vdwg.mxu0
      %v1340 = vmul.f32 %v1335, 0.125
      %v1341 = vsel %vm1228, %v1340, -inf
      %1342 = vmax.xlane.f32.xlu0 %v1341
      %v1343 = vpop.xlane.xlu0 %1342
      %v1344 = vsub.f32 %v1340, %v1343
      %v1345 = vmul.f32 %v1344, 1.442695
      %v1346 = vpow.pop %v1345
      %v1347 = vsel %vm1228, %v1346, 0.0
      %1348 = vadd.xlane.f32.xlu0 %v1347
      %v1349 = vpop.xlane.xlu0 %1348
      %v1350 = vpack.c.bf16 %v1346, %v1346
      %1352 = vrot.lane.b32.xlu0 %v1179, 64
      %v1353 = vpop.permute.xlu0 %1352
      %v1355 = vsel %vm1228, %v1350, 0
      %v1358 = vsel %vm1242, %v1353, 0
      %1360 = vmatprep.subr.bf16.mxu0 0
      %1361 = vmatpush1.bf16.msra.mxu0 %v1358
      %1362 = vmatprep.subr.bf16.mxu0 0
      %1363 = vmatpush1.bf16.msra.mxu0 0
      %1364 = vmatprep.subr.bf16.mxu0 0
      %1365 = vmatpush1.bf16.msra.mxu0 0
      %1366 = vmatprep.subr.bf16.mxu0 0
      %1367 = vmatpush1.bf16.msra.mxu0 0
      %1368 = vmatprep.subr.bf16.mxu0 0
      %1369 = vmatpush1.bf16.msra.mxu0 0
      %1370 = vmatprep.subr.bf16.mxu0 0
      %1371 = vmatpush1.bf16.msra.mxu0 0
      %1372 = vmatprep.subr.bf16.mxu0 0
      %1373 = vmatpush1.bf16.msra.mxu0 0
      %1374 = vmatprep.subr.bf16.mxu0 0
      %1375 = vmatpush1.bf16.msra.mxu0 0
      %1376 = vmatprep.subr.bf16.mxu0 0
      %1377 = vmatpush1.bf16.msra.mxu0 0
      %1378 = vmatprep.subr.bf16.mxu0 0
      %1379 = vmatpush1.bf16.msra.mxu0 0
      %1380 = vmatprep.subr.bf16.mxu0 0
      %1381 = vmatpush1.bf16.msra.mxu0 0
      %1382 = vmatprep.subr.bf16.mxu0 0
      %1383 = vmatpush1.bf16.msra.mxu0 0
      %1384 = vmatprep.subr.bf16.mxu0 0
      %1385 = vmatpush1.bf16.msra.mxu0 0
      %1386 = vmatprep.subr.bf16.mxu0 0
      %1387 = vmatpush1.bf16.msra.mxu0 0
      %1388 = vmatprep.subr.bf16.mxu0 0
      %1389 = vmatpush1.bf16.msra.mxu0 0
      %1390 = vmatprep.subr.bf16.mxu0 0
      %1391 = vmatpush1.bf16.msra.mxu0 0
      %1392 = vmatprep.mubr.bf16.mxu0 0
      %1393 = vmatmul.mubr.bf16.gmra.mrb[0].mxu0 %v1355
      %v1394 = vpop.f32.mrb[0].mxu0
      %v1395 = vadd.f32 0.0, %v1394
      %v1396 = vpop.f32.mrb[0].mxu0
      %v1397 = vpop.f32.mrb[0].mxu0
      %v1398 = vpop.f32.mrb[0].mxu0
      %1399 = vdwg.mxu0
      %v1400 = vrcp.pop %v1349
      %v1401 = vmul.f32 %v1395, %v1400
      %v1402 = vpack.c.bf16 %v1091, %v1091
      %v1403 = vpack.c.bf16 %v1132, %v1132
      %v1404 = vpack.c.bf16 %v1173, %v1173
      %v1406 = vsel %vm1180, %v1402, 0
      %v1409 = vsel %vm1180, %v1403, 0
      %1411 = vmatprep.subr.bf16.mxu0 0
      %1412 = vmatpush1.bf16.xpose.msra.mxu0 %v1409
      %1413 = vmatprep.subr.bf16.mxu0 0
      %1414 = vmatpush1.bf16.xpose.msra.mxu0 0
      %1415 = vmatprep.subr.bf16.mxu0 0
      %1416 = vmatpush1.bf16.xpose.msra.mxu0 0
      %1417 = vmatprep.subr.bf16.mxu0 0
      %1418 = vmatpush1.bf16.xpose.msra.mxu0 0
      %1419 = vmatprep.subr.bf16.mxu0 0
      %1420 = vmatpush1.bf16.xpose.msra.mxu0 0
      %1421 = vmatprep.subr.bf16.mxu0 0
      %1422 = vmatpush1.bf16.xpose.msra.mxu0 0
      %1423 = vmatprep.subr.bf16.mxu0 0
      %1424 = vmatpush1.bf16.xpose.msra.mxu0 0
      %1425 = vmatprep.subr.bf16.mxu0 0
      %1426 = vmatpush1.bf16.xpose.msra.mxu0 0
      %1427 = vmatprep.subr.bf16.mxu0 0
      %1428 = vmatpush1.bf16.xpose.msra.mxu0 0
      %1429 = vmatprep.subr.bf16.mxu0 0
      %1430 = vmatpush1.bf16.xpose.msra.mxu0 0
      %1431 = vmatprep.subr.bf16.mxu0 0
      %1432 = vmatpush1.bf16.xpose.msra.mxu0 0
      %1433 = vmatprep.subr.bf16.mxu0 0
      %1434 = vmatpush1.bf16.xpose.msra.mxu0 0
      %1435 = vmatprep.subr.bf16.mxu0 0
      %1436 = vmatpush1.bf16.xpose.msra.mxu0 0
      %1437 = vmatprep.subr.bf16.mxu0 0
      %1438 = vmatpush1.bf16.xpose.msra.mxu0 0
      %1439 = vmatprep.subr.bf16.mxu0 0
      %1440 = vmatpush1.bf16.xpose.msra.mxu0 0
      %1441 = vmatprep.subr.bf16.mxu0 0
      %1442 = vmatpush1.bf16.xpose.msra.mxu0 0
      %1443 = vmatprep.mubr.bf16.mxu0 0
      %1444 = vmatmul.mubr.bf16.gmra.mrb[0].mxu0 %v1406
      %v1445 = vpop.f32.mrb[0].mxu0
      %v1446 = vadd.f32 0.0, %v1445
      %v1447 = vpop.f32.mrb[0].mxu0
      %v1448 = vpop.f32.mrb[0].mxu0
      %v1449 = vpop.f32.mrb[0].mxu0
      %1450 = vdwg.mxu0
      %v1451 = vmul.f32 %v1446, 0.125
      %v1452 = vsel %vm1228, %v1451, -inf
      %1453 = vmax.xlane.f32.xlu0 %v1452
      %v1454 = vpop.xlane.xlu0 %1453
      %v1455 = vsub.f32 %v1451, %v1454
      %v1456 = vmul.f32 %v1455, 1.442695
      %v1457 = vpow.pop %v1456
      %v1458 = vsel %vm1228, %v1457, 0.0
      %1459 = vadd.xlane.f32.xlu0 %v1458
      %v1460 = vpop.xlane.xlu0 %1459
      %v1461 = vpack.c.bf16 %v1457, %v1457
      %v1463 = vsel %vm1228, %v1461, 0
      %v1466 = vsel %vm1242, %v1404, 0
      %1468 = vmatprep.subr.bf16.mxu0 0
      %1469 = vmatpush1.bf16.msra.mxu0 %v1466
      %1470 = vmatprep.subr.bf16.mxu0 0
      %1471 = vmatpush1.bf16.msra.mxu0 0
      %1472 = vmatprep.subr.bf16.mxu0 0
      %1473 = vmatpush1.bf16.msra.mxu0 0
      %1474 = vmatprep.subr.bf16.mxu0 0
      %1475 = vmatpush1.bf16.msra.mxu0 0
      %1476 = vmatprep.subr.bf16.mxu0 0
      %1477 = vmatpush1.bf16.msra.mxu0 0
      %1478 = vmatprep.subr.bf16.mxu0 0
      %1479 = vmatpush1.bf16.msra.mxu0 0
      %1480 = vmatprep.subr.bf16.mxu0 0
      %1481 = vmatpush1.bf16.msra.mxu0 0
      %1482 = vmatprep.subr.bf16.mxu0 0
      %1483 = vmatpush1.bf16.msra.mxu0 0
      %1484 = vmatprep.subr.bf16.mxu0 0
      %1485 = vmatpush1.bf16.msra.mxu0 0
      %1486 = vmatprep.subr.bf16.mxu0 0
      %1487 = vmatpush1.bf16.msra.mxu0 0
      %1488 = vmatprep.subr.bf16.mxu0 0
      %1489 = vmatpush1.bf16.msra.mxu0 0
      %1490 = vmatprep.subr.bf16.mxu0 0
      %1491 = vmatpush1.bf16.msra.mxu0 0
      %1492 = vmatprep.subr.bf16.mxu0 0
      %1493 = vmatpush1.bf16.msra.mxu0 0
      %1494 = vmatprep.subr.bf16.mxu0 0
      %1495 = vmatpush1.bf16.msra.mxu0 0
      %1496 = vmatprep.subr.bf16.mxu0 0
      %1497 = vmatpush1.bf16.msra.mxu0 0
      %1498 = vmatprep.subr.bf16.mxu0 0
      %1499 = vmatpush1.bf16.msra.mxu0 0
      %1500 = vmatprep.mubr.bf16.mxu0 0
      %1501 = vmatmul.mubr.bf16.gmra.mrb[0].mxu0 %v1463
      %v1502 = vpop.f32.mrb[0].mxu0
      %v1503 = vadd.f32 0.0, %v1502
      %v1504 = vpop.f32.mrb[0].mxu0
      %v1505 = vpop.f32.mrb[0].mxu0
      %v1506 = vpop.f32.mrb[0].mxu0
      %1507 = vdwg.mxu0
      %v1508 = vrcp.pop %v1460
      %v1509 = vmul.f32 %v1503, %v1508
      %1511 = vrot.lane.b32.xlu0 %v1402, 64
      %v1512 = vpop.permute.xlu0 %1511
      %1514 = vrot.lane.b32.xlu0 %v1403, 64
      %v1515 = vpop.permute.xlu0 %1514
      %v1517 = vsel %vm1180, %v1512, 0
      %v1520 = vsel %vm1180, %v1515, 0
      %1522 = vmatprep.subr.bf16.mxu0 0
      %1523 = vmatpush1.bf16.xpose.msra.mxu0 %v1520
      %1524 = vmatprep.subr.bf16.mxu0 0
      %1525 = vmatpush1.bf16.xpose.msra.mxu0 0
      %1526 = vmatprep.subr.bf16.mxu0 0
      %1527 = vmatpush1.bf16.xpose.msra.mxu0 0
      %1528 = vmatprep.subr.bf16.mxu0 0
      %1529 = vmatpush1.bf16.xpose.msra.mxu0 0
      %1530 = vmatprep.subr.bf16.mxu0 0
      %1531 = vmatpush1.bf16.xpose.msra.mxu0 0
      %1532 = vmatprep.subr.bf16.mxu0 0
      %1533 = vmatpush1.bf16.xpose.msra.mxu0 0
      %1534 = vmatprep.subr.bf16.mxu0 0
      %1535 = vmatpush1.bf16.xpose.msra.mxu0 0
      %1536 = vmatprep.subr.bf16.mxu0 0
      %1537 = vmatpush1.bf16.xpose.msra.mxu0 0
      %1538 = vmatprep.subr.bf16.mxu0 0
      %1539 = vmatpush1.bf16.xpose.msra.mxu0 0
      %1540 = vmatprep.subr.bf16.mxu0 0
      %1541 = vmatpush1.bf16.xpose.msra.mxu0 0
      %1542 = vmatprep.subr.bf16.mxu0 0
      %1543 = vmatpush1.bf16.xpose.msra.mxu0 0
      %1544 = vmatprep.subr.bf16.mxu0 0
      %1545 = vmatpush1.bf16.xpose.msra.mxu0 0
      %1546 = vmatprep.subr.bf16.mxu0 0
      %1547 = vmatpush1.bf16.xpose.msra.mxu0 0
      %1548 = vmatprep.subr.bf16.mxu0 0
      %1549 = vmatpush1.bf16.xpose.msra.mxu0 0
      %1550 = vmatprep.subr.bf16.mxu0 0
      %1551 = vmatpush1.bf16.xpose.msra.mxu0 0
      %1552 = vmatprep.subr.bf16.mxu0 0
      %1553 = vmatpush1.bf16.xpose.msra.mxu0 0
      %1554 = vmatprep.mubr.bf16.mxu0 0
      %1555 = vmatmul.mubr.bf16.gmra.mrb[0].mxu0 %v1517
      %v1556 = vpop.f32.mrb[0].mxu0
      %v1557 = vadd.f32 0.0, %v1556
      %v1558 = vpop.f32.mrb[0].mxu0
      %v1559 = vpop.f32.mrb[0].mxu0
      %v1560 = vpop.f32.mrb[0].mxu0
      %1561 = vdwg.mxu0
      %v1562 = vmul.f32 %v1557, 0.125
      %v1563 = vsel %vm1228, %v1562, -inf
      %1564 = vmax.xlane.f32.xlu0 %v1563
      %v1565 = vpop.xlane.xlu0 %1564
      %v1566 = vsub.f32 %v1562, %v1565
      %v1567 = vmul.f32 %v1566, 1.442695
      %v1568 = vpow.pop %v1567
      %v1569 = vsel %vm1228, %v1568, 0.0
      %1570 = vadd.xlane.f32.xlu0 %v1569
      %v1571 = vpop.xlane.xlu0 %1570
      %v1572 = vpack.c.bf16 %v1568, %v1568
      %1574 = vrot.lane.b32.xlu0 %v1404, 64
      %v1575 = vpop.permute.xlu0 %1574
      %v1577 = vsel %vm1228, %v1572, 0
      %v1580 = vsel %vm1242, %v1575, 0
      %1582 = vmatprep.subr.bf16.mxu0 0
      %1583 = vmatpush1.bf16.msra.mxu0 %v1580
      %1584 = vmatprep.subr.bf16.mxu0 0
      %1585 = vmatpush1.bf16.msra.mxu0 0
      %1586 = vmatprep.subr.bf16.mxu0 0
      %1587 = vmatpush1.bf16.msra.mxu0 0
      %1588 = vmatprep.subr.bf16.mxu0 0
      %1589 = vmatpush1.bf16.msra.mxu0 0
      %1590 = vmatprep.subr.bf16.mxu0 0
      %1591 = vmatpush1.bf16.msra.mxu0 0
      %1592 = vmatprep.subr.bf16.mxu0 0
      %1593 = vmatpush1.bf16.msra.mxu0 0
      %1594 = vmatprep.subr.bf16.mxu0 0
      %1595 = vmatpush1.bf16.msra.mxu0 0
      %1596 = vmatprep.subr.bf16.mxu0 0
      %1597 = vmatpush1.bf16.msra.mxu0 0
      %1598 = vmatprep.subr.bf16.mxu0 0
      %1599 = vmatpush1.bf16.msra.mxu0 0
      %1600 = vmatprep.subr.bf16.mxu0 0
      %1601 = vmatpush1.bf16.msra.mxu0 0
      %1602 = vmatprep.subr.bf16.mxu0 0
      %1603 = vmatpush1.bf16.msra.mxu0 0
      %1604 = vmatprep.subr.bf16.mxu0 0
      %1605 = vmatpush1.bf16.msra.mxu0 0
      %1606 = vmatprep.subr.bf16.mxu0 0
      %1607 = vmatpush1.bf16.msra.mxu0 0
      %1608 = vmatprep.subr.bf16.mxu0 0
      %1609 = vmatpush1.bf16.msra.mxu0 0
      %1610 = vmatprep.subr.bf16.mxu0 0
      %1611 = vmatpush1.bf16.msra.mxu0 0
      %1612 = vmatprep.subr.bf16.mxu0 0
      %1613 = vmatpush1.bf16.msra.mxu0 0
      %1614 = vmatprep.mubr.bf16.mxu0 0
      %1615 = vmatmul.mubr.bf16.gmra.mrb[0].mxu0 %v1577
      %v1616 = vpop.f32.mrb[0].mxu0
      %v1617 = vadd.f32 0.0, %v1616
      %v1618 = vpop.f32.mrb[0].mxu0
      %v1619 = vpop.f32.mrb[0].mxu0
      %v1620 = vpop.f32.mrb[0].mxu0
      %1621 = vdwg.mxu0
      %v1622 = vrcp.pop %v1571
      %v1623 = vmul.f32 %v1617, %v1622
      %1625 = vrot.lane.b32.xlu0 %v1401, 64
      %v1626 = vpop.permute.xlu0 %1625
      %1629 = vrot.lane.b32.xlu0 %v1623, 64
      %v1630 = vpop.permute.xlu0 %1629
      %v1632 = vsel %vm1180, %v1287, %v1626
      %v1633 = vsel %vm1180, %v1509, %v1630
      %v1634 = vpack.c.bf16 %v1632, %v1632
      %v1635 = vpack.c.bf16 %v1633, %v1633
      %v1636 = vld [vmem:[%s3] sm:$0xff]
      %v1637 = vld [vmem:[%s3 + $0x8] sm:$0xff]
      %v1638 = vld [vmem:[%s3 + $0x10] sm:$0xff]
      %v1639 = vld [vmem:[%s3 + $0x18] sm:$0xff]
      %v1640 = vld [vmem:[%s3 + $0x20] sm:$0xff]
      %v1641 = vld [vmem:[%s3 + $0x28] sm:$0xff]
      %v1642 = vld [vmem:[%s3 + $0x30] sm:$0xff]
      %v1643 = vld [vmem:[%s3 + $0x38] sm:$0xff]
      %v1644 = vld [vmem:[%s3 + $0x40] sm:$0xff]
      %v1645 = vld [vmem:[%s3 + $0x48] sm:$0xff]
      %v1646 = vld [vmem:[%s3 + $0x50] sm:$0xff]
      %v1647 = vld [vmem:[%s3 + $0x58] sm:$0xff]
      %v1648 = vld [vmem:[%s3 + $0x60] sm:$0xff]
      %v1649 = vld [vmem:[%s3 + $0x68] sm:$0xff]
      %v1650 = vld [vmem:[%s3 + $0x70] sm:$0xff]
      %v1651 = vld [vmem:[%s3 + $0x78] sm:$0xff]
      %v1652 = vld [vmem:[%s3 + $0x80] sm:$0xff]
      %v1653 = vld [vmem:[%s3 + $0x88] sm:$0xff]
      %v1654 = vld [vmem:[%s3 + $0x90] sm:$0xff]
      %v1655 = vld [vmem:[%s3 + $0x98] sm:$0xff]
      %v1656 = vld [vmem:[%s3 + $0xa0] sm:$0xff]
      %v1657 = vld [vmem:[%s3 + $0xa8] sm:$0xff]
      %v1658 = vld [vmem:[%s3 + $0xb0] sm:$0xff]
      %v1659 = vld [vmem:[%s3 + $0xb8] sm:$0xff]
      %v1660 = vld [vmem:[%s3 + $0xc0] sm:$0xff]
      %v1661 = vld [vmem:[%s3 + $0xc8] sm:$0xff]
      %v1662 = vld [vmem:[%s3 + $0xd0] sm:$0xff]
      %v1663 = vld [vmem:[%s3 + $0xd8] sm:$0xff]
      %v1664 = vld [vmem:[%s3 + $0xe0] sm:$0xff]
      %v1665 = vld [vmem:[%s3 + $0xe8] sm:$0xff]
      %v1666 = vld [vmem:[%s3 + $0xf0] sm:$0xff]
      %v1667 = vld [vmem:[%s3 + $0xf8] sm:$0xff]
      %v1668 = vld [vmem:[%s4] sm:$0x3]
      %v1670 = vlaneseq
      %v1671 = vshrl.u32 %v1670, 7
      %v1672 = vsub.s32 0, %v1671
      %v1673 = vrot.slane %v1668, %v1672
      %v1674 = vlaneseq
      %v1675 = vshrl.u32 %v1674, 7
      %v1676 = vsub.s32 1, %v1675
      %v1677 = vrot.slane %v1668, %v1676
      %v1712 = vunpack.c.l.b16 %v1636
      %v1713 = vunpack.c.h.b16 %v1636
      %v1714 = vunpack.c.l.b16 %v1637
      %v1715 = vunpack.c.h.b16 %v1637
      %v1716 = vunpack.c.l.b16 %v1638
      %v1717 = vunpack.c.h.b16 %v1638
      %v1718 = vunpack.c.l.b16 %v1639
      %v1719 = vunpack.c.h.b16 %v1639
      %v1720 = vunpack.c.l.b16 %v1640
      %v1721 = vunpack.c.h.b16 %v1640
      %v1722 = vunpack.c.l.b16 %v1641
      %v1723 = vunpack.c.h.b16 %v1641
      %v1724 = vunpack.c.l.b16 %v1642
      %v1725 = vunpack.c.h.b16 %v1642
      %v1726 = vunpack.c.l.b16 %v1643
      %v1727 = vunpack.c.h.b16 %v1643
      %v1728 = vunpack.c.l.b16 %v1644
      %v1729 = vunpack.c.h.b16 %v1644
      %v1730 = vunpack.c.l.b16 %v1645
      %v1731 = vunpack.c.h.b16 %v1645
      %v1732 = vunpack.c.l.b16 %v1646
      %v1733 = vunpack.c.h.b16 %v1646
      %v1734 = vunpack.c.l.b16 %v1647
      %v1735 = vunpack.c.h.b16 %v1647
      %v1736 = vunpack.c.l.b16 %v1648
      %v1737 = vunpack.c.h.b16 %v1648
      %v1738 = vunpack.c.l.b16 %v1649
      %v1739 = vunpack.c.h.b16 %v1649
      %v1740 = vunpack.c.l.b16 %v1650
      %v1741 = vunpack.c.h.b16 %v1650
      %v1742 = vunpack.c.l.b16 %v1651
      %v1743 = vunpack.c.h.b16 %v1651
      %v1744 = vunpack.c.l.b16 %v1652
      %v1745 = vunpack.c.h.b16 %v1652
      %v1746 = vunpack.c.l.b16 %v1653
      %v1747 = vunpack.c.h.b16 %v1653
      %v1748 = vunpack.c.l.b16 %v1654
      %v1749 = vunpack.c.h.b16 %v1654
      %v1750 = vunpack.c.l.b16 %v1655
      %v1751 = vunpack.c.h.b16 %v1655
      %v1752 = vunpack.c.l.b16 %v1656
      %v1753 = vunpack.c.h.b16 %v1656
      %v1754 = vunpack.c.l.b16 %v1657
      %v1755 = vunpack.c.h.b16 %v1657
      %v1756 = vunpack.c.l.b16 %v1658
      %v1757 = vunpack.c.h.b16 %v1658
      %v1758 = vunpack.c.l.b16 %v1659
      %v1759 = vunpack.c.h.b16 %v1659
      %v1760 = vunpack.c.l.b16 %v1660
      %v1761 = vunpack.c.h.b16 %v1660
      %v1762 = vunpack.c.l.b16 %v1661
      %v1763 = vunpack.c.h.b16 %v1661
      %v1764 = vunpack.c.l.b16 %v1662
      %v1765 = vunpack.c.h.b16 %v1662
      %v1766 = vunpack.c.l.b16 %v1663
      %v1767 = vunpack.c.h.b16 %v1663
      %v1768 = vunpack.c.l.b16 %v1664
      %v1769 = vunpack.c.h.b16 %v1664
      %v1770 = vunpack.c.l.b16 %v1665
      %v1771 = vunpack.c.h.b16 %v1665
      %v1772 = vunpack.c.l.b16 %v1666
      %v1773 = vunpack.c.h.b16 %v1666
      %v1774 = vunpack.c.l.b16 %v1667
      %v1775 = vunpack.c.h.b16 %v1667
      %v1776 = vpack.c.b16 %v1714, %v1712
      %v1777 = vpack.c.b16 %v1715, %v1713
      %v1778 = vpack.c.b16 %v1718, %v1716
      %v1779 = vpack.c.b16 %v1719, %v1717
      %v1780 = vpack.c.b16 %v1722, %v1720
      %v1781 = vpack.c.b16 %v1723, %v1721
      %v1782 = vpack.c.b16 %v1726, %v1724
      %v1783 = vpack.c.b16 %v1727, %v1725
      %v1784 = vpack.c.b16 %v1730, %v1728
      %v1785 = vpack.c.b16 %v1731, %v1729
      %v1786 = vpack.c.b16 %v1734, %v1732
      %v1787 = vpack.c.b16 %v1735, %v1733
      %v1788 = vpack.c.b16 %v1738, %v1736
      %v1789 = vpack.c.b16 %v1739, %v1737
      %v1790 = vpack.c.b16 %v1742, %v1740
      %v1791 = vpack.c.b16 %v1743, %v1741
      %v1792 = vpack.c.b16 %v1746, %v1744
      %v1793 = vpack.c.b16 %v1747, %v1745
      %v1794 = vpack.c.b16 %v1750, %v1748
      %v1795 = vpack.c.b16 %v1751, %v1749
      %v1796 = vpack.c.b16 %v1754, %v1752
      %v1797 = vpack.c.b16 %v1755, %v1753
      %v1798 = vpack.c.b16 %v1758, %v1756
      %v1799 = vpack.c.b16 %v1759, %v1757
      %v1800 = vpack.c.b16 %v1762, %v1760
      %v1801 = vpack.c.b16 %v1763, %v1761
      %v1802 = vpack.c.b16 %v1766, %v1764
      %v1803 = vpack.c.b16 %v1767, %v1765
      %v1804 = vpack.c.b16 %v1770, %v1768
      %v1805 = vpack.c.b16 %v1771, %v1769
      %v1806 = vpack.c.b16 %v1774, %v1772
      %v1807 = vpack.c.b16 %v1775, %v1773
      %1840 = vmatprep.subr.bf16.mxu0 %v1777
      %1841 = vmatpush1.bf16.msra.mxu0 %v1776
      %1842 = vmatprep.subr.bf16.mxu0 %v1779
      %1843 = vmatpush1.bf16.msra.mxu0 %v1778
      %1844 = vmatprep.subr.bf16.mxu0 %v1781
      %1845 = vmatpush1.bf16.msra.mxu0 %v1780
      %1846 = vmatprep.subr.bf16.mxu0 %v1783
      %1847 = vmatpush1.bf16.msra.mxu0 %v1782
      %1848 = vmatprep.subr.bf16.mxu0 %v1785
      %1849 = vmatpush1.bf16.msra.mxu0 %v1784
      %1850 = vmatprep.subr.bf16.mxu0 %v1787
      %1851 = vmatpush1.bf16.msra.mxu0 %v1786
      %1852 = vmatprep.subr.bf16.mxu0 %v1789
      %1853 = vmatpush1.bf16.msra.mxu0 %v1788
      %1854 = vmatprep.subr.bf16.mxu0 %v1791
      %1855 = vmatpush1.bf16.msra.mxu0 %v1790
      %1856 = vmatprep.subr.bf16.mxu0 %v1793
      %1857 = vmatpush1.bf16.msra.mxu0 %v1792
      %1858 = vmatprep.subr.bf16.mxu0 %v1795
      %1859 = vmatpush1.bf16.msra.mxu0 %v1794
      %1860 = vmatprep.subr.bf16.mxu0 %v1797
      %1861 = vmatpush1.bf16.msra.mxu0 %v1796
      %1862 = vmatprep.subr.bf16.mxu0 %v1799
      %1863 = vmatpush1.bf16.msra.mxu0 %v1798
      %1864 = vmatprep.subr.bf16.mxu0 %v1801
      %1865 = vmatpush1.bf16.msra.mxu0 %v1800
      %1866 = vmatprep.subr.bf16.mxu0 %v1803
      %1867 = vmatpush1.bf16.msra.mxu0 %v1802
      %1868 = vmatprep.subr.bf16.mxu0 %v1805
      %1869 = vmatpush1.bf16.msra.mxu0 %v1804
      %1870 = vmatprep.subr.bf16.mxu0 %v1807
      %1871 = vmatpush1.bf16.msra.mxu0 %v1806
      %1872 = vmatprep.mubr.bf16.mxu0 %v1635
      %1873 = vmatmul.mubr.bf16.gmra.mrb[0].mxu0 %v1634
      %v1874 = vpop.f32.mrb[0].mxu0
      %v1875 = vadd.f32 %v1673, %v1874
      %v1876 = vpop.f32.mrb[0].mxu0
      %v1877 = vadd.f32 %v1677, %v1876
      %v1878 = vpop.f32.mrb[0].mxu0
      %v1879 = vpop.f32.mrb[0].mxu0
      %1880 = vdwg.mxu0
      %v1881 = vadd.f32 %v442, %v1875
      %v1882 = vadd.f32 %v443, %v1877
      %v1883 = vadd.f32 %v1881, %v1882
      %1884 = vadd.xlane.f32.xlu0 %v1883
      %v1885 = vpop.xlane.xlu0 %1884
      %v1886 = vrcp.pop 256.0
      %v1887 = vmul.f32 %v1885, %v1886
      %v1888 = vsub.f32 %v1881, %v1887
      %v1889 = vsub.f32 %v1882, %v1887
      %v1890 = vmul.f32 %v1888, %v1888
      %v1891 = vmul.f32 %v1889, %v1889
      %v1892 = vadd.f32 %v1890, %v1891
      %1893 = vadd.xlane.f32.xlu0 %v1892
      %v1894 = vpop.xlane.xlu0 %1893
      %v1895 = vmul.f32 %v1894, %v1886
      %v1896 = vadd.f32 %v1895, 1e-05
      %v1897 = vrsqrt.pop %v1896
      %v1898 = vmul.f32 %v1888, %v1897
      %v1899 = vmul.f32 %v1889, %v1897
      %v1900 = vld [vmem:[%s5] sm:$0x3]
      %v1902 = vlaneseq
      %v1903 = vshrl.u32 %v1902, 7
      %v1904 = vsub.s32 0, %v1903
      %v1905 = vrot.slane %v1900, %v1904
      %v1906 = vlaneseq
      %v1907 = vshrl.u32 %v1906, 7
      %v1908 = vsub.s32 1, %v1907
      %v1909 = vrot.slane %v1900, %v1908
      %v1912 = vmul.f32 %v1898, %v1905
      %v1913 = vmul.f32 %v1899, %v1909
      %v1914 = vld [vmem:[%s6] sm:$0x3]
      %v1916 = vlaneseq
      %v1917 = vshrl.u32 %v1916, 7
      %v1918 = vsub.s32 0, %v1917
      %v1919 = vrot.slane %v1914, %v1918
      %v1920 = vlaneseq
      %v1921 = vshrl.u32 %v1920, 7
      %v1922 = vsub.s32 1, %v1921
      %v1923 = vrot.slane %v1914, %v1922
      %v1926 = vadd.f32 %v1912, %v1919
      %v1927 = vadd.f32 %v1913, %v1923
      %v1928 = vpack.c.bf16 %v1926, %v1926
      %v1929 = vpack.c.bf16 %v1927, %v1927
      %v1930 = vld [vmem:[%s7] sm:$0xff]
      %v1931 = vld [vmem:[%s7 + $0x8] sm:$0xff]
      %v1932 = vld [vmem:[%s7 + $0x10] sm:$0xff]
      %v1933 = vld [vmem:[%s7 + $0x18] sm:$0xff]
      %v1934 = vld [vmem:[%s7 + $0x20] sm:$0xff]
      %v1935 = vld [vmem:[%s7 + $0x28] sm:$0xff]
      %v1936 = vld [vmem:[%s7 + $0x30] sm:$0xff]
      %v1937 = vld [vmem:[%s7 + $0x38] sm:$0xff]
      %v1938 = vld [vmem:[%s7 + $0x40] sm:$0xff]
      %v1939 = vld [vmem:[%s7 + $0x48] sm:$0xff]
      %v1940 = vld [vmem:[%s7 + $0x50] sm:$0xff]
      %v1941 = vld [vmem:[%s7 + $0x58] sm:$0xff]
      %v1942 = vld [vmem:[%s7 + $0x60] sm:$0xff]
      %v1943 = vld [vmem:[%s7 + $0x68] sm:$0xff]
      %v1944 = vld [vmem:[%s7 + $0x70] sm:$0xff]
      %v1945 = vld [vmem:[%s7 + $0x78] sm:$0xff]
      %v1946 = vld [vmem:[%s7 + $0x80] sm:$0xff]
      %v1947 = vld [vmem:[%s7 + $0x88] sm:$0xff]
      %v1948 = vld [vmem:[%s7 + $0x90] sm:$0xff]
      %v1949 = vld [vmem:[%s7 + $0x98] sm:$0xff]
      %v1950 = vld [vmem:[%s7 + $0xa0] sm:$0xff]
      %v1951 = vld [vmem:[%s7 + $0xa8] sm:$0xff]
      %v1952 = vld [vmem:[%s7 + $0xb0] sm:$0xff]
      %v1953 = vld [vmem:[%s7 + $0xb8] sm:$0xff]
      %v1954 = vld [vmem:[%s7 + $0xc0] sm:$0xff]
      %v1955 = vld [vmem:[%s7 + $0xc8] sm:$0xff]
      %v1956 = vld [vmem:[%s7 + $0xd0] sm:$0xff]
      %v1957 = vld [vmem:[%s7 + $0xd8] sm:$0xff]
      %v1958 = vld [vmem:[%s7 + $0xe0] sm:$0xff]
      %v1959 = vld [vmem:[%s7 + $0xe8] sm:$0xff]
      %v1960 = vld [vmem:[%s7 + $0xf0] sm:$0xff]
      %v1961 = vld [vmem:[%s7 + $0xf8] sm:$0xff]
      %v1962 = vld [vmem:[%s7 + $0x100] sm:$0xff]
      %v1963 = vld [vmem:[%s7 + $0x108] sm:$0xff]
      %v1964 = vld [vmem:[%s7 + $0x110] sm:$0xff]
      %v1965 = vld [vmem:[%s7 + $0x118] sm:$0xff]
      %v1966 = vld [vmem:[%s7 + $0x120] sm:$0xff]
      %v1967 = vld [vmem:[%s7 + $0x128] sm:$0xff]
      %v1968 = vld [vmem:[%s7 + $0x130] sm:$0xff]
      %v1969 = vld [vmem:[%s7 + $0x138] sm:$0xff]
      %v1970 = vld [vmem:[%s7 + $0x140] sm:$0xff]
      %v1971 = vld [vmem:[%s7 + $0x148] sm:$0xff]
      %v1972 = vld [vmem:[%s7 + $0x150] sm:$0xff]
      %v1973 = vld [vmem:[%s7 + $0x158] sm:$0xff]
      %v1974 = vld [vmem:[%s7 + $0x160] sm:$0xff]
      %v1975 = vld [vmem:[%s7 + $0x168] sm:$0xff]
      %v1976 = vld [vmem:[%s7 + $0x170] sm:$0xff]
      %v1977 = vld [vmem:[%s7 + $0x178] sm:$0xff]
      %v1978 = vld [vmem:[%s7 + $0x180] sm:$0xff]
      %v1979 = vld [vmem:[%s7 + $0x188] sm:$0xff]
      %v1980 = vld [vmem:[%s7 + $0x190] sm:$0xff]
      %v1981 = vld [vmem:[%s7 + $0x198] sm:$0xff]
      %v1982 = vld [vmem:[%s7 + $0x1a0] sm:$0xff]
      %v1983 = vld [vmem:[%s7 + $0x1a8] sm:$0xff]
      %v1984 = vld [vmem:[%s7 + $0x1b0] sm:$0xff]
      %v1985 = vld [vmem:[%s7 + $0x1b8] sm:$0xff]
      %v1986 = vld [vmem:[%s7 + $0x1c0] sm:$0xff]
      %v1987 = vld [vmem:[%s7 + $0x1c8] sm:$0xff]
      %v1988 = vld [vmem:[%s7 + $0x1d0] sm:$0xff]
      %v1989 = vld [vmem:[%s7 + $0x1d8] sm:$0xff]
      %v1990 = vld [vmem:[%s7 + $0x1e0] sm:$0xff]
      %v1991 = vld [vmem:[%s7 + $0x1e8] sm:$0xff]
      %v1992 = vld [vmem:[%s7 + $0x1f0] sm:$0xff]
      %v1993 = vld [vmem:[%s7 + $0x1f8] sm:$0xff]
      %v1994 = vld [vmem:[%s8] sm:$0xf]
      %v1996 = vlaneseq
      %v1997 = vshrl.u32 %v1996, 7
      %v1998 = vsub.s32 0, %v1997
      %v1999 = vrot.slane %v1994, %v1998
      %v2000 = vlaneseq
      %v2001 = vshrl.u32 %v2000, 7
      %v2002 = vsub.s32 1, %v2001
      %v2003 = vrot.slane %v1994, %v2002
      %v2004 = vlaneseq
      %v2005 = vshrl.u32 %v2004, 7
      %v2006 = vsub.s32 2, %v2005
      %v2007 = vrot.slane %v1994, %v2006
      %v2008 = vlaneseq
      %v2009 = vshrl.u32 %v2008, 7
      %v2010 = vsub.s32 3, %v2009
      %v2011 = vrot.slane %v1994, %v2010
      %v2080 = vunpack.c.l.b16 %v1930
      %v2081 = vunpack.c.h.b16 %v1930
      %v2082 = vunpack.c.l.b16 %v1931
      %v2083 = vunpack.c.h.b16 %v1931
      %v2084 = vunpack.c.l.b16 %v1932
      %v2085 = vunpack.c.h.b16 %v1932
      %v2086 = vunpack.c.l.b16 %v1933
      %v2087 = vunpack.c.h.b16 %v1933
      %v2088 = vunpack.c.l.b16 %v1934
      %v2089 = vunpack.c.h.b16 %v1934
      %v2090 = vunpack.c.l.b16 %v1935
      %v2091 = vunpack.c.h.b16 %v1935
      %v2092 = vunpack.c.l.b16 %v1936
      %v2093 = vunpack.c.h.b16 %v1936
      %v2094 = vunpack.c.l.b16 %v1937
      %v2095 = vunpack.c.h.b16 %v1937
      %v2096 = vunpack.c.l.b16 %v1938
      %v2097 = vunpack.c.h.b16 %v1938
      %v2098 = vunpack.c.l.b16 %v1939
      %v2099 = vunpack.c.h.b16 %v1939
      %v2100 = vunpack.c.l.b16 %v1940
      %v2101 = vunpack.c.h.b16 %v1940
      %v2102 = vunpack.c.l.b16 %v1941
      %v2103 = vunpack.c.h.b16 %v1941
      %v2104 = vunpack.c.l.b16 %v1942
      %v2105 = vunpack.c.h.b16 %v1942
      %v2106 = vunpack.c.l.b16 %v1943
      %v2107 = vunpack.c.h.b16 %v1943
      %v2108 = vunpack.c.l.b16 %v1944
      %v2109 = vunpack.c.h.b16 %v1944
      %v2110 = vunpack.c.l.b16 %v1945
      %v2111 = vunpack.c.h.b16 %v1945
      %v2112 = vunpack.c.l.b16 %v1946
      %v2113 = vunpack.c.h.b16 %v1946
      %v2114 = vunpack.c.l.b16 %v1947
      %v2115 = vunpack.c.h.b16 %v1947
      %v2116 = vunpack.c.l.b16 %v1948
      %v2117 = vunpack.c.h.b16 %v1948
      %v2118 = vunpack.c.l.b16 %v1949
      %v2119 = vunpack.c.h.b16 %v1949
      %v2120 = vunpack.c.l.b16 %v1950
      %v2121 = vunpack.c.h.b16 %v1950
      %v2122 = vunpack.c.l.b16 %v1951
      %v2123 = vunpack.c.h.b16 %v1951
      %v2124 = vunpack.c.l.b16 %v1952
      %v2125 = vunpack.c.h.b16 %v1952
      %v2126 = vunpack.c.l.b16 %v1953
      %v2127 = vunpack.c.h.b16 %v1953
      %v2128 = vunpack.c.l.b16 %v1954
      %v2129 = vunpack.c.h.b16 %v1954
      %v2130 = vunpack.c.l.b16 %v1955
      %v2131 = vunpack.c.h.b16 %v1955
      %v2132 = vunpack.c.l.b16 %v1956
      %v2133 = vunpack.c.h.b16 %v1956
      %v2134 = vunpack.c.l.b16 %v1957
      %v2135 = vunpack.c.h.b16 %v1957
      %v2136 = vunpack.c.l.b16 %v1958
      %v2137 = vunpack.c.h.b16 %v1958
      %v2138 = vunpack.c.l.b16 %v1959
      %v2139 = vunpack.c.h.b16 %v1959
      %v2140 = vunpack.c.l.b16 %v1960
      %v2141 = vunpack.c.h.b16 %v1960
      %v2142 = vunpack.c.l.b16 %v1961
      %v2143 = vunpack.c.h.b16 %v1961
      %v2144 = vunpack.c.l.b16 %v1962
      %v2145 = vunpack.c.h.b16 %v1962
      %v2146 = vunpack.c.l.b16 %v1963
      %v2147 = vunpack.c.h.b16 %v1963
      %v2148 = vunpack.c.l.b16 %v1964
      %v2149 = vunpack.c.h.b16 %v1964
      %v2150 = vunpack.c.l.b16 %v1965
      %v2151 = vunpack.c.h.b16 %v1965
      %v2152 = vunpack.c.l.b16 %v1966
      %v2153 = vunpack.c.h.b16 %v1966
      %v2154 = vunpack.c.l.b16 %v1967
      %v2155 = vunpack.c.h.b16 %v1967
      %v2156 = vunpack.c.l.b16 %v1968
      %v2157 = vunpack.c.h.b16 %v1968
      %v2158 = vunpack.c.l.b16 %v1969
      %v2159 = vunpack.c.h.b16 %v1969
      %v2160 = vunpack.c.l.b16 %v1970
      %v2161 = vunpack.c.h.b16 %v1970
      %v2162 = vunpack.c.l.b16 %v1971
      %v2163 = vunpack.c.h.b16 %v1971
      %v2164 = vunpack.c.l.b16 %v1972
      %v2165 = vunpack.c.h.b16 %v1972
      %v2166 = vunpack.c.l.b16 %v1973
      %v2167 = vunpack.c.h.b16 %v1973
      %v2168 = vunpack.c.l.b16 %v1974
      %v2169 = vunpack.c.h.b16 %v1974
      %v2170 = vunpack.c.l.b16 %v1975
      %v2171 = vunpack.c.h.b16 %v1975
      %v2172 = vunpack.c.l.b16 %v1976
      %v2173 = vunpack.c.h.b16 %v1976
      %v2174 = vunpack.c.l.b16 %v1977
      %v2175 = vunpack.c.h.b16 %v1977
      %v2176 = vunpack.c.l.b16 %v1978
      %v2177 = vunpack.c.h.b16 %v1978
      %v2178 = vunpack.c.l.b16 %v1979
      %v2179 = vunpack.c.h.b16 %v1979
      %v2180 = vunpack.c.l.b16 %v1980
      %v2181 = vunpack.c.h.b16 %v1980
      %v2182 = vunpack.c.l.b16 %v1981
      %v2183 = vunpack.c.h.b16 %v1981
      %v2184 = vunpack.c.l.b16 %v1982
      %v2185 = vunpack.c.h.b16 %v1982
      %v2186 = vunpack.c.l.b16 %v1983
      %v2187 = vunpack.c.h.b16 %v1983
      %v2188 = vunpack.c.l.b16 %v1984
      %v2189 = vunpack.c.h.b16 %v1984
      %v2190 = vunpack.c.l.b16 %v1985
      %v2191 = vunpack.c.h.b16 %v1985
      %v2192 = vunpack.c.l.b16 %v1986
      %v2193 = vunpack.c.h.b16 %v1986
      %v2194 = vunpack.c.l.b16 %v1987
      %v2195 = vunpack.c.h.b16 %v1987
      %v2196 = vunpack.c.l.b16 %v1988
      %v2197 = vunpack.c.h.b16 %v1988
      %v2198 = vunpack.c.l.b16 %v1989
      %v2199 = vunpack.c.h.b16 %v1989
      %v2200 = vunpack.c.l.b16 %v1990
      %v2201 = vunpack.c.h.b16 %v1990
      %v2202 = vunpack.c.l.b16 %v1991
      %v2203 = vunpack.c.h.b16 %v1991
      %v2204 = vunpack.c.l.b16 %v1992
      %v2205 = vunpack.c.h.b16 %v1992
      %v2206 = vunpack.c.l.b16 %v1993
      %v2207 = vunpack.c.h.b16 %v1993
      %v2208 = vpack.c.b16 %v2084, %v2080
      %v2209 = vpack.c.b16 %v2085, %v2081
      %v2210 = vpack.c.b16 %v2086, %v2082
      %v2211 = vpack.c.b16 %v2087, %v2083
      %v2212 = vpack.c.b16 %v2092, %v2088
      %v2213 = vpack.c.b16 %v2093, %v2089
      %v2214 = vpack.c.b16 %v2094, %v2090
      %v2215 = vpack.c.b16 %v2095, %v2091
      %v2216 = vpack.c.b16 %v2100, %v2096
      %v2217 = vpack.c.b16 %v2101, %v2097
      %v2218 = vpack.c.b16 %v2102, %v2098
      %v2219 = vpack.c.b16 %v2103, %v2099
      %v2220 = vpack.c.b16 %v2108, %v2104
      %v2221 = vpack.c.b16 %v2109, %v2105
      %v2222 = vpack.c.b16 %v2110, %v2106
      %v2223 = vpack.c.b16 %v2111, %v2107
      %v2224 = vpack.c.b16 %v2116, %v2112
      %v2225 = vpack.c.b16 %v2117, %v2113
      %v2226 = vpack.c.b16 %v2118, %v2114
      %v2227 = vpack.c.b16 %v2119, %v2115
      %v2228 = vpack.c.b16 %v2124, %v2120
      %v2229 = vpack.c.b16 %v2125, %v2121
      %v2230 = vpack.c.b16 %v2126, %v2122
      %v2231 = vpack.c.b16 %v2127, %v2123
      %v2232 = vpack.c.b16 %v2132, %v2128
      %v2233 = vpack.c.b16 %v2133, %v2129
      %v2234 = vpack.c.b16 %v2134, %v2130
      %v2235 = vpack.c.b16 %v2135, %v2131
      %v2236 = vpack.c.b16 %v2140, %v2136
      %v2237 = vpack.c.b16 %v2141, %v2137
      %v2238 = vpack.c.b16 %v2142, %v2138
      %v2239 = vpack.c.b16 %v2143, %v2139
      %v2240 = vpack.c.b16 %v2148, %v2144
      %v2241 = vpack.c.b16 %v2149, %v2145
      %v2242 = vpack.c.b16 %v2150, %v2146
      %v2243 = vpack.c.b16 %v2151, %v2147
      %v2244 = vpack.c.b16 %v2156, %v2152
      %v2245 = vpack.c.b16 %v2157, %v2153
      %v2246 = vpack.c.b16 %v2158, %v2154
      %v2247 = vpack.c.b16 %v2159, %v2155
      %v2248 = vpack.c.b16 %v2164, %v2160
      %v2249 = vpack.c.b16 %v2165, %v2161
      %v2250 = vpack.c.b16 %v2166, %v2162
      %v2251 = vpack.c.b16 %v2167, %v2163
      %v2252 = vpack.c.b16 %v2172, %v2168
      %v2253 = vpack.c.b16 %v2173, %v2169
      %v2254 = vpack.c.b16 %v2174, %v2170
      %v2255 = vpack.c.b16 %v2175, %v2171
      %v2256 = vpack.c.b16 %v2180, %v2176
      %v2257 = vpack.c.b16 %v2181, %v2177
      %v2258 = vpack.c.b16 %v2182, %v2178
      %v2259 = vpack.c.b16 %v2183, %v2179
      %v2260 = vpack.c.b16 %v2188, %v2184
      %v2261 = vpack.c.b16 %v2189, %v2185
      %v2262 = vpack.c.b16 %v2190, %v2186
      %v2263 = vpack.c.b16 %v2191, %v2187
      %v2264 = vpack.c.b16 %v2196, %v2192
      %v2265 = vpack.c.b16 %v2197, %v2193
      %v2266 = vpack.c.b16 %v2198, %v2194
      %v2267 = vpack.c.b16 %v2199, %v2195
      %v2268 = vpack.c.b16 %v2204, %v2200
      %v2269 = vpack.c.b16 %v2205, %v2201
      %v2270 = vpack.c.b16 %v2206, %v2202
      %v2271 = vpack.c.b16 %v2207, %v2203
      %2336 = vmatprep.subr.bf16.mxu0 %v2209
      %2337 = vmatpush1.bf16.msra.mxu0 %v2208
      %2338 = vmatprep.subr.bf16.mxu0 %v2213
      %2339 = vmatpush1.bf16.msra.mxu0 %v2212
      %2340 = vmatprep.subr.bf16.mxu0 %v2217
      %2341 = vmatpush1.bf16.msra.mxu0 %v2216
      %2342 = vmatprep.subr.bf16.mxu0 %v2221
      %2343 = vmatpush1.bf16.msra.mxu0 %v2220
      %2344 = vmatprep.subr.bf16.mxu0 %v2225
      %2345 = vmatpush1.bf16.msra.mxu0 %v2224
      %2346 = vmatprep.subr.bf16.mxu0 %v2229
      %2347 = vmatpush1.bf16.msra.mxu0 %v2228
      %2348 = vmatprep.subr.bf16.mxu0 %v2233
      %2349 = vmatpush1.bf16.msra.mxu0 %v2232
      %2350 = vmatprep.subr.bf16.mxu0 %v2237
      %2351 = vmatpush1.bf16.msra.mxu0 %v2236
      %2352 = vmatprep.subr.bf16.mxu0 %v2241
      %2353 = vmatpush1.bf16.msra.mxu0 %v2240
      %2354 = vmatprep.subr.bf16.mxu0 %v2245
      %2355 = vmatpush1.bf16.msra.mxu0 %v2244
      %2356 = vmatprep.subr.bf16.mxu0 %v2249
      %2357 = vmatpush1.bf16.msra.mxu0 %v2248
      %2358 = vmatprep.subr.bf16.mxu0 %v2253
      %2359 = vmatpush1.bf16.msra.mxu0 %v2252
      %2360 = vmatprep.subr.bf16.mxu0 %v2257
      %2361 = vmatpush1.bf16.msra.mxu0 %v2256
      %2362 = vmatprep.subr.bf16.mxu0 %v2261
      %2363 = vmatpush1.bf16.msra.mxu0 %v2260
      %2364 = vmatprep.subr.bf16.mxu0 %v2265
      %2365 = vmatpush1.bf16.msra.mxu0 %v2264
      %2366 = vmatprep.subr.bf16.mxu0 %v2269
      %2367 = vmatpush1.bf16.msra.mxu0 %v2268
      %2368 = vmatprep.mubr.bf16.mxu0 %v1929
      %2369 = vmatmul.mubr.bf16.gmra.mrb[0].mxu0 %v1928
      %v2370 = vpop.f32.mrb[0].mxu0
      %v2371 = vadd.f32 %v1999, %v2370
      %v2372 = vpop.f32.mrb[0].mxu0
      %v2373 = vadd.f32 %v2003, %v2372
      %v2374 = vpop.f32.mrb[0].mxu0
      %v2375 = vpop.f32.mrb[0].mxu0
      %2376 = vdwg.mxu0
      %2377 = vmatprep.subr.bf16.mxu0 %v2211
      %2378 = vmatpush1.bf16.msra.mxu0 %v2210
      %2379 = vmatprep.subr.bf16.mxu0 %v2215
      %2380 = vmatpush1.bf16.msra.mxu0 %v2214
      %2381 = vmatprep.subr.bf16.mxu0 %v2219
      %2382 = vmatpush1.bf16.msra.mxu0 %v2218
      %2383 = vmatprep.subr.bf16.mxu0 %v2223
      %2384 = vmatpush1.bf16.msra.mxu0 %v2222
      %2385 = vmatprep.subr.bf16.mxu0 %v2227
      %2386 = vmatpush1.bf16.msra.mxu0 %v2226
      %2387 = vmatprep.subr.bf16.mxu0 %v2231
      %2388 = vmatpush1.bf16.msra.mxu0 %v2230
      %2389 = vmatprep.subr.bf16.mxu0 %v2235
      %2390 = vmatpush1.bf16.msra.mxu0 %v2234
      %2391 = vmatprep.subr.bf16.mxu0 %v2239
      %2392 = vmatpush1.bf16.msra.mxu0 %v2238
      %2393 = vmatprep.subr.bf16.mxu0 %v2243
      %2394 = vmatpush1.bf16.msra.mxu0 %v2242
      %2395 = vmatprep.subr.bf16.mxu0 %v2247
      %2396 = vmatpush1.bf16.msra.mxu0 %v2246
      %2397 = vmatprep.subr.bf16.mxu0 %v2251
      %2398 = vmatpush1.bf16.msra.mxu0 %v2250
      %2399 = vmatprep.subr.bf16.mxu0 %v2255
      %2400 = vmatpush1.bf16.msra.mxu0 %v2254
      %2401 = vmatprep.subr.bf16.mxu0 %v2259
      %2402 = vmatpush1.bf16.msra.mxu0 %v2258
      %2403 = vmatprep.subr.bf16.mxu0 %v2263
      %2404 = vmatpush1.bf16.msra.mxu0 %v2262
      %2405 = vmatprep.subr.bf16.mxu0 %v2267
      %2406 = vmatpush1.bf16.msra.mxu0 %v2266
      %2407 = vmatprep.subr.bf16.mxu0 %v2271
      %2408 = vmatpush1.bf16.msra.mxu0 %v2270
      %2409 = vmatprep.mubr.bf16.mxu0 %v1929
      %2410 = vmatmul.mubr.bf16.gmra.mrb[0].mxu0 %v1928
      %v2411 = vpop.f32.mrb[0].mxu0
      %v2412 = vadd.f32 %v2007, %v2411
      %v2413 = vpop.f32.mrb[0].mxu0
      %v2414 = vadd.f32 %v2011, %v2413
      %v2415 = vpop.f32.mrb[0].mxu0
      %v2416 = vpop.f32.mrb[0].mxu0
      %2417 = vdwg.mxu0
      %v2418 = vmax.f32 %v2371, 0.0
      %v2419 = vmax.f32 %v2373, 0.0
      %v2420 = vmax.f32 %v2412, 0.0
      %v2421 = vmax.f32 %v2414, 0.0
      %v2422 = vpack.c.bf16 %v2418, %v2418
      %v2423 = vpack.c.bf16 %v2419, %v2419
      %v2424 = vpack.c.bf16 %v2420, %v2420
      %v2425 = vpack.c.bf16 %v2421, %v2421
      %v2426 = vld [vmem:[%s9] sm:$0xff]
      %v2427 = vld [vmem:[%s9 + $0x8] sm:$0xff]
      %v2428 = vld [vmem:[%s9 + $0x10] sm:$0xff]
      %v2429 = vld [vmem:[%s9 + $0x18] sm:$0xff]
      %v2430 = vld [vmem:[%s9 + $0x20] sm:$0xff]
      %v2431 = vld [vmem:[%s9 + $0x28] sm:$0xff]
      %v2432 = vld [vmem:[%s9 + $0x30] sm:$0xff]
      %v2433 = vld [vmem:[%s9 + $0x38] sm:$0xff]
      %v2434 = vld [vmem:[%s9 + $0x40] sm:$0xff]
      %v2435 = vld [vmem:[%s9 + $0x48] sm:$0xff]
      %v2436 = vld [vmem:[%s9 + $0x50] sm:$0xff]
      %v2437 = vld [vmem:[%s9 + $0x58] sm:$0xff]
      %v2438 = vld [vmem:[%s9 + $0x60] sm:$0xff]
      %v2439 = vld [vmem:[%s9 + $0x68] sm:$0xff]
      %v2440 = vld [vmem:[%s9 + $0x70] sm:$0xff]
      %v2441 = vld [vmem:[%s9 + $0x78] sm:$0xff]
      %v2442 = vld [vmem:[%s9 + $0x80] sm:$0xff]
      %v2443 = vld [vmem:[%s9 + $0x88] sm:$0xff]
      %v2444 = vld [vmem:[%s9 + $0x90] sm:$0xff]
      %v2445 = vld [vmem:[%s9 + $0x98] sm:$0xff]
      %v2446 = vld [vmem:[%s9 + $0xa0] sm:$0xff]
      %v2447 = vld [vmem:[%s9 + $0xa8] sm:$0xff]
      %v2448 = vld [vmem:[%s9 + $0xb0] sm:$0xff]
      %v2449 = vld [vmem:[%s9 + $0xb8] sm:$0xff]
      %v2450 = vld [vmem:[%s9 + $0xc0] sm:$0xff]
      %v2451 = vld [vmem:[%s9 + $0xc8] sm:$0xff]
      %v2452 = vld [vmem:[%s9 + $0xd0] sm:$0xff]
      %v2453 = vld [vmem:[%s9 + $0xd8] sm:$0xff]
      %v2454 = vld [vmem:[%s9 + $0xe0] sm:$0xff]
      %v2455 = vld [vmem:[%s9 + $0xe8] sm:$0xff]
      %v2456 = vld [vmem:[%s9 + $0xf0] sm:$0xff]
      %v2457 = vld [vmem:[%s9 + $0xf8] sm:$0xff]
      %v2458 = vld [vmem:[%s9 + $0x100] sm:$0xff]
      %v2459 = vld [vmem:[%s9 + $0x108] sm:$0xff]
      %v2460 = vld [vmem:[%s9 + $0x110] sm:$0xff]
      %v2461 = vld [vmem:[%s9 + $0x118] sm:$0xff]
      %v2462 = vld [vmem:[%s9 + $0x120] sm:$0xff]
      %v2463 = vld [vmem:[%s9 + $0x128] sm:$0xff]
      %v2464 = vld [vmem:[%s9 + $0x130] sm:$0xff]
      %v2465 = vld [vmem:[%s9 + $0x138] sm:$0xff]
      %v2466 = vld [vmem:[%s9 + $0x140] sm:$0xff]
      %v2467 = vld [vmem:[%s9 + $0x148] sm:$0xff]
      %v2468 = vld [vmem:[%s9 + $0x150] sm:$0xff]
      %v2469 = vld [vmem:[%s9 + $0x158] sm:$0xff]
      %v2470 = vld [vmem:[%s9 + $0x160] sm:$0xff]
      %v2471 = vld [vmem:[%s9 + $0x168] sm:$0xff]
      %v2472 = vld [vmem:[%s9 + $0x170] sm:$0xff]
      %v2473 = vld [vmem:[%s9 + $0x178] sm:$0xff]
      %v2474 = vld [vmem:[%s9 + $0x180] sm:$0xff]
      %v2475 = vld [vmem:[%s9 + $0x188] sm:$0xff]
      %v2476 = vld [vmem:[%s9 + $0x190] sm:$0xff]
      %v2477 = vld [vmem:[%s9 + $0x198] sm:$0xff]
      %v2478 = vld [vmem:[%s9 + $0x1a0] sm:$0xff]
      %v2479 = vld [vmem:[%s9 + $0x1a8] sm:$0xff]
      %v2480 = vld [vmem:[%s9 + $0x1b0] sm:$0xff]
      %v2481 = vld [vmem:[%s9 + $0x1b8] sm:$0xff]
      %v2482 = vld [vmem:[%s9 + $0x1c0] sm:$0xff]
      %v2483 = vld [vmem:[%s9 + $0x1c8] sm:$0xff]
      %v2484 = vld [vmem:[%s9 + $0x1d0] sm:$0xff]
      %v2485 = vld [vmem:[%s9 + $0x1d8] sm:$0xff]
      %v2486 = vld [vmem:[%s9 + $0x1e0] sm:$0xff]
      %v2487 = vld [vmem:[%s9 + $0x1e8] sm:$0xff]
      %v2488 = vld [vmem:[%s9 + $0x1f0] sm:$0xff]
      %v2489 = vld [vmem:[%s9 + $0x1f8] sm:$0xff]
      %v2490 = vld [vmem:[%s10] sm:$0x3]
      %v2492 = vlaneseq
      %v2493 = vshrl.u32 %v2492, 7
      %v2494 = vsub.s32 0, %v2493
      %v2495 = vrot.slane %v2490, %v2494
      %v2496 = vlaneseq
      %v2497 = vshrl.u32 %v2496, 7
      %v2498 = vsub.s32 1, %v2497
      %v2499 = vrot.slane %v2490, %v2498
      %v2566 = vunpack.c.l.b16 %v2426
      %v2567 = vunpack.c.h.b16 %v2426
      %v2568 = vunpack.c.l.b16 %v2427
      %v2569 = vunpack.c.h.b16 %v2427
      %v2570 = vunpack.c.l.b16 %v2428
      %v2571 = vunpack.c.h.b16 %v2428
      %v2572 = vunpack.c.l.b16 %v2429
      %v2573 = vunpack.c.h.b16 %v2429
      %v2574 = vunpack.c.l.b16 %v2430
      %v2575 = vunpack.c.h.b16 %v2430
      %v2576 = vunpack.c.l.b16 %v2431
      %v2577 = vunpack.c.h.b16 %v2431
      %v2578 = vunpack.c.l.b16 %v2432
      %v2579 = vunpack.c.h.b16 %v2432
      %v2580 = vunpack.c.l.b16 %v2433
      %v2581 = vunpack.c.h.b16 %v2433
      %v2582 = vunpack.c.l.b16 %v2434
      %v2583 = vunpack.c.h.b16 %v2434
      %v2584 = vunpack.c.l.b16 %v2435
      %v2585 = vunpack.c.h.b16 %v2435
      %v2586 = vunpack.c.l.b16 %v2436
      %v2587 = vunpack.c.h.b16 %v2436
      %v2588 = vunpack.c.l.b16 %v2437
      %v2589 = vunpack.c.h.b16 %v2437
      %v2590 = vunpack.c.l.b16 %v2438
      %v2591 = vunpack.c.h.b16 %v2438
      %v2592 = vunpack.c.l.b16 %v2439
      %v2593 = vunpack.c.h.b16 %v2439
      %v2594 = vunpack.c.l.b16 %v2440
      %v2595 = vunpack.c.h.b16 %v2440
      %v2596 = vunpack.c.l.b16 %v2441
      %v2597 = vunpack.c.h.b16 %v2441
      %v2598 = vunpack.c.l.b16 %v2442
      %v2599 = vunpack.c.h.b16 %v2442
      %v2600 = vunpack.c.l.b16 %v2443
      %v2601 = vunpack.c.h.b16 %v2443
      %v2602 = vunpack.c.l.b16 %v2444
      %v2603 = vunpack.c.h.b16 %v2444
      %v2604 = vunpack.c.l.b16 %v2445
      %v2605 = vunpack.c.h.b16 %v2445
      %v2606 = vunpack.c.l.b16 %v2446
      %v2607 = vunpack.c.h.b16 %v2446
      %v2608 = vunpack.c.l.b16 %v2447
      %v2609 = vunpack.c.h.b16 %v2447
      %v2610 = vunpack.c.l.b16 %v2448
      %v2611 = vunpack.c.h.b16 %v2448
      %v2612 = vunpack.c.l.b16 %v2449
      %v2613 = vunpack.c.h.b16 %v2449
      %v2614 = vunpack.c.l.b16 %v2450
      %v2615 = vunpack.c.h.b16 %v2450
      %v2616 = vunpack.c.l.b16 %v2451
      %v2617 = vunpack.c.h.b16 %v2451
      %v2618 = vunpack.c.l.b16 %v2452
      %v2619 = vunpack.c.h.b16 %v2452
      %v2620 = vunpack.c.l.b16 %v2453
      %v2621 = vunpack.c.h.b16 %v2453
      %v2622 = vunpack.c.l.b16 %v2454
      %v2623 = vunpack.c.h.b16 %v2454
      %v2624 = vunpack.c.l.b16 %v2455
      %v2625 = vunpack.c.h.b16 %v2455
      %v2626 = vunpack.c.l.b16 %v2456
      %v2627 = vunpack.c.h.b16 %v2456
      %v2628 = vunpack.c.l.b16 %v2457
      %v2629 = vunpack.c.h.b16 %v2457
      %v2630 = vunpack.c.l.b16 %v2458
      %v2631 = vunpack.c.h.b16 %v2458
      %v2632 = vunpack.c.l.b16 %v2459
      %v2633 = vunpack.c.h.b16 %v2459
      %v2634 = vunpack.c.l.b16 %v2460
      %v2635 = vunpack.c.h.b16 %v2460
      %v2636 = vunpack.c.l.b16 %v2461
      %v2637 = vunpack.c.h.b16 %v2461
      %v2638 = vunpack.c.l.b16 %v2462
      %v2639 = vunpack.c.h.b16 %v2462
      %v2640 = vunpack.c.l.b16 %v2463
      %v2641 = vunpack.c.h.b16 %v2463
      %v2642 = vunpack.c.l.b16 %v2464
      %v2643 = vunpack.c.h.b16 %v2464
      %v2644 = vunpack.c.l.b16 %v2465
      %v2645 = vunpack.c.h.b16 %v2465
      %v2646 = vunpack.c.l.b16 %v2466
      %v2647 = vunpack.c.h.b16 %v2466
      %v2648 = vunpack.c.l.b16 %v2467
      %v2649 = vunpack.c.h.b16 %v2467
      %v2650 = vunpack.c.l.b16 %v2468
      %v2651 = vunpack.c.h.b16 %v2468
      %v2652 = vunpack.c.l.b16 %v2469
      %v2653 = vunpack.c.h.b16 %v2469
      %v2654 = vunpack.c.l.b16 %v2470
      %v2655 = vunpack.c.h.b16 %v2470
      %v2656 = vunpack.c.l.b16 %v2471
      %v2657 = vunpack.c.h.b16 %v2471
      %v2658 = vunpack.c.l.b16 %v2472
      %v2659 = vunpack.c.h.b16 %v2472
      %v2660 = vunpack.c.l.b16 %v2473
      %v2661 = vunpack.c.h.b16 %v2473
      %v2662 = vunpack.c.l.b16 %v2474
      %v2663 = vunpack.c.h.b16 %v2474
      %v2664 = vunpack.c.l.b16 %v2475
      %v2665 = vunpack.c.h.b16 %v2475
      %v2666 = vunpack.c.l.b16 %v2476
      %v2667 = vunpack.c.h.b16 %v2476
      %v2668 = vunpack.c.l.b16 %v2477
      %v2669 = vunpack.c.h.b16 %v2477
      %v2670 = vunpack.c.l.b16 %v2478
      %v2671 = vunpack.c.h.b16 %v2478
      %v2672 = vunpack.c.l.b16 %v2479
      %v2673 = vunpack.c.h.b16 %v2479
      %v2674 = vunpack.c.l.b16 %v2480
      %v2675 = vunpack.c.h.b16 %v2480
      %v2676 = vunpack.c.l.b16 %v2481
      %v2677 = vunpack.c.h.b16 %v2481
      %v2678 = vunpack.c.l.b16 %v2482
      %v2679 = vunpack.c.h.b16 %v2482
      %v2680 = vunpack.c.l.b16 %v2483
      %v2681 = vunpack.c.h.b16 %v2483
      %v2682 = vunpack.c.l.b16 %v2484
      %v2683 = vunpack.c.h.b16 %v2484
      %v2684 = vunpack.c.l.b16 %v2485
      %v2685 = vunpack.c.h.b16 %v2485
      %v2686 = vunpack.c.l.b16 %v2486
      %v2687 = vunpack.c.h.b16 %v2486
      %v2688 = vunpack.c.l.b16 %v2487
      %v2689 = vunpack.c.h.b16 %v2487
      %v2690 = vunpack.c.l.b16 %v2488
      %v2691 = vunpack.c.h.b16 %v2488
      %v2692 = vunpack.c.l.b16 %v2489
      %v2693 = vunpack.c.h.b16 %v2489
      %v2694 = vpack.c.b16 %v2568, %v2566
      %v2695 = vpack.c.b16 %v2569, %v2567
      %v2696 = vpack.c.b16 %v2572, %v2570
      %v2697 = vpack.c.b16 %v2573, %v2571
      %v2698 = vpack.c.b16 %v2576, %v2574
      %v2699 = vpack.c.b16 %v2577, %v2575
      %v2700 = vpack.c.b16 %v2580, %v2578
      %v2701 = vpack.c.b16 %v2581, %v2579
      %v2702 = vpack.c.b16 %v2584, %v2582
      %v2703 = vpack.c.b16 %v2585, %v2583
      %v2704 = vpack.c.b16 %v2588, %v2586
      %v2705 = vpack.c.b16 %v2589, %v2587
      %v2706 = vpack.c.b16 %v2592, %v2590
      %v2707 = vpack.c.b16 %v2593, %v2591
      %v2708 = vpack.c.b16 %v2596, %v2594
      %v2709 = vpack.c.b16 %v2597, %v2595
      %v2710 = vpack.c.b16 %v2600, %v2598
      %v2711 = vpack.c.b16 %v2601, %v2599
      %v2712 = vpack.c.b16 %v2604, %v2602
      %v2713 = vpack.c.b16 %v2605, %v2603
      %v2714 = vpack.c.b16 %v2608, %v2606
      %v2715 = vpack.c.b16 %v2609, %v2607
      %v2716 = vpack.c.b16 %v2612, %v2610
      %v2717 = vpack.c.b16 %v2613, %v2611
      %v2718 = vpack.c.b16 %v2616, %v2614
      %v2719 = vpack.c.b16 %v2617, %v2615
      %v2720 = vpack.c.b16 %v2620, %v2618
      %v2721 = vpack.c.b16 %v2621, %v2619
      %v2722 = vpack.c.b16 %v2624, %v2622
      %v2723 = vpack.c.b16 %v2625, %v2623
      %v2724 = vpack.c.b16 %v2628, %v2626
      %v2725 = vpack.c.b16 %v2629, %v2627
      %v2726 = vpack.c.b16 %v2632, %v2630
      %v2727 = vpack.c.b16 %v2633, %v2631
      %v2728 = vpack.c.b16 %v2636, %v2634
      %v2729 = vpack.c.b16 %v2637, %v2635
      %v2730 = vpack.c.b16 %v2640, %v2638
      %v2731 = vpack.c.b16 %v2641, %v2639
      %v2732 = vpack.c.b16 %v2644, %v2642
      %v2733 = vpack.c.b16 %v2645, %v2643
      %v2734 = vpack.c.b16 %v2648, %v2646
      %v2735 = vpack.c.b16 %v2649, %v2647
      %v2736 = vpack.c.b16 %v2652, %v2650
      %v2737 = vpack.c.b16 %v2653, %v2651
      %v2738 = vpack.c.b16 %v2656, %v2654
      %v2739 = vpack.c.b16 %v2657, %v2655
      %v2740 = vpack.c.b16 %v2660, %v2658
      %v2741 = vpack.c.b16 %v2661, %v2659
      %v2742 = vpack.c.b16 %v2664, %v2662
      %v2743 = vpack.c.b16 %v2665, %v2663
      %v2744 = vpack.c.b16 %v2668, %v2666
      %v2745 = vpack.c.b16 %v2669, %v2667
      %v2746 = vpack.c.b16 %v2672, %v2670
      %v2747 = vpack.c.b16 %v2673, %v2671
      %v2748 = vpack.c.b16 %v2676, %v2674
      %v2749 = vpack.c.b16 %v2677, %v2675
      %v2750 = vpack.c.b16 %v2680, %v2678
      %v2751 = vpack.c.b16 %v2681, %v2679
      %v2752 = vpack.c.b16 %v2684, %v2682
      %v2753 = vpack.c.b16 %v2685, %v2683
      %v2754 = vpack.c.b16 %v2688, %v2686
      %v2755 = vpack.c.b16 %v2689, %v2687
      %v2756 = vpack.c.b16 %v2692, %v2690
      %v2757 = vpack.c.b16 %v2693, %v2691
      %2822 = vmatprep.subr.bf16.mxu0 %v2695
      %2823 = vmatpush1.bf16.msra.mxu0 %v2694
      %2824 = vmatprep.subr.bf16.mxu0 %v2697
      %2825 = vmatpush1.bf16.msra.mxu0 %v2696
      %2826 = vmatprep.subr.bf16.mxu0 %v2699
      %2827 = vmatpush1.bf16.msra.mxu0 %v2698
      %2828 = vmatprep.subr.bf16.mxu0 %v2701
      %2829 = vmatpush1.bf16.msra.mxu0 %v2700
      %2830 = vmatprep.subr.bf16.mxu0 %v2703
      %2831 = vmatpush1.bf16.msra.mxu0 %v2702
      %2832 = vmatprep.subr.bf16.mxu0 %v2705
      %2833 = vmatpush1.bf16.msra.mxu0 %v2704
      %2834 = vmatprep.subr.bf16.mxu0 %v2707
      %2835 = vmatpush1.bf16.msra.mxu0 %v2706
      %2836 = vmatprep.subr.bf16.mxu0 %v2709
      %2837 = vmatpush1.bf16.msra.mxu0 %v2708
      %2838 = vmatprep.subr.bf16.mxu0 %v2711
      %2839 = vmatpush1.bf16.msra.mxu0 %v2710
      %2840 = vmatprep.subr.bf16.mxu0 %v2713
      %2841 = vmatpush1.bf16.msra.mxu0 %v2712
      %2842 = vmatprep.subr.bf16.mxu0 %v2715
      %2843 = vmatpush1.bf16.msra.mxu0 %v2714
      %2844 = vmatprep.subr.bf16.mxu0 %v2717
      %2845 = vmatpush1.bf16.msra.mxu0 %v2716
      %2846 = vmatprep.subr.bf16.mxu0 %v2719
      %2847 = vmatpush1.bf16.msra.mxu0 %v2718
      %2848 = vmatprep.subr.bf16.mxu0 %v2721
      %2849 = vmatpush1.bf16.msra.mxu0 %v2720
      %2850 = vmatprep.subr.bf16.mxu0 %v2723
      %2851 = vmatpush1.bf16.msra.mxu0 %v2722
      %2852 = vmatprep.subr.bf16.mxu0 %v2725
      %2853 = vmatpush1.bf16.msra.mxu0 %v2724
      %2854 = vmatprep.mubr.bf16.mxu0 %v2423
      %2855 = vmatmul.mubr.bf16.gmra.mrb[0].mxu0 %v2422
      %v2856 = vpop.f32.mrb[0].mxu0
      %v2857 = vadd.f32 %v2495, %v2856
      %v2858 = vpop.f32.mrb[0].mxu0
      %v2859 = vadd.f32 %v2499, %v2858
      %v2860 = vpop.f32.mrb[0].mxu0
      %v2861 = vpop.f32.mrb[0].mxu0
      %2862 = vdwg.mxu0
      %2863 = vmatprep.subr.bf16.mxu0 %v2727
      %2864 = vmatpush1.bf16.msra.mxu0 %v2726
      %2865 = vmatprep.subr.bf16.mxu0 %v2729
      %2866 = vmatpush1.bf16.msra.mxu0 %v2728
      %2867 = vmatprep.subr.bf16.mxu0 %v2731
      %2868 = vmatpush1.bf16.msra.mxu0 %v2730
      %2869 = vmatprep.subr.bf16.mxu0 %v2733
      %2870 = vmatpush1.bf16.msra.mxu0 %v2732
      %2871 = vmatprep.subr.bf16.mxu0 %v2735
      %2872 = vmatpush1.bf16.msra.mxu0 %v2734
      %2873 = vmatprep.subr.bf16.mxu0 %v2737
      %2874 = vmatpush1.bf16.msra.mxu0 %v2736
      %2875 = vmatprep.subr.bf16.mxu0 %v2739
      %2876 = vmatpush1.bf16.msra.mxu0 %v2738
      %2877 = vmatprep.subr.bf16.mxu0 %v2741
      %2878 = vmatpush1.bf16.msra.mxu0 %v2740
      %2879 = vmatprep.subr.bf16.mxu0 %v2743
      %2880 = vmatpush1.bf16.msra.mxu0 %v2742
      %2881 = vmatprep.subr.bf16.mxu0 %v2745
      %2882 = vmatpush1.bf16.msra.mxu0 %v2744
      %2883 = vmatprep.subr.bf16.mxu0 %v2747
      %2884 = vmatpush1.bf16.msra.mxu0 %v2746
      %2885 = vmatprep.subr.bf16.mxu0 %v2749
      %2886 = vmatpush1.bf16.msra.mxu0 %v2748
      %2887 = vmatprep.subr.bf16.mxu0 %v2751
      %2888 = vmatpush1.bf16.msra.mxu0 %v2750
      %2889 = vmatprep.subr.bf16.mxu0 %v2753
      %2890 = vmatpush1.bf16.msra.mxu0 %v2752
      %2891 = vmatprep.subr.bf16.mxu0 %v2755
      %2892 = vmatpush1.bf16.msra.mxu0 %v2754
      %2893 = vmatprep.subr.bf16.mxu0 %v2757
      %2894 = vmatpush1.bf16.msra.mxu0 %v2756
      %2895 = vmatprep.mubr.bf16.mxu0 %v2425
      %2896 = vmatmul.mubr.bf16.gmra.mrb[0].mxu0 %v2424
      %v2897 = vpop.f32.mrb[0].mxu0
      %v2898 = vadd.f32 %v2857, %v2897
      %v2899 = vpop.f32.mrb[0].mxu0
      %v2900 = vadd.f32 %v2859, %v2899
      %v2901 = vpop.f32.mrb[0].mxu0
      %v2902 = vpop.f32.mrb[0].mxu0
      %2903 = vdwg.mxu0
      %v2904 = vadd.f32 %v1926, %v2898
      %v2905 = vadd.f32 %v1927, %v2900
      %v2906 = vadd.f32 %v2904, %v2905
      %2907 = vadd.xlane.f32.xlu0 %v2906
      %v2908 = vpop.xlane.xlu0 %2907
      %v2909 = vmul.f32 %v2908, %v1886
      %v2910 = vsub.f32 %v2904, %v2909
      %v2911 = vsub.f32 %v2905, %v2909
      %v2912 = vmul.f32 %v2910, %v2910
      %v2913 = vmul.f32 %v2911, %v2911
      %v2914 = vadd.f32 %v2912, %v2913
      %2915 = vadd.xlane.f32.xlu0 %v2914
      %v2916 = vpop.xlane.xlu0 %2915
      %v2917 = vmul.f32 %v2916, %v1886
      %v2918 = vadd.f32 %v2917, 1e-05
      %v2919 = vrsqrt.pop %v2918
      %v2920 = vmul.f32 %v2910, %v2919
      %v2921 = vmul.f32 %v2911, %v2919
      %v2922 = vld [vmem:[%s11] sm:$0x3]
      %v2924 = vlaneseq
      %v2925 = vshrl.u32 %v2924, 7
      %v2926 = vsub.s32 0, %v2925
      %v2927 = vrot.slane %v2922, %v2926
      %v2928 = vlaneseq
      %v2929 = vshrl.u32 %v2928, 7
      %v2930 = vsub.s32 1, %v2929
      %v2931 = vrot.slane %v2922, %v2930
      %v2934 = vmul.f32 %v2920, %v2927
      %v2935 = vmul.f32 %v2921, %v2931
      %v2936 = vld [vmem:[%s12] sm:$0x3]
      %v2938 = vlaneseq
      %v2939 = vshrl.u32 %v2938, 7
      %v2940 = vsub.s32 0, %v2939
      %v2941 = vrot.slane %v2936, %v2940
      %v2942 = vlaneseq
      %v2943 = vshrl.u32 %v2942, 7
      %v2944 = vsub.s32 1, %v2943
      %v2945 = vrot.slane %v2936, %v2944
      %v2948 = vadd.f32 %v2934, %v2941
      %v2949 = vadd.f32 %v2935, %v2945
      %2950 = vst [vmem:[%s440] sm:$0xff] %v2948
      %2951 = vst [vmem:[%s440 + $0x8] sm:$0xff] %v2949
      %p2952 = scmp.lt.s32.totalorder %s24, 1
      %s2953 = scalar_select %p2952, %s24, 1
      %s2954 = smul.addr %s2953, 2
      %s2955 = smul.addr %s2954, 8
      %s2956 = scalar_lea.vmem %s13, %s2955
      // Predicated region
      $region73: #{tf_nn_forward.8} parent=71 // pred_check
        %p2957 = pneg %p320
      $region74: #{tf_nn_forward.8} parent=71 // pred_check_branch
        %2959 = sbr.rel (%p2957) target = $region76
      $region75: #{tf_nn_forward.8} parent=71 // pred_region
        _
      $region76: #{tf_nn_forward.8} parent=71 // pred_fallthru
        _
    $region72: #{tf_nn_forward.8} parent=5 // pred_fallthru
      _
    %p2960 = scmp.le.s32.totalorder 2, %s19
    // Predicated region
    $region77: #{tf_nn_forward.8} parent=5 // pred_check
      %p2961 = pneg %p2960
    $region78: #{tf_nn_forward.8} parent=5 // pred_check_branch
      %2963 = sbr.rel (%p2961) target = $region80
    $region79: #{tf_nn_forward.8} parent=5 // pred_region
      %s2964 = ssub.s32 %s19, 2
      // Predicated region
      $region81: #{tf_nn_forward.8} parent=79 // pred_check
        %p2965 = pneg %p326
      $region82: #{tf_nn_forward.8} parent=79 // pred_check_branch
        %2967 = sbr.rel (%p2965) target = $region84
      $region83: #{tf_nn_forward.8} parent=79 // pred_region
        %p2968 = scmp.lt.s32.totalorder %s25, 1
        %s2969 = scalar_select %p2968, %s25, 1
        %s2970 = smul.addr %s2969, 2
        %s2971 = smul.addr %s2970, 8
        %s2972 = scalar_lea.vmem %s13, %s2971
      $region84: #{tf_nn_forward.8} parent=79 // pred_fallthru
        _
    $region80: #{tf_nn_forward.8} parent=5 // pred_fallthru
      _
  $region6: #{tf_nn_forward.8} parent=0 // loop_footer
    %s23 = sadd.s32 1, %s19
  $region7: #{tf_nn_forward.8} parent=0 // loop_footer_branch
    %18 = sbr.rel target = $region3
  $region8: #{tf_nn_forward.8} parent=0 // loop_exit
    _

</llo_original>
